<compile_context>
chip_gen: v6e
topology: v6e:2x2x1
jax: 0.10.0
libtpu: 0.0.40
codegen_flags: <defaults>
</compile_context>

<pallas_src>
import functools

import jax
import jax.numpy as jnp
from jax.experimental import pallas as pl
from jax.experimental.pallas import tpu as pltpu


def _pick_tile(dim, candidates=(512, 256, 128)):
    for c in candidates:
        if dim % c == 0:
            return c
    return dim


# ----------------------------------------------------------------------------
# Kernel 1: out = x @ w + b  (+ optional LeakyReLU).  Used for the final,
# lane-padded ConvTranspose2d.
# ----------------------------------------------------------------------------
def _matmul_bias_kernel(x_ref, w_ref, b_ref, o_ref, *, leaky_slope):
    acc = jnp.dot(x_ref[...], w_ref[...], preferred_element_type=jnp.float32)
    acc = acc + b_ref[...]
    if leaky_slope is not None:
        acc = jnp.where(acc >= 0, acc, leaky_slope * acc)
    o_ref[...] = acc.astype(o_ref.dtype)


def matmul_bias(x, w, b, *, leaky_slope=None, out_dtype=None):
    """x: (M, K), w: (K, N), b: (1, N) -> (M, N)."""
    M, K = x.shape
    K2, N = w.shape
    assert K == K2 and b.shape == (1, N)
    out_dtype = out_dtype if out_dtype is not None else x.dtype

    pad = (-M) % 8
    if pad:
        x = jnp.pad(x, ((0, pad), (0, 0)))
    Mp = M + pad
    tm = _pick_tile(Mp, (256, 128))      # small M -> single full-M block
    tn = _pick_tile(N)

    out = pl.pallas_call(
        functools.partial(_matmul_bias_kernel, leaky_slope=leaky_slope),
        out_shape=jax.ShapeDtypeStruct((Mp, N), out_dtype),
        grid=(Mp // tm, N // tn),
        in_specs=[
            pl.BlockSpec((tm, K), lambda i, j: (i, 0)),
            pl.BlockSpec((K, tn), lambda i, j: (0, j)),
            pl.BlockSpec((1, tn), lambda i, j: (0, j)),
        ],
        out_specs=pl.BlockSpec((tm, tn), lambda i, j: (i, j)),
        compiler_params=pltpu.CompilerParams(
            dimension_semantics=("parallel", "parallel")),
    )(x, w, b)
    return out[:M] if pad else out


# ----------------------------------------------------------------------------
# Kernel 2: fused decoder level
#   out = S @ W_s + (feat @ W_t + b_t) @ W_f + b_up
# (1x1 "trans" conv + channel concat + ConvTranspose 2x2/s2 in one call).
# ----------------------------------------------------------------------------
def _fused_level_kernel(s_ref, f_ref, wt_ref, bt_ref, ws_ref, wf_ref, bu_ref,
                        o_ref):
    # 1x1 conv of the skip feature (tiny recompute per lane tile — M is small)
    t = jnp.dot(f_ref[...], wt_ref[...], preferred_element_type=jnp.float32)
    t = t + bt_ref[...]
    # up-conv as two matmuls on the lane-tiled 4*Cout axis
    acc = jnp.dot(s_ref[...], ws_ref[...], preferred_element_type=jnp.float32)
    acc = acc + jnp.dot(t.astype(wf_ref.dtype), wf_ref[...],
                        preferred_element_type=jnp.float32)
    acc = acc + bu_ref[...]
    o_ref[...] = acc.astype(o_ref.dtype)


def fused_up_level(s2d, f2d, wt, bt, ws, wf, bu, *, out_dtype=jnp.bfloat16):
    """s2d: (M, C_S), f2d: (M, C_F), wt: (C_F, C_T), ws: (C_S, 4*Cout),
    wf: (C_T, 4*Cout), biases (1, C_T) / (1, 4*Cout).  Returns (M, 4*Cout)."""
    M, c_s = s2d.shape
    Mf, c_f = f2d.shape
    assert M == Mf
    c_f2, c_t = wt.shape
    c_s2, n_out = ws.shape
    assert c_f == c_f2 and c_s == c_s2 and wf.shape == (c_t, n_out)
    assert bt.shape == (1, c_t) and bu.shape == (1, n_out)

    pad = (-M) % 8
    if pad:
        s2d = jnp.pad(s2d, ((0, pad), (0, 0)))
        f2d = jnp.pad(f2d, ((0, pad), (0, 0)))
    Mp = M + pad
    tm = _pick_tile(Mp, (256, 128))      # M = 8/32/128 here -> no padding work
    tn = _pick_tile(n_out)               # 512-wide weight tiles -> grid >= 2

    out = pl.pallas_call(
        _fused_level_kernel,
        out_shape=jax.ShapeDtypeStruct((Mp, n_out), out_dtype),
        grid=(Mp // tm, n_out // tn),
        in_specs=[
            pl.BlockSpec((tm, c_s), lambda i, j: (i, 0)),   # S rows
            pl.BlockSpec((tm, c_f), lambda i, j: (i, 0)),   # skip-feature rows
            pl.BlockSpec((c_f, c_t), lambda i, j: (0, 0)),  # 1x1 conv weight
            pl.BlockSpec((1, c_t), lambda i, j: (0, 0)),    # 1x1 conv bias
            pl.BlockSpec((c_s, tn), lambda i, j: (0, j)),   # up weight (S part)
            pl.BlockSpec((c_t, tn), lambda i, j: (0, j)),   # up weight (f part)
            pl.BlockSpec((1, tn), lambda i, j: (0, j)),     # up bias (pre-tiled)
        ],
        out_specs=pl.BlockSpec((tm, tn), lambda i, j: (i, j)),
        compiler_params=pltpu.CompilerParams(
            dimension_semantics=("parallel", "parallel")),
    )(s2d, f2d, wt, bt, ws, wf, bu)
    return out[:M] if pad else out


# ----------------------------------------------------------------------------
# Glue: pixel shuffle for the stride-2 transposed conv (tiny tensors, XLA)
# ----------------------------------------------------------------------------
# TODO(synk): the 2x2 pixel shuffle could be folded into the kernel's output
# DMA, but per-level outputs are <0.5 MB so the extra HBM pass is negligible.
def pixel_shuffle_2x2(y2d, n, h, w, c_out):
    """(N*H*W, 4*Cout) with columns ordered (ki, kj, co) -> (N, 2H, 2W, Cout)."""
    y = y2d.reshape(n, h, w, 2, 2, c_out)
    y = jnp.transpose(y, (0, 1, 3, 2, 4, 5))
    return y.reshape(n, 2 * h, 2 * w, c_out)


# ----------------------------------------------------------------------------
# Parameters: init in the PyTorch layouts, pack ONCE into kernel layouts
# ----------------------------------------------------------------------------
TRANS_SHAPES = [(256, 680), (256, 592), (128, 416)]            # (Cout, Cin)
UP_SHAPES = [(1024 + 256, 512), (512 + 256, 256),              # (Cin, Cout)
             (256 + 128, 256), (256, 1)]
FINAL_LANE_PAD = 128


def init_dep_params(key, scale=0.02):
    params = {"trans": [], "up": []}
    for (c_out, c_in) in TRANS_SHAPES:
        key, kw = jax.random.split(key)
        params["trans"].append({
            "w": scale * jax.random.normal(kw, (c_out, c_in, 1, 1), jnp.float32),
            "b": jnp.zeros((c_out,), jnp.float32),
        })
    for (c_in, c_out) in UP_SHAPES:
        key, kw = jax.random.split(key)
        params["up"].append({
            "w": scale * jax.random.normal(kw, (c_in, c_out, 2, 2), jnp.float32),
            "b": jnp.zeros((c_out,), jnp.float32),
        })
    return params


def pack_dep_params(raw):
    """One-time (outside jit) layout conversion: pre-transpose / pre-split
    weights, pre-tile biases, cast weights to bf16, lane-pad the final layer."""
    packed = {"level": [], "final": None}
    for i in range(3):
        wt = jnp.transpose(raw["trans"][i]["w"][:, :, 0, 0], (1, 0))   # (Cf, Ct)
        bt = raw["trans"][i]["b"].reshape(1, -1).astype(jnp.float32)
        c_t = wt.shape[1]
        wu = raw["up"][i]["w"]                                         # (Cin, Cout, 2, 2)
        c_in, c_out = wu.shape[0], wu.shape[1]
        c_s = c_in - c_t
        wu = jnp.transpose(wu, (0, 2, 3, 1)).reshape(c_in, 4 * c_out)  # (Cin, 4*Cout)
        bu = jnp.tile(raw["up"][i]["b"], 4).reshape(1, -1).astype(jnp.float32)
        packed["level"].append({
            "wt": wt.astype(jnp.bfloat16), "bt": bt,
            "ws": wu[:c_s].astype(jnp.bfloat16),     # rows for S (cat order: S first)
            "wf": wu[c_s:].astype(jnp.bfloat16),     # rows for the trans feature
            "bu": bu,
        })
    wu = raw["up"][3]["w"]                                             # (256, 1, 2, 2)
    c_in, c_out = wu.shape[0], wu.shape[1]
    w_mat = jnp.transpose(wu, (0, 2, 3, 1)).reshape(c_in, 4 * c_out)
    b_vec = jnp.tile(raw["up"][3]["b"], 4)
    w_pad = jnp.zeros((c_in, FINAL_LANE_PAD), jnp.float32)
    w_pad = w_pad.at[:, :4 * c_out].set(w_mat).astype(jnp.bfloat16)
    b_pad = jnp.zeros((1, FINAL_LANE_PAD), jnp.float32)
    b_pad = b_pad.at[:, :4 * c_out].set(b_vec)
    packed["final"] = {"w": w_pad, "b": b_pad}
    return packed


# ----------------------------------------------------------------------------
# DEP forward (NCHW in / NCHW out, matching the PyTorch module)
# ----------------------------------------------------------------------------
def dep_forward(params, features, x_in):
    to_nhwc = lambda a: jnp.transpose(a, (0, 2, 3, 1))
    n_lvl = len(features)

    S = to_nhwc(x_in).astype(jnp.bfloat16)
    for i in range(n_lvl):
        j = n_lvl - 1 - i
        lvl = params["level"][i]
        f = to_nhwc(features[j]).astype(jnp.bfloat16)
        nb, h, w, c_s = S.shape
        c_f = f.shape[-1]
        c_out = lvl["ws"].shape[1] // 4
        y = fused_up_level(S.reshape(nb * h * w, c_s),
                           f.reshape(nb * h * w, c_f),
                           lvl["wt"], lvl["bt"], lvl["ws"], lvl["wf"], lvl["bu"])
        S = pixel_shuffle_2x2(y, nb, h, w, c_out)

    # Final ConvTranspose2d(256 -> 1) + LeakyReLU(0.01); weight lane-padded to
    # 128 columns at pack time (real columns are the first 4 = 2*2*Cout).
    fin = params["final"]
    nb, h, w, c_s = S.shape
    y = matmul_bias(S.reshape(nb * h * w, c_s), fin["w"], fin["b"],
                    leaky_slope=0.01, out_dtype=jnp.float32)
    y = y[:, :4]
    S = pixel_shuffle_2x2(y, nb, h, w, 1)
    return jnp.transpose(S, (0, 3, 1, 2))


# Pure-JAX reference mirroring the same bf16 cast points (sanity check only).
def dep_forward_ref(params, features, x_in):
    to_nhwc = lambda a: jnp.transpose(a, (0, 2, 3, 1))
    n_lvl = len(features)
    S = to_nhwc(x_in).astype(jnp.bfloat16)
    for i in range(n_lvl):
        j = n_lvl - 1 - i
        lvl = params["level"][i]
        f = to_nhwc(features[j]).astype(jnp.bfloat16)
        nb, h, w, c_s = S.shape
        c_out = lvl["ws"].shape[1] // 4
        s2 = S.reshape(nb * h * w, c_s)
        f2 = f.reshape(nb * h * w, -1)
        t = jnp.dot(f2, lvl["wt"], preferred_element_type=jnp.float32) + lvl["bt"]
        y = jnp.dot(s2, lvl["ws"], preferred_element_type=jnp.float32)
        y = y + jnp.dot(t.astype(jnp.bfloat16), lvl["wf"],
                        preferred_element_type=jnp.float32)
        y = (y + lvl["bu"]).astype(jnp.bfloat16)
        S = pixel_shuffle_2x2(y, nb, h, w, c_out)
    fin = params["final"]
    nb, h, w, c_s = S.shape
    y = jnp.dot(S.reshape(nb * h * w, c_s), fin["w"],
                preferred_element_type=jnp.float32) + fin["b"]
    y = jnp.where(y >= 0, y, 0.01 * y)[:, :4]
    S = pixel_shuffle_2x2(y, nb, h, w, 1)
    return jnp.transpose(S, (0, 3, 1, 2))


if __name__ == "__main__":
    key = jax.random.PRNGKey(0)
    kp, k0, k1, k2, k3 = jax.random.split(key, 5)

    raw_params = init_dep_params(kp)
    params = pack_dep_params(raw_params)        # one-time layout/bf16 packing

    batch, h = 2, 2  # deepest spatial resolution
    x_in = 0.1 * jax.random.normal(k0, (batch, 1024, h, h), jnp.float32)
    features = [
        0.1 * jax.random.normal(k1, (batch, 416, 4 * h, 4 * h), jnp.float32),
        0.1 * jax.random.normal(k2, (batch, 592, 2 * h, 2 * h), jnp.float32),
        0.1 * jax.random.normal(k3, (batch, 680, h, h), jnp.float32),
    ]

    out = jax.jit(dep_forward)(params, features, x_in)
    out = jax.block_until_ready(out)
    assert out.shape == (batch, 1, 16 * h, 16 * h), out.shape

    ref = jax.block_until_ready(jax.jit(dep_forward_ref)(params, features, x_in))
    assert jnp.allclose(out, ref, atol=1e-2, rtol=1e-2), "mismatch vs reference"

    print("KERNEL_OK")
</pallas_src>

<mosaic_0001>
module attributes {stable_mosaic.version = 11 : i64} {
  func.func @_fused_level_kernel(%arg0: i32, %arg1: i32, %arg2: memref<8x1024xbf16, #tpu.memory_space<vmem>>, %arg3: memref<8x680xbf16, #tpu.memory_space<vmem>>, %arg4: memref<680x256xbf16, #tpu.memory_space<vmem>>, %arg5: memref<1x256xf32, #tpu.memory_space<vmem>>, %arg6: memref<1024x512xbf16, #tpu.memory_space<vmem>>, %arg7: memref<256x512xbf16, #tpu.memory_space<vmem>>, %arg8: memref<1x512xf32, #tpu.memory_space<vmem>>, %arg9: memref<8x512xbf16, #tpu.memory_space<vmem>>) attributes {dimension_semantics = [#tpu.dimension_semantics<parallel>, #tpu.dimension_semantics<parallel>], iteration_bounds = array<i64: 1, 4>, scalar_prefetch = 0 : i64, scratch_operands = 0 : i64, tpu.core_type = #tpu.core_type<tc>, window_params = [{transform_indices = @transform_0, window_bounds = array<i64: 8, 1024>}, {transform_indices = @transform_1, window_bounds = array<i64: 8, 680>}, {pipeline_mode = #tpu.pipeline_mode<synchronous>, transform_indices = @transform_2, window_bounds = array<i64: 680, 256>}, {pipeline_mode = #tpu.pipeline_mode<synchronous>, transform_indices = @transform_3, window_bounds = array<i64: 1, 256>}, {transform_indices = @transform_4, window_bounds = array<i64: 1024, 512>}, {transform_indices = @transform_5, window_bounds = array<i64: 256, 512>}, {transform_indices = @transform_6, window_bounds = array<i64: 1, 512>}, {transform_indices = @transform_7, window_bounds = array<i64: 8, 512>}]} {
    %c0 = arith.constant 0 : index
    %c0_0 = arith.constant 0 : index
    %0 = vector.load %arg3[%c0, %c0_0] : memref<8x680xbf16, #tpu.memory_space<vmem>>, vector<8x680xbf16>
    %c0_1 = arith.constant 0 : index
    %c0_2 = arith.constant 0 : index
    %1 = vector.load %arg4[%c0_1, %c0_2] : memref<680x256xbf16, #tpu.memory_space<vmem>>, vector<680x256xbf16>
    %cst = arith.constant dense<0.000000e+00> : vector<8x256xf32>
    %2 = tpu.matmul %0, %1, %cst {dimension_numbers = #tpu.dot_dimension_numbers<[1], [0], [0], [1], [0, 0, 1, 1], [], []>} : vector<8x680xbf16>, vector<680x256xbf16>, vector<8x256xf32> -> vector<8x256xf32>
    %c0_3 = arith.constant 0 : index
    %c0_4 = arith.constant 0 : index
    %3 = vector.load %arg5[%c0_3, %c0_4] : memref<1x256xf32, #tpu.memory_space<vmem>>, vector<1x256xf32>
    %4 = vector.broadcast %3 : vector<1x256xf32> to vector<8x256xf32>
    %5 = arith.addf %2, %4 : vector<8x256xf32>
    %c0_5 = arith.constant 0 : index
    %c0_6 = arith.constant 0 : index
    %6 = vector.load %arg2[%c0_5, %c0_6] : memref<8x1024xbf16, #tpu.memory_space<vmem>>, vector<8x1024xbf16>
    %c0_7 = arith.constant 0 : index
    %c0_8 = arith.constant 0 : index
    %7 = vector.load %arg6[%c0_7, %c0_8] : memref<1024x512xbf16, #tpu.memory_space<vmem>>, vector<1024x512xbf16>
    %cst_9 = arith.constant dense<0.000000e+00> : vector<8x512xf32>
    %8 = tpu.matmul %6, %7, %cst_9 {dimension_numbers = #tpu.dot_dimension_numbers<[1], [0], [0], [1], [0, 0, 1, 1], [], []>} : vector<8x1024xbf16>, vector<1024x512xbf16>, vector<8x512xf32> -> vector<8x512xf32>
    %9 = arith.truncf %5 : vector<8x256xf32> to vector<8x256xbf16>
    %c0_10 = arith.constant 0 : index
    %c0_11 = arith.constant 0 : index
    %10 = vector.load %arg7[%c0_10, %c0_11] : memref<256x512xbf16, #tpu.memory_space<vmem>>, vector<256x512xbf16>
    %cst_12 = arith.constant dense<0.000000e+00> : vector<8x512xf32>
    %11 = tpu.matmul %9, %10, %cst_12 {dimension_numbers = #tpu.dot_dimension_numbers<[1], [0], [0], [1], [0, 0, 1, 1], [], []>} : vector<8x256xbf16>, vector<256x512xbf16>, vector<8x512xf32> -> vector<8x512xf32>
    %12 = arith.addf %8, %11 : vector<8x512xf32>
    %c0_13 = arith.constant 0 : index
    %c0_14 = arith.constant 0 : index
    %13 = vector.load %arg8[%c0_13, %c0_14] : memref<1x512xf32, #tpu.memory_space<vmem>>, vector<1x512xf32>
    %14 = vector.broadcast %13 : vector<1x512xf32> to vector<8x512xf32>
    %15 = arith.addf %12, %14 : vector<8x512xf32>
    %16 = arith.truncf %15 : vector<8x512xf32> to vector<8x512xbf16>
    %c0_15 = arith.constant 0 : index
    %c0_16 = arith.constant 0 : index
    %17 = vector.load %arg9[%c0_15, %c0_16] : memref<8x512xbf16, #tpu.memory_space<vmem>>, vector<8x512xbf16>
    tpu.vector_store %arg9[%c0_15, %c0_16], %16 {strides = array<i32>} : memref<8x512xbf16, #tpu.memory_space<vmem>>, vector<8x512xbf16>,
    return
  }
  func.func @transform_0(%arg0: i32, %arg1: i32) -> (i32, i32) {
    %c0_i32 = arith.constant 0 : i32
    %c0_i32_0 = arith.constant 0 : i32
    return %arg0, %c0_i32 : i32, i32
  }
  func.func @transform_1(%arg0: i32, %arg1: i32) -> (i32, i32) {
    %c0_i32 = arith.constant 0 : i32
    %c0_i32_0 = arith.constant 0 : i32
    return %arg0, %c0_i32 : i32, i32
  }
  func.func @transform_2(%arg0: i32, %arg1: i32) -> (i32, i32) {
    %c0_i32 = arith.constant 0 : i32
    %c0_i32_0 = arith.constant 0 : i32
    %c0_i32_1 = arith.constant 0 : i32
    return %c0_i32, %c0_i32_0 : i32, i32
  }
  func.func @transform_3(%arg0: i32, %arg1: i32) -> (i32, i32) {
    %c0_i32 = arith.constant 0 : i32
    %c0_i32_0 = arith.constant 0 : i32
    %c0_i32_1 = arith.constant 0 : i32
    return %c0_i32, %c0_i32_0 : i32, i32
  }
  func.func @transform_4(%arg0: i32, %arg1: i32) -> (i32, i32) {
    %c0_i32 = arith.constant 0 : i32
    %c0_i32_0 = arith.constant 0 : i32
    return %c0_i32, %arg1 : i32, i32
  }
  func.func @transform_5(%arg0: i32, %arg1: i32) -> (i32, i32) {
    %c0_i32 = arith.constant 0 : i32
    %c0_i32_0 = arith.constant 0 : i32
    return %c0_i32, %arg1 : i32, i32
  }
  func.func @transform_6(%arg0: i32, %arg1: i32) -> (i32, i32) {
    %c0_i32 = arith.constant 0 : i32
    %c0_i32_0 = arith.constant 0 : i32
    return %c0_i32, %arg1 : i32, i32
  }
  func.func @transform_7(%arg0: i32, %arg1: i32) -> (i32, i32) {
    %c0_i32 = arith.constant 0 : i32
    return %arg0, %arg1 : i32, i32
  }
}

module attributes {stable_mosaic.version = 11 : i64} {
  func.func @_fused_level_kernel(%arg0: i32, %arg1: i32, %arg2: memref<32x512xbf16, #tpu.memory_space<vmem>>, %arg3: memref<32x592xbf16, #tpu.memory_space<vmem>>, %arg4: memref<592x256xbf16, #tpu.memory_space<vmem>>, %arg5: memref<1x256xf32, #tpu.memory_space<vmem>>, %arg6: memref<512x512xbf16, #tpu.memory_space<vmem>>, %arg7: memref<256x512xbf16, #tpu.memory_space<vmem>>, %arg8: memref<1x512xf32, #tpu.memory_space<vmem>>, %arg9: memref<32x512xbf16, #tpu.memory_space<vmem>>) attributes {dimension_semantics = [#tpu.dimension_semantics<parallel>, #tpu.dimension_semantics<parallel>], iteration_bounds = array<i64: 1, 2>, scalar_prefetch = 0 : i64, scratch_operands = 0 : i64, tpu.core_type = #tpu.core_type<tc>, window_params = [{transform_indices = @transform_0, window_bounds = array<i64: 32, 512>}, {transform_indices = @transform_1, window_bounds = array<i64: 32, 592>}, {pipeline_mode = #tpu.pipeline_mode<synchronous>, transform_indices = @transform_2, window_bounds = array<i64: 592, 256>}, {pipeline_mode = #tpu.pipeline_mode<synchronous>, transform_indices = @transform_3, window_bounds = array<i64: 1, 256>}, {transform_indices = @transform_4, window_bounds = array<i64: 512, 512>}, {transform_indices = @transform_5, window_bounds = array<i64: 256, 512>}, {transform_indices = @transform_6, window_bounds = array<i64: 1, 512>}, {transform_indices = @transform_7, window_bounds = array<i64: 32, 512>}]} {
    %c0 = arith.constant 0 : index
    %c0_0 = arith.constant 0 : index
    %0 = vector.load %arg3[%c0, %c0_0] : memref<32x592xbf16, #tpu.memory_space<vmem>>, vector<32x592xbf16>
    %c0_1 = arith.constant 0 : index
    %c0_2 = arith.constant 0 : index
    %1 = vector.load %arg4[%c0_1, %c0_2] : memref<592x256xbf16, #tpu.memory_space<vmem>>, vector<592x256xbf16>
    %cst = arith.constant dense<0.000000e+00> : vector<32x256xf32>
    %2 = tpu.matmul %0, %1, %cst {dimension_numbers = #tpu.dot_dimension_numbers<[1], [0], [0], [1], [0, 0, 1, 1], [], []>} : vector<32x592xbf16>, vector<592x256xbf16>, vector<32x256xf32> -> vector<32x256xf32>
    %c0_3 = arith.constant 0 : index
    %c0_4 = arith.constant 0 : index
    %3 = vector.load %arg5[%c0_3, %c0_4] : memref<1x256xf32, #tpu.memory_space<vmem>>, vector<1x256xf32>
    %4 = vector.broadcast %3 : vector<1x256xf32> to vector<32x256xf32>
    %5 = arith.addf %2, %4 : vector<32x256xf32>
    %c0_5 = arith.constant 0 : index
    %c0_6 = arith.constant 0 : index
    %6 = vector.load %arg2[%c0_5, %c0_6] : memref<32x512xbf16, #tpu.memory_space<vmem>>, vector<32x512xbf16>
    %c0_7 = arith.constant 0 : index
    %c0_8 = arith.constant 0 : index
    %7 = vector.load %arg6[%c0_7, %c0_8] : memref<512x512xbf16, #tpu.memory_space<vmem>>, vector<512x512xbf16>
    %cst_9 = arith.constant dense<0.000000e+00> : vector<32x512xf32>
    %8 = tpu.matmul %6, %7, %cst_9 {dimension_numbers = #tpu.dot_dimension_numbers<[1], [0], [0], [1], [0, 0, 1, 1], [], []>} : vector<32x512xbf16>, vector<512x512xbf16>, vector<32x512xf32> -> vector<32x512xf32>
    %9 = arith.truncf %5 : vector<32x256xf32> to vector<32x256xbf16>
    %c0_10 = arith.constant 0 : index
    %c0_11 = arith.constant 0 : index
    %10 = vector.load %arg7[%c0_10, %c0_11] : memref<256x512xbf16, #tpu.memory_space<vmem>>, vector<256x512xbf16>
    %cst_12 = arith.constant dense<0.000000e+00> : vector<32x512xf32>
    %11 = tpu.matmul %9, %10, %cst_12 {dimension_numbers = #tpu.dot_dimension_numbers<[1], [0], [0], [1], [0, 0, 1, 1], [], []>} : vector<32x256xbf16>, vector<256x512xbf16>, vector<32x512xf32> -> vector<32x512xf32>
    %12 = arith.addf %8, %11 : vector<32x512xf32>
    %c0_13 = arith.constant 0 : index
    %c0_14 = arith.constant 0 : index
    %13 = vector.load %arg8[%c0_13, %c0_14] : memref<1x512xf32, #tpu.memory_space<vmem>>, vector<1x512xf32>
    %14 = vector.broadcast %13 : vector<1x512xf32> to vector<32x512xf32>
    %15 = arith.addf %12, %14 : vector<32x512xf32>
    %16 = arith.truncf %15 : vector<32x512xf32> to vector<32x512xbf16>
    %c0_15 = arith.constant 0 : index
    %c0_16 = arith.constant 0 : index
    %17 = vector.load %arg9[%c0_15, %c0_16] : memref<32x512xbf16, #tpu.memory_space<vmem>>, vector<32x512xbf16>
    tpu.vector_store %arg9[%c0_15, %c0_16], %16 {strides = array<i32>} : memref<32x512xbf16, #tpu.memory_space<vmem>>, vector<32x512xbf16>,
    return
  }
  func.func @transform_0(%arg0: i32, %arg1: i32) -> (i32, i32) {
    %c0_i32 = arith.constant 0 : i32
    %c0_i32_0 = arith.constant 0 : i32
    return %arg0, %c0_i32 : i32, i32
  }
  func.func @transform_1(%arg0: i32, %arg1: i32) -> (i32, i32) {
    %c0_i32 = arith.constant 0 : i32
    %c0_i32_0 = arith.constant 0 : i32
    return %arg0, %c0_i32 : i32, i32
  }
  func.func @transform_2(%arg0: i32, %arg1: i32) -> (i32, i32) {
    %c0_i32 = arith.constant 0 : i32
    %c0_i32_0 = arith.constant 0 : i32
    %c0_i32_1 = arith.constant 0 : i32
    return %c0_i32, %c0_i32_0 : i32, i32
  }
  func.func @transform_3(%arg0: i32, %arg1: i32) -> (i32, i32) {
    %c0_i32 = arith.constant 0 : i32
    %c0_i32_0 = arith.constant 0 : i32
    %c0_i32_1 = arith.constant 0 : i32
    return %c0_i32, %c0_i32_0 : i32, i32
  }
  func.func @transform_4(%arg0: i32, %arg1: i32) -> (i32, i32) {
    %c0_i32 = arith.constant 0 : i32
    %c0_i32_0 = arith.constant 0 : i32
    return %c0_i32, %arg1 : i32, i32
  }
  func.func @transform_5(%arg0: i32, %arg1: i32) -> (i32, i32) {
    %c0_i32 = arith.constant 0 : i32
    %c0_i32_0 = arith.constant 0 : i32
    return %c0_i32, %arg1 : i32, i32
  }
  func.func @transform_6(%arg0: i32, %arg1: i32) -> (i32, i32) {
    %c0_i32 = arith.constant 0 : i32
    %c0_i32_0 = arith.constant 0 : i32
    return %c0_i32, %arg1 : i32, i32
  }
  func.func @transform_7(%arg0: i32, %arg1: i32) -> (i32, i32) {
    %c0_i32 = arith.constant 0 : i32
    return %arg0, %arg1 : i32, i32
  }
}

module attributes {stable_mosaic.version = 11 : i64} {
  func.func @_fused_level_kernel(%arg0: i32, %arg1: i32, %arg2: memref<128x256xbf16, #tpu.memory_space<vmem>>, %arg3: memref<128x416xbf16, #tpu.memory_space<vmem>>, %arg4: memref<416x128xbf16, #tpu.memory_space<vmem>>, %arg5: memref<1x128xf32, #tpu.memory_space<vmem>>, %arg6: memref<256x512xbf16, #tpu.memory_space<vmem>>, %arg7: memref<128x512xbf16, #tpu.memory_space<vmem>>, %arg8: memref<1x512xf32, #tpu.memory_space<vmem>>, %arg9: memref<128x512xbf16, #tpu.memory_space<vmem>>) attributes {dimension_semantics = [#tpu.dimension_semantics<parallel>, #tpu.dimension_semantics<parallel>], iteration_bounds = array<i64: 1, 2>, scalar_prefetch = 0 : i64, scratch_operands = 0 : i64, tpu.core_type = #tpu.core_type<tc>, window_params = [{transform_indices = @transform_0, window_bounds = array<i64: 128, 256>}, {transform_indices = @transform_1, window_bounds = array<i64: 128, 416>}, {pipeline_mode = #tpu.pipeline_mode<synchronous>, transform_indices = @transform_2, window_bounds = array<i64: 416, 128>}, {pipeline_mode = #tpu.pipeline_mode<synchronous>, transform_indices = @transform_3, window_bounds = array<i64: 1, 128>}, {transform_indices = @transform_4, window_bounds = array<i64: 256, 512>}, {transform_indices = @transform_5, window_bounds = array<i64: 128, 512>}, {transform_indices = @transform_6, window_bounds = array<i64: 1, 512>}, {transform_indices = @transform_7, window_bounds = array<i64: 128, 512>}]} {
    %c0 = arith.constant 0 : index
    %c0_0 = arith.constant 0 : index
    %0 = vector.load %arg3[%c0, %c0_0] : memref<128x416xbf16, #tpu.memory_space<vmem>>, vector<128x416xbf16>
    %c0_1 = arith.constant 0 : index
    %c0_2 = arith.constant 0 : index
    %1 = vector.load %arg4[%c0_1, %c0_2] : memref<416x128xbf16, #tpu.memory_space<vmem>>, vector<416x128xbf16>
    %cst = arith.constant dense<0.000000e+00> : vector<128x128xf32>
    %2 = tpu.matmul %0, %1, %cst {dimension_numbers = #tpu.dot_dimension_numbers<[1], [0], [0], [1], [0, 0, 1, 1], [], []>} : vector<128x416xbf16>, vector<416x128xbf16>, vector<128x128xf32> -> vector<128x128xf32>
    %c0_3 = arith.constant 0 : index
    %c0_4 = arith.constant 0 : index
    %3 = vector.load %arg5[%c0_3, %c0_4] : memref<1x128xf32, #tpu.memory_space<vmem>>, vector<1x128xf32>
    %4 = vector.broadcast %3 : vector<1x128xf32> to vector<128x128xf32>
    %5 = arith.addf %2, %4 : vector<128x128xf32>
    %c0_5 = arith.constant 0 : index
    %c0_6 = arith.constant 0 : index
    %6 = vector.load %arg2[%c0_5, %c0_6] : memref<128x256xbf16, #tpu.memory_space<vmem>>, vector<128x256xbf16>
    %c0_7 = arith.constant 0 : index
    %c0_8 = arith.constant 0 : index
    %7 = vector.load %arg6[%c0_7, %c0_8] : memref<256x512xbf16, #tpu.memory_space<vmem>>, vector<256x512xbf16>
    %cst_9 = arith.constant dense<0.000000e+00> : vector<128x512xf32>
    %8 = tpu.matmul %6, %7, %cst_9 {dimension_numbers = #tpu.dot_dimension_numbers<[1], [0], [0], [1], [0, 0, 1, 1], [], []>} : vector<128x256xbf16>, vector<256x512xbf16>, vector<128x512xf32> -> vector<128x512xf32>
    %9 = arith.truncf %5 : vector<128x128xf32> to vector<128x128xbf16>
    %c0_10 = arith.constant 0 : index
    %c0_11 = arith.constant 0 : index
    %10 = vector.load %arg7[%c0_10, %c0_11] : memref<128x512xbf16, #tpu.memory_space<vmem>>, vector<128x512xbf16>
    %cst_12 = arith.constant dense<0.000000e+00> : vector<128x512xf32>
    %11 = tpu.matmul %9, %10, %cst_12 {dimension_numbers = #tpu.dot_dimension_numbers<[1], [0], [0], [1], [0, 0, 1, 1], [], []>} : vector<128x128xbf16>, vector<128x512xbf16>, vector<128x512xf32> -> vector<128x512xf32>
    %12 = arith.addf %8, %11 : vector<128x512xf32>
    %c0_13 = arith.constant 0 : index
    %c0_14 = arith.constant 0 : index
    %13 = vector.load %arg8[%c0_13, %c0_14] : memref<1x512xf32, #tpu.memory_space<vmem>>, vector<1x512xf32>
    %14 = vector.broadcast %13 : vector<1x512xf32> to vector<128x512xf32>
    %15 = arith.addf %12, %14 : vector<128x512xf32>
    %16 = arith.truncf %15 : vector<128x512xf32> to vector<128x512xbf16>
    %c0_15 = arith.constant 0 : index
    %c0_16 = arith.constant 0 : index
    %17 = vector.load %arg9[%c0_15, %c0_16] : memref<128x512xbf16, #tpu.memory_space<vmem>>, vector<128x512xbf16>
    tpu.vector_store %arg9[%c0_15, %c0_16], %16 {strides = array<i32>} : memref<128x512xbf16, #tpu.memory_space<vmem>>, vector<128x512xbf16>,
    return
  }
  func.func @transform_0(%arg0: i32, %arg1: i32) -> (i32, i32) {
    %c0_i32 = arith.constant 0 : i32
    %c0_i32_0 = arith.constant 0 : i32
    return %arg0, %c0_i32 : i32, i32
  }
  func.func @transform_1(%arg0: i32, %arg1: i32) -> (i32, i32) {
    %c0_i32 = arith.constant 0 : i32
    %c0_i32_0 = arith.constant 0 : i32
    return %arg0, %c0_i32 : i32, i32
  }
  func.func @transform_2(%arg0: i32, %arg1: i32) -> (i32, i32) {
    %c0_i32 = arith.constant 0 : i32
    %c0_i32_0 = arith.constant 0 : i32
    %c0_i32_1 = arith.constant 0 : i32
    return %c0_i32, %c0_i32_0 : i32, i32
  }
  func.func @transform_3(%arg0: i32, %arg1: i32) -> (i32, i32) {
    %c0_i32 = arith.constant 0 : i32
    %c0_i32_0 = arith.constant 0 : i32
    %c0_i32_1 = arith.constant 0 : i32
    return %c0_i32, %c0_i32_0 : i32, i32
  }
  func.func @transform_4(%arg0: i32, %arg1: i32) -> (i32, i32) {
    %c0_i32 = arith.constant 0 : i32
    %c0_i32_0 = arith.constant 0 : i32
    return %c0_i32, %arg1 : i32, i32
  }
  func.func @transform_5(%arg0: i32, %arg1: i32) -> (i32, i32) {
    %c0_i32 = arith.constant 0 : i32
    %c0_i32_0 = arith.constant 0 : i32
    return %c0_i32, %arg1 : i32, i32
  }
  func.func @transform_6(%arg0: i32, %arg1: i32) -> (i32, i32) {
    %c0_i32 = arith.constant 0 : i32
    %c0_i32_0 = arith.constant 0 : i32
    return %c0_i32, %arg1 : i32, i32
  }
  func.func @transform_7(%arg0: i32, %arg1: i32) -> (i32, i32) {
    %c0_i32 = arith.constant 0 : i32
    return %arg0, %arg1 : i32, i32
  }
}

module attributes {stable_mosaic.version = 11 : i64} {
  func.func @_matmul_bias_kernel(%arg0: i32, %arg1: i32, %arg2: memref<256x256xbf16, #tpu.memory_space<vmem>>, %arg3: memref<256x128xbf16, #tpu.memory_space<vmem>>, %arg4: memref<1x128xf32, #tpu.memory_space<vmem>>, %arg5: memref<256x128xf32, #tpu.memory_space<vmem>>) attributes {dimension_semantics = [#tpu.dimension_semantics<parallel>, #tpu.dimension_semantics<parallel>], iteration_bounds = array<i64: 2, 1>, scalar_prefetch = 0 : i64, scratch_operands = 0 : i64, tpu.core_type = #tpu.core_type<tc>, window_params = [{transform_indices = @transform_0, window_bounds = array<i64: 256, 256>}, {transform_indices = @transform_1, window_bounds = array<i64: 256, 128>}, {transform_indices = @transform_2, window_bounds = array<i64: 1, 128>}, {transform_indices = @transform_3, window_bounds = array<i64: 256, 128>}]} {
    %c0 = arith.constant 0 : index
    %c0_0 = arith.constant 0 : index
    %0 = vector.load %arg2[%c0, %c0_0] : memref<256x256xbf16, #tpu.memory_space<vmem>>, vector<256x256xbf16>
    %c0_1 = arith.constant 0 : index
    %c0_2 = arith.constant 0 : index
    %1 = vector.load %arg3[%c0_1, %c0_2] : memref<256x128xbf16, #tpu.memory_space<vmem>>, vector<256x128xbf16>
    %cst = arith.constant dense<0.000000e+00> : vector<256x128xf32>
    %2 = tpu.matmul %0, %1, %cst {dimension_numbers = #tpu.dot_dimension_numbers<[1], [0], [0], [1], [0, 0, 1, 1], [], []>} : vector<256x256xbf16>, vector<256x128xbf16>, vector<256x128xf32> -> vector<256x128xf32>
    %c0_3 = arith.constant 0 : index
    %c0_4 = arith.constant 0 : index
    %3 = vector.load %arg4[%c0_3, %c0_4] : memref<1x128xf32, #tpu.memory_space<vmem>>, vector<1x128xf32>
    %4 = vector.broadcast %3 : vector<1x128xf32> to vector<256x128xf32>
    %5 = arith.addf %2, %4 : vector<256x128xf32>
    %cst_5 = arith.constant 0.000000e+00 : f32
    %6 = vector.broadcast %cst_5 : f32 to vector<256x128xf32>
    %7 = arith.cmpf oge, %5, %6 : vector<256x128xf32>
    %cst_6 = arith.constant 0.00999999977 : f32
    %8 = vector.broadcast %cst_6 : f32 to vector<256x128xf32>
    %9 = arith.mulf %8, %5 : vector<256x128xf32>
    %10 = arith.select %7, %5, %9 : vector<256x128xi1>, vector<256x128xf32>
    %c0_7 = arith.constant 0 : index
    %c0_8 = arith.constant 0 : index
    %11 = vector.load %arg5[%c0_7, %c0_8] : memref<256x128xf32, #tpu.memory_space<vmem>>, vector<256x128xf32>
    tpu.vector_store %arg5[%c0_7, %c0_8], %10 {strides = array<i32>} : memref<256x128xf32, #tpu.memory_space<vmem>>, vector<256x128xf32>,
    return
  }
  func.func @transform_0(%arg0: i32, %arg1: i32) -> (i32, i32) {
    %c0_i32 = arith.constant 0 : i32
    %c0_i32_0 = arith.constant 0 : i32
    return %arg0, %c0_i32 : i32, i32
  }
  func.func @transform_1(%arg0: i32, %arg1: i32) -> (i32, i32) {
    %c0_i32 = arith.constant 0 : i32
    %c0_i32_0 = arith.constant 0 : i32
    return %c0_i32, %arg1 : i32, i32
  }
  func.func @transform_2(%arg0: i32, %arg1: i32) -> (i32, i32) {
    %c0_i32 = arith.constant 0 : i32
    %c0_i32_0 = arith.constant 0 : i32
    return %c0_i32, %arg1 : i32, i32
  }
  func.func @transform_3(%arg0: i32, %arg1: i32) -> (i32, i32) {
    %c0_i32 = arith.constant 0 : i32
    return %arg0, %arg1 : i32, i32
  }
}

</mosaic_0001>

<llo_original>
// kernel: dep_forward.6
$region0: #{dep_forward.6}
  #allocation0 [shape = 'u32[]', space=smem, size = 0x4, offset = 0x4, fixed_abs, tag = 'smem constant byte address 0x4 - core index']
  #allocation1 [shape = 'u32[144,128]{1,0:T(1,128)}', space=vmem, size = 0x12000, scoped, tag = 'internal scratch']
  %s0 = inlined_call_operand.vmem [shape: bf16[128,256], index: 0, kind: input, shape index: {}]
  %s1 = inlined_call_operand.vmem [shape: bf16[128,416], index: 1, kind: input, shape index: {}]
  %s2 = inlined_call_operand.vmem [shape: bf16[416,128], index: 2, kind: input, shape index: {}]
  %s3 = inlined_call_operand.vmem [shape: f32[1,128], index: 3, kind: input, shape index: {}]
  %s4 = inlined_call_operand.vmem [shape: bf16[256,1024], index: 4, kind: input, shape index: {}]
  %s5 = inlined_call_operand.vmem [shape: bf16[128,1024], index: 5, kind: input, shape index: {}]
  %s6 = inlined_call_operand.vmem [shape: f32[1,1024], index: 6, kind: input, shape index: {}]
  %s7 = inlined_call_operand.vmem [shape: bf16[128,1024], index: 7, kind: output, shape index: {}]
  %s8 = sld [smem:[#allocation0]]
  $region126: #{dep_forward.6} parent=0
    _
  %s10 = ssub.s32 1, %s8
  %s11 = scalar_select 0, %s10, %s8
  $region1: #{dep_forward.6} parent=0
    #allocation2 [shape = 'u8[524288]{0}', space=vmem, size = 0x80000, scoped, tag = 'input window, operand 4']
    #allocation3 [shape = 'u8[262144]{0}', space=vmem, size = 0x40000, scoped, tag = 'input window, operand 5']
    #allocation4 [shape = 'u8[262144]{0}', space=vmem, size = 0x40000, scoped, tag = 'output window, operand 0']
    loop: start=0, step=1, limit=4
    $region2: #{dep_forward.6} parent=1 // loop_pre_header
      _
    $region3: #{dep_forward.6} parent=1 // loop_header
      %s13 = sphi 0, %s17
      %p14 = scmp.ge.s32.totalorder %s13, 4
      %s20 = sphi 0, %s32
      %s21 = sphi 0, %s28
      %s22 = sphi 0, %s20
      %s23 = sphi 0, %s21
      %s24 = sphi 0, %s22
      %s25 = sphi 0, %s23
      %s35 = sphi 0, %s37
      %s38 = sphi 0, %s35
      %s39 = sphi 0, %s38
      %s55 = sphi 0, %s39
      %s61 = sphi 0, %s63
      %s64 = sphi 0, %s61
      %s65 = sphi 0, %s64
      %s81 = sphi 0, %s65
      %s85 = sphi 0, %s85
      %s87 = sphi 0, %s85
      %s88 = sphi 0, %s87
      %s102 = sphi 0, %s88
      %s106 = sphi 0, %s106
      %s108 = sphi 0, %s106
      %s109 = sphi 0, %s108
      %s123 = sphi 0, %s109
      %s129 = sphi 0, %s131
      %s132 = sphi 0, %s129
      %s133 = sphi 0, %s132
      %s149 = sphi 0, %s133
      %s155 = sphi 0, %s157
      %s158 = sphi 0, %s155
      %s159 = sphi 0, %s158
      %s175 = sphi 0, %s159
      %s181 = sphi 0, %s183
      %s184 = sphi 0, %s181
      %s185 = sphi 0, %s184
      %s201 = sphi 0, %s185
      %s209 = sphi 0, %s211
      %s212 = sphi 0, %s209
      %s213 = sphi 0, %s212
      %s229 = sphi 0, %s213
    $region4: #{dep_forward.6} parent=1 // loop_header_branch
      %16 = sbr.rel (%p14) target = $region8
    $region5: #{dep_forward.6} parent=1 // loop_body
      %s18 = ssub.s32 %s13, 1
      %s19 = ssub.s32 %s13, 2
      %s26 = sadd.s32 1, %s21
      %p27 = scmp.ge.s32.totalorder %s26, 2
      %s28 = scalar_select %p27, 0, %s26
      %s29 = sadd.s32 1, %s20
      %s30 = scalar_select %p27, %s29, %s20
      %p31 = scmp.ge.s32.totalorder %s30, 1
      %s32 = scalar_select %p31, 0, %s30
      %s33 = ssub.s32 %s20, %s32
      %p34 = scmp.eq.s32.totalorder %s33, 0
      %s36 = sadd.s32 %s35, 1
      %s37 = scalar_select %p34, %s35, %s36
      %p40 = pneg %p34
      %p41 = scmp.eq.s32.totalorder %s13, 1
      %p42 = por %p40, %p41
      %p43 = scmp.ne.s32.totalorder %s35, %s38
      %p44 = scmp.eq.s32.totalorder %s13, 0
      %p45 = por %p43, %p44
      %p46 = scmp.ne.s32.totalorder %s35, %s38
      %p47 = scmp.eq.s32.totalorder %s18, 1
      %p48 = por %p46, %p47
      %p49 = scmp.ne.s32.totalorder %s38, %s39
      %p50 = scmp.eq.s32.totalorder %s18, 0
      %p51 = por %p49, %p50
      %p52 = scmp.ne.s32.totalorder %s38, %s39
      %p53 = scmp.eq.s32.totalorder %s19, 1
      %p54 = por %p52, %p53
      %p56 = scmp.ne.s32.totalorder %s39, %s55
      %p57 = scmp.eq.s32.totalorder %s19, 0
      %p58 = por %p56, %p57
      %s59 = ssub.s32 %s20, %s32
      %p60 = scmp.eq.s32.totalorder %s59, 0
      %s62 = sadd.s32 %s61, 1
      %s63 = scalar_select %p60, %s61, %s62
      %p66 = pneg %p60
      %p67 = scmp.eq.s32.totalorder %s13, 1
      %p68 = por %p66, %p67
      %p69 = scmp.ne.s32.totalorder %s61, %s64
      %p70 = scmp.eq.s32.totalorder %s13, 0
      %p71 = por %p69, %p70
      %p72 = scmp.ne.s32.totalorder %s61, %s64
      %p73 = scmp.eq.s32.totalorder %s18, 1
      %p74 = por %p72, %p73
      %p75 = scmp.ne.s32.totalorder %s64, %s65
      %p76 = scmp.eq.s32.totalorder %s18, 0
      %p77 = por %p75, %p76
      %p78 = scmp.ne.s32.totalorder %s64, %s65
      %p79 = scmp.eq.s32.totalorder %s19, 1
      %p80 = por %p78, %p79
      %p82 = scmp.ne.s32.totalorder %s65, %s81
      %p83 = scmp.eq.s32.totalorder %s19, 0
      %p84 = por %p82, %p83
      %s86 = sadd.s32 %s85, 1
      %p89 = scmp.eq.s32.totalorder %s13, 1
      %p90 = scmp.ne.s32.totalorder %s85, %s87
      %p91 = scmp.eq.s32.totalorder %s13, 0
      %p92 = por %p90, %p91
      %p93 = scmp.ne.s32.totalorder %s85, %s87
      %p94 = scmp.eq.s32.totalorder %s18, 1
      %p95 = por %p93, %p94
      %p96 = scmp.ne.s32.totalorder %s87, %s88
      %p97 = scmp.eq.s32.totalorder %s18, 0
      %p98 = por %p96, %p97
      %p99 = scmp.ne.s32.totalorder %s87, %s88
      %p100 = scmp.eq.s32.totalorder %s19, 1
      %p101 = por %p99, %p100
      %p103 = scmp.ne.s32.totalorder %s88, %s102
      %p104 = scmp.eq.s32.totalorder %s19, 0
      %p105 = por %p103, %p104
      %s107 = sadd.s32 %s106, 1
      %p110 = scmp.eq.s32.totalorder %s13, 1
      %p111 = scmp.ne.s32.totalorder %s106, %s108
      %p112 = scmp.eq.s32.totalorder %s13, 0
      %p113 = por %p111, %p112
      %p114 = scmp.ne.s32.totalorder %s106, %s108
      %p115 = scmp.eq.s32.totalorder %s18, 1
      %p116 = por %p114, %p115
      %p117 = scmp.ne.s32.totalorder %s108, %s109
      %p118 = scmp.eq.s32.totalorder %s18, 0
      %p119 = por %p117, %p118
      %p120 = scmp.ne.s32.totalorder %s108, %s109
      %p121 = scmp.eq.s32.totalorder %s19, 1
      %p122 = por %p120, %p121
      %p124 = scmp.ne.s32.totalorder %s109, %s123
      %p125 = scmp.eq.s32.totalorder %s19, 0
      %p126 = por %p124, %p125
      %s127 = ssub.s32 %s21, %s28
      %p128 = scmp.eq.s32.totalorder %s127, 0
      %s130 = sadd.s32 %s129, 1
      %s131 = scalar_select %p128, %s129, %s130
      %p134 = pneg %p128
      %p135 = scmp.eq.s32.totalorder %s13, 1
      %p136 = por %p134, %p135
      %p137 = scmp.ne.s32.totalorder %s129, %s132
      %p138 = scmp.eq.s32.totalorder %s13, 0
      %p139 = por %p137, %p138
      %p140 = scmp.ne.s32.totalorder %s129, %s132
      %p141 = scmp.eq.s32.totalorder %s18, 1
      %p142 = por %p140, %p141
      %p143 = scmp.ne.s32.totalorder %s132, %s133
      %p144 = scmp.eq.s32.totalorder %s18, 0
      %p145 = por %p143, %p144
      %p146 = scmp.ne.s32.totalorder %s132, %s133
      %p147 = scmp.eq.s32.totalorder %s19, 1
      %p148 = por %p146, %p147
      %p150 = scmp.ne.s32.totalorder %s133, %s149
      %p151 = scmp.eq.s32.totalorder %s19, 0
      %p152 = por %p150, %p151
      %s153 = ssub.s32 %s21, %s28
      %p154 = scmp.eq.s32.totalorder %s153, 0
      %s156 = sadd.s32 %s155, 1
      %s157 = scalar_select %p154, %s155, %s156
      %p160 = pneg %p154
      %p161 = scmp.eq.s32.totalorder %s13, 1
      %p162 = por %p160, %p161
      %p163 = scmp.ne.s32.totalorder %s155, %s158
      %p164 = scmp.eq.s32.totalorder %s13, 0
      %p165 = por %p163, %p164
      %p166 = scmp.ne.s32.totalorder %s155, %s158
      %p167 = scmp.eq.s32.totalorder %s18, 1
      %p168 = por %p166, %p167
      %p169 = scmp.ne.s32.totalorder %s158, %s159
      %p170 = scmp.eq.s32.totalorder %s18, 0
      %p171 = por %p169, %p170
      %p172 = scmp.ne.s32.totalorder %s158, %s159
      %p173 = scmp.eq.s32.totalorder %s19, 1
      %p174 = por %p172, %p173
      %p176 = scmp.ne.s32.totalorder %s159, %s175
      %p177 = scmp.eq.s32.totalorder %s19, 0
      %p178 = por %p176, %p177
      %s179 = ssub.s32 %s21, %s28
      %p180 = scmp.eq.s32.totalorder %s179, 0
      %s182 = sadd.s32 %s181, 1
      %s183 = scalar_select %p180, %s181, %s182
      %p186 = pneg %p180
      %p187 = scmp.eq.s32.totalorder %s13, 1
      %p188 = por %p186, %p187
      %p189 = scmp.ne.s32.totalorder %s181, %s184
      %p190 = scmp.eq.s32.totalorder %s13, 0
      %p191 = por %p189, %p190
      %p192 = scmp.ne.s32.totalorder %s181, %s184
      %p193 = scmp.eq.s32.totalorder %s18, 1
      %p194 = por %p192, %p193
      %p195 = scmp.ne.s32.totalorder %s184, %s185
      %p196 = scmp.eq.s32.totalorder %s18, 0
      %p197 = por %p195, %p196
      %p198 = scmp.ne.s32.totalorder %s184, %s185
      %p199 = scmp.eq.s32.totalorder %s19, 1
      %p200 = por %p198, %p199
      %p202 = scmp.ne.s32.totalorder %s185, %s201
      %p203 = scmp.eq.s32.totalorder %s19, 0
      %p204 = por %p202, %p203
      %s205 = ssub.s32 %s20, %s32
      %s206 = ssub.s32 %s21, %s28
      %s207 = sor.u32 %s205, %s206
      %p208 = scmp.eq.s32.totalorder %s207, 0
      %s210 = sadd.s32 %s209, 1
      %s211 = scalar_select %p208, %s209, %s210
      %p214 = pneg %p208
      %p215 = scmp.eq.s32.totalorder %s13, 1
      %p216 = por %p214, %p215
      %p217 = scmp.ne.s32.totalorder %s209, %s212
      %p218 = scmp.eq.s32.totalorder %s13, 0
      %p219 = por %p217, %p218
      %p220 = scmp.ne.s32.totalorder %s209, %s212
      %p221 = scmp.eq.s32.totalorder %s18, 1
      %p222 = por %p220, %p221
      %p223 = scmp.ne.s32.totalorder %s212, %s213
      %p224 = scmp.eq.s32.totalorder %s18, 0
      %p225 = por %p223, %p224
      %p226 = scmp.ne.s32.totalorder %s212, %s213
      %p227 = scmp.eq.s32.totalorder %s19, 1
      %p228 = por %p226, %p227
      %p230 = scmp.ne.s32.totalorder %s213, %s229
      %p231 = scmp.eq.s32.totalorder %s19, 0
      %p232 = por %p230, %p231
      %p233 = scmp.le.s32.totalorder 1, %s13
      %p234 = scmp.lt.s32.totalorder %s13, 3
      %p235 = pnand %p233, %p234
      %p236 = pneg %p235
      // Predicated region
      $region9: #{dep_forward.6} parent=5 // pred_check
        _
      $region10: #{dep_forward.6} parent=5 // pred_check_branch
        %238 = sbr.rel (%p235) target = $region12
      $region11: #{dep_forward.6} parent=5 // pred_region
        %s239 = ssub.s32 %s13, 1
        // Predicated region
        $region13: #{dep_forward.6} parent=11 // pred_check
          %p240 = pneg %p51
        $region14: #{dep_forward.6} parent=11 // pred_check_branch
          %242 = sbr.rel (%p240) target = $region16
        $region15: #{dep_forward.6} parent=11 // pred_region
          %s243 = smul.u32 16, %s22
          %p244 = scmp.lt.s32.totalorder %s243, 15
          %s245 = scalar_select %p244, %s243, 15
          %s246 = smul.addr %s245, 2
          %s247 = smul.addr %s246, 4
          %s248 = scalar_lea.vmem %s0, %s247
          %s249 = smul.u32 16, %s22
        $region16: #{dep_forward.6} parent=11 // pred_fallthru
          _
        // Predicated region
        $region17: #{dep_forward.6} parent=11 // pred_check
          %p250 = pneg %p77
        $region18: #{dep_forward.6} parent=11 // pred_check_branch
          %252 = sbr.rel (%p250) target = $region20
        $region19: #{dep_forward.6} parent=11 // pred_region
          %s253 = smul.u32 16, %s22
          %p254 = scmp.lt.s32.totalorder %s253, 15
          %s255 = scalar_select %p254, %s253, 15
          %s256 = smul.addr %s255, 4
          %s257 = smul.addr %s256, 4
          %s258 = scalar_lea.vmem %s1, %s257
          %s259 = smul.u32 16, %s22
        $region20: #{dep_forward.6} parent=11 // pred_fallthru
          _
        // Predicated region
        $region21: #{dep_forward.6} parent=11 // pred_check
          %p260 = pneg %p98
        $region22: #{dep_forward.6} parent=11 // pred_check_branch
          %262 = sbr.rel (%p260) target = $region24
        $region23: #{dep_forward.6} parent=11 // pred_region
          _
        $region24: #{dep_forward.6} parent=11 // pred_fallthru
          _
        // Predicated region
        $region25: #{dep_forward.6} parent=11 // pred_check
          %p263 = pneg %p119
        $region26: #{dep_forward.6} parent=11 // pred_check_branch
          %265 = sbr.rel (%p263) target = $region28
        $region27: #{dep_forward.6} parent=11 // pred_region
          _
        $region28: #{dep_forward.6} parent=11 // pred_fallthru
          _
      $region12: #{dep_forward.6} parent=5 // pred_fallthru
        _
      %p266 = scmp.lt.s32.totalorder %s13, 2
      // Predicated region
      $region29: #{dep_forward.6} parent=5 // pred_check
        %p267 = pneg %p266
      $region30: #{dep_forward.6} parent=5 // pred_check_branch
        %269 = sbr.rel (%p267) target = $region32
      $region31: #{dep_forward.6} parent=5 // pred_region
        // Predicated region
        $region33: #{dep_forward.6} parent=31 // pred_check
          %p270 = pneg %p139
        $region34: #{dep_forward.6} parent=31 // pred_check_branch
          %272 = sbr.rel (%p270) target = $region36
        $region35: #{dep_forward.6} parent=31 // pred_region
          %s273 = sand.u32 %s129, 1
          %s274 = sand.u32 %s129, 1
          %s275 = smul.addr %s274, 512
          %s276 = scalar_lea.vmem [#allocation2], %s275
          %s277 = smul.u32 4, %s21
          %s278 = smul.addr %s277, 4
          %s279 = scalar_lea.vmem %s4, %s278
          // Predicated region
          $region37: #{dep_forward.6} parent=35 // pred_check
            _
          $region38: #{dep_forward.6} parent=35 // pred_check_branch
            %281 = sbr.rel (0) target = $region40
          $region39: #{dep_forward.6} parent=35 // pred_region
            // Predicated region
            $region41: #{dep_forward.6} parent=39 // pred_check
              _
            $region42: #{dep_forward.6} parent=39 // pred_check_branch
              %283 = sbr.rel (0) target = $region44
            $region43: #{dep_forward.6} parent=39 // pred_region
              loop: start=0, step=1, limit=1
              $region45: #{dep_forward.6} parent=43 // loop_pre_header
                _
              $region46: #{dep_forward.6} parent=43 // loop_header
                %s285 = sphi 0, %s289
                %p286 = scmp.ge.s32.totalorder %s285, 1
                %s290 = sphi %s279, %s279
                %s291 = sphi %s276, %s276
              $region47: #{dep_forward.6} parent=43 // loop_header_branch
                %288 = sbr.rel (%p286) target = $region51
              $region48: #{dep_forward.6} parent=43 // loop_body
                %v292 = vld [vmem:[%s290] sm:$0xff]
                %293 = vst [vmem:[%s291] sm:$0xff] %v292
                %v294 = vld [vmem:[%s290 + $0x8] sm:$0xff]
                %295 = vst [vmem:[%s291 + $0x8] sm:$0xff] %v294
                %v296 = vld [vmem:[%s290 + $0x20] sm:$0xff]
                %297 = vst [vmem:[%s291 + $0x10] sm:$0xff] %v296
                %v298 = vld [vmem:[%s290 + $0x28] sm:$0xff]
                %299 = vst [vmem:[%s291 + $0x18] sm:$0xff] %v298
                %v300 = vld [vmem:[%s290 + $0x40] sm:$0xff]
                %301 = vst [vmem:[%s291 + $0x20] sm:$0xff] %v300
                %v302 = vld [vmem:[%s290 + $0x48] sm:$0xff]
                %303 = vst [vmem:[%s291 + $0x28] sm:$0xff] %v302
                %v304 = vld [vmem:[%s290 + $0x60] sm:$0xff]
                %305 = vst [vmem:[%s291 + $0x30] sm:$0xff] %v304
                %v306 = vld [vmem:[%s290 + $0x68] sm:$0xff]
                %307 = vst [vmem:[%s291 + $0x38] sm:$0xff] %v306
                %v308 = vld [vmem:[%s290 + $0x80] sm:$0xff]
                %309 = vst [vmem:[%s291 + $0x40] sm:$0xff] %v308
                %v310 = vld [vmem:[%s290 + $0x88] sm:$0xff]
                %311 = vst [vmem:[%s291 + $0x48] sm:$0xff] %v310
                %v312 = vld [vmem:[%s290 + $0xa0] sm:$0xff]
                %313 = vst [vmem:[%s291 + $0x50] sm:$0xff] %v312
                %v314 = vld [vmem:[%s290 + $0xa8] sm:$0xff]
                %315 = vst [vmem:[%s291 + $0x58] sm:$0xff] %v314
                %v316 = vld [vmem:[%s290 + $0xc0] sm:$0xff]
                %317 = vst [vmem:[%s291 + $0x60] sm:$0xff] %v316
                %v318 = vld [vmem:[%s290 + $0xc8] sm:$0xff]
                %319 = vst [vmem:[%s291 + $0x68] sm:$0xff] %v318
                %v320 = vld [vmem:[%s290 + $0xe0] sm:$0xff]
                %321 = vst [vmem:[%s291 + $0x70] sm:$0xff] %v320
                %v322 = vld [vmem:[%s290 + $0xe8] sm:$0xff]
                %323 = vst [vmem:[%s291 + $0x78] sm:$0xff] %v322
                %v324 = vld [vmem:[%s290 + $0x100] sm:$0xff]
                %325 = vst [vmem:[%s291 + $0x80] sm:$0xff] %v324
                %v326 = vld [vmem:[%s290 + $0x108] sm:$0xff]
                %327 = vst [vmem:[%s291 + $0x88] sm:$0xff] %v326
                %v328 = vld [vmem:[%s290 + $0x120] sm:$0xff]
                %329 = vst [vmem:[%s291 + $0x90] sm:$0xff] %v328
                %v330 = vld [vmem:[%s290 + $0x128] sm:$0xff]
                %331 = vst [vmem:[%s291 + $0x98] sm:$0xff] %v330
                %v332 = vld [vmem:[%s290 + $0x140] sm:$0xff]
                %333 = vst [vmem:[%s291 + $0xa0] sm:$0xff] %v332
                %v334 = vld [vmem:[%s290 + $0x148] sm:$0xff]
                %335 = vst [vmem:[%s291 + $0xa8] sm:$0xff] %v334
                %v336 = vld [vmem:[%s290 + $0x160] sm:$0xff]
                %337 = vst [vmem:[%s291 + $0xb0] sm:$0xff] %v336
                %v338 = vld [vmem:[%s290 + $0x168] sm:$0xff]
                %339 = vst [vmem:[%s291 + $0xb8] sm:$0xff] %v338
                %v340 = vld [vmem:[%s290 + $0x180] sm:$0xff]
                %341 = vst [vmem:[%s291 + $0xc0] sm:$0xff] %v340
                %v342 = vld [vmem:[%s290 + $0x188] sm:$0xff]
                %343 = vst [vmem:[%s291 + $0xc8] sm:$0xff] %v342
                %v344 = vld [vmem:[%s290 + $0x1a0] sm:$0xff]
                %345 = vst [vmem:[%s291 + $0xd0] sm:$0xff] %v344
                %v346 = vld [vmem:[%s290 + $0x1a8] sm:$0xff]
                %347 = vst [vmem:[%s291 + $0xd8] sm:$0xff] %v346
                %v348 = vld [vmem:[%s290 + $0x1c0] sm:$0xff]
                %349 = vst [vmem:[%s291 + $0xe0] sm:$0xff] %v348
                %v350 = vld [vmem:[%s290 + $0x1c8] sm:$0xff]
                %351 = vst [vmem:[%s291 + $0xe8] sm:$0xff] %v350
                %v352 = vld [vmem:[%s290 + $0x1e0] sm:$0xff]
                %353 = vst [vmem:[%s291 + $0xf0] sm:$0xff] %v352
                %v354 = vld [vmem:[%s290 + $0x1e8] sm:$0xff]
                %355 = vst [vmem:[%s291 + $0xf8] sm:$0xff] %v354
                %v356 = vld [vmem:[%s290 + $0x200] sm:$0xff]
                %357 = vst [vmem:[%s291 + $0x100] sm:$0xff] %v356
                %v358 = vld [vmem:[%s290 + $0x208] sm:$0xff]
                %359 = vst [vmem:[%s291 + $0x108] sm:$0xff] %v358
                %v360 = vld [vmem:[%s290 + $0x220] sm:$0xff]
                %361 = vst [vmem:[%s291 + $0x110] sm:$0xff] %v360
                %v362 = vld [vmem:[%s290 + $0x228] sm:$0xff]
                %363 = vst [vmem:[%s291 + $0x118] sm:$0xff] %v362
                %v364 = vld [vmem:[%s290 + $0x240] sm:$0xff]
                %365 = vst [vmem:[%s291 + $0x120] sm:$0xff] %v364
                %v366 = vld [vmem:[%s290 + $0x248] sm:$0xff]
                %367 = vst [vmem:[%s291 + $0x128] sm:$0xff] %v366
                %v368 = vld [vmem:[%s290 + $0x260] sm:$0xff]
                %369 = vst [vmem:[%s291 + $0x130] sm:$0xff] %v368
                %v370 = vld [vmem:[%s290 + $0x268] sm:$0xff]
                %371 = vst [vmem:[%s291 + $0x138] sm:$0xff] %v370
                %v372 = vld [vmem:[%s290 + $0x280] sm:$0xff]
                %373 = vst [vmem:[%s291 + $0x140] sm:$0xff] %v372
                %v374 = vld [vmem:[%s290 + $0x288] sm:$0xff]
                %375 = vst [vmem:[%s291 + $0x148] sm:$0xff] %v374
                %v376 = vld [vmem:[%s290 + $0x2a0] sm:$0xff]
                %377 = vst [vmem:[%s291 + $0x150] sm:$0xff] %v376
                %v378 = vld [vmem:[%s290 + $0x2a8] sm:$0xff]
                %379 = vst [vmem:[%s291 + $0x158] sm:$0xff] %v378
                %v380 = vld [vmem:[%s290 + $0x2c0] sm:$0xff]
                %381 = vst [vmem:[%s291 + $0x160] sm:$0xff] %v380
                %v382 = vld [vmem:[%s290 + $0x2c8] sm:$0xff]
                %383 = vst [vmem:[%s291 + $0x168] sm:$0xff] %v382
                %v384 = vld [vmem:[%s290 + $0x2e0] sm:$0xff]
                %385 = vst [vmem:[%s291 + $0x170] sm:$0xff] %v384
                %v386 = vld [vmem:[%s290 + $0x2e8] sm:$0xff]
                %387 = vst [vmem:[%s291 + $0x178] sm:$0xff] %v386
                %v388 = vld [vmem:[%s290 + $0x300] sm:$0xff]
                %389 = vst [vmem:[%s291 + $0x180] sm:$0xff] %v388
                %v390 = vld [vmem:[%s290 + $0x308] sm:$0xff]
                %391 = vst [vmem:[%s291 + $0x188] sm:$0xff] %v390
                %v392 = vld [vmem:[%s290 + $0x320] sm:$0xff]
                %393 = vst [vmem:[%s291 + $0x190] sm:$0xff] %v392
                %v394 = vld [vmem:[%s290 + $0x328] sm:$0xff]
                %395 = vst [vmem:[%s291 + $0x198] sm:$0xff] %v394
                %v396 = vld [vmem:[%s290 + $0x340] sm:$0xff]
                %397 = vst [vmem:[%s291 + $0x1a0] sm:$0xff] %v396
                %v398 = vld [vmem:[%s290 + $0x348] sm:$0xff]
                %399 = vst [vmem:[%s291 + $0x1a8] sm:$0xff] %v398
                %v400 = vld [vmem:[%s290 + $0x360] sm:$0xff]
                %401 = vst [vmem:[%s291 + $0x1b0] sm:$0xff] %v400
                %v402 = vld [vmem:[%s290 + $0x368] sm:$0xff]
                %403 = vst [vmem:[%s291 + $0x1b8] sm:$0xff] %v402
                %v404 = vld [vmem:[%s290 + $0x380] sm:$0xff]
                %405 = vst [vmem:[%s291 + $0x1c0] sm:$0xff] %v404
                %v406 = vld [vmem:[%s290 + $0x388] sm:$0xff]
                %407 = vst [vmem:[%s291 + $0x1c8] sm:$0xff] %v406
                %v408 = vld [vmem:[%s290 + $0x3a0] sm:$0xff]
                %409 = vst [vmem:[%s291 + $0x1d0] sm:$0xff] %v408
                %v410 = vld [vmem:[%s290 + $0x3a8] sm:$0xff]
                %411 = vst [vmem:[%s291 + $0x1d8] sm:$0xff] %v410
                %v412 = vld [vmem:[%s290 + $0x3c0] sm:$0xff]
                %413 = vst [vmem:[%s291 + $0x1e0] sm:$0xff] %v412
                %v414 = vld [vmem:[%s290 + $0x3c8] sm:$0xff]
                %415 = vst [vmem:[%s291 + $0x1e8] sm:$0xff] %v414
                %v416 = vld [vmem:[%s290 + $0x3e0] sm:$0xff]
                %417 = vst [vmem:[%s291 + $0x1f0] sm:$0xff] %v416
                %v418 = vld [vmem:[%s290 + $0x3e8] sm:$0xff]
                %419 = vst [vmem:[%s291 + $0x1f8] sm:$0xff] %v418
              $region49: #{dep_forward.6} parent=43 // loop_footer
                %s289 = sadd.s32 1, %s285
              $region50: #{dep_forward.6} parent=43 // loop_footer_branch
                %284 = sbr.rel target = $region46
              $region51: #{dep_forward.6} parent=43 // loop_exit
                _
            $region44: #{dep_forward.6} parent=39 // pred_fallthru
              _
            // Predicated region
            $region52: #{dep_forward.6} parent=39 // pred_check
              _
            $region53: #{dep_forward.6} parent=39 // pred_check_branch
              %421 = sbr.rel target = $region55
            $region54: #{dep_forward.6} parent=39 // pred_region
              _
            $region55: #{dep_forward.6} parent=39 // pred_fallthru
              _
          $region40: #{dep_forward.6} parent=35 // pred_fallthru
            _
          %422 = vnop
        $region36: #{dep_forward.6} parent=31 // pred_fallthru
          _
        // Predicated region
        $region56: #{dep_forward.6} parent=31 // pred_check
          %p423 = pneg %p165
        $region57: #{dep_forward.6} parent=31 // pred_check_branch
          %425 = sbr.rel (%p423) target = $region59
        $region58: #{dep_forward.6} parent=31 // pred_region
          %s426 = sand.u32 %s155, 1
          %s427 = sand.u32 %s155, 1
          %s428 = smul.addr %s427, 256
          %s429 = scalar_lea.vmem [#allocation3], %s428
          %s430 = smul.u32 4, %s21
          %s431 = smul.addr %s430, 4
          %s432 = scalar_lea.vmem %s5, %s431
          // Predicated region
          $region60: #{dep_forward.6} parent=58 // pred_check
            _
          $region61: #{dep_forward.6} parent=58 // pred_check_branch
            %434 = sbr.rel (0) target = $region63
          $region62: #{dep_forward.6} parent=58 // pred_region
            // Predicated region
            $region64: #{dep_forward.6} parent=62 // pred_check
              _
            $region65: #{dep_forward.6} parent=62 // pred_check_branch
              %436 = sbr.rel (0) target = $region67
            $region66: #{dep_forward.6} parent=62 // pred_region
              loop: start=0, step=1, limit=1
              $region68: #{dep_forward.6} parent=66 // loop_pre_header
                _
              $region69: #{dep_forward.6} parent=66 // loop_header
                %s438 = sphi 0, %s442
                %p439 = scmp.ge.s32.totalorder %s438, 1
                %s443 = sphi %s432, %s432
                %s444 = sphi %s429, %s429
              $region70: #{dep_forward.6} parent=66 // loop_header_branch
                %441 = sbr.rel (%p439) target = $region74
              $region71: #{dep_forward.6} parent=66 // loop_body
                %v445 = vld [vmem:[%s443] sm:$0xff]
                %446 = vst [vmem:[%s444] sm:$0xff] %v445
                %v447 = vld [vmem:[%s443 + $0x8] sm:$0xff]
                %448 = vst [vmem:[%s444 + $0x8] sm:$0xff] %v447
                %v449 = vld [vmem:[%s443 + $0x20] sm:$0xff]
                %450 = vst [vmem:[%s444 + $0x10] sm:$0xff] %v449
                %v451 = vld [vmem:[%s443 + $0x28] sm:$0xff]
                %452 = vst [vmem:[%s444 + $0x18] sm:$0xff] %v451
                %v453 = vld [vmem:[%s443 + $0x40] sm:$0xff]
                %454 = vst [vmem:[%s444 + $0x20] sm:$0xff] %v453
                %v455 = vld [vmem:[%s443 + $0x48] sm:$0xff]
                %456 = vst [vmem:[%s444 + $0x28] sm:$0xff] %v455
                %v457 = vld [vmem:[%s443 + $0x60] sm:$0xff]
                %458 = vst [vmem:[%s444 + $0x30] sm:$0xff] %v457
                %v459 = vld [vmem:[%s443 + $0x68] sm:$0xff]
                %460 = vst [vmem:[%s444 + $0x38] sm:$0xff] %v459
                %v461 = vld [vmem:[%s443 + $0x80] sm:$0xff]
                %462 = vst [vmem:[%s444 + $0x40] sm:$0xff] %v461
                %v463 = vld [vmem:[%s443 + $0x88] sm:$0xff]
                %464 = vst [vmem:[%s444 + $0x48] sm:$0xff] %v463
                %v465 = vld [vmem:[%s443 + $0xa0] sm:$0xff]
                %466 = vst [vmem:[%s444 + $0x50] sm:$0xff] %v465
                %v467 = vld [vmem:[%s443 + $0xa8] sm:$0xff]
                %468 = vst [vmem:[%s444 + $0x58] sm:$0xff] %v467
                %v469 = vld [vmem:[%s443 + $0xc0] sm:$0xff]
                %470 = vst [vmem:[%s444 + $0x60] sm:$0xff] %v469
                %v471 = vld [vmem:[%s443 + $0xc8] sm:$0xff]
                %472 = vst [vmem:[%s444 + $0x68] sm:$0xff] %v471
                %v473 = vld [vmem:[%s443 + $0xe0] sm:$0xff]
                %474 = vst [vmem:[%s444 + $0x70] sm:$0xff] %v473
                %v475 = vld [vmem:[%s443 + $0xe8] sm:$0xff]
                %476 = vst [vmem:[%s444 + $0x78] sm:$0xff] %v475
                %v477 = vld [vmem:[%s443 + $0x100] sm:$0xff]
                %478 = vst [vmem:[%s444 + $0x80] sm:$0xff] %v477
                %v479 = vld [vmem:[%s443 + $0x108] sm:$0xff]
                %480 = vst [vmem:[%s444 + $0x88] sm:$0xff] %v479
                %v481 = vld [vmem:[%s443 + $0x120] sm:$0xff]
                %482 = vst [vmem:[%s444 + $0x90] sm:$0xff] %v481
                %v483 = vld [vmem:[%s443 + $0x128] sm:$0xff]
                %484 = vst [vmem:[%s444 + $0x98] sm:$0xff] %v483
                %v485 = vld [vmem:[%s443 + $0x140] sm:$0xff]
                %486 = vst [vmem:[%s444 + $0xa0] sm:$0xff] %v485
                %v487 = vld [vmem:[%s443 + $0x148] sm:$0xff]
                %488 = vst [vmem:[%s444 + $0xa8] sm:$0xff] %v487
                %v489 = vld [vmem:[%s443 + $0x160] sm:$0xff]
                %490 = vst [vmem:[%s444 + $0xb0] sm:$0xff] %v489
                %v491 = vld [vmem:[%s443 + $0x168] sm:$0xff]
                %492 = vst [vmem:[%s444 + $0xb8] sm:$0xff] %v491
                %v493 = vld [vmem:[%s443 + $0x180] sm:$0xff]
                %494 = vst [vmem:[%s444 + $0xc0] sm:$0xff] %v493
                %v495 = vld [vmem:[%s443 + $0x188] sm:$0xff]
                %496 = vst [vmem:[%s444 + $0xc8] sm:$0xff] %v495
                %v497 = vld [vmem:[%s443 + $0x1a0] sm:$0xff]
                %498 = vst [vmem:[%s444 + $0xd0] sm:$0xff] %v497
                %v499 = vld [vmem:[%s443 + $0x1a8] sm:$0xff]
                %500 = vst [vmem:[%s444 + $0xd8] sm:$0xff] %v499
                %v501 = vld [vmem:[%s443 + $0x1c0] sm:$0xff]
                %502 = vst [vmem:[%s444 + $0xe0] sm:$0xff] %v501
                %v503 = vld [vmem:[%s443 + $0x1c8] sm:$0xff]
                %504 = vst [vmem:[%s444 + $0xe8] sm:$0xff] %v503
                %v505 = vld [vmem:[%s443 + $0x1e0] sm:$0xff]
                %506 = vst [vmem:[%s444 + $0xf0] sm:$0xff] %v505
                %v507 = vld [vmem:[%s443 + $0x1e8] sm:$0xff]
                %508 = vst [vmem:[%s444 + $0xf8] sm:$0xff] %v507
              $region72: #{dep_forward.6} parent=66 // loop_footer
                %s442 = sadd.s32 1, %s438
              $region73: #{dep_forward.6} parent=66 // loop_footer_branch
                %437 = sbr.rel target = $region69
              $region74: #{dep_forward.6} parent=66 // loop_exit
                _
            $region67: #{dep_forward.6} parent=62 // pred_fallthru
              _
            // Predicated region
            $region75: #{dep_forward.6} parent=62 // pred_check
              _
            $region76: #{dep_forward.6} parent=62 // pred_check_branch
              %510 = sbr.rel target = $region78
            $region77: #{dep_forward.6} parent=62 // pred_region
              _
            $region78: #{dep_forward.6} parent=62 // pred_fallthru
              _
          $region63: #{dep_forward.6} parent=58 // pred_fallthru
            _
          %511 = vnop
        $region59: #{dep_forward.6} parent=31 // pred_fallthru
          _
        // Predicated region
        $region79: #{dep_forward.6} parent=31 // pred_check
          %p512 = pneg %p191
        $region80: #{dep_forward.6} parent=31 // pred_check_branch
          %514 = sbr.rel (%p512) target = $region82
        $region81: #{dep_forward.6} parent=31 // pred_region
          %s515 = smul.u32 4, %s21
          %p516 = scmp.lt.s32.totalorder %s515, 7
          %s517 = scalar_select %p516, %s515, 7
          %s518 = scalar_lea.vmem %s6, %s517
          %s519 = smul.u32 4, %s21
        $region82: #{dep_forward.6} parent=31 // pred_fallthru
          _
      $region32: #{dep_forward.6} parent=5 // pred_fallthru
        _
      %p520 = scmp.le.s32.totalorder 1, %s13
      %p521 = scmp.lt.s32.totalorder %s13, 3
      %p522 = pnand %p520, %p521
      %p523 = pneg %p522
      // Predicated region
      $region83: #{dep_forward.6} parent=5 // pred_check
        _
      $region84: #{dep_forward.6} parent=5 // pred_check_branch
        %525 = sbr.rel (%p522) target = $region86
      $region85: #{dep_forward.6} parent=5 // pred_region
        %s526 = ssub.s32 %s13, 1
        %s527 = sand.u32 %s132, 1
        %s528 = sand.u32 %s132, 1
        %s529 = smul.addr %s528, 512
        %s530 = scalar_lea.vmem [#allocation2], %s529
        // Predicated region
        $region87: #{dep_forward.6} parent=85 // pred_check
          %p531 = pneg %p145
        $region88: #{dep_forward.6} parent=85 // pred_check_branch
          %533 = sbr.rel (%p531) target = $region90
        $region89: #{dep_forward.6} parent=85 // pred_region
          _
        $region90: #{dep_forward.6} parent=85 // pred_fallthru
          _
        %s534 = sand.u32 %s158, 1
        %s535 = sand.u32 %s158, 1
        %s536 = smul.addr %s535, 256
        %s537 = scalar_lea.vmem [#allocation3], %s536
        // Predicated region
        $region91: #{dep_forward.6} parent=85 // pred_check
          %p538 = pneg %p171
        $region92: #{dep_forward.6} parent=85 // pred_check_branch
          %540 = sbr.rel (%p538) target = $region94
        $region93: #{dep_forward.6} parent=85 // pred_region
          _
        $region94: #{dep_forward.6} parent=85 // pred_fallthru
          _
        %s541 = smul.u32 16, %s22
        %p542 = scmp.lt.s32.totalorder %s541, 15
        %s543 = scalar_select %p542, %s541, 15
        %s544 = smul.addr %s543, 2
        %s545 = smul.addr %s544, 4
        %s546 = scalar_lea.vmem %s0, %s545
        %p547 = pneg %p51
        %p548 = pneg %p48
        %s549 = smul.u32 16, %s22
        %p550 = scmp.lt.s32.totalorder %s549, 15
        %s551 = scalar_select %p550, %s549, 15
        %s552 = smul.addr %s551, 4
        %s553 = smul.addr %s552, 4
        %s554 = scalar_lea.vmem %s1, %s553
        %p555 = pneg %p77
        %p556 = pneg %p74
        %p557 = pneg %p98
        %p558 = pneg %p95
        %p559 = pneg %p119
        %p560 = pneg %p116
        %s561 = sand.u32 %s132, 1
        %s562 = sand.u32 %s132, 1
        %s563 = smul.addr %s562, 512
        %s564 = scalar_lea.vmem [#allocation2], %s563
        %p565 = pneg %p145
        %p566 = pneg %p142
        %s567 = sand.u32 %s158, 1
        %s568 = sand.u32 %s158, 1
        %s569 = smul.addr %s568, 256
        %s570 = scalar_lea.vmem [#allocation3], %s569
        %p571 = pneg %p171
        %p572 = pneg %p168
        %s573 = smul.u32 4, %s23
        %p574 = scmp.lt.s32.totalorder %s573, 7
        %s575 = scalar_select %p574, %s573, 7
        %s576 = scalar_lea.vmem %s6, %s575
        %p577 = pneg %p197
        %p578 = pneg %p194
        %p579 = pneg %p225
        %p580 = pneg %p222
        %s581 = sand.u32 %s212, 1
        %s582 = sand.u32 %s212, 1
        %s583 = smul.addr %s582, 256
        %s584 = scalar_lea.vmem [#allocation4], %s583
        %s585 = smul.u32 16, %s22
        %p586 = scmp.lt.s32.totalorder %s585, 15
        %s587 = scalar_select %p586, %s585, 15
        %s588 = smul.addr %s587, 2
        %s589 = smul.addr %s588, 4
        %s590 = scalar_lea.vmem %s0, %s589
        %s591 = smul.u32 16, %s22
        %s592 = smul.u32 16, %s22
        %p593 = scmp.lt.s32.totalorder %s592, 15
        %s594 = scalar_select %p593, %s592, 15
        %s595 = smul.addr %s594, 4
        %s596 = smul.addr %s595, 4
        %s597 = scalar_lea.vmem %s1, %s596
        %s598 = smul.u32 16, %s22
        %s599 = smul.u32 4, %s23
        %s600 = smul.u32 4, %s23
        %s601 = smul.u32 4, %s23
        %p602 = scmp.lt.s32.totalorder %s601, 7
        %s603 = scalar_select %p602, %s601, 7
        %s604 = scalar_lea.vmem %s6, %s603
        %s605 = smul.u32 4, %s23
        %s606 = smul.u32 16, %s22
        %s607 = smul.u32 4, %s23
        %v609 = vld [vmem:[%s597] sm:$0xff]
        %v610 = vld [vmem:[%s597 + $0x8] sm:$0xff]
        %v611 = vld [vmem:[%s597 + $0x10] sm:$0xff]
        %v612 = vld [vmem:[%s597 + $0x18] sm:$0xff]
        %v613 = vld [vmem:[%s597 + $0x20] sm:$0xff]
        %v614 = vld [vmem:[%s597 + $0x28] sm:$0xff]
        %v615 = vld [vmem:[%s597 + $0x30] sm:$0xff]
        %v616 = vld [vmem:[%s597 + $0x38] sm:$0xff]
        %v617 = vld [vmem:[%s597 + $0x40] sm:$0xff]
        %v618 = vld [vmem:[%s597 + $0x48] sm:$0xff]
        %v619 = vld [vmem:[%s597 + $0x50] sm:$0xff]
        %v620 = vld [vmem:[%s597 + $0x58] sm:$0xff]
        %v621 = vld [vmem:[%s597 + $0x60] sm:$0xff]
        %v622 = vld [vmem:[%s597 + $0x68] sm:$0xff]
        %v623 = vld [vmem:[%s597 + $0x70] sm:$0xff]
        %v624 = vld [vmem:[%s597 + $0x78] sm:$0xff]
        %v625 = vld [vmem:[%s597 + $0x80] sm:$0xff]
        %v626 = vld [vmem:[%s597 + $0x88] sm:$0xff]
        %v627 = vld [vmem:[%s597 + $0x90] sm:$0xff]
        %v628 = vld [vmem:[%s597 + $0x98] sm:$0xff]
        %v629 = vld [vmem:[%s597 + $0xa0] sm:$0xff]
        %v630 = vld [vmem:[%s597 + $0xa8] sm:$0xff]
        %v631 = vld [vmem:[%s597 + $0xb0] sm:$0xff]
        %v632 = vld [vmem:[%s597 + $0xb8] sm:$0xff]
        %v633 = vld [vmem:[%s597 + $0xc0] sm:$0xff]
        %v634 = vld [vmem:[%s597 + $0xc8] sm:$0xff]
        %v635 = vld [vmem:[%s597 + $0xd0] sm:$0xff]
        %v636 = vld [vmem:[%s597 + $0xd8] sm:$0xff]
        %v637 = vld [vmem:[%s597 + $0xe0] sm:$0xff]
        %v638 = vld [vmem:[%s597 + $0xe8] sm:$0xff]
        %v639 = vld [vmem:[%s597 + $0xf0] sm:$0xff]
        %v640 = vld [vmem:[%s597 + $0xf8] sm:$0xff]
        %v641 = vld [vmem:[%s2] sm:$0xf]
        %v642 = vld [vmem:[%s2 + $0x4] sm:$0xf]
        %v643 = vld [vmem:[%s2 + $0x8] sm:$0xf]
        %v644 = vld [vmem:[%s2 + $0xc] sm:$0xf]
        %v645 = vld [vmem:[%s2 + $0x10] sm:$0xf]
        %v646 = vld [vmem:[%s2 + $0x14] sm:$0xf]
        %v647 = vld [vmem:[%s2 + $0x18] sm:$0xf]
        %v648 = vld [vmem:[%s2 + $0x1c] sm:$0xf]
        %v649 = vld [vmem:[%s2 + $0x20] sm:$0xf]
        %v650 = vld [vmem:[%s2 + $0x24] sm:$0xf]
        %v651 = vld [vmem:[%s2 + $0x28] sm:$0xf]
        %v652 = vld [vmem:[%s2 + $0x2c] sm:$0xf]
        %v653 = vld [vmem:[%s2 + $0x30] sm:$0xf]
        %v654 = vld [vmem:[%s2 + $0x34] sm:$0xf]
        %v655 = vld [vmem:[%s2 + $0x38] sm:$0xf]
        %v656 = vld [vmem:[%s2 + $0x3c] sm:$0xf]
        %v657 = vld [vmem:[%s2 + $0x40] sm:$0xf]
        %v658 = vld [vmem:[%s2 + $0x44] sm:$0xf]
        %v659 = vld [vmem:[%s2 + $0x48] sm:$0xf]
        %v660 = vld [vmem:[%s2 + $0x4c] sm:$0xf]
        %v661 = vld [vmem:[%s2 + $0x50] sm:$0xf]
        %v662 = vld [vmem:[%s2 + $0x54] sm:$0xf]
        %v663 = vld [vmem:[%s2 + $0x58] sm:$0xf]
        %v664 = vld [vmem:[%s2 + $0x5c] sm:$0xf]
        %v665 = vld [vmem:[%s2 + $0x60] sm:$0xf]
        %v666 = vld [vmem:[%s2 + $0x64] sm:$0xf]
        %v667 = vld [vmem:[%s2 + $0x68] sm:$0xf]
        %v668 = vld [vmem:[%s2 + $0x6c] sm:$0xf]
        %v669 = vld [vmem:[%s2 + $0x70] sm:$0xf]
        %v670 = vld [vmem:[%s2 + $0x74] sm:$0xf]
        %v671 = vld [vmem:[%s2 + $0x78] sm:$0xf]
        %v672 = vld [vmem:[%s2 + $0x7c] sm:$0xf]
        %v673 = vld [vmem:[%s2 + $0x80] sm:$0xf]
        %v674 = vld [vmem:[%s2 + $0x84] sm:$0xf]
        %v675 = vld [vmem:[%s2 + $0x88] sm:$0xf]
        %v676 = vld [vmem:[%s2 + $0x8c] sm:$0xf]
        %v677 = vld [vmem:[%s2 + $0x90] sm:$0xf]
        %v678 = vld [vmem:[%s2 + $0x94] sm:$0xf]
        %v679 = vld [vmem:[%s2 + $0x98] sm:$0xf]
        %v680 = vld [vmem:[%s2 + $0x9c] sm:$0xf]
        %v681 = vld [vmem:[%s2 + $0xa0] sm:$0xf]
        %v682 = vld [vmem:[%s2 + $0xa4] sm:$0xf]
        %v683 = vld [vmem:[%s2 + $0xa8] sm:$0xf]
        %v684 = vld [vmem:[%s2 + $0xac] sm:$0xf]
        %v685 = vld [vmem:[%s2 + $0xb0] sm:$0xf]
        %v686 = vld [vmem:[%s2 + $0xb4] sm:$0xf]
        %v687 = vld [vmem:[%s2 + $0xb8] sm:$0xf]
        %v688 = vld [vmem:[%s2 + $0xbc] sm:$0xf]
        %v689 = vld [vmem:[%s2 + $0xc0] sm:$0xf]
        %v690 = vld [vmem:[%s2 + $0xc4] sm:$0xf]
        %v691 = vld [vmem:[%s2 + $0xc8] sm:$0xf]
        %v692 = vld [vmem:[%s2 + $0xcc] sm:$0xf]
        %v693 = vld [vmem:[%s3] sm:$0x1]
        %v695 = vlaneseq
        %v696 = vshrl.u32 %v695, 7
        %v697 = vsub.s32 0, %v696
        %v698 = vrot.slane %v693, %v697
        %v732 = vunpack.c.l.b16 %v609
        %v733 = vunpack.c.h.b16 %v609
        %v734 = vunpack.c.l.b16 %v610
        %v735 = vunpack.c.h.b16 %v610
        %v736 = vunpack.c.l.b16 %v611
        %v737 = vunpack.c.h.b16 %v611
        %v738 = vunpack.c.l.b16 %v612
        %v739 = vunpack.c.h.b16 %v612
        %v740 = vunpack.c.l.b16 %v613
        %v741 = vunpack.c.h.b16 %v613
        %v742 = vunpack.c.l.b16 %v614
        %v743 = vunpack.c.h.b16 %v614
        %v744 = vunpack.c.l.b16 %v615
        %v745 = vunpack.c.h.b16 %v615
        %v746 = vunpack.c.l.b16 %v616
        %v747 = vunpack.c.h.b16 %v616
        %v748 = vunpack.c.l.b16 %v617
        %v749 = vunpack.c.h.b16 %v617
        %v750 = vunpack.c.l.b16 %v618
        %v751 = vunpack.c.h.b16 %v618
        %v752 = vunpack.c.l.b16 %v619
        %v753 = vunpack.c.h.b16 %v619
        %v754 = vunpack.c.l.b16 %v620
        %v755 = vunpack.c.h.b16 %v620
        %v756 = vunpack.c.l.b16 %v621
        %v757 = vunpack.c.h.b16 %v621
        %v758 = vunpack.c.l.b16 %v622
        %v759 = vunpack.c.h.b16 %v622
        %v760 = vunpack.c.l.b16 %v623
        %v761 = vunpack.c.h.b16 %v623
        %v762 = vunpack.c.l.b16 %v624
        %v763 = vunpack.c.h.b16 %v624
        %v764 = vunpack.c.l.b16 %v625
        %v765 = vunpack.c.h.b16 %v625
        %v766 = vunpack.c.l.b16 %v626
        %v767 = vunpack.c.h.b16 %v626
        %v768 = vunpack.c.l.b16 %v627
        %v769 = vunpack.c.h.b16 %v627
        %v770 = vunpack.c.l.b16 %v628
        %v771 = vunpack.c.h.b16 %v628
        %v772 = vunpack.c.l.b16 %v629
        %v773 = vunpack.c.h.b16 %v629
        %v774 = vunpack.c.l.b16 %v630
        %v775 = vunpack.c.h.b16 %v630
        %v776 = vunpack.c.l.b16 %v631
        %v777 = vunpack.c.h.b16 %v631
        %v778 = vunpack.c.l.b16 %v632
        %v779 = vunpack.c.h.b16 %v632
        %v780 = vunpack.c.l.b16 %v633
        %v781 = vunpack.c.h.b16 %v633
        %v782 = vunpack.c.l.b16 %v634
        %v783 = vunpack.c.h.b16 %v634
        %v784 = vunpack.c.l.b16 %v635
        %v785 = vunpack.c.h.b16 %v635
        %v786 = vunpack.c.l.b16 %v636
        %v787 = vunpack.c.h.b16 %v636
        %v788 = vunpack.c.l.b16 %v637
        %v789 = vunpack.c.h.b16 %v637
        %v790 = vunpack.c.l.b16 %v638
        %v791 = vunpack.c.h.b16 %v638
        %v792 = vunpack.c.l.b16 %v639
        %v793 = vunpack.c.h.b16 %v639
        %v794 = vunpack.c.l.b16 %v640
        %v795 = vunpack.c.h.b16 %v640
        %v796 = vpack.c.b16 %v736, %v732
        %v797 = vpack.c.b16 %v737, %v733
        %v798 = vpack.c.b16 %v738, %v734
        %v799 = vpack.c.b16 %v739, %v735
        %v800 = vpack.c.b16 %v744, %v740
        %v801 = vpack.c.b16 %v745, %v741
        %v802 = vpack.c.b16 %v746, %v742
        %v803 = vpack.c.b16 %v747, %v743
        %v804 = vpack.c.b16 %v752, %v748
        %v805 = vpack.c.b16 %v753, %v749
        %v806 = vpack.c.b16 %v754, %v750
        %v807 = vpack.c.b16 %v755, %v751
        %v808 = vpack.c.b16 %v760, %v756
        %v809 = vpack.c.b16 %v761, %v757
        %v810 = vpack.c.b16 %v762, %v758
        %v811 = vpack.c.b16 %v763, %v759
        %v812 = vpack.c.b16 %v768, %v764
        %v813 = vpack.c.b16 %v769, %v765
        %v814 = vpack.c.b16 %v770, %v766
        %v815 = vpack.c.b16 %v771, %v767
        %v816 = vpack.c.b16 %v776, %v772
        %v817 = vpack.c.b16 %v777, %v773
        %v818 = vpack.c.b16 %v778, %v774
        %v819 = vpack.c.b16 %v779, %v775
        %v820 = vpack.c.b16 %v784, %v780
        %v821 = vpack.c.b16 %v785, %v781
        %v822 = vpack.c.b16 %v786, %v782
        %v823 = vpack.c.b16 %v787, %v783
        %v824 = vpack.c.b16 %v792, %v788
        %v825 = vpack.c.b16 %v793, %v789
        %v826 = vpack.c.b16 %v794, %v790
        %v827 = vpack.c.b16 %v795, %v791
        %v904 = vunpack.c.l.b16 %v641
        %v905 = vunpack.c.l.b16 %v642
        %v906 = vunpack.c.l.b16 %v643
        %v907 = vunpack.c.l.b16 %v644
        %v908 = vunpack.c.l.b16 %v645
        %v909 = vunpack.c.l.b16 %v646
        %v910 = vunpack.c.l.b16 %v647
        %v911 = vunpack.c.l.b16 %v648
        %v912 = vunpack.c.l.b16 %v649
        %v913 = vunpack.c.l.b16 %v650
        %v914 = vunpack.c.l.b16 %v651
        %v915 = vunpack.c.l.b16 %v652
        %v916 = vunpack.c.l.b16 %v653
        %v917 = vunpack.c.l.b16 %v654
        %v918 = vunpack.c.l.b16 %v655
        %v919 = vunpack.c.l.b16 %v656
        %v920 = vunpack.c.l.b16 %v657
        %v921 = vunpack.c.l.b16 %v658
        %v922 = vunpack.c.l.b16 %v659
        %v923 = vunpack.c.l.b16 %v660
        %v924 = vunpack.c.l.b16 %v661
        %v925 = vunpack.c.l.b16 %v662
        %v926 = vunpack.c.l.b16 %v663
        %v927 = vunpack.c.l.b16 %v664
        %v928 = vunpack.c.l.b16 %v665
        %v929 = vunpack.c.l.b16 %v666
        %v930 = vunpack.c.l.b16 %v667
        %v931 = vunpack.c.l.b16 %v668
        %v932 = vunpack.c.l.b16 %v669
        %v933 = vunpack.c.l.b16 %v670
        %v934 = vunpack.c.l.b16 %v671
        %v935 = vunpack.c.l.b16 %v672
        %v936 = vunpack.c.l.b16 %v673
        %v937 = vunpack.c.l.b16 %v674
        %v938 = vunpack.c.l.b16 %v675
        %v939 = vunpack.c.l.b16 %v676
        %v940 = vunpack.c.l.b16 %v677
        %v941 = vunpack.c.l.b16 %v678
        %v942 = vunpack.c.l.b16 %v679
        %v943 = vunpack.c.l.b16 %v680
        %v944 = vunpack.c.l.b16 %v681
        %v945 = vunpack.c.l.b16 %v682
        %v946 = vunpack.c.l.b16 %v683
        %v947 = vunpack.c.l.b16 %v684
        %v948 = vunpack.c.l.b16 %v685
        %v949 = vunpack.c.l.b16 %v686
        %v950 = vunpack.c.l.b16 %v687
        %v951 = vunpack.c.l.b16 %v688
        %v952 = vunpack.c.l.b16 %v689
        %v953 = vunpack.c.l.b16 %v690
        %v954 = vunpack.c.l.b16 %v691
        %v955 = vunpack.c.l.b16 %v692
        %v956 = vpack.c.b16 %v905, %v904
        %v957 = vpack.c.b16 %v907, %v906
        %v958 = vpack.c.b16 %v909, %v908
        %v959 = vpack.c.b16 %v911, %v910
        %v960 = vpack.c.b16 %v913, %v912
        %v961 = vpack.c.b16 %v915, %v914
        %v962 = vpack.c.b16 %v917, %v916
        %v963 = vpack.c.b16 %v919, %v918
        %v964 = vpack.c.b16 %v921, %v920
        %v965 = vpack.c.b16 %v923, %v922
        %v966 = vpack.c.b16 %v925, %v924
        %v967 = vpack.c.b16 %v927, %v926
        %v968 = vpack.c.b16 %v929, %v928
        %v969 = vpack.c.b16 %v931, %v930
        %v970 = vpack.c.b16 %v933, %v932
        %v971 = vpack.c.b16 %v935, %v934
        %v972 = vpack.c.b16 %v937, %v936
        %v973 = vpack.c.b16 %v939, %v938
        %v974 = vpack.c.b16 %v941, %v940
        %v975 = vpack.c.b16 %v943, %v942
        %v976 = vpack.c.b16 %v945, %v944
        %v977 = vpack.c.b16 %v947, %v946
        %v978 = vpack.c.b16 %v949, %v948
        %v979 = vpack.c.b16 %v951, %v950
        %v980 = vpack.c.b16 %v953, %v952
        %v981 = vpack.c.b16 %v955, %v954
        %vm1008 = vcmask 261120
        %v1010 = vsel %vm1008, %v799, 0
        %v1013 = vsel %vm1008, %v803, 0
        %v1016 = vsel %vm1008, %v807, 0
        %v1019 = vsel %vm1008, %v811, 0
        %v1022 = vsel %vm1008, %v815, 0
        %v1025 = vsel %vm1008, %v819, 0
        %v1028 = vsel %vm1008, %v823, 0
        %v1031 = vsel %vm1008, %v827, 0
        %1033 = vmatprep.subr.bf16.mxu0 0
        %1034 = vmatpush1.bf16.msra.mxu0 %v963
        %1035 = vmatprep.subr.bf16.mxu0 0
        %1036 = vmatpush1.bf16.msra.mxu0 %v962
        %1037 = vmatprep.subr.bf16.mxu0 0
        %1038 = vmatpush1.bf16.msra.mxu0 %v961
        %1039 = vmatprep.subr.bf16.mxu0 0
        %1040 = vmatpush1.bf16.msra.mxu0 %v960
        %1041 = vmatprep.subr.bf16.mxu0 0
        %1042 = vmatpush1.bf16.msra.mxu0 %v959
        %1043 = vmatprep.subr.bf16.mxu0 0
        %1044 = vmatpush1.bf16.msra.mxu0 %v958
        %1045 = vmatprep.subr.bf16.mxu0 0
        %1046 = vmatpush1.bf16.msra.mxu0 %v957
        %1047 = vmatprep.subr.bf16.mxu0 0
        %1048 = vmatpush1.bf16.msra.mxu0 %v956
        %1049 = vmatprep.subr.bf16.mxu0 0
        %1050 = vmatpush2.bf16.msra.mxu0 %v971
        %1051 = vmatprep.subr.bf16.mxu0 0
        %1052 = vmatpush2.bf16.msra.mxu0 %v970
        %1053 = vmatprep.subr.bf16.mxu0 0
        %1054 = vmatpush2.bf16.msra.mxu0 %v969
        %1055 = vmatprep.subr.bf16.mxu0 0
        %1056 = vmatpush2.bf16.msra.mxu0 %v968
        %1057 = vmatprep.subr.bf16.mxu0 0
        %1058 = vmatpush2.bf16.msra.mxu0 %v967
        %1059 = vmatprep.subr.bf16.mxu0 0
        %1060 = vmatpush2.bf16.msra.mxu0 %v966
        %1061 = vmatprep.subr.bf16.mxu0 0
        %1062 = vmatpush2.bf16.msra.mxu0 %v965
        %1063 = vmatprep.subr.bf16.mxu0 0
        %1064 = vmatpush2.bf16.msra.mxu0 %v964
        %1065 = vmatprep.mubr.bf16.mxu0 %v797
        %1066 = vmatmul.mubr.bf16.gmra.mxu0 %v796
        %v1067 = vpop.f32.mrf.mxu0
        %v1068 = vadd.f32 %v698, %v1067
        %v1069 = vpop.f32.mrf.mxu0
        %v1070 = vpop.f32.mrf.mxu0
        %v1071 = vadd.f32 %v698, %v1070
        %v1072 = vpop.f32.mrf.mxu0
        %1073 = vmatprep.mubr.bf16.mxu0 %v801
        %1074 = vmatmul.mubr.bf16.gmra.mxu0 %v800
        %v1075 = vpop.f32.mrf.mxu0
        %v1076 = vadd.f32 %v698, %v1075
        %v1077 = vpop.f32.mrf.mxu0
        %v1078 = vpop.f32.mrf.mxu0
        %v1079 = vadd.f32 %v698, %v1078
        %v1080 = vpop.f32.mrf.mxu0
        %1081 = vmatprep.mubr.bf16.mxu0 %v805
        %1082 = vmatmul.mubr.bf16.gmra.mxu0 %v804
        %v1083 = vpop.f32.mrf.mxu0
        %v1084 = vadd.f32 %v698, %v1083
        %v1085 = vpop.f32.mrf.mxu0
        %v1086 = vpop.f32.mrf.mxu0
        %v1087 = vadd.f32 %v698, %v1086
        %v1088 = vpop.f32.mrf.mxu0
        %1089 = vmatprep.mubr.bf16.mxu0 %v809
        %1090 = vmatmul.mubr.bf16.gmra.mxu0 %v808
        %v1091 = vpop.f32.mrf.mxu0
        %v1092 = vadd.f32 %v698, %v1091
        %v1093 = vpop.f32.mrf.mxu0
        %v1094 = vpop.f32.mrf.mxu0
        %v1095 = vadd.f32 %v698, %v1094
        %v1096 = vpop.f32.mrf.mxu0
        %1097 = vmatprep.mubr.bf16.mxu0 %v813
        %1098 = vmatmul.mubr.bf16.gmra.mxu0 %v812
        %v1099 = vpop.f32.mrf.mxu0
        %v1100 = vadd.f32 %v698, %v1099
        %v1101 = vpop.f32.mrf.mxu0
        %v1102 = vpop.f32.mrf.mxu0
        %v1103 = vadd.f32 %v698, %v1102
        %v1104 = vpop.f32.mrf.mxu0
        %1105 = vmatprep.mubr.bf16.mxu0 %v817
        %1106 = vmatmul.mubr.bf16.gmra.mxu0 %v816
        %v1107 = vpop.f32.mrf.mxu0
        %v1108 = vadd.f32 %v698, %v1107
        %v1109 = vpop.f32.mrf.mxu0
        %v1110 = vpop.f32.mrf.mxu0
        %v1111 = vadd.f32 %v698, %v1110
        %v1112 = vpop.f32.mrf.mxu0
        %1113 = vmatprep.mubr.bf16.mxu0 %v821
        %1114 = vmatmul.mubr.bf16.gmra.mxu0 %v820
        %v1115 = vpop.f32.mrf.mxu0
        %v1116 = vadd.f32 %v698, %v1115
        %v1117 = vpop.f32.mrf.mxu0
        %v1118 = vpop.f32.mrf.mxu0
        %v1119 = vadd.f32 %v698, %v1118
        %v1120 = vpop.f32.mrf.mxu0
        %1121 = vmatprep.mubr.bf16.mxu0 %v825
        %1122 = vmatmul.mubr.bf16.gmra.mxu0 %v824
        %v1123 = vpop.f32.mrf.mxu0
        %v1124 = vadd.f32 %v698, %v1123
        %v1125 = vpop.f32.mrf.mxu0
        %v1126 = vpop.f32.mrf.mxu0
        %v1127 = vadd.f32 %v698, %v1126
        %v1128 = vpop.f32.mrf.mxu0
        %1129 = vdwg.mxu0
        %1130 = vmatprep.subr.bf16.mxu0 0
        %1131 = vmatpush1.bf16.msra.mxu0 %v979
        %1132 = vmatprep.subr.bf16.mxu0 0
        %1133 = vmatpush1.bf16.msra.mxu0 %v978
        %1134 = vmatprep.subr.bf16.mxu0 0
        %1135 = vmatpush1.bf16.msra.mxu0 %v977
        %1136 = vmatprep.subr.bf16.mxu0 0
        %1137 = vmatpush1.bf16.msra.mxu0 %v976
        %1138 = vmatprep.subr.bf16.mxu0 0
        %1139 = vmatpush1.bf16.msra.mxu0 %v975
        %1140 = vmatprep.subr.bf16.mxu0 0
        %1141 = vmatpush1.bf16.msra.mxu0 %v974
        %1142 = vmatprep.subr.bf16.mxu0 0
        %1143 = vmatpush1.bf16.msra.mxu0 %v973
        %1144 = vmatprep.subr.bf16.mxu0 0
        %1145 = vmatpush1.bf16.msra.mxu0 %v972
        %1146 = vmatprep.subr.bf16.mxu0 0
        %1147 = vmatpush2.bf16.msra.mxu0 0
        %1148 = vmatprep.subr.bf16.mxu0 0
        %1149 = vmatpush2.bf16.msra.mxu0 0
        %1150 = vmatprep.subr.bf16.mxu0 0
        %1151 = vmatpush2.bf16.msra.mxu0 0
        %1152 = vmatprep.subr.bf16.mxu0 0
        %1153 = vmatpush2.bf16.msra.mxu0 0
        %1154 = vmatprep.subr.bf16.mxu0 0
        %1155 = vmatpush2.bf16.msra.mxu0 0
        %1156 = vmatprep.subr.bf16.mxu0 0
        %1157 = vmatpush2.bf16.msra.mxu0 0
        %1158 = vmatprep.subr.bf16.mxu0 0
        %1159 = vmatpush2.bf16.msra.mxu0 %v981
        %1160 = vmatprep.subr.bf16.mxu0 0
        %1161 = vmatpush2.bf16.msra.mxu0 %v980
        %1162 = vmatprep.mubr.bf16.mxu0 %v1010
        %1163 = vmatmul.mubr.bf16.gmra.mxu0 %v798
        %v1164 = vpop.f32.mrf.mxu0
        %v1165 = vadd.f32 %v1068, %v1164
        %v1166 = vpop.f32.mrf.mxu0
        %v1167 = vpop.f32.mrf.mxu0
        %v1168 = vadd.f32 %v1071, %v1167
        %v1169 = vpop.f32.mrf.mxu0
        %1170 = vmatprep.mubr.bf16.mxu0 %v1013
        %1171 = vmatmul.mubr.bf16.gmra.mxu0 %v802
        %v1172 = vpop.f32.mrf.mxu0
        %v1173 = vadd.f32 %v1076, %v1172
        %v1174 = vpop.f32.mrf.mxu0
        %v1175 = vpop.f32.mrf.mxu0
        %v1176 = vadd.f32 %v1079, %v1175
        %v1177 = vpop.f32.mrf.mxu0
        %1178 = vmatprep.mubr.bf16.mxu0 %v1016
        %1179 = vmatmul.mubr.bf16.gmra.mxu0 %v806
        %v1180 = vpop.f32.mrf.mxu0
        %v1181 = vadd.f32 %v1084, %v1180
        %v1182 = vpop.f32.mrf.mxu0
        %v1183 = vpop.f32.mrf.mxu0
        %v1184 = vadd.f32 %v1087, %v1183
        %v1185 = vpop.f32.mrf.mxu0
        %1186 = vmatprep.mubr.bf16.mxu0 %v1019
        %1187 = vmatmul.mubr.bf16.gmra.mxu0 %v810
        %v1188 = vpop.f32.mrf.mxu0
        %v1189 = vadd.f32 %v1092, %v1188
        %v1190 = vpop.f32.mrf.mxu0
        %v1191 = vpop.f32.mrf.mxu0
        %v1192 = vadd.f32 %v1095, %v1191
        %v1193 = vpop.f32.mrf.mxu0
        %1194 = vmatprep.mubr.bf16.mxu0 %v1022
        %1195 = vmatmul.mubr.bf16.gmra.mxu0 %v814
        %v1196 = vpop.f32.mrf.mxu0
        %v1197 = vadd.f32 %v1100, %v1196
        %v1198 = vpop.f32.mrf.mxu0
        %v1199 = vpop.f32.mrf.mxu0
        %v1200 = vadd.f32 %v1103, %v1199
        %v1201 = vpop.f32.mrf.mxu0
        %1202 = vmatprep.mubr.bf16.mxu0 %v1025
        %1203 = vmatmul.mubr.bf16.gmra.mxu0 %v818
        %v1204 = vpop.f32.mrf.mxu0
        %v1205 = vadd.f32 %v1108, %v1204
        %v1206 = vpop.f32.mrf.mxu0
        %v1207 = vpop.f32.mrf.mxu0
        %v1208 = vadd.f32 %v1111, %v1207
        %v1209 = vpop.f32.mrf.mxu0
        %1210 = vmatprep.mubr.bf16.mxu0 %v1028
        %1211 = vmatmul.mubr.bf16.gmra.mxu0 %v822
        %v1212 = vpop.f32.mrf.mxu0
        %v1213 = vadd.f32 %v1116, %v1212
        %v1214 = vpop.f32.mrf.mxu0
        %v1215 = vpop.f32.mrf.mxu0
        %v1216 = vadd.f32 %v1119, %v1215
        %v1217 = vpop.f32.mrf.mxu0
        %1218 = vmatprep.mubr.bf16.mxu0 %v1031
        %1219 = vmatmul.mubr.bf16.gmra.mxu0 %v826
        %v1220 = vpop.f32.mrf.mxu0
        %v1221 = vadd.f32 %v1124, %v1220
        %v1222 = vpop.f32.mrf.mxu0
        %v1223 = vpop.f32.mrf.mxu0
        %v1224 = vadd.f32 %v1127, %v1223
        %v1225 = vpop.f32.mrf.mxu0
        %1226 = vdwg.mxu0
        %v1227 = vld [vmem:[%s590] sm:$0xff]
        %v1228 = vld [vmem:[%s590 + $0x8] sm:$0xff]
        %v1229 = vld [vmem:[%s590 + $0x10] sm:$0xff]
        %v1230 = vld [vmem:[%s590 + $0x18] sm:$0xff]
        %v1231 = vld [vmem:[%s590 + $0x20] sm:$0xff]
        %v1232 = vld [vmem:[%s590 + $0x28] sm:$0xff]
        %v1233 = vld [vmem:[%s590 + $0x30] sm:$0xff]
        %v1234 = vld [vmem:[%s590 + $0x38] sm:$0xff]
        %v1235 = vld [vmem:[%s590 + $0x40] sm:$0xff]
        %v1236 = vld [vmem:[%s590 + $0x48] sm:$0xff]
        %v1237 = vld [vmem:[%s590 + $0x50] sm:$0xff]
        %v1238 = vld [vmem:[%s590 + $0x58] sm:$0xff]
        %v1239 = vld [vmem:[%s590 + $0x60] sm:$0xff]
        %v1240 = vld [vmem:[%s590 + $0x68] sm:$0xff]
        %v1241 = vld [vmem:[%s590 + $0x70] sm:$0xff]
        %v1242 = vld [vmem:[%s590 + $0x78] sm:$0xff]
        %v1243 = vld [vmem:[%s530] sm:$0xff]
        %v1244 = vld [vmem:[%s530 + $0x8] sm:$0xff]
        %v1245 = vld [vmem:[%s530 + $0x10] sm:$0xff]
        %v1246 = vld [vmem:[%s530 + $0x18] sm:$0xff]
        %v1247 = vld [vmem:[%s530 + $0x20] sm:$0xff]
        %v1248 = vld [vmem:[%s530 + $0x28] sm:$0xff]
        %v1249 = vld [vmem:[%s530 + $0x30] sm:$0xff]
        %v1250 = vld [vmem:[%s530 + $0x38] sm:$0xff]
        %v1251 = vld [vmem:[%s530 + $0x40] sm:$0xff]
        %v1252 = vld [vmem:[%s530 + $0x48] sm:$0xff]
        %v1253 = vld [vmem:[%s530 + $0x50] sm:$0xff]
        %v1254 = vld [vmem:[%s530 + $0x58] sm:$0xff]
        %v1255 = vld [vmem:[%s530 + $0x60] sm:$0xff]
        %v1256 = vld [vmem:[%s530 + $0x68] sm:$0xff]
        %v1257 = vld [vmem:[%s530 + $0x70] sm:$0xff]
        %v1258 = vld [vmem:[%s530 + $0x78] sm:$0xff]
        %v1259 = vld [vmem:[%s530 + $0x80] sm:$0xff]
        %v1260 = vld [vmem:[%s530 + $0x88] sm:$0xff]
        %v1261 = vld [vmem:[%s530 + $0x90] sm:$0xff]
        %v1262 = vld [vmem:[%s530 + $0x98] sm:$0xff]
        %v1263 = vld [vmem:[%s530 + $0xa0] sm:$0xff]
        %v1264 = vld [vmem:[%s530 + $0xa8] sm:$0xff]
        %v1265 = vld [vmem:[%s530 + $0xb0] sm:$0xff]
        %v1266 = vld [vmem:[%s530 + $0xb8] sm:$0xff]
        %v1267 = vld [vmem:[%s530 + $0xc0] sm:$0xff]
        %v1268 = vld [vmem:[%s530 + $0xc8] sm:$0xff]
        %v1269 = vld [vmem:[%s530 + $0xd0] sm:$0xff]
        %v1270 = vld [vmem:[%s530 + $0xd8] sm:$0xff]
        %v1271 = vld [vmem:[%s530 + $0xe0] sm:$0xff]
        %v1272 = vld [vmem:[%s530 + $0xe8] sm:$0xff]
        %v1273 = vld [vmem:[%s530 + $0xf0] sm:$0xff]
        %v1274 = vld [vmem:[%s530 + $0xf8] sm:$0xff]
        %v1275 = vld [vmem:[%s530 + $0x100] sm:$0xff]
        %v1276 = vld [vmem:[%s530 + $0x108] sm:$0xff]
        %v1277 = vld [vmem:[%s530 + $0x110] sm:$0xff]
        %v1278 = vld [vmem:[%s530 + $0x118] sm:$0xff]
        %v1279 = vld [vmem:[%s530 + $0x120] sm:$0xff]
        %v1280 = vld [vmem:[%s530 + $0x128] sm:$0xff]
        %v1281 = vld [vmem:[%s530 + $0x130] sm:$0xff]
        %v1282 = vld [vmem:[%s530 + $0x138] sm:$0xff]
        %v1283 = vld [vmem:[%s530 + $0x140] sm:$0xff]
        %v1284 = vld [vmem:[%s530 + $0x148] sm:$0xff]
        %v1285 = vld [vmem:[%s530 + $0x150] sm:$0xff]
        %v1286 = vld [vmem:[%s530 + $0x158] sm:$0xff]
        %v1287 = vld [vmem:[%s530 + $0x160] sm:$0xff]
        %v1288 = vld [vmem:[%s530 + $0x168] sm:$0xff]
        %v1289 = vld [vmem:[%s530 + $0x170] sm:$0xff]
        %v1290 = vld [vmem:[%s530 + $0x178] sm:$0xff]
        %v1291 = vld [vmem:[%s530 + $0x180] sm:$0xff]
        %v1292 = vld [vmem:[%s530 + $0x188] sm:$0xff]
        %v1293 = vld [vmem:[%s530 + $0x190] sm:$0xff]
        %v1294 = vld [vmem:[%s530 + $0x198] sm:$0xff]
        %v1295 = vld [vmem:[%s530 + $0x1a0] sm:$0xff]
        %v1296 = vld [vmem:[%s530 + $0x1a8] sm:$0xff]
        %v1297 = vld [vmem:[%s530 + $0x1b0] sm:$0xff]
        %v1298 = vld [vmem:[%s530 + $0x1b8] sm:$0xff]
        %v1299 = vld [vmem:[%s530 + $0x1c0] sm:$0xff]
        %v1300 = vld [vmem:[%s530 + $0x1c8] sm:$0xff]
        %v1301 = vld [vmem:[%s530 + $0x1d0] sm:$0xff]
        %v1302 = vld [vmem:[%s530 + $0x1d8] sm:$0xff]
        %v1303 = vld [vmem:[%s530 + $0x1e0] sm:$0xff]
        %v1304 = vld [vmem:[%s530 + $0x1e8] sm:$0xff]
        %v1305 = vld [vmem:[%s530 + $0x1f0] sm:$0xff]
        %v1306 = vld [vmem:[%s530 + $0x1f8] sm:$0xff]
        %v1307 = vpack.c.bf16 %v1168, %v1165
        %v1308 = vpack.c.bf16 %v1176, %v1173
        %v1309 = vpack.c.bf16 %v1184, %v1181
        %v1310 = vpack.c.bf16 %v1192, %v1189
        %v1311 = vpack.c.bf16 %v1200, %v1197
        %v1312 = vpack.c.bf16 %v1208, %v1205
        %v1313 = vpack.c.bf16 %v1216, %v1213
        %v1314 = vpack.c.bf16 %v1224, %v1221
        %v1315 = vld [vmem:[%s537] sm:$0xff]
        %v1316 = vld [vmem:[%s537 + $0x8] sm:$0xff]
        %v1317 = vld [vmem:[%s537 + $0x10] sm:$0xff]
        %v1318 = vld [vmem:[%s537 + $0x18] sm:$0xff]
        %v1319 = vld [vmem:[%s537 + $0x20] sm:$0xff]
        %v1320 = vld [vmem:[%s537 + $0x28] sm:$0xff]
        %v1321 = vld [vmem:[%s537 + $0x30] sm:$0xff]
        %v1322 = vld [vmem:[%s537 + $0x38] sm:$0xff]
        %v1323 = vld [vmem:[%s537 + $0x40] sm:$0xff]
        %v1324 = vld [vmem:[%s537 + $0x48] sm:$0xff]
        %v1325 = vld [vmem:[%s537 + $0x50] sm:$0xff]
        %v1326 = vld [vmem:[%s537 + $0x58] sm:$0xff]
        %v1327 = vld [vmem:[%s537 + $0x60] sm:$0xff]
        %v1328 = vld [vmem:[%s537 + $0x68] sm:$0xff]
        %v1329 = vld [vmem:[%s537 + $0x70] sm:$0xff]
        %v1330 = vld [vmem:[%s537 + $0x78] sm:$0xff]
        %v1331 = vld [vmem:[%s537 + $0x80] sm:$0xff]
        %v1332 = vld [vmem:[%s537 + $0x88] sm:$0xff]
        %v1333 = vld [vmem:[%s537 + $0x90] sm:$0xff]
        %v1334 = vld [vmem:[%s537 + $0x98] sm:$0xff]
        %v1335 = vld [vmem:[%s537 + $0xa0] sm:$0xff]
        %v1336 = vld [vmem:[%s537 + $0xa8] sm:$0xff]
        %v1337 = vld [vmem:[%s537 + $0xb0] sm:$0xff]
        %v1338 = vld [vmem:[%s537 + $0xb8] sm:$0xff]
        %v1339 = vld [vmem:[%s537 + $0xc0] sm:$0xff]
        %v1340 = vld [vmem:[%s537 + $0xc8] sm:$0xff]
        %v1341 = vld [vmem:[%s537 + $0xd0] sm:$0xff]
        %v1342 = vld [vmem:[%s537 + $0xd8] sm:$0xff]
        %v1343 = vld [vmem:[%s537 + $0xe0] sm:$0xff]
        %v1344 = vld [vmem:[%s537 + $0xe8] sm:$0xff]
        %v1345 = vld [vmem:[%s537 + $0xf0] sm:$0xff]
        %v1346 = vld [vmem:[%s537 + $0xf8] sm:$0xff]
        %v1379 = vunpack.c.l.b16 %v1315
        %v1380 = vunpack.c.h.b16 %v1315
        %v1381 = vunpack.c.l.b16 %v1316
        %v1382 = vunpack.c.h.b16 %v1316
        %v1383 = vunpack.c.l.b16 %v1317
        %v1384 = vunpack.c.h.b16 %v1317
        %v1385 = vunpack.c.l.b16 %v1318
        %v1386 = vunpack.c.h.b16 %v1318
        %v1387 = vunpack.c.l.b16 %v1319
        %v1388 = vunpack.c.h.b16 %v1319
        %v1389 = vunpack.c.l.b16 %v1320
        %v1390 = vunpack.c.h.b16 %v1320
        %v1391 = vunpack.c.l.b16 %v1321
        %v1392 = vunpack.c.h.b16 %v1321
        %v1393 = vunpack.c.l.b16 %v1322
        %v1394 = vunpack.c.h.b16 %v1322
        %v1395 = vunpack.c.l.b16 %v1323
        %v1396 = vunpack.c.h.b16 %v1323
        %v1397 = vunpack.c.l.b16 %v1324
        %v1398 = vunpack.c.h.b16 %v1324
        %v1399 = vunpack.c.l.b16 %v1325
        %v1400 = vunpack.c.h.b16 %v1325
        %v1401 = vunpack.c.l.b16 %v1326
        %v1402 = vunpack.c.h.b16 %v1326
        %v1403 = vunpack.c.l.b16 %v1327
        %v1404 = vunpack.c.h.b16 %v1327
        %v1405 = vunpack.c.l.b16 %v1328
        %v1406 = vunpack.c.h.b16 %v1328
        %v1407 = vunpack.c.l.b16 %v1329
        %v1408 = vunpack.c.h.b16 %v1329
        %v1409 = vunpack.c.l.b16 %v1330
        %v1410 = vunpack.c.h.b16 %v1330
        %v1411 = vunpack.c.l.b16 %v1331
        %v1412 = vunpack.c.h.b16 %v1331
        %v1413 = vunpack.c.l.b16 %v1332
        %v1414 = vunpack.c.h.b16 %v1332
        %v1415 = vunpack.c.l.b16 %v1333
        %v1416 = vunpack.c.h.b16 %v1333
        %v1417 = vunpack.c.l.b16 %v1334
        %v1418 = vunpack.c.h.b16 %v1334
        %v1419 = vunpack.c.l.b16 %v1335
        %v1420 = vunpack.c.h.b16 %v1335
        %v1421 = vunpack.c.l.b16 %v1336
        %v1422 = vunpack.c.h.b16 %v1336
        %v1423 = vunpack.c.l.b16 %v1337
        %v1424 = vunpack.c.h.b16 %v1337
        %v1425 = vunpack.c.l.b16 %v1338
        %v1426 = vunpack.c.h.b16 %v1338
        %v1427 = vunpack.c.l.b16 %v1339
        %v1428 = vunpack.c.h.b16 %v1339
        %v1429 = vunpack.c.l.b16 %v1340
        %v1430 = vunpack.c.h.b16 %v1340
        %v1431 = vunpack.c.l.b16 %v1341
        %v1432 = vunpack.c.h.b16 %v1341
        %v1433 = vunpack.c.l.b16 %v1342
        %v1434 = vunpack.c.h.b16 %v1342
        %v1435 = vunpack.c.l.b16 %v1343
        %v1436 = vunpack.c.h.b16 %v1343
        %v1437 = vunpack.c.l.b16 %v1344
        %v1438 = vunpack.c.h.b16 %v1344
        %v1439 = vunpack.c.l.b16 %v1345
        %v1440 = vunpack.c.h.b16 %v1345
        %v1441 = vunpack.c.l.b16 %v1346
        %v1442 = vunpack.c.h.b16 %v1346
        %v1443 = vpack.c.b16 %v1383, %v1379
        %v1444 = vpack.c.b16 %v1384, %v1380
        %v1445 = vpack.c.b16 %v1385, %v1381
        %v1446 = vpack.c.b16 %v1386, %v1382
        %v1447 = vpack.c.b16 %v1391, %v1387
        %v1448 = vpack.c.b16 %v1392, %v1388
        %v1449 = vpack.c.b16 %v1393, %v1389
        %v1450 = vpack.c.b16 %v1394, %v1390
        %v1451 = vpack.c.b16 %v1399, %v1395
        %v1452 = vpack.c.b16 %v1400, %v1396
        %v1453 = vpack.c.b16 %v1401, %v1397
        %v1454 = vpack.c.b16 %v1402, %v1398
        %v1455 = vpack.c.b16 %v1407, %v1403
        %v1456 = vpack.c.b16 %v1408, %v1404
        %v1457 = vpack.c.b16 %v1409, %v1405
        %v1458 = vpack.c.b16 %v1410, %v1406
        %v1459 = vpack.c.b16 %v1415, %v1411
        %v1460 = vpack.c.b16 %v1416, %v1412
        %v1461 = vpack.c.b16 %v1417, %v1413
        %v1462 = vpack.c.b16 %v1418, %v1414
        %v1463 = vpack.c.b16 %v1423, %v1419
        %v1464 = vpack.c.b16 %v1424, %v1420
        %v1465 = vpack.c.b16 %v1425, %v1421
        %v1466 = vpack.c.b16 %v1426, %v1422
        %v1467 = vpack.c.b16 %v1431, %v1427
        %v1468 = vpack.c.b16 %v1432, %v1428
        %v1469 = vpack.c.b16 %v1433, %v1429
        %v1470 = vpack.c.b16 %v1434, %v1430
        %v1471 = vpack.c.b16 %v1439, %v1435
        %v1472 = vpack.c.b16 %v1440, %v1436
        %v1473 = vpack.c.b16 %v1441, %v1437
        %v1474 = vpack.c.b16 %v1442, %v1438
        %1507 = vmatprep.subr.bf16.mxu0 %v1472
        %1508 = vmatpush1.bf16.msra.mxu0 %v1471
        %1509 = vmatprep.subr.bf16.mxu0 %v1468
        %1510 = vmatpush1.bf16.msra.mxu0 %v1467
        %1511 = vmatprep.subr.bf16.mxu0 %v1464
        %1512 = vmatpush1.bf16.msra.mxu0 %v1463
        %1513 = vmatprep.subr.bf16.mxu0 %v1460
        %1514 = vmatpush1.bf16.msra.mxu0 %v1459
        %1515 = vmatprep.subr.bf16.mxu0 %v1456
        %1516 = vmatpush1.bf16.msra.mxu0 %v1455
        %1517 = vmatprep.subr.bf16.mxu0 %v1452
        %1518 = vmatpush1.bf16.msra.mxu0 %v1451
        %1519 = vmatprep.subr.bf16.mxu0 %v1448
        %1520 = vmatpush1.bf16.msra.mxu0 %v1447
        %1521 = vmatprep.subr.bf16.mxu0 %v1444
        %1522 = vmatpush1.bf16.msra.mxu0 %v1443
        %1523 = vmatprep.subr.bf16.mxu0 0
        %1524 = vmatpush2.bf16.msra.mxu0 0
        %1525 = vmatprep.subr.bf16.mxu0 0
        %1526 = vmatpush2.bf16.msra.mxu0 0
        %1527 = vmatprep.subr.bf16.mxu0 0
        %1528 = vmatpush2.bf16.msra.mxu0 0
        %1529 = vmatprep.subr.bf16.mxu0 0
        %1530 = vmatpush2.bf16.msra.mxu0 0
        %1531 = vmatprep.subr.bf16.mxu0 0
        %1532 = vmatpush2.bf16.msra.mxu0 0
        %1533 = vmatprep.subr.bf16.mxu0 0
        %1534 = vmatpush2.bf16.msra.mxu0 0
        %1535 = vmatprep.subr.bf16.mxu0 0
        %1536 = vmatpush2.bf16.msra.mxu0 0
        %1537 = vmatprep.subr.bf16.mxu0 0
        %1538 = vmatpush2.bf16.msra.mxu0 0
        %1539 = vmatprep.mubr.bf16.mxu0 0
        %1540 = vmatmul.mubr.bf16.gmra.mxu0 %v1307
        %v1541 = vpop.f32.mrf.mxu0
        %v1542 = vadd.f32 0.0, %v1541
        %v1543 = vpop.f32.mrf.mxu0
        %v1544 = vadd.f32 0.0, %v1543
        %v1545 = vpop.f32.mrf.mxu0
        %v1546 = vadd.f32 0.0, %v1545
        %v1547 = vpop.f32.mrf.mxu0
        %v1548 = vadd.f32 0.0, %v1547
        %1549 = vmatprep.mubr.bf16.mxu0 0
        %1550 = vmatmul.mubr.bf16.gmra.mxu0 %v1308
        %v1551 = vpop.f32.mrf.mxu0
        %v1552 = vadd.f32 0.0, %v1551
        %v1553 = vpop.f32.mrf.mxu0
        %v1554 = vadd.f32 0.0, %v1553
        %v1555 = vpop.f32.mrf.mxu0
        %v1556 = vadd.f32 0.0, %v1555
        %v1557 = vpop.f32.mrf.mxu0
        %v1558 = vadd.f32 0.0, %v1557
        %1559 = vmatprep.mubr.bf16.mxu0 0
        %1560 = vmatmul.mubr.bf16.gmra.mxu0 %v1309
        %v1561 = vpop.f32.mrf.mxu0
        %v1562 = vadd.f32 0.0, %v1561
        %v1563 = vpop.f32.mrf.mxu0
        %v1564 = vadd.f32 0.0, %v1563
        %v1565 = vpop.f32.mrf.mxu0
        %v1566 = vadd.f32 0.0, %v1565
        %v1567 = vpop.f32.mrf.mxu0
        %v1568 = vadd.f32 0.0, %v1567
        %1569 = vmatprep.mubr.bf16.mxu0 0
        %1570 = vmatmul.mubr.bf16.gmra.mxu0 %v1310
        %v1571 = vpop.f32.mrf.mxu0
        %v1572 = vadd.f32 0.0, %v1571
        %v1573 = vpop.f32.mrf.mxu0
        %v1574 = vadd.f32 0.0, %v1573
        %v1575 = vpop.f32.mrf.mxu0
        %v1576 = vadd.f32 0.0, %v1575
        %v1577 = vpop.f32.mrf.mxu0
        %v1578 = vadd.f32 0.0, %v1577
        %1579 = vmatprep.mubr.bf16.mxu0 0
        %1580 = vmatmul.mubr.bf16.gmra.mxu0 %v1311
        %v1581 = vpop.f32.mrf.mxu0
        %v1582 = vadd.f32 0.0, %v1581
        %v1583 = vpop.f32.mrf.mxu0
        %v1584 = vadd.f32 0.0, %v1583
        %v1585 = vpop.f32.mrf.mxu0
        %v1586 = vadd.f32 0.0, %v1585
        %v1587 = vpop.f32.mrf.mxu0
        %v1588 = vadd.f32 0.0, %v1587
        %1589 = vmatprep.mubr.bf16.mxu0 0
        %1590 = vmatmul.mubr.bf16.gmra.mxu0 %v1312
        %v1591 = vpop.f32.mrf.mxu0
        %v1592 = vadd.f32 0.0, %v1591
        %v1593 = vpop.f32.mrf.mxu0
        %v1594 = vadd.f32 0.0, %v1593
        %v1595 = vpop.f32.mrf.mxu0
        %v1596 = vadd.f32 0.0, %v1595
        %v1597 = vpop.f32.mrf.mxu0
        %v1598 = vadd.f32 0.0, %v1597
        %1599 = vmatprep.mubr.bf16.mxu0 0
        %1600 = vmatmul.mubr.bf16.gmra.mxu0 %v1313
        %v1601 = vpop.f32.mrf.mxu0
        %v1602 = vadd.f32 0.0, %v1601
        %v1603 = vpop.f32.mrf.mxu0
        %v1604 = vadd.f32 0.0, %v1603
        %v1605 = vpop.f32.mrf.mxu0
        %v1606 = vadd.f32 0.0, %v1605
        %v1607 = vpop.f32.mrf.mxu0
        %v1608 = vadd.f32 0.0, %v1607
        %1609 = vmatprep.mubr.bf16.mxu0 0
        %1610 = vmatmul.mubr.bf16.gmra.mxu0 %v1314
        %v1611 = vpop.f32.mrf.mxu0
        %v1612 = vadd.f32 0.0, %v1611
        %v1613 = vpop.f32.mrf.mxu0
        %v1614 = vadd.f32 0.0, %v1613
        %v1615 = vpop.f32.mrf.mxu0
        %v1616 = vadd.f32 0.0, %v1615
        %v1617 = vpop.f32.mrf.mxu0
        %v1618 = vadd.f32 0.0, %v1617
        %1619 = vdwg.mxu0
        %1620 = vmatprep.subr.bf16.mxu0 %v1474
        %1621 = vmatpush1.bf16.msra.mxu0 %v1473
        %1622 = vmatprep.subr.bf16.mxu0 %v1470
        %1623 = vmatpush1.bf16.msra.mxu0 %v1469
        %1624 = vmatprep.subr.bf16.mxu0 %v1466
        %1625 = vmatpush1.bf16.msra.mxu0 %v1465
        %1626 = vmatprep.subr.bf16.mxu0 %v1462
        %1627 = vmatpush1.bf16.msra.mxu0 %v1461
        %1628 = vmatprep.subr.bf16.mxu0 %v1458
        %1629 = vmatpush1.bf16.msra.mxu0 %v1457
        %1630 = vmatprep.subr.bf16.mxu0 %v1454
        %1631 = vmatpush1.bf16.msra.mxu0 %v1453
        %1632 = vmatprep.subr.bf16.mxu0 %v1450
        %1633 = vmatpush1.bf16.msra.mxu0 %v1449
        %1634 = vmatprep.subr.bf16.mxu0 %v1446
        %1635 = vmatpush1.bf16.msra.mxu0 %v1445
        %1636 = vmatprep.subr.bf16.mxu0 0
        %1637 = vmatpush2.bf16.msra.mxu0 0
        %1638 = vmatprep.subr.bf16.mxu0 0
        %1639 = vmatpush2.bf16.msra.mxu0 0
        %1640 = vmatprep.subr.bf16.mxu0 0
        %1641 = vmatpush2.bf16.msra.mxu0 0
        %1642 = vmatprep.subr.bf16.mxu0 0
        %1643 = vmatpush2.bf16.msra.mxu0 0
        %1644 = vmatprep.subr.bf16.mxu0 0
        %1645 = vmatpush2.bf16.msra.mxu0 0
        %1646 = vmatprep.subr.bf16.mxu0 0
        %1647 = vmatpush2.bf16.msra.mxu0 0
        %1648 = vmatprep.subr.bf16.mxu0 0
        %1649 = vmatpush2.bf16.msra.mxu0 0
        %1650 = vmatprep.subr.bf16.mxu0 0
        %1651 = vmatpush2.bf16.msra.mxu0 0
        %1652 = vmatprep.mubr.bf16.mxu0 0
        %1653 = vmatmul.mubr.bf16.gmra.mxu0 %v1307
        %v1654 = vpop.f32.mrf.mxu0
        %v1655 = vadd.f32 0.0, %v1654
        %v1656 = vpop.f32.mrf.mxu0
        %v1657 = vadd.f32 0.0, %v1656
        %v1658 = vpop.f32.mrf.mxu0
        %v1659 = vadd.f32 0.0, %v1658
        %v1660 = vpop.f32.mrf.mxu0
        %v1661 = vadd.f32 0.0, %v1660
        %1662 = vmatprep.mubr.bf16.mxu0 0
        %1663 = vmatmul.mubr.bf16.gmra.mxu0 %v1308
        %v1664 = vpop.f32.mrf.mxu0
        %v1665 = vadd.f32 0.0, %v1664
        %v1666 = vpop.f32.mrf.mxu0
        %v1667 = vadd.f32 0.0, %v1666
        %v1668 = vpop.f32.mrf.mxu0
        %v1669 = vadd.f32 0.0, %v1668
        %v1670 = vpop.f32.mrf.mxu0
        %v1671 = vadd.f32 0.0, %v1670
        %1672 = vmatprep.mubr.bf16.mxu0 0
        %1673 = vmatmul.mubr.bf16.gmra.mxu0 %v1309
        %v1674 = vpop.f32.mrf.mxu0
        %v1675 = vadd.f32 0.0, %v1674
        %v1676 = vpop.f32.mrf.mxu0
        %v1677 = vadd.f32 0.0, %v1676
        %v1678 = vpop.f32.mrf.mxu0
        %v1679 = vadd.f32 0.0, %v1678
        %v1680 = vpop.f32.mrf.mxu0
        %v1681 = vadd.f32 0.0, %v1680
        %1682 = vmatprep.mubr.bf16.mxu0 0
        %1683 = vmatmul.mubr.bf16.gmra.mxu0 %v1310
        %v1684 = vpop.f32.mrf.mxu0
        %v1685 = vadd.f32 0.0, %v1684
        %v1686 = vpop.f32.mrf.mxu0
        %v1687 = vadd.f32 0.0, %v1686
        %v1688 = vpop.f32.mrf.mxu0
        %v1689 = vadd.f32 0.0, %v1688
        %v1690 = vpop.f32.mrf.mxu0
        %v1691 = vadd.f32 0.0, %v1690
        %1692 = vmatprep.mubr.bf16.mxu0 0
        %1693 = vmatmul.mubr.bf16.gmra.mxu0 %v1311
        %v1694 = vpop.f32.mrf.mxu0
        %v1695 = vadd.f32 0.0, %v1694
        %v1696 = vpop.f32.mrf.mxu0
        %v1697 = vadd.f32 0.0, %v1696
        %v1698 = vpop.f32.mrf.mxu0
        %v1699 = vadd.f32 0.0, %v1698
        %v1700 = vpop.f32.mrf.mxu0
        %v1701 = vadd.f32 0.0, %v1700
        %1702 = vmatprep.mubr.bf16.mxu0 0
        %1703 = vmatmul.mubr.bf16.gmra.mxu0 %v1312
        %v1704 = vpop.f32.mrf.mxu0
        %v1705 = vadd.f32 0.0, %v1704
        %v1706 = vpop.f32.mrf.mxu0
        %v1707 = vadd.f32 0.0, %v1706
        %v1708 = vpop.f32.mrf.mxu0
        %v1709 = vadd.f32 0.0, %v1708
        %v1710 = vpop.f32.mrf.mxu0
        %v1711 = vadd.f32 0.0, %v1710
        %1712 = vmatprep.mubr.bf16.mxu0 0
        %1713 = vmatmul.mubr.bf16.gmra.mxu0 %v1313
        %v1714 = vpop.f32.mrf.mxu0
        %v1715 = vadd.f32 0.0, %v1714
        %v1716 = vpop.f32.mrf.mxu0
        %v1717 = vadd.f32 0.0, %v1716
        %v1718 = vpop.f32.mrf.mxu0
        %v1719 = vadd.f32 0.0, %v1718
        %v1720 = vpop.f32.mrf.mxu0
        %v1721 = vadd.f32 0.0, %v1720
        %1722 = vmatprep.mubr.bf16.mxu0 0
        %1723 = vmatmul.mubr.bf16.gmra.mxu0 %v1314
        %v1724 = vpop.f32.mrf.mxu0
        %v1725 = vadd.f32 0.0, %v1724
        %v1726 = vpop.f32.mrf.mxu0
        %v1727 = vadd.f32 0.0, %v1726
        %v1728 = vpop.f32.mrf.mxu0
        %v1729 = vadd.f32 0.0, %v1728
        %v1730 = vpop.f32.mrf.mxu0
        %v1731 = vadd.f32 0.0, %v1730
        %1732 = vdwg.mxu0
        %v1749 = vunpack.c.l.b16 %v1227
        %v1750 = vunpack.c.h.b16 %v1227
        %v1751 = vunpack.c.l.b16 %v1228
        %v1752 = vunpack.c.h.b16 %v1228
        %v1753 = vunpack.c.l.b16 %v1229
        %v1754 = vunpack.c.h.b16 %v1229
        %v1755 = vunpack.c.l.b16 %v1230
        %v1756 = vunpack.c.h.b16 %v1230
        %v1757 = vunpack.c.l.b16 %v1231
        %v1758 = vunpack.c.h.b16 %v1231
        %v1759 = vunpack.c.l.b16 %v1232
        %v1760 = vunpack.c.h.b16 %v1232
        %v1761 = vunpack.c.l.b16 %v1233
        %v1762 = vunpack.c.h.b16 %v1233
        %v1763 = vunpack.c.l.b16 %v1234
        %v1764 = vunpack.c.h.b16 %v1234
        %v1765 = vunpack.c.l.b16 %v1235
        %v1766 = vunpack.c.h.b16 %v1235
        %v1767 = vunpack.c.l.b16 %v1236
        %v1768 = vunpack.c.h.b16 %v1236
        %v1769 = vunpack.c.l.b16 %v1237
        %v1770 = vunpack.c.h.b16 %v1237
        %v1771 = vunpack.c.l.b16 %v1238
        %v1772 = vunpack.c.h.b16 %v1238
        %v1773 = vunpack.c.l.b16 %v1239
        %v1774 = vunpack.c.h.b16 %v1239
        %v1775 = vunpack.c.l.b16 %v1240
        %v1776 = vunpack.c.h.b16 %v1240
        %v1777 = vunpack.c.l.b16 %v1241
        %v1778 = vunpack.c.h.b16 %v1241
        %v1779 = vunpack.c.l.b16 %v1242
        %v1780 = vunpack.c.h.b16 %v1242
        %v1781 = vpack.c.b16 %v1751, %v1749
        %v1782 = vpack.c.b16 %v1752, %v1750
        %v1783 = vpack.c.b16 %v1755, %v1753
        %v1784 = vpack.c.b16 %v1756, %v1754
        %v1785 = vpack.c.b16 %v1759, %v1757
        %v1786 = vpack.c.b16 %v1760, %v1758
        %v1787 = vpack.c.b16 %v1763, %v1761
        %v1788 = vpack.c.b16 %v1764, %v1762
        %v1789 = vpack.c.b16 %v1767, %v1765
        %v1790 = vpack.c.b16 %v1768, %v1766
        %v1791 = vpack.c.b16 %v1771, %v1769
        %v1792 = vpack.c.b16 %v1772, %v1770
        %v1793 = vpack.c.b16 %v1775, %v1773
        %v1794 = vpack.c.b16 %v1776, %v1774
        %v1795 = vpack.c.b16 %v1779, %v1777
        %v1796 = vpack.c.b16 %v1780, %v1778
        %v1877 = vunpack.c.l.b16 %v1243
        %v1878 = vunpack.c.h.b16 %v1243
        %v1879 = vunpack.c.l.b16 %v1244
        %v1880 = vunpack.c.h.b16 %v1244
        %v1881 = vunpack.c.l.b16 %v1245
        %v1882 = vunpack.c.h.b16 %v1245
        %v1883 = vunpack.c.l.b16 %v1246
        %v1884 = vunpack.c.h.b16 %v1246
        %v1885 = vunpack.c.l.b16 %v1247
        %v1886 = vunpack.c.h.b16 %v1247
        %v1887 = vunpack.c.l.b16 %v1248
        %v1888 = vunpack.c.h.b16 %v1248
        %v1889 = vunpack.c.l.b16 %v1249
        %v1890 = vunpack.c.h.b16 %v1249
        %v1891 = vunpack.c.l.b16 %v1250
        %v1892 = vunpack.c.h.b16 %v1250
        %v1893 = vunpack.c.l.b16 %v1251
        %v1894 = vunpack.c.h.b16 %v1251
        %v1895 = vunpack.c.l.b16 %v1252
        %v1896 = vunpack.c.h.b16 %v1252
        %v1897 = vunpack.c.l.b16 %v1253
        %v1898 = vunpack.c.h.b16 %v1253
        %v1899 = vunpack.c.l.b16 %v1254
        %v1900 = vunpack.c.h.b16 %v1254
        %v1901 = vunpack.c.l.b16 %v1255
        %v1902 = vunpack.c.h.b16 %v1255
        %v1903 = vunpack.c.l.b16 %v1256
        %v1904 = vunpack.c.h.b16 %v1256
        %v1905 = vunpack.c.l.b16 %v1257
        %v1906 = vunpack.c.h.b16 %v1257
        %v1907 = vunpack.c.l.b16 %v1258
        %v1908 = vunpack.c.h.b16 %v1258
        %v1909 = vunpack.c.l.b16 %v1259
        %v1910 = vunpack.c.h.b16 %v1259
        %v1911 = vunpack.c.l.b16 %v1260
        %v1912 = vunpack.c.h.b16 %v1260
        %v1913 = vunpack.c.l.b16 %v1261
        %v1914 = vunpack.c.h.b16 %v1261
        %v1915 = vunpack.c.l.b16 %v1262
        %v1916 = vunpack.c.h.b16 %v1262
        %v1917 = vunpack.c.l.b16 %v1263
        %v1918 = vunpack.c.h.b16 %v1263
        %v1919 = vunpack.c.l.b16 %v1264
        %v1920 = vunpack.c.h.b16 %v1264
        %v1921 = vunpack.c.l.b16 %v1265
        %v1922 = vunpack.c.h.b16 %v1265
        %v1923 = vunpack.c.l.b16 %v1266
        %v1924 = vunpack.c.h.b16 %v1266
        %v1925 = vunpack.c.l.b16 %v1267
        %v1926 = vunpack.c.h.b16 %v1267
        %v1927 = vunpack.c.l.b16 %v1268
        %v1928 = vunpack.c.h.b16 %v1268
        %v1929 = vunpack.c.l.b16 %v1269
        %v1930 = vunpack.c.h.b16 %v1269
        %v1931 = vunpack.c.l.b16 %v1270
        %v1932 = vunpack.c.h.b16 %v1270
        %v1933 = vunpack.c.l.b16 %v1271
        %v1934 = vunpack.c.h.b16 %v1271
        %v1935 = vunpack.c.l.b16 %v1272
        %v1936 = vunpack.c.h.b16 %v1272
        %v1937 = vunpack.c.l.b16 %v1273
        %v1938 = vunpack.c.h.b16 %v1273
        %v1939 = vunpack.c.l.b16 %v1274
        %v1940 = vunpack.c.h.b16 %v1274
        %v1941 = vunpack.c.l.b16 %v1275
        %v1942 = vunpack.c.h.b16 %v1275
        %v1943 = vunpack.c.l.b16 %v1276
        %v1944 = vunpack.c.h.b16 %v1276
        %v1945 = vunpack.c.l.b16 %v1277
        %v1946 = vunpack.c.h.b16 %v1277
        %v1947 = vunpack.c.l.b16 %v1278
        %v1948 = vunpack.c.h.b16 %v1278
        %v1949 = vunpack.c.l.b16 %v1279
        %v1950 = vunpack.c.h.b16 %v1279
        %v1951 = vunpack.c.l.b16 %v1280
        %v1952 = vunpack.c.h.b16 %v1280
        %v1953 = vunpack.c.l.b16 %v1281
        %v1954 = vunpack.c.h.b16 %v1281
        %v1955 = vunpack.c.l.b16 %v1282
        %v1956 = vunpack.c.h.b16 %v1282
        %v1957 = vunpack.c.l.b16 %v1283
        %v1958 = vunpack.c.h.b16 %v1283
        %v1959 = vunpack.c.l.b16 %v1284
        %v1960 = vunpack.c.h.b16 %v1284
        %v1961 = vunpack.c.l.b16 %v1285
        %v1962 = vunpack.c.h.b16 %v1285
        %v1963 = vunpack.c.l.b16 %v1286
        %v1964 = vunpack.c.h.b16 %v1286
        %v1965 = vunpack.c.l.b16 %v1287
        %v1966 = vunpack.c.h.b16 %v1287
        %v1967 = vunpack.c.l.b16 %v1288
        %v1968 = vunpack.c.h.b16 %v1288
        %v1969 = vunpack.c.l.b16 %v1289
        %v1970 = vunpack.c.h.b16 %v1289
        %v1971 = vunpack.c.l.b16 %v1290
        %v1972 = vunpack.c.h.b16 %v1290
        %v1973 = vunpack.c.l.b16 %v1291
        %v1974 = vunpack.c.h.b16 %v1291
        %v1975 = vunpack.c.l.b16 %v1292
        %v1976 = vunpack.c.h.b16 %v1292
        %v1977 = vunpack.c.l.b16 %v1293
        %v1978 = vunpack.c.h.b16 %v1293
        %v1979 = vunpack.c.l.b16 %v1294
        %v1980 = vunpack.c.h.b16 %v1294
        %v1981 = vunpack.c.l.b16 %v1295
        %v1982 = vunpack.c.h.b16 %v1295
        %v1983 = vunpack.c.l.b16 %v1296
        %v1984 = vunpack.c.h.b16 %v1296
        %v1985 = vunpack.c.l.b16 %v1297
        %v1986 = vunpack.c.h.b16 %v1297
        %v1987 = vunpack.c.l.b16 %v1298
        %v1988 = vunpack.c.h.b16 %v1298
        %v1989 = vunpack.c.l.b16 %v1299
        %v1990 = vunpack.c.h.b16 %v1299
        %v1991 = vunpack.c.l.b16 %v1300
        %v1992 = vunpack.c.h.b16 %v1300
        %v1993 = vunpack.c.l.b16 %v1301
        %v1994 = vunpack.c.h.b16 %v1301
        %v1995 = vunpack.c.l.b16 %v1302
        %v1996 = vunpack.c.h.b16 %v1302
        %v1997 = vunpack.c.l.b16 %v1303
        %v1998 = vunpack.c.h.b16 %v1303
        %v1999 = vunpack.c.l.b16 %v1304
        %v2000 = vunpack.c.h.b16 %v1304
        %v2001 = vunpack.c.l.b16 %v1305
        %v2002 = vunpack.c.h.b16 %v1305
        %v2003 = vunpack.c.l.b16 %v1306
        %v2004 = vunpack.c.h.b16 %v1306
        %v2005 = vpack.c.b16 %v1881, %v1877
        %v2006 = vpack.c.b16 %v1882, %v1878
        %v2007 = vpack.c.b16 %v1883, %v1879
        %v2008 = vpack.c.b16 %v1884, %v1880
        %v2009 = vpack.c.b16 %v1889, %v1885
        %v2010 = vpack.c.b16 %v1890, %v1886
        %v2011 = vpack.c.b16 %v1891, %v1887
        %v2012 = vpack.c.b16 %v1892, %v1888
        %v2013 = vpack.c.b16 %v1897, %v1893
        %v2014 = vpack.c.b16 %v1898, %v1894
        %v2015 = vpack.c.b16 %v1899, %v1895
        %v2016 = vpack.c.b16 %v1900, %v1896
        %v2017 = vpack.c.b16 %v1905, %v1901
        %v2018 = vpack.c.b16 %v1906, %v1902
        %v2019 = vpack.c.b16 %v1907, %v1903
        %v2020 = vpack.c.b16 %v1908, %v1904
        %v2021 = vpack.c.b16 %v1913, %v1909
        %v2022 = vpack.c.b16 %v1914, %v1910
        %v2023 = vpack.c.b16 %v1915, %v1911
        %v2024 = vpack.c.b16 %v1916, %v1912
        %v2025 = vpack.c.b16 %v1921, %v1917
        %v2026 = vpack.c.b16 %v1922, %v1918
        %v2027 = vpack.c.b16 %v1923, %v1919
        %v2028 = vpack.c.b16 %v1924, %v1920
        %v2029 = vpack.c.b16 %v1929, %v1925
        %v2030 = vpack.c.b16 %v1930, %v1926
        %v2031 = vpack.c.b16 %v1931, %v1927
        %v2032 = vpack.c.b16 %v1932, %v1928
        %v2033 = vpack.c.b16 %v1937, %v1933
        %v2034 = vpack.c.b16 %v1938, %v1934
        %v2035 = vpack.c.b16 %v1939, %v1935
        %v2036 = vpack.c.b16 %v1940, %v1936
        %v2037 = vpack.c.b16 %v1945, %v1941
        %v2038 = vpack.c.b16 %v1946, %v1942
        %v2039 = vpack.c.b16 %v1947, %v1943
        %v2040 = vpack.c.b16 %v1948, %v1944
        %v2041 = vpack.c.b16 %v1953, %v1949
        %v2042 = vpack.c.b16 %v1954, %v1950
        %v2043 = vpack.c.b16 %v1955, %v1951
        %v2044 = vpack.c.b16 %v1956, %v1952
        %v2045 = vpack.c.b16 %v1961, %v1957
        %v2046 = vpack.c.b16 %v1962, %v1958
        %v2047 = vpack.c.b16 %v1963, %v1959
        %v2048 = vpack.c.b16 %v1964, %v1960
        %v2049 = vpack.c.b16 %v1969, %v1965
        %v2050 = vpack.c.b16 %v1970, %v1966
        %v2051 = vpack.c.b16 %v1971, %v1967
        %v2052 = vpack.c.b16 %v1972, %v1968
        %v2053 = vpack.c.b16 %v1977, %v1973
        %v2054 = vpack.c.b16 %v1978, %v1974
        %v2055 = vpack.c.b16 %v1979, %v1975
        %v2056 = vpack.c.b16 %v1980, %v1976
        %v2057 = vpack.c.b16 %v1985, %v1981
        %v2058 = vpack.c.b16 %v1986, %v1982
        %v2059 = vpack.c.b16 %v1987, %v1983
        %v2060 = vpack.c.b16 %v1988, %v1984
        %v2061 = vpack.c.b16 %v1993, %v1989
        %v2062 = vpack.c.b16 %v1994, %v1990
        %v2063 = vpack.c.b16 %v1995, %v1991
        %v2064 = vpack.c.b16 %v1996, %v1992
        %v2065 = vpack.c.b16 %v2001, %v1997
        %v2066 = vpack.c.b16 %v2002, %v1998
        %v2067 = vpack.c.b16 %v2003, %v1999
        %v2068 = vpack.c.b16 %v2004, %v2000
        %2133 = vmatprep.subr.bf16.mxu0 %v2034
        %2134 = vmatpush1.bf16.msra.mxu0 %v2033
        %2135 = vmatprep.subr.bf16.mxu0 %v2030
        %2136 = vmatpush1.bf16.msra.mxu0 %v2029
        %2137 = vmatprep.subr.bf16.mxu0 %v2026
        %2138 = vmatpush1.bf16.msra.mxu0 %v2025
        %2139 = vmatprep.subr.bf16.mxu0 %v2022
        %2140 = vmatpush1.bf16.msra.mxu0 %v2021
        %2141 = vmatprep.subr.bf16.mxu0 %v2018
        %2142 = vmatpush1.bf16.msra.mxu0 %v2017
        %2143 = vmatprep.subr.bf16.mxu0 %v2014
        %2144 = vmatpush1.bf16.msra.mxu0 %v2013
        %2145 = vmatprep.subr.bf16.mxu0 %v2010
        %2146 = vmatpush1.bf16.msra.mxu0 %v2009
        %2147 = vmatprep.subr.bf16.mxu0 %v2006
        %2148 = vmatpush1.bf16.msra.mxu0 %v2005
        %2149 = vmatprep.subr.bf16.mxu0 %v2066
        %2150 = vmatpush2.bf16.msra.mxu0 %v2065
        %2151 = vmatprep.subr.bf16.mxu0 %v2062
        %2152 = vmatpush2.bf16.msra.mxu0 %v2061
        %2153 = vmatprep.subr.bf16.mxu0 %v2058
        %2154 = vmatpush2.bf16.msra.mxu0 %v2057
        %2155 = vmatprep.subr.bf16.mxu0 %v2054
        %2156 = vmatpush2.bf16.msra.mxu0 %v2053
        %2157 = vmatprep.subr.bf16.mxu0 %v2050
        %2158 = vmatpush2.bf16.msra.mxu0 %v2049
        %2159 = vmatprep.subr.bf16.mxu0 %v2046
        %2160 = vmatpush2.bf16.msra.mxu0 %v2045
        %2161 = vmatprep.subr.bf16.mxu0 %v2042
        %2162 = vmatpush2.bf16.msra.mxu0 %v2041
        %2163 = vmatprep.subr.bf16.mxu0 %v2038
        %2164 = vmatpush2.bf16.msra.mxu0 %v2037
        %2165 = vmatprep.mubr.bf16.mxu0 %v1782
        %2166 = vmatmul.mubr.bf16.gmra.mxu0 %v1781
        %v2167 = vpop.f32.mrf.mxu0
        %v2168 = vadd.f32 %v1542, %v2167
        %v2169 = vpop.f32.mrf.mxu0
        %v2170 = vadd.f32 %v1544, %v2169
        %v2171 = vpop.f32.mrf.mxu0
        %v2172 = vadd.f32 %v1546, %v2171
        %v2173 = vpop.f32.mrf.mxu0
        %v2174 = vadd.f32 %v1548, %v2173
        %2175 = vmatprep.mubr.bf16.mxu0 %v1784
        %2176 = vmatmul.mubr.bf16.gmra.mxu0 %v1783
        %v2177 = vpop.f32.mrf.mxu0
        %v2178 = vadd.f32 %v1552, %v2177
        %v2179 = vpop.f32.mrf.mxu0
        %v2180 = vadd.f32 %v1554, %v2179
        %v2181 = vpop.f32.mrf.mxu0
        %v2182 = vadd.f32 %v1556, %v2181
        %v2183 = vpop.f32.mrf.mxu0
        %v2184 = vadd.f32 %v1558, %v2183
        %2185 = vmatprep.mubr.bf16.mxu0 %v1786
        %2186 = vmatmul.mubr.bf16.gmra.mxu0 %v1785
        %v2187 = vpop.f32.mrf.mxu0
        %v2188 = vadd.f32 %v1562, %v2187
        %v2189 = vpop.f32.mrf.mxu0
        %v2190 = vadd.f32 %v1564, %v2189
        %v2191 = vpop.f32.mrf.mxu0
        %v2192 = vadd.f32 %v1566, %v2191
        %v2193 = vpop.f32.mrf.mxu0
        %v2194 = vadd.f32 %v1568, %v2193
        %2195 = vmatprep.mubr.bf16.mxu0 %v1788
        %2196 = vmatmul.mubr.bf16.gmra.mxu0 %v1787
        %v2197 = vpop.f32.mrf.mxu0
        %v2198 = vadd.f32 %v1572, %v2197
        %v2199 = vpop.f32.mrf.mxu0
        %v2200 = vadd.f32 %v1574, %v2199
        %v2201 = vpop.f32.mrf.mxu0
        %v2202 = vadd.f32 %v1576, %v2201
        %v2203 = vpop.f32.mrf.mxu0
        %v2204 = vadd.f32 %v1578, %v2203
        %2205 = vmatprep.mubr.bf16.mxu0 %v1790
        %2206 = vmatmul.mubr.bf16.gmra.mxu0 %v1789
        %v2207 = vpop.f32.mrf.mxu0
        %v2208 = vadd.f32 %v1582, %v2207
        %v2209 = vpop.f32.mrf.mxu0
        %v2210 = vadd.f32 %v1584, %v2209
        %v2211 = vpop.f32.mrf.mxu0
        %v2212 = vadd.f32 %v1586, %v2211
        %v2213 = vpop.f32.mrf.mxu0
        %v2214 = vadd.f32 %v1588, %v2213
        %2215 = vmatprep.mubr.bf16.mxu0 %v1792
        %2216 = vmatmul.mubr.bf16.gmra.mxu0 %v1791
        %v2217 = vpop.f32.mrf.mxu0
        %v2218 = vadd.f32 %v1592, %v2217
        %v2219 = vpop.f32.mrf.mxu0
        %v2220 = vadd.f32 %v1594, %v2219
        %v2221 = vpop.f32.mrf.mxu0
        %v2222 = vadd.f32 %v1596, %v2221
        %v2223 = vpop.f32.mrf.mxu0
        %v2224 = vadd.f32 %v1598, %v2223
        %2225 = vmatprep.mubr.bf16.mxu0 %v1794
        %2226 = vmatmul.mubr.bf16.gmra.mxu0 %v1793
        %v2227 = vpop.f32.mrf.mxu0
        %v2228 = vadd.f32 %v1602, %v2227
        %v2229 = vpop.f32.mrf.mxu0
        %v2230 = vadd.f32 %v1604, %v2229
        %v2231 = vpop.f32.mrf.mxu0
        %v2232 = vadd.f32 %v1606, %v2231
        %v2233 = vpop.f32.mrf.mxu0
        %v2234 = vadd.f32 %v1608, %v2233
        %2235 = vmatprep.mubr.bf16.mxu0 %v1796
        %2236 = vmatmul.mubr.bf16.gmra.mxu0 %v1795
        %v2237 = vpop.f32.mrf.mxu0
        %v2238 = vadd.f32 %v1612, %v2237
        %v2239 = vpop.f32.mrf.mxu0
        %v2240 = vadd.f32 %v1614, %v2239
        %v2241 = vpop.f32.mrf.mxu0
        %v2242 = vadd.f32 %v1616, %v2241
        %v2243 = vpop.f32.mrf.mxu0
        %v2244 = vadd.f32 %v1618, %v2243
        %2245 = vdwg.mxu0
        %2246 = vmatprep.subr.bf16.mxu0 %v2036
        %2247 = vmatpush1.bf16.msra.mxu0 %v2035
        %2248 = vmatprep.subr.bf16.mxu0 %v2032
        %2249 = vmatpush1.bf16.msra.mxu0 %v2031
        %2250 = vmatprep.subr.bf16.mxu0 %v2028
        %2251 = vmatpush1.bf16.msra.mxu0 %v2027
        %2252 = vmatprep.subr.bf16.mxu0 %v2024
        %2253 = vmatpush1.bf16.msra.mxu0 %v2023
        %2254 = vmatprep.subr.bf16.mxu0 %v2020
        %2255 = vmatpush1.bf16.msra.mxu0 %v2019
        %2256 = vmatprep.subr.bf16.mxu0 %v2016
        %2257 = vmatpush1.bf16.msra.mxu0 %v2015
        %2258 = vmatprep.subr.bf16.mxu0 %v2012
        %2259 = vmatpush1.bf16.msra.mxu0 %v2011
        %2260 = vmatprep.subr.bf16.mxu0 %v2008
        %2261 = vmatpush1.bf16.msra.mxu0 %v2007
        %2262 = vmatprep.subr.bf16.mxu0 %v2068
        %2263 = vmatpush2.bf16.msra.mxu0 %v2067
        %2264 = vmatprep.subr.bf16.mxu0 %v2064
        %2265 = vmatpush2.bf16.msra.mxu0 %v2063
        %2266 = vmatprep.subr.bf16.mxu0 %v2060
        %2267 = vmatpush2.bf16.msra.mxu0 %v2059
        %2268 = vmatprep.subr.bf16.mxu0 %v2056
        %2269 = vmatpush2.bf16.msra.mxu0 %v2055
        %2270 = vmatprep.subr.bf16.mxu0 %v2052
        %2271 = vmatpush2.bf16.msra.mxu0 %v2051
        %2272 = vmatprep.subr.bf16.mxu0 %v2048
        %2273 = vmatpush2.bf16.msra.mxu0 %v2047
        %2274 = vmatprep.subr.bf16.mxu0 %v2044
        %2275 = vmatpush2.bf16.msra.mxu0 %v2043
        %2276 = vmatprep.subr.bf16.mxu0 %v2040
        %2277 = vmatpush2.bf16.msra.mxu0 %v2039
        %2278 = vmatprep.mubr.bf16.mxu0 %v1782
        %2279 = vmatmul.mubr.bf16.gmra.mxu0 %v1781
        %v2280 = vpop.f32.mrf.mxu0
        %v2281 = vadd.f32 %v1655, %v2280
        %v2282 = vpop.f32.mrf.mxu0
        %v2283 = vadd.f32 %v1657, %v2282
        %v2284 = vpop.f32.mrf.mxu0
        %v2285 = vadd.f32 %v1659, %v2284
        %v2286 = vpop.f32.mrf.mxu0
        %v2287 = vadd.f32 %v1661, %v2286
        %2288 = vmatprep.mubr.bf16.mxu0 %v1784
        %2289 = vmatmul.mubr.bf16.gmra.mxu0 %v1783
        %v2290 = vpop.f32.mrf.mxu0
        %v2291 = vadd.f32 %v1665, %v2290
        %v2292 = vpop.f32.mrf.mxu0
        %v2293 = vadd.f32 %v1667, %v2292
        %v2294 = vpop.f32.mrf.mxu0
        %v2295 = vadd.f32 %v1669, %v2294
        %v2296 = vpop.f32.mrf.mxu0
        %v2297 = vadd.f32 %v1671, %v2296
        %2298 = vmatprep.mubr.bf16.mxu0 %v1786
        %2299 = vmatmul.mubr.bf16.gmra.mxu0 %v1785
        %v2300 = vpop.f32.mrf.mxu0
        %v2301 = vadd.f32 %v1675, %v2300
        %v2302 = vpop.f32.mrf.mxu0
        %v2303 = vadd.f32 %v1677, %v2302
        %v2304 = vpop.f32.mrf.mxu0
        %v2305 = vadd.f32 %v1679, %v2304
        %v2306 = vpop.f32.mrf.mxu0
        %v2307 = vadd.f32 %v1681, %v2306
        %2308 = vmatprep.mubr.bf16.mxu0 %v1788
        %2309 = vmatmul.mubr.bf16.gmra.mxu0 %v1787
        %v2310 = vpop.f32.mrf.mxu0
        %v2311 = vadd.f32 %v1685, %v2310
        %v2312 = vpop.f32.mrf.mxu0
        %v2313 = vadd.f32 %v1687, %v2312
        %v2314 = vpop.f32.mrf.mxu0
        %v2315 = vadd.f32 %v1689, %v2314
        %v2316 = vpop.f32.mrf.mxu0
        %v2317 = vadd.f32 %v1691, %v2316
        %2318 = vmatprep.mubr.bf16.mxu0 %v1790
        %2319 = vmatmul.mubr.bf16.gmra.mxu0 %v1789
        %v2320 = vpop.f32.mrf.mxu0
        %v2321 = vadd.f32 %v1695, %v2320
        %v2322 = vpop.f32.mrf.mxu0
        %v2323 = vadd.f32 %v1697, %v2322
        %v2324 = vpop.f32.mrf.mxu0
        %v2325 = vadd.f32 %v1699, %v2324
        %v2326 = vpop.f32.mrf.mxu0
        %v2327 = vadd.f32 %v1701, %v2326
        %2328 = vmatprep.mubr.bf16.mxu0 %v1792
        %2329 = vmatmul.mubr.bf16.gmra.mxu0 %v1791
        %v2330 = vpop.f32.mrf.mxu0
        %v2331 = vadd.f32 %v1705, %v2330
        %v2332 = vpop.f32.mrf.mxu0
        %v2333 = vadd.f32 %v1707, %v2332
        %v2334 = vpop.f32.mrf.mxu0
        %v2335 = vadd.f32 %v1709, %v2334
        %v2336 = vpop.f32.mrf.mxu0
        %v2337 = vadd.f32 %v1711, %v2336
        %2338 = vmatprep.mubr.bf16.mxu0 %v1794
        %2339 = vmatmul.mubr.bf16.gmra.mxu0 %v1793
        %v2340 = vpop.f32.mrf.mxu0
        %v2341 = vadd.f32 %v1715, %v2340
        %v2342 = vpop.f32.mrf.mxu0
        %v2343 = vadd.f32 %v1717, %v2342
        %v2344 = vpop.f32.mrf.mxu0
        %v2345 = vadd.f32 %v1719, %v2344
        %v2346 = vpop.f32.mrf.mxu0
        %v2347 = vadd.f32 %v1721, %v2346
        %2348 = vmatprep.mubr.bf16.mxu0 %v1796
        %2349 = vmatmul.mubr.bf16.gmra.mxu0 %v1795
        %v2350 = vpop.f32.mrf.mxu0
        %v2351 = vadd.f32 %v1725, %v2350
        %v2352 = vpop.f32.mrf.mxu0
        %v2353 = vadd.f32 %v1727, %v2352
        %v2354 = vpop.f32.mrf.mxu0
        %v2355 = vadd.f32 %v1729, %v2354
        %v2356 = vpop.f32.mrf.mxu0
        %v2357 = vadd.f32 %v1731, %v2356
        %2358 = vdwg.mxu0
        %v2359 = vld [vmem:[%s604] sm:$0xf]
        %v2361 = vlaneseq
        %v2362 = vshrl.u32 %v2361, 7
        %v2363 = vsub.s32 0, %v2362
        %v2364 = vrot.slane %v2359, %v2363
        %v2365 = vlaneseq
        %v2366 = vshrl.u32 %v2365, 7
        %v2367 = vsub.s32 1, %v2366
        %v2368 = vrot.slane %v2359, %v2367
        %v2369 = vlaneseq
        %v2370 = vshrl.u32 %v2369, 7
        %v2371 = vsub.s32 2, %v2370
        %v2372 = vrot.slane %v2359, %v2371
        %v2373 = vlaneseq
        %v2374 = vshrl.u32 %v2373, 7
        %v2375 = vsub.s32 3, %v2374
        %v2376 = vrot.slane %v2359, %v2375
        %v2381 = vadd.f32 %v2168, %v2364
        %v2382 = vadd.f32 %v2170, %v2368
        %v2383 = vadd.f32 %v2281, %v2372
        %v2384 = vadd.f32 %v2283, %v2376
        %v2385 = vadd.f32 %v2172, %v2364
        %v2386 = vadd.f32 %v2174, %v2368
        %v2387 = vadd.f32 %v2285, %v2372
        %v2388 = vadd.f32 %v2287, %v2376
        %v2389 = vadd.f32 %v2178, %v2364
        %v2390 = vadd.f32 %v2180, %v2368
        %v2391 = vadd.f32 %v2291, %v2372
        %v2392 = vadd.f32 %v2293, %v2376
        %v2393 = vadd.f32 %v2182, %v2364
        %v2394 = vadd.f32 %v2184, %v2368
        %v2395 = vadd.f32 %v2295, %v2372
        %v2396 = vadd.f32 %v2297, %v2376
        %v2397 = vadd.f32 %v2188, %v2364
        %v2398 = vadd.f32 %v2190, %v2368
        %v2399 = vadd.f32 %v2301, %v2372
        %v2400 = vadd.f32 %v2303, %v2376
        %v2401 = vadd.f32 %v2192, %v2364
        %v2402 = vadd.f32 %v2194, %v2368
        %v2403 = vadd.f32 %v2305, %v2372
        %v2404 = vadd.f32 %v2307, %v2376
        %v2405 = vadd.f32 %v2198, %v2364
        %v2406 = vadd.f32 %v2200, %v2368
        %v2407 = vadd.f32 %v2311, %v2372
        %v2408 = vadd.f32 %v2313, %v2376
        %v2409 = vadd.f32 %v2202, %v2364
        %v2410 = vadd.f32 %v2204, %v2368
        %v2411 = vadd.f32 %v2315, %v2372
        %v2412 = vadd.f32 %v2317, %v2376
        %v2413 = vadd.f32 %v2208, %v2364
        %v2414 = vadd.f32 %v2210, %v2368
        %v2415 = vadd.f32 %v2321, %v2372
        %v2416 = vadd.f32 %v2323, %v2376
        %v2417 = vadd.f32 %v2212, %v2364
        %v2418 = vadd.f32 %v2214, %v2368
        %v2419 = vadd.f32 %v2325, %v2372
        %v2420 = vadd.f32 %v2327, %v2376
        %v2421 = vadd.f32 %v2218, %v2364
        %v2422 = vadd.f32 %v2220, %v2368
        %v2423 = vadd.f32 %v2331, %v2372
        %v2424 = vadd.f32 %v2333, %v2376
        %v2425 = vadd.f32 %v2222, %v2364
        %v2426 = vadd.f32 %v2224, %v2368
        %v2427 = vadd.f32 %v2335, %v2372
        %v2428 = vadd.f32 %v2337, %v2376
        %v2429 = vadd.f32 %v2228, %v2364
        %v2430 = vadd.f32 %v2230, %v2368
        %v2431 = vadd.f32 %v2341, %v2372
        %v2432 = vadd.f32 %v2343, %v2376
        %v2433 = vadd.f32 %v2232, %v2364
        %v2434 = vadd.f32 %v2234, %v2368
        %v2435 = vadd.f32 %v2345, %v2372
        %v2436 = vadd.f32 %v2347, %v2376
        %v2437 = vadd.f32 %v2238, %v2364
        %v2438 = vadd.f32 %v2240, %v2368
        %v2439 = vadd.f32 %v2351, %v2372
        %v2440 = vadd.f32 %v2353, %v2376
        %v2441 = vadd.f32 %v2242, %v2364
        %v2442 = vadd.f32 %v2244, %v2368
        %v2443 = vadd.f32 %v2355, %v2372
        %v2444 = vadd.f32 %v2357, %v2376
        %v2445 = vpack.c.bf16 %v2385, %v2381
        %v2446 = vpack.c.bf16 %v2386, %v2382
        %v2447 = vpack.c.bf16 %v2387, %v2383
        %v2448 = vpack.c.bf16 %v2388, %v2384
        %v2449 = vpack.c.bf16 %v2393, %v2389
        %v2450 = vpack.c.bf16 %v2394, %v2390
        %v2451 = vpack.c.bf16 %v2395, %v2391
        %v2452 = vpack.c.bf16 %v2396, %v2392
        %v2453 = vpack.c.bf16 %v2401, %v2397
        %v2454 = vpack.c.bf16 %v2402, %v2398
        %v2455 = vpack.c.bf16 %v2403, %v2399
        %v2456 = vpack.c.bf16 %v2404, %v2400
        %v2457 = vpack.c.bf16 %v2409, %v2405
        %v2458 = vpack.c.bf16 %v2410, %v2406
        %v2459 = vpack.c.bf16 %v2411, %v2407
        %v2460 = vpack.c.bf16 %v2412, %v2408
        %v2461 = vpack.c.bf16 %v2417, %v2413
        %v2462 = vpack.c.bf16 %v2418, %v2414
        %v2463 = vpack.c.bf16 %v2419, %v2415
        %v2464 = vpack.c.bf16 %v2420, %v2416
        %v2465 = vpack.c.bf16 %v2425, %v2421
        %v2466 = vpack.c.bf16 %v2426, %v2422
        %v2467 = vpack.c.bf16 %v2427, %v2423
        %v2468 = vpack.c.bf16 %v2428, %v2424
        %v2469 = vpack.c.bf16 %v2433, %v2429
        %v2470 = vpack.c.bf16 %v2434, %v2430
        %v2471 = vpack.c.bf16 %v2435, %v2431
        %v2472 = vpack.c.bf16 %v2436, %v2432
        %v2473 = vpack.c.bf16 %v2441, %v2437
        %v2474 = vpack.c.bf16 %v2442, %v2438
        %v2475 = vpack.c.bf16 %v2443, %v2439
        %v2476 = vpack.c.bf16 %v2444, %v2440
        %v2509 = vunpack.c.l.b16 %v2445
        %v2510 = vunpack.c.l.b16 %v2446
        %v2511 = vunpack.c.l.b16 %v2447
        %v2512 = vunpack.c.l.b16 %v2448
        %v2513 = vunpack.c.h.b16 %v2445
        %v2514 = vunpack.c.h.b16 %v2446
        %v2515 = vunpack.c.h.b16 %v2447
        %v2516 = vunpack.c.h.b16 %v2448
        %v2517 = vunpack.c.l.b16 %v2449
        %v2518 = vunpack.c.l.b16 %v2450
        %v2519 = vunpack.c.l.b16 %v2451
        %v2520 = vunpack.c.l.b16 %v2452
        %v2521 = vunpack.c.h.b16 %v2449
        %v2522 = vunpack.c.h.b16 %v2450
        %v2523 = vunpack.c.h.b16 %v2451
        %v2524 = vunpack.c.h.b16 %v2452
        %v2525 = vunpack.c.l.b16 %v2453
        %v2526 = vunpack.c.l.b16 %v2454
        %v2527 = vunpack.c.l.b16 %v2455
        %v2528 = vunpack.c.l.b16 %v2456
        %v2529 = vunpack.c.h.b16 %v2453
        %v2530 = vunpack.c.h.b16 %v2454
        %v2531 = vunpack.c.h.b16 %v2455
        %v2532 = vunpack.c.h.b16 %v2456
        %v2533 = vunpack.c.l.b16 %v2457
        %v2534 = vunpack.c.l.b16 %v2458
        %v2535 = vunpack.c.l.b16 %v2459
        %v2536 = vunpack.c.l.b16 %v2460
        %v2537 = vunpack.c.h.b16 %v2457
        %v2538 = vunpack.c.h.b16 %v2458
        %v2539 = vunpack.c.h.b16 %v2459
        %v2540 = vunpack.c.h.b16 %v2460
        %v2541 = vunpack.c.l.b16 %v2461
        %v2542 = vunpack.c.l.b16 %v2462
        %v2543 = vunpack.c.l.b16 %v2463
        %v2544 = vunpack.c.l.b16 %v2464
        %v2545 = vunpack.c.h.b16 %v2461
        %v2546 = vunpack.c.h.b16 %v2462
        %v2547 = vunpack.c.h.b16 %v2463
        %v2548 = vunpack.c.h.b16 %v2464
        %v2549 = vunpack.c.l.b16 %v2465
        %v2550 = vunpack.c.l.b16 %v2466
        %v2551 = vunpack.c.l.b16 %v2467
        %v2552 = vunpack.c.l.b16 %v2468
        %v2553 = vunpack.c.h.b16 %v2465
        %v2554 = vunpack.c.h.b16 %v2466
        %v2555 = vunpack.c.h.b16 %v2467
        %v2556 = vunpack.c.h.b16 %v2468
        %v2557 = vunpack.c.l.b16 %v2469
        %v2558 = vunpack.c.l.b16 %v2470
        %v2559 = vunpack.c.l.b16 %v2471
        %v2560 = vunpack.c.l.b16 %v2472
        %v2561 = vunpack.c.h.b16 %v2469
        %v2562 = vunpack.c.h.b16 %v2470
        %v2563 = vunpack.c.h.b16 %v2471
        %v2564 = vunpack.c.h.b16 %v2472
        %v2565 = vunpack.c.l.b16 %v2473
        %v2566 = vunpack.c.l.b16 %v2474
        %v2567 = vunpack.c.l.b16 %v2475
        %v2568 = vunpack.c.l.b16 %v2476
        %v2569 = vunpack.c.h.b16 %v2473
        %v2570 = vunpack.c.h.b16 %v2474
        %v2571 = vunpack.c.h.b16 %v2475
        %v2572 = vunpack.c.h.b16 %v2476
        %v2573 = vpack.c.b16 %v2510, %v2509
        %v2574 = vpack.c.b16 %v2512, %v2511
        %v2575 = vpack.c.b16 %v2514, %v2513
        %v2576 = vpack.c.b16 %v2516, %v2515
        %v2577 = vpack.c.b16 %v2518, %v2517
        %v2578 = vpack.c.b16 %v2520, %v2519
        %v2579 = vpack.c.b16 %v2522, %v2521
        %v2580 = vpack.c.b16 %v2524, %v2523
        %v2581 = vpack.c.b16 %v2526, %v2525
        %v2582 = vpack.c.b16 %v2528, %v2527
        %v2583 = vpack.c.b16 %v2530, %v2529
        %v2584 = vpack.c.b16 %v2532, %v2531
        %v2585 = vpack.c.b16 %v2534, %v2533
        %v2586 = vpack.c.b16 %v2536, %v2535
        %v2587 = vpack.c.b16 %v2538, %v2537
        %v2588 = vpack.c.b16 %v2540, %v2539
        %v2589 = vpack.c.b16 %v2542, %v2541
        %v2590 = vpack.c.b16 %v2544, %v2543
        %v2591 = vpack.c.b16 %v2546, %v2545
        %v2592 = vpack.c.b16 %v2548, %v2547
        %v2593 = vpack.c.b16 %v2550, %v2549
        %v2594 = vpack.c.b16 %v2552, %v2551
        %v2595 = vpack.c.b16 %v2554, %v2553
        %v2596 = vpack.c.b16 %v2556, %v2555
        %v2597 = vpack.c.b16 %v2558, %v2557
        %v2598 = vpack.c.b16 %v2560, %v2559
        %v2599 = vpack.c.b16 %v2562, %v2561
        %v2600 = vpack.c.b16 %v2564, %v2563
        %v2601 = vpack.c.b16 %v2566, %v2565
        %v2602 = vpack.c.b16 %v2568, %v2567
        %v2603 = vpack.c.b16 %v2570, %v2569
        %v2604 = vpack.c.b16 %v2572, %v2571
        %2637 = vst [vmem:[%s584] sm:$0xff] %v2573
        %2638 = vst [vmem:[%s584 + $0x8] sm:$0xff] %v2574
        %2639 = vst [vmem:[%s584 + $0x10] sm:$0xff] %v2575
        %2640 = vst [vmem:[%s584 + $0x18] sm:$0xff] %v2576
        %2641 = vst [vmem:[%s584 + $0x20] sm:$0xff] %v2577
        %2642 = vst [vmem:[%s584 + $0x28] sm:$0xff] %v2578
        %2643 = vst [vmem:[%s584 + $0x30] sm:$0xff] %v2579
        %2644 = vst [vmem:[%s584 + $0x38] sm:$0xff] %v2580
        %2645 = vst [vmem:[%s584 + $0x40] sm:$0xff] %v2581
        %2646 = vst [vmem:[%s584 + $0x48] sm:$0xff] %v2582
        %2647 = vst [vmem:[%s584 + $0x50] sm:$0xff] %v2583
        %2648 = vst [vmem:[%s584 + $0x58] sm:$0xff] %v2584
        %2649 = vst [vmem:[%s584 + $0x60] sm:$0xff] %v2585
        %2650 = vst [vmem:[%s584 + $0x68] sm:$0xff] %v2586
        %2651 = vst [vmem:[%s584 + $0x70] sm:$0xff] %v2587
        %2652 = vst [vmem:[%s584 + $0x78] sm:$0xff] %v2588
        %2653 = vst [vmem:[%s584 + $0x80] sm:$0xff] %v2589
        %2654 = vst [vmem:[%s584 + $0x88] sm:$0xff] %v2590
        %2655 = vst [vmem:[%s584 + $0x90] sm:$0xff] %v2591
        %2656 = vst [vmem:[%s584 + $0x98] sm:$0xff] %v2592
        %2657 = vst [vmem:[%s584 + $0xa0] sm:$0xff] %v2593
        %2658 = vst [vmem:[%s584 + $0xa8] sm:$0xff] %v2594
        %2659 = vst [vmem:[%s584 + $0xb0] sm:$0xff] %v2595
        %2660 = vst [vmem:[%s584 + $0xb8] sm:$0xff] %v2596
        %2661 = vst [vmem:[%s584 + $0xc0] sm:$0xff] %v2597
        %2662 = vst [vmem:[%s584 + $0xc8] sm:$0xff] %v2598
        %2663 = vst [vmem:[%s584 + $0xd0] sm:$0xff] %v2599
        %2664 = vst [vmem:[%s584 + $0xd8] sm:$0xff] %v2600
        %2665 = vst [vmem:[%s584 + $0xe0] sm:$0xff] %v2601
        %2666 = vst [vmem:[%s584 + $0xe8] sm:$0xff] %v2602
        %2667 = vst [vmem:[%s584 + $0xf0] sm:$0xff] %v2603
        %2668 = vst [vmem:[%s584 + $0xf8] sm:$0xff] %v2604
        %s2669 = sand.u32 %s212, 1
        %s2670 = sand.u32 %s212, 1
        %s2671 = smul.addr %s2670, 256
        %s2672 = scalar_lea.vmem [#allocation4], %s2671
        // Predicated region
        $region95: #{dep_forward.6} parent=85 // pred_check
          %p2673 = pneg %p222
        $region96: #{dep_forward.6} parent=85 // pred_check_branch
          %2675 = sbr.rel (%p2673) target = $region98
        $region97: #{dep_forward.6} parent=85 // pred_region
          %s2676 = smul.u32 16, %s22
          %s2677 = smul.u32 4, %s23
          %s2678 = smul.addr %s2676, 8
          %s2679 = sadd.s32 %s2677, %s2678
          %s2680 = smul.addr %s2679, 4
          %s2681 = scalar_lea.vmem %s7, %s2680
          // Predicated region
          $region99: #{dep_forward.6} parent=97 // pred_check
            _
          $region100: #{dep_forward.6} parent=97 // pred_check_branch
            %2683 = sbr.rel (0) target = $region102
          $region101: #{dep_forward.6} parent=97 // pred_region
            // Predicated region
            $region103: #{dep_forward.6} parent=101 // pred_check
              _
            $region104: #{dep_forward.6} parent=101 // pred_check_branch
              %2685 = sbr.rel (0) target = $region106
            $region105: #{dep_forward.6} parent=101 // pred_region
              loop: start=0, step=1, limit=1
              $region107: #{dep_forward.6} parent=105 // loop_pre_header
                _
              $region108: #{dep_forward.6} parent=105 // loop_header
                %s2687 = sphi 0, %s2691
                %p2688 = scmp.ge.s32.totalorder %s2687, 1
                %s2692 = sphi %s2672, %s2672
                %s2693 = sphi %s2681, %s2681
              $region109: #{dep_forward.6} parent=105 // loop_header_branch
                %2690 = sbr.rel (%p2688) target = $region113
              $region110: #{dep_forward.6} parent=105 // loop_body
                %v2694 = vld [vmem:[%s2692] sm:$0xff]
                %2695 = vst [vmem:[%s2693] sm:$0xff] %v2694
                %v2696 = vld [vmem:[%s2692 + $0x8] sm:$0xff]
                %2697 = vst [vmem:[%s2693 + $0x8] sm:$0xff] %v2696
                %v2698 = vld [vmem:[%s2692 + $0x10] sm:$0xff]
                %2699 = vst [vmem:[%s2693 + $0x20] sm:$0xff] %v2698
                %v2700 = vld [vmem:[%s2692 + $0x18] sm:$0xff]
                %2701 = vst [vmem:[%s2693 + $0x28] sm:$0xff] %v2700
                %v2702 = vld [vmem:[%s2692 + $0x20] sm:$0xff]
                %2703 = vst [vmem:[%s2693 + $0x40] sm:$0xff] %v2702
                %v2704 = vld [vmem:[%s2692 + $0x28] sm:$0xff]
                %2705 = vst [vmem:[%s2693 + $0x48] sm:$0xff] %v2704
                %v2706 = vld [vmem:[%s2692 + $0x30] sm:$0xff]
                %2707 = vst [vmem:[%s2693 + $0x60] sm:$0xff] %v2706
                %v2708 = vld [vmem:[%s2692 + $0x38] sm:$0xff]
                %2709 = vst [vmem:[%s2693 + $0x68] sm:$0xff] %v2708
                %v2710 = vld [vmem:[%s2692 + $0x40] sm:$0xff]
                %2711 = vst [vmem:[%s2693 + $0x80] sm:$0xff] %v2710
                %v2712 = vld [vmem:[%s2692 + $0x48] sm:$0xff]
                %2713 = vst [vmem:[%s2693 + $0x88] sm:$0xff] %v2712
                %v2714 = vld [vmem:[%s2692 + $0x50] sm:$0xff]
                %2715 = vst [vmem:[%s2693 + $0xa0] sm:$0xff] %v2714
                %v2716 = vld [vmem:[%s2692 + $0x58] sm:$0xff]
                %2717 = vst [vmem:[%s2693 + $0xa8] sm:$0xff] %v2716
                %v2718 = vld [vmem:[%s2692 + $0x60] sm:$0xff]
                %2719 = vst [vmem:[%s2693 + $0xc0] sm:$0xff] %v2718
                %v2720 = vld [vmem:[%s2692 + $0x68] sm:$0xff]
                %2721 = vst [vmem:[%s2693 + $0xc8] sm:$0xff] %v2720
                %v2722 = vld [vmem:[%s2692 + $0x70] sm:$0xff]
                %2723 = vst [vmem:[%s2693 + $0xe0] sm:$0xff] %v2722
                %v2724 = vld [vmem:[%s2692 + $0x78] sm:$0xff]
                %2725 = vst [vmem:[%s2693 + $0xe8] sm:$0xff] %v2724
                %v2726 = vld [vmem:[%s2692 + $0x80] sm:$0xff]
                %2727 = vst [vmem:[%s2693 + $0x100] sm:$0xff] %v2726
                %v2728 = vld [vmem:[%s2692 + $0x88] sm:$0xff]
                %2729 = vst [vmem:[%s2693 + $0x108] sm:$0xff] %v2728
                %v2730 = vld [vmem:[%s2692 + $0x90] sm:$0xff]
                %2731 = vst [vmem:[%s2693 + $0x120] sm:$0xff] %v2730
                %v2732 = vld [vmem:[%s2692 + $0x98] sm:$0xff]
                %2733 = vst [vmem:[%s2693 + $0x128] sm:$0xff] %v2732
                %v2734 = vld [vmem:[%s2692 + $0xa0] sm:$0xff]
                %2735 = vst [vmem:[%s2693 + $0x140] sm:$0xff] %v2734
                %v2736 = vld [vmem:[%s2692 + $0xa8] sm:$0xff]
                %2737 = vst [vmem:[%s2693 + $0x148] sm:$0xff] %v2736
                %v2738 = vld [vmem:[%s2692 + $0xb0] sm:$0xff]
                %2739 = vst [vmem:[%s2693 + $0x160] sm:$0xff] %v2738
                %v2740 = vld [vmem:[%s2692 + $0xb8] sm:$0xff]
                %2741 = vst [vmem:[%s2693 + $0x168] sm:$0xff] %v2740
                %v2742 = vld [vmem:[%s2692 + $0xc0] sm:$0xff]
                %2743 = vst [vmem:[%s2693 + $0x180] sm:$0xff] %v2742
                %v2744 = vld [vmem:[%s2692 + $0xc8] sm:$0xff]
                %2745 = vst [vmem:[%s2693 + $0x188] sm:$0xff] %v2744
                %v2746 = vld [vmem:[%s2692 + $0xd0] sm:$0xff]
                %2747 = vst [vmem:[%s2693 + $0x1a0] sm:$0xff] %v2746
                %v2748 = vld [vmem:[%s2692 + $0xd8] sm:$0xff]
                %2749 = vst [vmem:[%s2693 + $0x1a8] sm:$0xff] %v2748
                %v2750 = vld [vmem:[%s2692 + $0xe0] sm:$0xff]
                %2751 = vst [vmem:[%s2693 + $0x1c0] sm:$0xff] %v2750
                %v2752 = vld [vmem:[%s2692 + $0xe8] sm:$0xff]
                %2753 = vst [vmem:[%s2693 + $0x1c8] sm:$0xff] %v2752
                %v2754 = vld [vmem:[%s2692 + $0xf0] sm:$0xff]
                %2755 = vst [vmem:[%s2693 + $0x1e0] sm:$0xff] %v2754
                %v2756 = vld [vmem:[%s2692 + $0xf8] sm:$0xff]
                %2757 = vst [vmem:[%s2693 + $0x1e8] sm:$0xff] %v2756
              $region111: #{dep_forward.6} parent=105 // loop_footer
                %s2691 = sadd.s32 1, %s2687
              $region112: #{dep_forward.6} parent=105 // loop_footer_branch
                %2686 = sbr.rel target = $region108
              $region113: #{dep_forward.6} parent=105 // loop_exit
                _
            $region106: #{dep_forward.6} parent=101 // pred_fallthru
              _
            // Predicated region
            $region114: #{dep_forward.6} parent=101 // pred_check
              _
            $region115: #{dep_forward.6} parent=101 // pred_check_branch
              %2759 = sbr.rel target = $region117
            $region116: #{dep_forward.6} parent=101 // pred_region
              _
            $region117: #{dep_forward.6} parent=101 // pred_fallthru
              _
          $region102: #{dep_forward.6} parent=97 // pred_fallthru
            _
          %2760 = vnop
        $region98: #{dep_forward.6} parent=85 // pred_fallthru
          _
      $region86: #{dep_forward.6} parent=5 // pred_fallthru
        _
      %p2761 = scmp.le.s32.totalorder 2, %s13
      // Predicated region
      $region118: #{dep_forward.6} parent=5 // pred_check
        %p2762 = pneg %p2761
      $region119: #{dep_forward.6} parent=5 // pred_check_branch
        %2764 = sbr.rel (%p2762) target = $region121
      $region120: #{dep_forward.6} parent=5 // pred_region
        %s2765 = ssub.s32 %s13, 2
        // Predicated region
        $region122: #{dep_forward.6} parent=120 // pred_check
          %p2766 = pneg %p228
        $region123: #{dep_forward.6} parent=120 // pred_check_branch
          %2768 = sbr.rel (%p2766) target = $region125
        $region124: #{dep_forward.6} parent=120 // pred_region
          %s2769 = sand.u32 %s213, 1
          %s2770 = sand.u32 %s213, 1
          %s2771 = smul.addr %s2770, 256
          %s2772 = scalar_lea.vmem [#allocation4], %s2771
        $region125: #{dep_forward.6} parent=120 // pred_fallthru
          _
      $region121: #{dep_forward.6} parent=5 // pred_fallthru
        _
    $region6: #{dep_forward.6} parent=1 // loop_footer
      %s17 = sadd.s32 1, %s13
    $region7: #{dep_forward.6} parent=1 // loop_footer_branch
      %12 = sbr.rel target = $region3
    $region8: #{dep_forward.6} parent=1 // loop_exit
      _

// kernel: dep_forward.5
$region0: #{dep_forward.5}
  #allocation0 [shape = 'u32[]', space=smem, size = 0x4, offset = 0x4, fixed_abs, tag = 'smem constant byte address 0x4 - core index']
  #allocation1 [shape = 'u32[144,128]{1,0:T(1,128)}', space=vmem, size = 0x12000, scoped, tag = 'internal scratch']
  %s0 = inlined_call_operand.vmem [shape: bf16[32,512], index: 0, kind: input, shape index: {}]
  %s1 = inlined_call_operand.vmem [shape: bf16[32,592], index: 1, kind: input, shape index: {}]
  %s2 = inlined_call_operand.vmem [shape: bf16[592,256], index: 2, kind: input, shape index: {}]
  %s3 = inlined_call_operand.vmem [shape: f32[1,256], index: 3, kind: input, shape index: {}]
  %s4 = inlined_call_operand.vmem [shape: bf16[512,1024], index: 4, kind: input, shape index: {}]
  %s5 = inlined_call_operand.vmem [shape: bf16[256,1024], index: 5, kind: input, shape index: {}]
  %s6 = inlined_call_operand.vmem [shape: f32[1,1024], index: 6, kind: input, shape index: {}]
  %s7 = inlined_call_operand.vmem [shape: bf16[32,1024], index: 7, kind: output, shape index: {}]
  %s8 = sld [smem:[#allocation0]]
  $region126: #{dep_forward.5} parent=0
    _
  %s10 = ssub.s32 1, %s8
  %s11 = scalar_select 0, %s10, %s8
  $region1: #{dep_forward.5} parent=0
    #allocation2 [shape = 'u8[1048576]{0}', space=vmem, size = 0x100000, scoped, tag = 'input window, operand 4']
    #allocation3 [shape = 'u8[524288]{0}', space=vmem, size = 0x80000, scoped, tag = 'input window, operand 5']
    #allocation4 [shape = 'u8[65536]{0}', space=vmem, size = 0x10000, scoped, tag = 'output window, operand 0']
    loop: start=0, step=1, limit=4
    $region2: #{dep_forward.5} parent=1 // loop_pre_header
      _
    $region3: #{dep_forward.5} parent=1 // loop_header
      %s13 = sphi 0, %s17
      %p14 = scmp.ge.s32.totalorder %s13, 4
      %s20 = sphi 0, %s32
      %s21 = sphi 0, %s28
      %s22 = sphi 0, %s20
      %s23 = sphi 0, %s21
      %s24 = sphi 0, %s22
      %s25 = sphi 0, %s23
      %s35 = sphi 0, %s37
      %s38 = sphi 0, %s35
      %s39 = sphi 0, %s38
      %s55 = sphi 0, %s39
      %s61 = sphi 0, %s63
      %s64 = sphi 0, %s61
      %s65 = sphi 0, %s64
      %s81 = sphi 0, %s65
      %s85 = sphi 0, %s85
      %s87 = sphi 0, %s85
      %s88 = sphi 0, %s87
      %s102 = sphi 0, %s88
      %s106 = sphi 0, %s106
      %s108 = sphi 0, %s106
      %s109 = sphi 0, %s108
      %s123 = sphi 0, %s109
      %s129 = sphi 0, %s131
      %s132 = sphi 0, %s129
      %s133 = sphi 0, %s132
      %s149 = sphi 0, %s133
      %s155 = sphi 0, %s157
      %s158 = sphi 0, %s155
      %s159 = sphi 0, %s158
      %s175 = sphi 0, %s159
      %s181 = sphi 0, %s183
      %s184 = sphi 0, %s181
      %s185 = sphi 0, %s184
      %s201 = sphi 0, %s185
      %s209 = sphi 0, %s211
      %s212 = sphi 0, %s209
      %s213 = sphi 0, %s212
      %s229 = sphi 0, %s213
    $region4: #{dep_forward.5} parent=1 // loop_header_branch
      %16 = sbr.rel (%p14) target = $region8
    $region5: #{dep_forward.5} parent=1 // loop_body
      %s18 = ssub.s32 %s13, 1
      %s19 = ssub.s32 %s13, 2
      %s26 = sadd.s32 1, %s21
      %p27 = scmp.ge.s32.totalorder %s26, 2
      %s28 = scalar_select %p27, 0, %s26
      %s29 = sadd.s32 1, %s20
      %s30 = scalar_select %p27, %s29, %s20
      %p31 = scmp.ge.s32.totalorder %s30, 1
      %s32 = scalar_select %p31, 0, %s30
      %s33 = ssub.s32 %s20, %s32
      %p34 = scmp.eq.s32.totalorder %s33, 0
      %s36 = sadd.s32 %s35, 1
      %s37 = scalar_select %p34, %s35, %s36
      %p40 = pneg %p34
      %p41 = scmp.eq.s32.totalorder %s13, 1
      %p42 = por %p40, %p41
      %p43 = scmp.ne.s32.totalorder %s35, %s38
      %p44 = scmp.eq.s32.totalorder %s13, 0
      %p45 = por %p43, %p44
      %p46 = scmp.ne.s32.totalorder %s35, %s38
      %p47 = scmp.eq.s32.totalorder %s18, 1
      %p48 = por %p46, %p47
      %p49 = scmp.ne.s32.totalorder %s38, %s39
      %p50 = scmp.eq.s32.totalorder %s18, 0
      %p51 = por %p49, %p50
      %p52 = scmp.ne.s32.totalorder %s38, %s39
      %p53 = scmp.eq.s32.totalorder %s19, 1
      %p54 = por %p52, %p53
      %p56 = scmp.ne.s32.totalorder %s39, %s55
      %p57 = scmp.eq.s32.totalorder %s19, 0
      %p58 = por %p56, %p57
      %s59 = ssub.s32 %s20, %s32
      %p60 = scmp.eq.s32.totalorder %s59, 0
      %s62 = sadd.s32 %s61, 1
      %s63 = scalar_select %p60, %s61, %s62
      %p66 = pneg %p60
      %p67 = scmp.eq.s32.totalorder %s13, 1
      %p68 = por %p66, %p67
      %p69 = scmp.ne.s32.totalorder %s61, %s64
      %p70 = scmp.eq.s32.totalorder %s13, 0
      %p71 = por %p69, %p70
      %p72 = scmp.ne.s32.totalorder %s61, %s64
      %p73 = scmp.eq.s32.totalorder %s18, 1
      %p74 = por %p72, %p73
      %p75 = scmp.ne.s32.totalorder %s64, %s65
      %p76 = scmp.eq.s32.totalorder %s18, 0
      %p77 = por %p75, %p76
      %p78 = scmp.ne.s32.totalorder %s64, %s65
      %p79 = scmp.eq.s32.totalorder %s19, 1
      %p80 = por %p78, %p79
      %p82 = scmp.ne.s32.totalorder %s65, %s81
      %p83 = scmp.eq.s32.totalorder %s19, 0
      %p84 = por %p82, %p83
      %s86 = sadd.s32 %s85, 1
      %p89 = scmp.eq.s32.totalorder %s13, 1
      %p90 = scmp.ne.s32.totalorder %s85, %s87
      %p91 = scmp.eq.s32.totalorder %s13, 0
      %p92 = por %p90, %p91
      %p93 = scmp.ne.s32.totalorder %s85, %s87
      %p94 = scmp.eq.s32.totalorder %s18, 1
      %p95 = por %p93, %p94
      %p96 = scmp.ne.s32.totalorder %s87, %s88
      %p97 = scmp.eq.s32.totalorder %s18, 0
      %p98 = por %p96, %p97
      %p99 = scmp.ne.s32.totalorder %s87, %s88
      %p100 = scmp.eq.s32.totalorder %s19, 1
      %p101 = por %p99, %p100
      %p103 = scmp.ne.s32.totalorder %s88, %s102
      %p104 = scmp.eq.s32.totalorder %s19, 0
      %p105 = por %p103, %p104
      %s107 = sadd.s32 %s106, 1
      %p110 = scmp.eq.s32.totalorder %s13, 1
      %p111 = scmp.ne.s32.totalorder %s106, %s108
      %p112 = scmp.eq.s32.totalorder %s13, 0
      %p113 = por %p111, %p112
      %p114 = scmp.ne.s32.totalorder %s106, %s108
      %p115 = scmp.eq.s32.totalorder %s18, 1
      %p116 = por %p114, %p115
      %p117 = scmp.ne.s32.totalorder %s108, %s109
      %p118 = scmp.eq.s32.totalorder %s18, 0
      %p119 = por %p117, %p118
      %p120 = scmp.ne.s32.totalorder %s108, %s109
      %p121 = scmp.eq.s32.totalorder %s19, 1
      %p122 = por %p120, %p121
      %p124 = scmp.ne.s32.totalorder %s109, %s123
      %p125 = scmp.eq.s32.totalorder %s19, 0
      %p126 = por %p124, %p125
      %s127 = ssub.s32 %s21, %s28
      %p128 = scmp.eq.s32.totalorder %s127, 0
      %s130 = sadd.s32 %s129, 1
      %s131 = scalar_select %p128, %s129, %s130
      %p134 = pneg %p128
      %p135 = scmp.eq.s32.totalorder %s13, 1
      %p136 = por %p134, %p135
      %p137 = scmp.ne.s32.totalorder %s129, %s132
      %p138 = scmp.eq.s32.totalorder %s13, 0
      %p139 = por %p137, %p138
      %p140 = scmp.ne.s32.totalorder %s129, %s132
      %p141 = scmp.eq.s32.totalorder %s18, 1
      %p142 = por %p140, %p141
      %p143 = scmp.ne.s32.totalorder %s132, %s133
      %p144 = scmp.eq.s32.totalorder %s18, 0
      %p145 = por %p143, %p144
      %p146 = scmp.ne.s32.totalorder %s132, %s133
      %p147 = scmp.eq.s32.totalorder %s19, 1
      %p148 = por %p146, %p147
      %p150 = scmp.ne.s32.totalorder %s133, %s149
      %p151 = scmp.eq.s32.totalorder %s19, 0
      %p152 = por %p150, %p151
      %s153 = ssub.s32 %s21, %s28
      %p154 = scmp.eq.s32.totalorder %s153, 0
      %s156 = sadd.s32 %s155, 1
      %s157 = scalar_select %p154, %s155, %s156
      %p160 = pneg %p154
      %p161 = scmp.eq.s32.totalorder %s13, 1
      %p162 = por %p160, %p161
      %p163 = scmp.ne.s32.totalorder %s155, %s158
      %p164 = scmp.eq.s32.totalorder %s13, 0
      %p165 = por %p163, %p164
      %p166 = scmp.ne.s32.totalorder %s155, %s158
      %p167 = scmp.eq.s32.totalorder %s18, 1
      %p168 = por %p166, %p167
      %p169 = scmp.ne.s32.totalorder %s158, %s159
      %p170 = scmp.eq.s32.totalorder %s18, 0
      %p171 = por %p169, %p170
      %p172 = scmp.ne.s32.totalorder %s158, %s159
      %p173 = scmp.eq.s32.totalorder %s19, 1
      %p174 = por %p172, %p173
      %p176 = scmp.ne.s32.totalorder %s159, %s175
      %p177 = scmp.eq.s32.totalorder %s19, 0
      %p178 = por %p176, %p177
      %s179 = ssub.s32 %s21, %s28
      %p180 = scmp.eq.s32.totalorder %s179, 0
      %s182 = sadd.s32 %s181, 1
      %s183 = scalar_select %p180, %s181, %s182
      %p186 = pneg %p180
      %p187 = scmp.eq.s32.totalorder %s13, 1
      %p188 = por %p186, %p187
      %p189 = scmp.ne.s32.totalorder %s181, %s184
      %p190 = scmp.eq.s32.totalorder %s13, 0
      %p191 = por %p189, %p190
      %p192 = scmp.ne.s32.totalorder %s181, %s184
      %p193 = scmp.eq.s32.totalorder %s18, 1
      %p194 = por %p192, %p193
      %p195 = scmp.ne.s32.totalorder %s184, %s185
      %p196 = scmp.eq.s32.totalorder %s18, 0
      %p197 = por %p195, %p196
      %p198 = scmp.ne.s32.totalorder %s184, %s185
      %p199 = scmp.eq.s32.totalorder %s19, 1
      %p200 = por %p198, %p199
      %p202 = scmp.ne.s32.totalorder %s185, %s201
      %p203 = scmp.eq.s32.totalorder %s19, 0
      %p204 = por %p202, %p203
      %s205 = ssub.s32 %s20, %s32
      %s206 = ssub.s32 %s21, %s28
      %s207 = sor.u32 %s205, %s206
      %p208 = scmp.eq.s32.totalorder %s207, 0
      %s210 = sadd.s32 %s209, 1
      %s211 = scalar_select %p208, %s209, %s210
      %p214 = pneg %p208
      %p215 = scmp.eq.s32.totalorder %s13, 1
      %p216 = por %p214, %p215
      %p217 = scmp.ne.s32.totalorder %s209, %s212
      %p218 = scmp.eq.s32.totalorder %s13, 0
      %p219 = por %p217, %p218
      %p220 = scmp.ne.s32.totalorder %s209, %s212
      %p221 = scmp.eq.s32.totalorder %s18, 1
      %p222 = por %p220, %p221
      %p223 = scmp.ne.s32.totalorder %s212, %s213
      %p224 = scmp.eq.s32.totalorder %s18, 0
      %p225 = por %p223, %p224
      %p226 = scmp.ne.s32.totalorder %s212, %s213
      %p227 = scmp.eq.s32.totalorder %s19, 1
      %p228 = por %p226, %p227
      %p230 = scmp.ne.s32.totalorder %s213, %s229
      %p231 = scmp.eq.s32.totalorder %s19, 0
      %p232 = por %p230, %p231
      %p233 = scmp.le.s32.totalorder 1, %s13
      %p234 = scmp.lt.s32.totalorder %s13, 3
      %p235 = pnand %p233, %p234
      %p236 = pneg %p235
      // Predicated region
      $region9: #{dep_forward.5} parent=5 // pred_check
        _
      $region10: #{dep_forward.5} parent=5 // pred_check_branch
        %238 = sbr.rel (%p235) target = $region12
      $region11: #{dep_forward.5} parent=5 // pred_region
        %s239 = ssub.s32 %s13, 1
        // Predicated region
        $region13: #{dep_forward.5} parent=11 // pred_check
          %p240 = pneg %p51
        $region14: #{dep_forward.5} parent=11 // pred_check_branch
          %242 = sbr.rel (%p240) target = $region16
        $region15: #{dep_forward.5} parent=11 // pred_region
          %s243 = smul.u32 4, %s22
          %p244 = scmp.lt.s32.totalorder %s243, 3
          %s245 = scalar_select %p244, %s243, 3
          %s246 = smul.addr %s245, 4
          %s247 = smul.addr %s246, 4
          %s248 = scalar_lea.vmem %s0, %s247
          %s249 = smul.u32 4, %s22
        $region16: #{dep_forward.5} parent=11 // pred_fallthru
          _
        // Predicated region
        $region17: #{dep_forward.5} parent=11 // pred_check
          %p250 = pneg %p77
        $region18: #{dep_forward.5} parent=11 // pred_check_branch
          %252 = sbr.rel (%p250) target = $region20
        $region19: #{dep_forward.5} parent=11 // pred_region
          %s253 = smul.u32 4, %s22
          %p254 = scmp.lt.s32.totalorder %s253, 3
          %s255 = scalar_select %p254, %s253, 3
          %s256 = smul.addr %s255, 5
          %s257 = smul.addr %s256, 4
          %s258 = scalar_lea.vmem %s1, %s257
          %s259 = smul.u32 4, %s22
        $region20: #{dep_forward.5} parent=11 // pred_fallthru
          _
        // Predicated region
        $region21: #{dep_forward.5} parent=11 // pred_check
          %p260 = pneg %p98
        $region22: #{dep_forward.5} parent=11 // pred_check_branch
          %262 = sbr.rel (%p260) target = $region24
        $region23: #{dep_forward.5} parent=11 // pred_region
          _
        $region24: #{dep_forward.5} parent=11 // pred_fallthru
          _
        // Predicated region
        $region25: #{dep_forward.5} parent=11 // pred_check
          %p263 = pneg %p119
        $region26: #{dep_forward.5} parent=11 // pred_check_branch
          %265 = sbr.rel (%p263) target = $region28
        $region27: #{dep_forward.5} parent=11 // pred_region
          _
        $region28: #{dep_forward.5} parent=11 // pred_fallthru
          _
      $region12: #{dep_forward.5} parent=5 // pred_fallthru
        _
      %p266 = scmp.lt.s32.totalorder %s13, 2
      // Predicated region
      $region29: #{dep_forward.5} parent=5 // pred_check
        %p267 = pneg %p266
      $region30: #{dep_forward.5} parent=5 // pred_check_branch
        %269 = sbr.rel (%p267) target = $region32
      $region31: #{dep_forward.5} parent=5 // pred_region
        // Predicated region
        $region33: #{dep_forward.5} parent=31 // pred_check
          %p270 = pneg %p139
        $region34: #{dep_forward.5} parent=31 // pred_check_branch
          %272 = sbr.rel (%p270) target = $region36
        $region35: #{dep_forward.5} parent=31 // pred_region
          %s273 = sand.u32 %s129, 1
          %s274 = sand.u32 %s129, 1
          %s275 = smul.addr %s274, 1024
          %s276 = scalar_lea.vmem [#allocation2], %s275
          %s277 = smul.u32 4, %s21
          %s278 = smul.addr %s277, 4
          %s279 = scalar_lea.vmem %s4, %s278
          // Predicated region
          $region37: #{dep_forward.5} parent=35 // pred_check
            _
          $region38: #{dep_forward.5} parent=35 // pred_check_branch
            %281 = sbr.rel (0) target = $region40
          $region39: #{dep_forward.5} parent=35 // pred_region
            // Predicated region
            $region41: #{dep_forward.5} parent=39 // pred_check
              _
            $region42: #{dep_forward.5} parent=39 // pred_check_branch
              %283 = sbr.rel (0) target = $region44
            $region43: #{dep_forward.5} parent=39 // pred_region
              loop: start=0, step=1, limit=1
              $region45: #{dep_forward.5} parent=43 // loop_pre_header
                _
              $region46: #{dep_forward.5} parent=43 // loop_header
                %s285 = sphi 0, %s289
                %p286 = scmp.ge.s32.totalorder %s285, 1
                %s290 = sphi %s279, %s279
                %s291 = sphi %s276, %s276
              $region47: #{dep_forward.5} parent=43 // loop_header_branch
                %288 = sbr.rel (%p286) target = $region51
              $region48: #{dep_forward.5} parent=43 // loop_body
                %v292 = vld [vmem:[%s290] sm:$0xff]
                %293 = vst [vmem:[%s291] sm:$0xff] %v292
                %v294 = vld [vmem:[%s290 + $0x8] sm:$0xff]
                %295 = vst [vmem:[%s291 + $0x8] sm:$0xff] %v294
                %v296 = vld [vmem:[%s290 + $0x20] sm:$0xff]
                %297 = vst [vmem:[%s291 + $0x10] sm:$0xff] %v296
                %v298 = vld [vmem:[%s290 + $0x28] sm:$0xff]
                %299 = vst [vmem:[%s291 + $0x18] sm:$0xff] %v298
                %v300 = vld [vmem:[%s290 + $0x40] sm:$0xff]
                %301 = vst [vmem:[%s291 + $0x20] sm:$0xff] %v300
                %v302 = vld [vmem:[%s290 + $0x48] sm:$0xff]
                %303 = vst [vmem:[%s291 + $0x28] sm:$0xff] %v302
                %v304 = vld [vmem:[%s290 + $0x60] sm:$0xff]
                %305 = vst [vmem:[%s291 + $0x30] sm:$0xff] %v304
                %v306 = vld [vmem:[%s290 + $0x68] sm:$0xff]
                %307 = vst [vmem:[%s291 + $0x38] sm:$0xff] %v306
                %v308 = vld [vmem:[%s290 + $0x80] sm:$0xff]
                %309 = vst [vmem:[%s291 + $0x40] sm:$0xff] %v308
                %v310 = vld [vmem:[%s290 + $0x88] sm:$0xff]
                %311 = vst [vmem:[%s291 + $0x48] sm:$0xff] %v310
                %v312 = vld [vmem:[%s290 + $0xa0] sm:$0xff]
                %313 = vst [vmem:[%s291 + $0x50] sm:$0xff] %v312
                %v314 = vld [vmem:[%s290 + $0xa8] sm:$0xff]
                %315 = vst [vmem:[%s291 + $0x58] sm:$0xff] %v314
                %v316 = vld [vmem:[%s290 + $0xc0] sm:$0xff]
                %317 = vst [vmem:[%s291 + $0x60] sm:$0xff] %v316
                %v318 = vld [vmem:[%s290 + $0xc8] sm:$0xff]
                %319 = vst [vmem:[%s291 + $0x68] sm:$0xff] %v318
                %v320 = vld [vmem:[%s290 + $0xe0] sm:$0xff]
                %321 = vst [vmem:[%s291 + $0x70] sm:$0xff] %v320
                %v322 = vld [vmem:[%s290 + $0xe8] sm:$0xff]
                %323 = vst [vmem:[%s291 + $0x78] sm:$0xff] %v322
                %v324 = vld [vmem:[%s290 + $0x100] sm:$0xff]
                %325 = vst [vmem:[%s291 + $0x80] sm:$0xff] %v324
                %v326 = vld [vmem:[%s290 + $0x108] sm:$0xff]
                %327 = vst [vmem:[%s291 + $0x88] sm:$0xff] %v326
                %v328 = vld [vmem:[%s290 + $0x120] sm:$0xff]
                %329 = vst [vmem:[%s291 + $0x90] sm:$0xff] %v328
                %v330 = vld [vmem:[%s290 + $0x128] sm:$0xff]
                %331 = vst [vmem:[%s291 + $0x98] sm:$0xff] %v330
                %v332 = vld [vmem:[%s290 + $0x140] sm:$0xff]
                %333 = vst [vmem:[%s291 + $0xa0] sm:$0xff] %v332
                %v334 = vld [vmem:[%s290 + $0x148] sm:$0xff]
                %335 = vst [vmem:[%s291 + $0xa8] sm:$0xff] %v334
                %v336 = vld [vmem:[%s290 + $0x160] sm:$0xff]
                %337 = vst [vmem:[%s291 + $0xb0] sm:$0xff] %v336
                %v338 = vld [vmem:[%s290 + $0x168] sm:$0xff]
                %339 = vst [vmem:[%s291 + $0xb8] sm:$0xff] %v338
                %v340 = vld [vmem:[%s290 + $0x180] sm:$0xff]
                %341 = vst [vmem:[%s291 + $0xc0] sm:$0xff] %v340
                %v342 = vld [vmem:[%s290 + $0x188] sm:$0xff]
                %343 = vst [vmem:[%s291 + $0xc8] sm:$0xff] %v342
                %v344 = vld [vmem:[%s290 + $0x1a0] sm:$0xff]
                %345 = vst [vmem:[%s291 + $0xd0] sm:$0xff] %v344
                %v346 = vld [vmem:[%s290 + $0x1a8] sm:$0xff]
                %347 = vst [vmem:[%s291 + $0xd8] sm:$0xff] %v346
                %v348 = vld [vmem:[%s290 + $0x1c0] sm:$0xff]
                %349 = vst [vmem:[%s291 + $0xe0] sm:$0xff] %v348
                %v350 = vld [vmem:[%s290 + $0x1c8] sm:$0xff]
                %351 = vst [vmem:[%s291 + $0xe8] sm:$0xff] %v350
                %v352 = vld [vmem:[%s290 + $0x1e0] sm:$0xff]
                %353 = vst [vmem:[%s291 + $0xf0] sm:$0xff] %v352
                %v354 = vld [vmem:[%s290 + $0x1e8] sm:$0xff]
                %355 = vst [vmem:[%s291 + $0xf8] sm:$0xff] %v354
                %v356 = vld [vmem:[%s290 + $0x200] sm:$0xff]
                %357 = vst [vmem:[%s291 + $0x100] sm:$0xff] %v356
                %v358 = vld [vmem:[%s290 + $0x208] sm:$0xff]
                %359 = vst [vmem:[%s291 + $0x108] sm:$0xff] %v358
                %v360 = vld [vmem:[%s290 + $0x220] sm:$0xff]
                %361 = vst [vmem:[%s291 + $0x110] sm:$0xff] %v360
                %v362 = vld [vmem:[%s290 + $0x228] sm:$0xff]
                %363 = vst [vmem:[%s291 + $0x118] sm:$0xff] %v362
                %v364 = vld [vmem:[%s290 + $0x240] sm:$0xff]
                %365 = vst [vmem:[%s291 + $0x120] sm:$0xff] %v364
                %v366 = vld [vmem:[%s290 + $0x248] sm:$0xff]
                %367 = vst [vmem:[%s291 + $0x128] sm:$0xff] %v366
                %v368 = vld [vmem:[%s290 + $0x260] sm:$0xff]
                %369 = vst [vmem:[%s291 + $0x130] sm:$0xff] %v368
                %v370 = vld [vmem:[%s290 + $0x268] sm:$0xff]
                %371 = vst [vmem:[%s291 + $0x138] sm:$0xff] %v370
                %v372 = vld [vmem:[%s290 + $0x280] sm:$0xff]
                %373 = vst [vmem:[%s291 + $0x140] sm:$0xff] %v372
                %v374 = vld [vmem:[%s290 + $0x288] sm:$0xff]
                %375 = vst [vmem:[%s291 + $0x148] sm:$0xff] %v374
                %v376 = vld [vmem:[%s290 + $0x2a0] sm:$0xff]
                %377 = vst [vmem:[%s291 + $0x150] sm:$0xff] %v376
                %v378 = vld [vmem:[%s290 + $0x2a8] sm:$0xff]
                %379 = vst [vmem:[%s291 + $0x158] sm:$0xff] %v378
                %v380 = vld [vmem:[%s290 + $0x2c0] sm:$0xff]
                %381 = vst [vmem:[%s291 + $0x160] sm:$0xff] %v380
                %v382 = vld [vmem:[%s290 + $0x2c8] sm:$0xff]
                %383 = vst [vmem:[%s291 + $0x168] sm:$0xff] %v382
                %v384 = vld [vmem:[%s290 + $0x2e0] sm:$0xff]
                %385 = vst [vmem:[%s291 + $0x170] sm:$0xff] %v384
                %v386 = vld [vmem:[%s290 + $0x2e8] sm:$0xff]
                %387 = vst [vmem:[%s291 + $0x178] sm:$0xff] %v386
                %v388 = vld [vmem:[%s290 + $0x300] sm:$0xff]
                %389 = vst [vmem:[%s291 + $0x180] sm:$0xff] %v388
                %v390 = vld [vmem:[%s290 + $0x308] sm:$0xff]
                %391 = vst [vmem:[%s291 + $0x188] sm:$0xff] %v390
                %v392 = vld [vmem:[%s290 + $0x320] sm:$0xff]
                %393 = vst [vmem:[%s291 + $0x190] sm:$0xff] %v392
                %v394 = vld [vmem:[%s290 + $0x328] sm:$0xff]
                %395 = vst [vmem:[%s291 + $0x198] sm:$0xff] %v394
                %v396 = vld [vmem:[%s290 + $0x340] sm:$0xff]
                %397 = vst [vmem:[%s291 + $0x1a0] sm:$0xff] %v396
                %v398 = vld [vmem:[%s290 + $0x348] sm:$0xff]
                %399 = vst [vmem:[%s291 + $0x1a8] sm:$0xff] %v398
                %v400 = vld [vmem:[%s290 + $0x360] sm:$0xff]
                %401 = vst [vmem:[%s291 + $0x1b0] sm:$0xff] %v400
                %v402 = vld [vmem:[%s290 + $0x368] sm:$0xff]
                %403 = vst [vmem:[%s291 + $0x1b8] sm:$0xff] %v402
                %v404 = vld [vmem:[%s290 + $0x380] sm:$0xff]
                %405 = vst [vmem:[%s291 + $0x1c0] sm:$0xff] %v404
                %v406 = vld [vmem:[%s290 + $0x388] sm:$0xff]
                %407 = vst [vmem:[%s291 + $0x1c8] sm:$0xff] %v406
                %v408 = vld [vmem:[%s290 + $0x3a0] sm:$0xff]
                %409 = vst [vmem:[%s291 + $0x1d0] sm:$0xff] %v408
                %v410 = vld [vmem:[%s290 + $0x3a8] sm:$0xff]
                %411 = vst [vmem:[%s291 + $0x1d8] sm:$0xff] %v410
                %v412 = vld [vmem:[%s290 + $0x3c0] sm:$0xff]
                %413 = vst [vmem:[%s291 + $0x1e0] sm:$0xff] %v412
                %v414 = vld [vmem:[%s290 + $0x3c8] sm:$0xff]
                %415 = vst [vmem:[%s291 + $0x1e8] sm:$0xff] %v414
                %v416 = vld [vmem:[%s290 + $0x3e0] sm:$0xff]
                %417 = vst [vmem:[%s291 + $0x1f0] sm:$0xff] %v416
                %v418 = vld [vmem:[%s290 + $0x3e8] sm:$0xff]
                %419 = vst [vmem:[%s291 + $0x1f8] sm:$0xff] %v418
                %v420 = vld [vmem:[%s290 + $0x400] sm:$0xff]
                %421 = vst [vmem:[%s291 + $0x200] sm:$0xff] %v420
                %v422 = vld [vmem:[%s290 + $0x408] sm:$0xff]
                %423 = vst [vmem:[%s291 + $0x208] sm:$0xff] %v422
                %v424 = vld [vmem:[%s290 + $0x420] sm:$0xff]
                %425 = vst [vmem:[%s291 + $0x210] sm:$0xff] %v424
                %v426 = vld [vmem:[%s290 + $0x428] sm:$0xff]
                %427 = vst [vmem:[%s291 + $0x218] sm:$0xff] %v426
                %v428 = vld [vmem:[%s290 + $0x440] sm:$0xff]
                %429 = vst [vmem:[%s291 + $0x220] sm:$0xff] %v428
                %v430 = vld [vmem:[%s290 + $0x448] sm:$0xff]
                %431 = vst [vmem:[%s291 + $0x228] sm:$0xff] %v430
                %v432 = vld [vmem:[%s290 + $0x460] sm:$0xff]
                %433 = vst [vmem:[%s291 + $0x230] sm:$0xff] %v432
                %v434 = vld [vmem:[%s290 + $0x468] sm:$0xff]
                %435 = vst [vmem:[%s291 + $0x238] sm:$0xff] %v434
                %v436 = vld [vmem:[%s290 + $0x480] sm:$0xff]
                %437 = vst [vmem:[%s291 + $0x240] sm:$0xff] %v436
                %v438 = vld [vmem:[%s290 + $0x488] sm:$0xff]
                %439 = vst [vmem:[%s291 + $0x248] sm:$0xff] %v438
                %v440 = vld [vmem:[%s290 + $0x4a0] sm:$0xff]
                %441 = vst [vmem:[%s291 + $0x250] sm:$0xff] %v440
                %v442 = vld [vmem:[%s290 + $0x4a8] sm:$0xff]
                %443 = vst [vmem:[%s291 + $0x258] sm:$0xff] %v442
                %v444 = vld [vmem:[%s290 + $0x4c0] sm:$0xff]
                %445 = vst [vmem:[%s291 + $0x260] sm:$0xff] %v444
                %v446 = vld [vmem:[%s290 + $0x4c8] sm:$0xff]
                %447 = vst [vmem:[%s291 + $0x268] sm:$0xff] %v446
                %v448 = vld [vmem:[%s290 + $0x4e0] sm:$0xff]
                %449 = vst [vmem:[%s291 + $0x270] sm:$0xff] %v448
                %v450 = vld [vmem:[%s290 + $0x4e8] sm:$0xff]
                %451 = vst [vmem:[%s291 + $0x278] sm:$0xff] %v450
                %v452 = vld [vmem:[%s290 + $0x500] sm:$0xff]
                %453 = vst [vmem:[%s291 + $0x280] sm:$0xff] %v452
                %v454 = vld [vmem:[%s290 + $0x508] sm:$0xff]
                %455 = vst [vmem:[%s291 + $0x288] sm:$0xff] %v454
                %v456 = vld [vmem:[%s290 + $0x520] sm:$0xff]
                %457 = vst [vmem:[%s291 + $0x290] sm:$0xff] %v456
                %v458 = vld [vmem:[%s290 + $0x528] sm:$0xff]
                %459 = vst [vmem:[%s291 + $0x298] sm:$0xff] %v458
                %v460 = vld [vmem:[%s290 + $0x540] sm:$0xff]
                %461 = vst [vmem:[%s291 + $0x2a0] sm:$0xff] %v460
                %v462 = vld [vmem:[%s290 + $0x548] sm:$0xff]
                %463 = vst [vmem:[%s291 + $0x2a8] sm:$0xff] %v462
                %v464 = vld [vmem:[%s290 + $0x560] sm:$0xff]
                %465 = vst [vmem:[%s291 + $0x2b0] sm:$0xff] %v464
                %v466 = vld [vmem:[%s290 + $0x568] sm:$0xff]
                %467 = vst [vmem:[%s291 + $0x2b8] sm:$0xff] %v466
                %v468 = vld [vmem:[%s290 + $0x580] sm:$0xff]
                %469 = vst [vmem:[%s291 + $0x2c0] sm:$0xff] %v468
                %v470 = vld [vmem:[%s290 + $0x588] sm:$0xff]
                %471 = vst [vmem:[%s291 + $0x2c8] sm:$0xff] %v470
                %v472 = vld [vmem:[%s290 + $0x5a0] sm:$0xff]
                %473 = vst [vmem:[%s291 + $0x2d0] sm:$0xff] %v472
                %v474 = vld [vmem:[%s290 + $0x5a8] sm:$0xff]
                %475 = vst [vmem:[%s291 + $0x2d8] sm:$0xff] %v474
                %v476 = vld [vmem:[%s290 + $0x5c0] sm:$0xff]
                %477 = vst [vmem:[%s291 + $0x2e0] sm:$0xff] %v476
                %v478 = vld [vmem:[%s290 + $0x5c8] sm:$0xff]
                %479 = vst [vmem:[%s291 + $0x2e8] sm:$0xff] %v478
                %v480 = vld [vmem:[%s290 + $0x5e0] sm:$0xff]
                %481 = vst [vmem:[%s291 + $0x2f0] sm:$0xff] %v480
                %v482 = vld [vmem:[%s290 + $0x5e8] sm:$0xff]
                %483 = vst [vmem:[%s291 + $0x2f8] sm:$0xff] %v482
                %v484 = vld [vmem:[%s290 + $0x600] sm:$0xff]
                %485 = vst [vmem:[%s291 + $0x300] sm:$0xff] %v484
                %v486 = vld [vmem:[%s290 + $0x608] sm:$0xff]
                %487 = vst [vmem:[%s291 + $0x308] sm:$0xff] %v486
                %v488 = vld [vmem:[%s290 + $0x620] sm:$0xff]
                %489 = vst [vmem:[%s291 + $0x310] sm:$0xff] %v488
                %v490 = vld [vmem:[%s290 + $0x628] sm:$0xff]
                %491 = vst [vmem:[%s291 + $0x318] sm:$0xff] %v490
                %v492 = vld [vmem:[%s290 + $0x640] sm:$0xff]
                %493 = vst [vmem:[%s291 + $0x320] sm:$0xff] %v492
                %v494 = vld [vmem:[%s290 + $0x648] sm:$0xff]
                %495 = vst [vmem:[%s291 + $0x328] sm:$0xff] %v494
                %v496 = vld [vmem:[%s290 + $0x660] sm:$0xff]
                %497 = vst [vmem:[%s291 + $0x330] sm:$0xff] %v496
                %v498 = vld [vmem:[%s290 + $0x668] sm:$0xff]
                %499 = vst [vmem:[%s291 + $0x338] sm:$0xff] %v498
                %v500 = vld [vmem:[%s290 + $0x680] sm:$0xff]
                %501 = vst [vmem:[%s291 + $0x340] sm:$0xff] %v500
                %v502 = vld [vmem:[%s290 + $0x688] sm:$0xff]
                %503 = vst [vmem:[%s291 + $0x348] sm:$0xff] %v502
                %v504 = vld [vmem:[%s290 + $0x6a0] sm:$0xff]
                %505 = vst [vmem:[%s291 + $0x350] sm:$0xff] %v504
                %v506 = vld [vmem:[%s290 + $0x6a8] sm:$0xff]
                %507 = vst [vmem:[%s291 + $0x358] sm:$0xff] %v506
                %v508 = vld [vmem:[%s290 + $0x6c0] sm:$0xff]
                %509 = vst [vmem:[%s291 + $0x360] sm:$0xff] %v508
                %v510 = vld [vmem:[%s290 + $0x6c8] sm:$0xff]
                %511 = vst [vmem:[%s291 + $0x368] sm:$0xff] %v510
                %v512 = vld [vmem:[%s290 + $0x6e0] sm:$0xff]
                %513 = vst [vmem:[%s291 + $0x370] sm:$0xff] %v512
                %v514 = vld [vmem:[%s290 + $0x6e8] sm:$0xff]
                %515 = vst [vmem:[%s291 + $0x378] sm:$0xff] %v514
                %v516 = vld [vmem:[%s290 + $0x700] sm:$0xff]
                %517 = vst [vmem:[%s291 + $0x380] sm:$0xff] %v516
                %v518 = vld [vmem:[%s290 + $0x708] sm:$0xff]
                %519 = vst [vmem:[%s291 + $0x388] sm:$0xff] %v518
                %v520 = vld [vmem:[%s290 + $0x720] sm:$0xff]
                %521 = vst [vmem:[%s291 + $0x390] sm:$0xff] %v520
                %v522 = vld [vmem:[%s290 + $0x728] sm:$0xff]
                %523 = vst [vmem:[%s291 + $0x398] sm:$0xff] %v522
                %v524 = vld [vmem:[%s290 + $0x740] sm:$0xff]
                %525 = vst [vmem:[%s291 + $0x3a0] sm:$0xff] %v524
                %v526 = vld [vmem:[%s290 + $0x748] sm:$0xff]
                %527 = vst [vmem:[%s291 + $0x3a8] sm:$0xff] %v526
                %v528 = vld [vmem:[%s290 + $0x760] sm:$0xff]
                %529 = vst [vmem:[%s291 + $0x3b0] sm:$0xff] %v528
                %v530 = vld [vmem:[%s290 + $0x768] sm:$0xff]
                %531 = vst [vmem:[%s291 + $0x3b8] sm:$0xff] %v530
                %v532 = vld [vmem:[%s290 + $0x780] sm:$0xff]
                %533 = vst [vmem:[%s291 + $0x3c0] sm:$0xff] %v532
                %v534 = vld [vmem:[%s290 + $0x788] sm:$0xff]
                %535 = vst [vmem:[%s291 + $0x3c8] sm:$0xff] %v534
                %v536 = vld [vmem:[%s290 + $0x7a0] sm:$0xff]
                %537 = vst [vmem:[%s291 + $0x3d0] sm:$0xff] %v536
                %v538 = vld [vmem:[%s290 + $0x7a8] sm:$0xff]
                %539 = vst [vmem:[%s291 + $0x3d8] sm:$0xff] %v538
                %v540 = vld [vmem:[%s290 + $0x7c0] sm:$0xff]
                %541 = vst [vmem:[%s291 + $0x3e0] sm:$0xff] %v540
                %v542 = vld [vmem:[%s290 + $0x7c8] sm:$0xff]
                %543 = vst [vmem:[%s291 + $0x3e8] sm:$0xff] %v542
                %v544 = vld [vmem:[%s290 + $0x7e0] sm:$0xff]
                %545 = vst [vmem:[%s291 + $0x3f0] sm:$0xff] %v544
                %v546 = vld [vmem:[%s290 + $0x7e8] sm:$0xff]
                %547 = vst [vmem:[%s291 + $0x3f8] sm:$0xff] %v546
              $region49: #{dep_forward.5} parent=43 // loop_footer
                %s289 = sadd.s32 1, %s285
              $region50: #{dep_forward.5} parent=43 // loop_footer_branch
                %284 = sbr.rel target = $region46
              $region51: #{dep_forward.5} parent=43 // loop_exit
                _
            $region44: #{dep_forward.5} parent=39 // pred_fallthru
              _
            // Predicated region
            $region52: #{dep_forward.5} parent=39 // pred_check
              _
            $region53: #{dep_forward.5} parent=39 // pred_check_branch
              %549 = sbr.rel target = $region55
            $region54: #{dep_forward.5} parent=39 // pred_region
              _
            $region55: #{dep_forward.5} parent=39 // pred_fallthru
              _
          $region40: #{dep_forward.5} parent=35 // pred_fallthru
            _
          %550 = vnop
        $region36: #{dep_forward.5} parent=31 // pred_fallthru
          _
        // Predicated region
        $region56: #{dep_forward.5} parent=31 // pred_check
          %p551 = pneg %p165
        $region57: #{dep_forward.5} parent=31 // pred_check_branch
          %553 = sbr.rel (%p551) target = $region59
        $region58: #{dep_forward.5} parent=31 // pred_region
          %s554 = sand.u32 %s155, 1
          %s555 = sand.u32 %s155, 1
          %s556 = smul.addr %s555, 512
          %s557 = scalar_lea.vmem [#allocation3], %s556
          %s558 = smul.u32 4, %s21
          %s559 = smul.addr %s558, 4
          %s560 = scalar_lea.vmem %s5, %s559
          // Predicated region
          $region60: #{dep_forward.5} parent=58 // pred_check
            _
          $region61: #{dep_forward.5} parent=58 // pred_check_branch
            %562 = sbr.rel (0) target = $region63
          $region62: #{dep_forward.5} parent=58 // pred_region
            // Predicated region
            $region64: #{dep_forward.5} parent=62 // pred_check
              _
            $region65: #{dep_forward.5} parent=62 // pred_check_branch
              %564 = sbr.rel (0) target = $region67
            $region66: #{dep_forward.5} parent=62 // pred_region
              loop: start=0, step=1, limit=1
              $region68: #{dep_forward.5} parent=66 // loop_pre_header
                _
              $region69: #{dep_forward.5} parent=66 // loop_header
                %s566 = sphi 0, %s570
                %p567 = scmp.ge.s32.totalorder %s566, 1
                %s571 = sphi %s560, %s560
                %s572 = sphi %s557, %s557
              $region70: #{dep_forward.5} parent=66 // loop_header_branch
                %569 = sbr.rel (%p567) target = $region74
              $region71: #{dep_forward.5} parent=66 // loop_body
                %v573 = vld [vmem:[%s571] sm:$0xff]
                %574 = vst [vmem:[%s572] sm:$0xff] %v573
                %v575 = vld [vmem:[%s571 + $0x8] sm:$0xff]
                %576 = vst [vmem:[%s572 + $0x8] sm:$0xff] %v575
                %v577 = vld [vmem:[%s571 + $0x20] sm:$0xff]
                %578 = vst [vmem:[%s572 + $0x10] sm:$0xff] %v577
                %v579 = vld [vmem:[%s571 + $0x28] sm:$0xff]
                %580 = vst [vmem:[%s572 + $0x18] sm:$0xff] %v579
                %v581 = vld [vmem:[%s571 + $0x40] sm:$0xff]
                %582 = vst [vmem:[%s572 + $0x20] sm:$0xff] %v581
                %v583 = vld [vmem:[%s571 + $0x48] sm:$0xff]
                %584 = vst [vmem:[%s572 + $0x28] sm:$0xff] %v583
                %v585 = vld [vmem:[%s571 + $0x60] sm:$0xff]
                %586 = vst [vmem:[%s572 + $0x30] sm:$0xff] %v585
                %v587 = vld [vmem:[%s571 + $0x68] sm:$0xff]
                %588 = vst [vmem:[%s572 + $0x38] sm:$0xff] %v587
                %v589 = vld [vmem:[%s571 + $0x80] sm:$0xff]
                %590 = vst [vmem:[%s572 + $0x40] sm:$0xff] %v589
                %v591 = vld [vmem:[%s571 + $0x88] sm:$0xff]
                %592 = vst [vmem:[%s572 + $0x48] sm:$0xff] %v591
                %v593 = vld [vmem:[%s571 + $0xa0] sm:$0xff]
                %594 = vst [vmem:[%s572 + $0x50] sm:$0xff] %v593
                %v595 = vld [vmem:[%s571 + $0xa8] sm:$0xff]
                %596 = vst [vmem:[%s572 + $0x58] sm:$0xff] %v595
                %v597 = vld [vmem:[%s571 + $0xc0] sm:$0xff]
                %598 = vst [vmem:[%s572 + $0x60] sm:$0xff] %v597
                %v599 = vld [vmem:[%s571 + $0xc8] sm:$0xff]
                %600 = vst [vmem:[%s572 + $0x68] sm:$0xff] %v599
                %v601 = vld [vmem:[%s571 + $0xe0] sm:$0xff]
                %602 = vst [vmem:[%s572 + $0x70] sm:$0xff] %v601
                %v603 = vld [vmem:[%s571 + $0xe8] sm:$0xff]
                %604 = vst [vmem:[%s572 + $0x78] sm:$0xff] %v603
                %v605 = vld [vmem:[%s571 + $0x100] sm:$0xff]
                %606 = vst [vmem:[%s572 + $0x80] sm:$0xff] %v605
                %v607 = vld [vmem:[%s571 + $0x108] sm:$0xff]
                %608 = vst [vmem:[%s572 + $0x88] sm:$0xff] %v607
                %v609 = vld [vmem:[%s571 + $0x120] sm:$0xff]
                %610 = vst [vmem:[%s572 + $0x90] sm:$0xff] %v609
                %v611 = vld [vmem:[%s571 + $0x128] sm:$0xff]
                %612 = vst [vmem:[%s572 + $0x98] sm:$0xff] %v611
                %v613 = vld [vmem:[%s571 + $0x140] sm:$0xff]
                %614 = vst [vmem:[%s572 + $0xa0] sm:$0xff] %v613
                %v615 = vld [vmem:[%s571 + $0x148] sm:$0xff]
                %616 = vst [vmem:[%s572 + $0xa8] sm:$0xff] %v615
                %v617 = vld [vmem:[%s571 + $0x160] sm:$0xff]
                %618 = vst [vmem:[%s572 + $0xb0] sm:$0xff] %v617
                %v619 = vld [vmem:[%s571 + $0x168] sm:$0xff]
                %620 = vst [vmem:[%s572 + $0xb8] sm:$0xff] %v619
                %v621 = vld [vmem:[%s571 + $0x180] sm:$0xff]
                %622 = vst [vmem:[%s572 + $0xc0] sm:$0xff] %v621
                %v623 = vld [vmem:[%s571 + $0x188] sm:$0xff]
                %624 = vst [vmem:[%s572 + $0xc8] sm:$0xff] %v623
                %v625 = vld [vmem:[%s571 + $0x1a0] sm:$0xff]
                %626 = vst [vmem:[%s572 + $0xd0] sm:$0xff] %v625
                %v627 = vld [vmem:[%s571 + $0x1a8] sm:$0xff]
                %628 = vst [vmem:[%s572 + $0xd8] sm:$0xff] %v627
                %v629 = vld [vmem:[%s571 + $0x1c0] sm:$0xff]
                %630 = vst [vmem:[%s572 + $0xe0] sm:$0xff] %v629
                %v631 = vld [vmem:[%s571 + $0x1c8] sm:$0xff]
                %632 = vst [vmem:[%s572 + $0xe8] sm:$0xff] %v631
                %v633 = vld [vmem:[%s571 + $0x1e0] sm:$0xff]
                %634 = vst [vmem:[%s572 + $0xf0] sm:$0xff] %v633
                %v635 = vld [vmem:[%s571 + $0x1e8] sm:$0xff]
                %636 = vst [vmem:[%s572 + $0xf8] sm:$0xff] %v635
                %v637 = vld [vmem:[%s571 + $0x200] sm:$0xff]
                %638 = vst [vmem:[%s572 + $0x100] sm:$0xff] %v637
                %v639 = vld [vmem:[%s571 + $0x208] sm:$0xff]
                %640 = vst [vmem:[%s572 + $0x108] sm:$0xff] %v639
                %v641 = vld [vmem:[%s571 + $0x220] sm:$0xff]
                %642 = vst [vmem:[%s572 + $0x110] sm:$0xff] %v641
                %v643 = vld [vmem:[%s571 + $0x228] sm:$0xff]
                %644 = vst [vmem:[%s572 + $0x118] sm:$0xff] %v643
                %v645 = vld [vmem:[%s571 + $0x240] sm:$0xff]
                %646 = vst [vmem:[%s572 + $0x120] sm:$0xff] %v645
                %v647 = vld [vmem:[%s571 + $0x248] sm:$0xff]
                %648 = vst [vmem:[%s572 + $0x128] sm:$0xff] %v647
                %v649 = vld [vmem:[%s571 + $0x260] sm:$0xff]
                %650 = vst [vmem:[%s572 + $0x130] sm:$0xff] %v649
                %v651 = vld [vmem:[%s571 + $0x268] sm:$0xff]
                %652 = vst [vmem:[%s572 + $0x138] sm:$0xff] %v651
                %v653 = vld [vmem:[%s571 + $0x280] sm:$0xff]
                %654 = vst [vmem:[%s572 + $0x140] sm:$0xff] %v653
                %v655 = vld [vmem:[%s571 + $0x288] sm:$0xff]
                %656 = vst [vmem:[%s572 + $0x148] sm:$0xff] %v655
                %v657 = vld [vmem:[%s571 + $0x2a0] sm:$0xff]
                %658 = vst [vmem:[%s572 + $0x150] sm:$0xff] %v657
                %v659 = vld [vmem:[%s571 + $0x2a8] sm:$0xff]
                %660 = vst [vmem:[%s572 + $0x158] sm:$0xff] %v659
                %v661 = vld [vmem:[%s571 + $0x2c0] sm:$0xff]
                %662 = vst [vmem:[%s572 + $0x160] sm:$0xff] %v661
                %v663 = vld [vmem:[%s571 + $0x2c8] sm:$0xff]
                %664 = vst [vmem:[%s572 + $0x168] sm:$0xff] %v663
                %v665 = vld [vmem:[%s571 + $0x2e0] sm:$0xff]
                %666 = vst [vmem:[%s572 + $0x170] sm:$0xff] %v665
                %v667 = vld [vmem:[%s571 + $0x2e8] sm:$0xff]
                %668 = vst [vmem:[%s572 + $0x178] sm:$0xff] %v667
                %v669 = vld [vmem:[%s571 + $0x300] sm:$0xff]
                %670 = vst [vmem:[%s572 + $0x180] sm:$0xff] %v669
                %v671 = vld [vmem:[%s571 + $0x308] sm:$0xff]
                %672 = vst [vmem:[%s572 + $0x188] sm:$0xff] %v671
                %v673 = vld [vmem:[%s571 + $0x320] sm:$0xff]
                %674 = vst [vmem:[%s572 + $0x190] sm:$0xff] %v673
                %v675 = vld [vmem:[%s571 + $0x328] sm:$0xff]
                %676 = vst [vmem:[%s572 + $0x198] sm:$0xff] %v675
                %v677 = vld [vmem:[%s571 + $0x340] sm:$0xff]
                %678 = vst [vmem:[%s572 + $0x1a0] sm:$0xff] %v677
                %v679 = vld [vmem:[%s571 + $0x348] sm:$0xff]
                %680 = vst [vmem:[%s572 + $0x1a8] sm:$0xff] %v679
                %v681 = vld [vmem:[%s571 + $0x360] sm:$0xff]
                %682 = vst [vmem:[%s572 + $0x1b0] sm:$0xff] %v681
                %v683 = vld [vmem:[%s571 + $0x368] sm:$0xff]
                %684 = vst [vmem:[%s572 + $0x1b8] sm:$0xff] %v683
                %v685 = vld [vmem:[%s571 + $0x380] sm:$0xff]
                %686 = vst [vmem:[%s572 + $0x1c0] sm:$0xff] %v685
                %v687 = vld [vmem:[%s571 + $0x388] sm:$0xff]
                %688 = vst [vmem:[%s572 + $0x1c8] sm:$0xff] %v687
                %v689 = vld [vmem:[%s571 + $0x3a0] sm:$0xff]
                %690 = vst [vmem:[%s572 + $0x1d0] sm:$0xff] %v689
                %v691 = vld [vmem:[%s571 + $0x3a8] sm:$0xff]
                %692 = vst [vmem:[%s572 + $0x1d8] sm:$0xff] %v691
                %v693 = vld [vmem:[%s571 + $0x3c0] sm:$0xff]
                %694 = vst [vmem:[%s572 + $0x1e0] sm:$0xff] %v693
                %v695 = vld [vmem:[%s571 + $0x3c8] sm:$0xff]
                %696 = vst [vmem:[%s572 + $0x1e8] sm:$0xff] %v695
                %v697 = vld [vmem:[%s571 + $0x3e0] sm:$0xff]
                %698 = vst [vmem:[%s572 + $0x1f0] sm:$0xff] %v697
                %v699 = vld [vmem:[%s571 + $0x3e8] sm:$0xff]
                %700 = vst [vmem:[%s572 + $0x1f8] sm:$0xff] %v699
              $region72: #{dep_forward.5} parent=66 // loop_footer
                %s570 = sadd.s32 1, %s566
              $region73: #{dep_forward.5} parent=66 // loop_footer_branch
                %565 = sbr.rel target = $region69
              $region74: #{dep_forward.5} parent=66 // loop_exit
                _
            $region67: #{dep_forward.5} parent=62 // pred_fallthru
              _
            // Predicated region
            $region75: #{dep_forward.5} parent=62 // pred_check
              _
            $region76: #{dep_forward.5} parent=62 // pred_check_branch
              %702 = sbr.rel target = $region78
            $region77: #{dep_forward.5} parent=62 // pred_region
              _
            $region78: #{dep_forward.5} parent=62 // pred_fallthru
              _
          $region63: #{dep_forward.5} parent=58 // pred_fallthru
            _
          %703 = vnop
        $region59: #{dep_forward.5} parent=31 // pred_fallthru
          _
        // Predicated region
        $region79: #{dep_forward.5} parent=31 // pred_check
          %p704 = pneg %p191
        $region80: #{dep_forward.5} parent=31 // pred_check_branch
          %706 = sbr.rel (%p704) target = $region82
        $region81: #{dep_forward.5} parent=31 // pred_region
          %s707 = smul.u32 4, %s21
          %p708 = scmp.lt.s32.totalorder %s707, 7
          %s709 = scalar_select %p708, %s707, 7
          %s710 = scalar_lea.vmem %s6, %s709
          %s711 = smul.u32 4, %s21
        $region82: #{dep_forward.5} parent=31 // pred_fallthru
          _
      $region32: #{dep_forward.5} parent=5 // pred_fallthru
        _
      %p712 = scmp.le.s32.totalorder 1, %s13
      %p713 = scmp.lt.s32.totalorder %s13, 3
      %p714 = pnand %p712, %p713
      %p715 = pneg %p714
      // Predicated region
      $region83: #{dep_forward.5} parent=5 // pred_check
        _
      $region84: #{dep_forward.5} parent=5 // pred_check_branch
        %717 = sbr.rel (%p714) target = $region86
      $region85: #{dep_forward.5} parent=5 // pred_region
        %s718 = ssub.s32 %s13, 1
        %s719 = sand.u32 %s132, 1
        %s720 = sand.u32 %s132, 1
        %s721 = smul.addr %s720, 1024
        %s722 = scalar_lea.vmem [#allocation2], %s721
        // Predicated region
        $region87: #{dep_forward.5} parent=85 // pred_check
          %p723 = pneg %p145
        $region88: #{dep_forward.5} parent=85 // pred_check_branch
          %725 = sbr.rel (%p723) target = $region90
        $region89: #{dep_forward.5} parent=85 // pred_region
          _
        $region90: #{dep_forward.5} parent=85 // pred_fallthru
          _
        %s726 = sand.u32 %s158, 1
        %s727 = sand.u32 %s158, 1
        %s728 = smul.addr %s727, 512
        %s729 = scalar_lea.vmem [#allocation3], %s728
        // Predicated region
        $region91: #{dep_forward.5} parent=85 // pred_check
          %p730 = pneg %p171
        $region92: #{dep_forward.5} parent=85 // pred_check_branch
          %732 = sbr.rel (%p730) target = $region94
        $region93: #{dep_forward.5} parent=85 // pred_region
          _
        $region94: #{dep_forward.5} parent=85 // pred_fallthru
          _
        %s733 = smul.u32 4, %s22
        %p734 = scmp.lt.s32.totalorder %s733, 3
        %s735 = scalar_select %p734, %s733, 3
        %s736 = smul.addr %s735, 4
        %s737 = smul.addr %s736, 4
        %s738 = scalar_lea.vmem %s0, %s737
        %p739 = pneg %p51
        %p740 = pneg %p48
        %s741 = smul.u32 4, %s22
        %p742 = scmp.lt.s32.totalorder %s741, 3
        %s743 = scalar_select %p742, %s741, 3
        %s744 = smul.addr %s743, 5
        %s745 = smul.addr %s744, 4
        %s746 = scalar_lea.vmem %s1, %s745
        %p747 = pneg %p77
        %p748 = pneg %p74
        %p749 = pneg %p98
        %p750 = pneg %p95
        %p751 = pneg %p119
        %p752 = pneg %p116
        %s753 = sand.u32 %s132, 1
        %s754 = sand.u32 %s132, 1
        %s755 = smul.addr %s754, 1024
        %s756 = scalar_lea.vmem [#allocation2], %s755
        %p757 = pneg %p145
        %p758 = pneg %p142
        %s759 = sand.u32 %s158, 1
        %s760 = sand.u32 %s158, 1
        %s761 = smul.addr %s760, 512
        %s762 = scalar_lea.vmem [#allocation3], %s761
        %p763 = pneg %p171
        %p764 = pneg %p168
        %s765 = smul.u32 4, %s23
        %p766 = scmp.lt.s32.totalorder %s765, 7
        %s767 = scalar_select %p766, %s765, 7
        %s768 = scalar_lea.vmem %s6, %s767
        %p769 = pneg %p197
        %p770 = pneg %p194
        %p771 = pneg %p225
        %p772 = pneg %p222
        %s773 = sand.u32 %s212, 1
        %s774 = sand.u32 %s212, 1
        %s775 = smul.addr %s774, 64
        %s776 = scalar_lea.vmem [#allocation4], %s775
        %s777 = smul.u32 4, %s22
        %p778 = scmp.lt.s32.totalorder %s777, 3
        %s779 = scalar_select %p778, %s777, 3
        %s780 = smul.addr %s779, 4
        %s781 = smul.addr %s780, 4
        %s782 = scalar_lea.vmem %s0, %s781
        %s783 = smul.u32 4, %s22
        %s784 = smul.u32 4, %s22
        %p785 = scmp.lt.s32.totalorder %s784, 3
        %s786 = scalar_select %p785, %s784, 3
        %s787 = smul.addr %s786, 5
        %s788 = smul.addr %s787, 4
        %s789 = scalar_lea.vmem %s1, %s788
        %s790 = smul.u32 4, %s22
        %s791 = smul.u32 4, %s23
        %s792 = smul.u32 4, %s23
        %s793 = smul.u32 4, %s23
        %p794 = scmp.lt.s32.totalorder %s793, 7
        %s795 = scalar_select %p794, %s793, 7
        %s796 = scalar_lea.vmem %s6, %s795
        %s797 = smul.u32 4, %s23
        %s798 = smul.u32 4, %s22
        %s799 = smul.u32 4, %s23
        %v801 = vld [vmem:[%s789] sm:$0xff]
        %v802 = vld [vmem:[%s789 + $0x8] sm:$0xff]
        %v803 = vld [vmem:[%s789 + $0x10] sm:$0xf]
        %v804 = vld [vmem:[%s789 + $0x14] sm:$0xff]
        %v805 = vld [vmem:[%s789 + $0x1c] sm:$0xff]
        %v806 = vld [vmem:[%s789 + $0x24] sm:$0xf]
        %v807 = vld [vmem:[%s789 + $0x28] sm:$0xff]
        %v808 = vld [vmem:[%s789 + $0x30] sm:$0xff]
        %v809 = vld [vmem:[%s789 + $0x38] sm:$0xf]
        %v810 = vld [vmem:[%s789 + $0x3c] sm:$0xff]
        %v811 = vld [vmem:[%s789 + $0x44] sm:$0xff]
        %v812 = vld [vmem:[%s789 + $0x4c] sm:$0xf]
        %v813 = vld [vmem:[%s2] sm:$0xff]
        %v814 = vld [vmem:[%s2 + $0x8] sm:$0xff]
        %v815 = vld [vmem:[%s2 + $0x10] sm:$0xff]
        %v816 = vld [vmem:[%s2 + $0x18] sm:$0xff]
        %v817 = vld [vmem:[%s2 + $0x20] sm:$0xff]
        %v818 = vld [vmem:[%s2 + $0x28] sm:$0xff]
        %v819 = vld [vmem:[%s2 + $0x30] sm:$0xff]
        %v820 = vld [vmem:[%s2 + $0x38] sm:$0xff]
        %v821 = vld [vmem:[%s2 + $0x40] sm:$0xff]
        %v822 = vld [vmem:[%s2 + $0x48] sm:$0xff]
        %v823 = vld [vmem:[%s2 + $0x50] sm:$0xff]
        %v824 = vld [vmem:[%s2 + $0x58] sm:$0xff]
        %v825 = vld [vmem:[%s2 + $0x60] sm:$0xff]
        %v826 = vld [vmem:[%s2 + $0x68] sm:$0xff]
        %v827 = vld [vmem:[%s2 + $0x70] sm:$0xff]
        %v828 = vld [vmem:[%s2 + $0x78] sm:$0xff]
        %v829 = vld [vmem:[%s2 + $0x80] sm:$0xff]
        %v830 = vld [vmem:[%s2 + $0x88] sm:$0xff]
        %v831 = vld [vmem:[%s2 + $0x90] sm:$0xff]
        %v832 = vld [vmem:[%s2 + $0x98] sm:$0xff]
        %v833 = vld [vmem:[%s2 + $0xa0] sm:$0xff]
        %v834 = vld [vmem:[%s2 + $0xa8] sm:$0xff]
        %v835 = vld [vmem:[%s2 + $0xb0] sm:$0xff]
        %v836 = vld [vmem:[%s2 + $0xb8] sm:$0xff]
        %v837 = vld [vmem:[%s2 + $0xc0] sm:$0xff]
        %v838 = vld [vmem:[%s2 + $0xc8] sm:$0xff]
        %v839 = vld [vmem:[%s2 + $0xd0] sm:$0xff]
        %v840 = vld [vmem:[%s2 + $0xd8] sm:$0xff]
        %v841 = vld [vmem:[%s2 + $0xe0] sm:$0xff]
        %v842 = vld [vmem:[%s2 + $0xe8] sm:$0xff]
        %v843 = vld [vmem:[%s2 + $0xf0] sm:$0xff]
        %v844 = vld [vmem:[%s2 + $0xf8] sm:$0xff]
        %v845 = vld [vmem:[%s2 + $0x100] sm:$0xff]
        %v846 = vld [vmem:[%s2 + $0x108] sm:$0xff]
        %v847 = vld [vmem:[%s2 + $0x110] sm:$0xff]
        %v848 = vld [vmem:[%s2 + $0x118] sm:$0xff]
        %v849 = vld [vmem:[%s2 + $0x120] sm:$0xff]
        %v850 = vld [vmem:[%s2 + $0x128] sm:$0xff]
        %v851 = vld [vmem:[%s2 + $0x130] sm:$0xff]
        %v852 = vld [vmem:[%s2 + $0x138] sm:$0xff]
        %v853 = vld [vmem:[%s2 + $0x140] sm:$0xff]
        %v854 = vld [vmem:[%s2 + $0x148] sm:$0xff]
        %v855 = vld [vmem:[%s2 + $0x150] sm:$0xff]
        %v856 = vld [vmem:[%s2 + $0x158] sm:$0xff]
        %v857 = vld [vmem:[%s2 + $0x160] sm:$0xff]
        %v858 = vld [vmem:[%s2 + $0x168] sm:$0xff]
        %v859 = vld [vmem:[%s2 + $0x170] sm:$0xff]
        %v860 = vld [vmem:[%s2 + $0x178] sm:$0xff]
        %v861 = vld [vmem:[%s2 + $0x180] sm:$0xff]
        %v862 = vld [vmem:[%s2 + $0x188] sm:$0xff]
        %v863 = vld [vmem:[%s2 + $0x190] sm:$0xff]
        %v864 = vld [vmem:[%s2 + $0x198] sm:$0xff]
        %v865 = vld [vmem:[%s2 + $0x1a0] sm:$0xff]
        %v866 = vld [vmem:[%s2 + $0x1a8] sm:$0xff]
        %v867 = vld [vmem:[%s2 + $0x1b0] sm:$0xff]
        %v868 = vld [vmem:[%s2 + $0x1b8] sm:$0xff]
        %v869 = vld [vmem:[%s2 + $0x1c0] sm:$0xff]
        %v870 = vld [vmem:[%s2 + $0x1c8] sm:$0xff]
        %v871 = vld [vmem:[%s2 + $0x1d0] sm:$0xff]
        %v872 = vld [vmem:[%s2 + $0x1d8] sm:$0xff]
        %v873 = vld [vmem:[%s2 + $0x1e0] sm:$0xff]
        %v874 = vld [vmem:[%s2 + $0x1e8] sm:$0xff]
        %v875 = vld [vmem:[%s2 + $0x1f0] sm:$0xff]
        %v876 = vld [vmem:[%s2 + $0x1f8] sm:$0xff]
        %v877 = vld [vmem:[%s2 + $0x200] sm:$0xff]
        %v878 = vld [vmem:[%s2 + $0x208] sm:$0xff]
        %v879 = vld [vmem:[%s2 + $0x210] sm:$0xff]
        %v880 = vld [vmem:[%s2 + $0x218] sm:$0xff]
        %v881 = vld [vmem:[%s2 + $0x220] sm:$0xff]
        %v882 = vld [vmem:[%s2 + $0x228] sm:$0xff]
        %v883 = vld [vmem:[%s2 + $0x230] sm:$0xff]
        %v884 = vld [vmem:[%s2 + $0x238] sm:$0xff]
        %v885 = vld [vmem:[%s2 + $0x240] sm:$0xff]
        %v886 = vld [vmem:[%s2 + $0x248] sm:$0xff]
        %v887 = vld [vmem:[%s3] sm:$0x3]
        %v889 = vlaneseq
        %v890 = vshrl.u32 %v889, 7
        %v891 = vsub.s32 0, %v890
        %v892 = vrot.slane %v887, %v891
        %v893 = vlaneseq
        %v894 = vshrl.u32 %v893, 7
        %v895 = vsub.s32 1, %v894
        %v896 = vrot.slane %v887, %v895
        %v911 = vunpack.c.l.b16 %v801
        %v912 = vunpack.c.h.b16 %v801
        %v913 = vunpack.c.l.b16 %v802
        %v914 = vunpack.c.h.b16 %v802
        %v915 = vunpack.c.l.b16 %v803
        %v916 = vunpack.c.l.b16 %v804
        %v917 = vunpack.c.h.b16 %v804
        %v918 = vunpack.c.l.b16 %v805
        %v919 = vunpack.c.h.b16 %v805
        %v920 = vunpack.c.l.b16 %v806
        %v921 = vunpack.c.l.b16 %v807
        %v922 = vunpack.c.h.b16 %v807
        %v923 = vunpack.c.l.b16 %v808
        %v924 = vunpack.c.h.b16 %v808
        %v925 = vunpack.c.l.b16 %v809
        %v926 = vunpack.c.l.b16 %v810
        %v927 = vunpack.c.h.b16 %v810
        %v928 = vunpack.c.l.b16 %v811
        %v929 = vunpack.c.h.b16 %v811
        %v930 = vunpack.c.l.b16 %v812
        %v931 = vpack.c.b16 %v916, %v911
        %v932 = vpack.c.b16 %v917, %v912
        %v933 = vpack.c.b16 %v918, %v913
        %v934 = vpack.c.b16 %v919, %v914
        %v935 = vpack.c.b16 %v920, %v915
        %v936 = vpack.c.b16 %v926, %v921
        %v937 = vpack.c.b16 %v927, %v922
        %v938 = vpack.c.b16 %v928, %v923
        %v939 = vpack.c.b16 %v929, %v924
        %v940 = vpack.c.b16 %v930, %v925
        %v1023 = vunpack.c.l.b16 %v813
        %v1024 = vunpack.c.h.b16 %v813
        %v1025 = vunpack.c.l.b16 %v814
        %v1026 = vunpack.c.h.b16 %v814
        %v1027 = vunpack.c.l.b16 %v815
        %v1028 = vunpack.c.h.b16 %v815
        %v1029 = vunpack.c.l.b16 %v816
        %v1030 = vunpack.c.h.b16 %v816
        %v1031 = vunpack.c.l.b16 %v817
        %v1032 = vunpack.c.h.b16 %v817
        %v1033 = vunpack.c.l.b16 %v818
        %v1034 = vunpack.c.h.b16 %v818
        %v1035 = vunpack.c.l.b16 %v819
        %v1036 = vunpack.c.h.b16 %v819
        %v1037 = vunpack.c.l.b16 %v820
        %v1038 = vunpack.c.h.b16 %v820
        %v1039 = vunpack.c.l.b16 %v821
        %v1040 = vunpack.c.h.b16 %v821
        %v1041 = vunpack.c.l.b16 %v822
        %v1042 = vunpack.c.h.b16 %v822
        %v1043 = vunpack.c.l.b16 %v823
        %v1044 = vunpack.c.h.b16 %v823
        %v1045 = vunpack.c.l.b16 %v824
        %v1046 = vunpack.c.h.b16 %v824
        %v1047 = vunpack.c.l.b16 %v825
        %v1048 = vunpack.c.h.b16 %v825
        %v1049 = vunpack.c.l.b16 %v826
        %v1050 = vunpack.c.h.b16 %v826
        %v1051 = vunpack.c.l.b16 %v827
        %v1052 = vunpack.c.h.b16 %v827
        %v1053 = vunpack.c.l.b16 %v828
        %v1054 = vunpack.c.h.b16 %v828
        %v1055 = vunpack.c.l.b16 %v829
        %v1056 = vunpack.c.h.b16 %v829
        %v1057 = vunpack.c.l.b16 %v830
        %v1058 = vunpack.c.h.b16 %v830
        %v1059 = vunpack.c.l.b16 %v831
        %v1060 = vunpack.c.h.b16 %v831
        %v1061 = vunpack.c.l.b16 %v832
        %v1062 = vunpack.c.h.b16 %v832
        %v1063 = vunpack.c.l.b16 %v833
        %v1064 = vunpack.c.h.b16 %v833
        %v1065 = vunpack.c.l.b16 %v834
        %v1066 = vunpack.c.h.b16 %v834
        %v1067 = vunpack.c.l.b16 %v835
        %v1068 = vunpack.c.h.b16 %v835
        %v1069 = vunpack.c.l.b16 %v836
        %v1070 = vunpack.c.h.b16 %v836
        %v1071 = vunpack.c.l.b16 %v837
        %v1072 = vunpack.c.h.b16 %v837
        %v1073 = vunpack.c.l.b16 %v838
        %v1074 = vunpack.c.h.b16 %v838
        %v1075 = vunpack.c.l.b16 %v839
        %v1076 = vunpack.c.h.b16 %v839
        %v1077 = vunpack.c.l.b16 %v840
        %v1078 = vunpack.c.h.b16 %v840
        %v1079 = vunpack.c.l.b16 %v841
        %v1080 = vunpack.c.h.b16 %v841
        %v1081 = vunpack.c.l.b16 %v842
        %v1082 = vunpack.c.h.b16 %v842
        %v1083 = vunpack.c.l.b16 %v843
        %v1084 = vunpack.c.h.b16 %v843
        %v1085 = vunpack.c.l.b16 %v844
        %v1086 = vunpack.c.h.b16 %v844
        %v1087 = vunpack.c.l.b16 %v845
        %v1088 = vunpack.c.h.b16 %v845
        %v1089 = vunpack.c.l.b16 %v846
        %v1090 = vunpack.c.h.b16 %v846
        %v1091 = vunpack.c.l.b16 %v847
        %v1092 = vunpack.c.h.b16 %v847
        %v1093 = vunpack.c.l.b16 %v848
        %v1094 = vunpack.c.h.b16 %v848
        %v1095 = vunpack.c.l.b16 %v849
        %v1096 = vunpack.c.h.b16 %v849
        %v1097 = vunpack.c.l.b16 %v850
        %v1098 = vunpack.c.h.b16 %v850
        %v1099 = vunpack.c.l.b16 %v851
        %v1100 = vunpack.c.h.b16 %v851
        %v1101 = vunpack.c.l.b16 %v852
        %v1102 = vunpack.c.h.b16 %v852
        %v1103 = vunpack.c.l.b16 %v853
        %v1104 = vunpack.c.h.b16 %v853
        %v1105 = vunpack.c.l.b16 %v854
        %v1106 = vunpack.c.h.b16 %v854
        %v1107 = vunpack.c.l.b16 %v855
        %v1108 = vunpack.c.h.b16 %v855
        %v1109 = vunpack.c.l.b16 %v856
        %v1110 = vunpack.c.h.b16 %v856
        %v1111 = vunpack.c.l.b16 %v857
        %v1112 = vunpack.c.h.b16 %v857
        %v1113 = vunpack.c.l.b16 %v858
        %v1114 = vunpack.c.h.b16 %v858
        %v1115 = vunpack.c.l.b16 %v859
        %v1116 = vunpack.c.h.b16 %v859
        %v1117 = vunpack.c.l.b16 %v860
        %v1118 = vunpack.c.h.b16 %v860
        %v1119 = vunpack.c.l.b16 %v861
        %v1120 = vunpack.c.h.b16 %v861
        %v1121 = vunpack.c.l.b16 %v862
        %v1122 = vunpack.c.h.b16 %v862
        %v1123 = vunpack.c.l.b16 %v863
        %v1124 = vunpack.c.h.b16 %v863
        %v1125 = vunpack.c.l.b16 %v864
        %v1126 = vunpack.c.h.b16 %v864
        %v1127 = vunpack.c.l.b16 %v865
        %v1128 = vunpack.c.h.b16 %v865
        %v1129 = vunpack.c.l.b16 %v866
        %v1130 = vunpack.c.h.b16 %v866
        %v1131 = vunpack.c.l.b16 %v867
        %v1132 = vunpack.c.h.b16 %v867
        %v1133 = vunpack.c.l.b16 %v868
        %v1134 = vunpack.c.h.b16 %v868
        %v1135 = vunpack.c.l.b16 %v869
        %v1136 = vunpack.c.h.b16 %v869
        %v1137 = vunpack.c.l.b16 %v870
        %v1138 = vunpack.c.h.b16 %v870
        %v1139 = vunpack.c.l.b16 %v871
        %v1140 = vunpack.c.h.b16 %v871
        %v1141 = vunpack.c.l.b16 %v872
        %v1142 = vunpack.c.h.b16 %v872
        %v1143 = vunpack.c.l.b16 %v873
        %v1144 = vunpack.c.h.b16 %v873
        %v1145 = vunpack.c.l.b16 %v874
        %v1146 = vunpack.c.h.b16 %v874
        %v1147 = vunpack.c.l.b16 %v875
        %v1148 = vunpack.c.h.b16 %v875
        %v1149 = vunpack.c.l.b16 %v876
        %v1150 = vunpack.c.h.b16 %v876
        %v1151 = vunpack.c.l.b16 %v877
        %v1152 = vunpack.c.h.b16 %v877
        %v1153 = vunpack.c.l.b16 %v878
        %v1154 = vunpack.c.h.b16 %v878
        %v1155 = vunpack.c.l.b16 %v879
        %v1156 = vunpack.c.h.b16 %v879
        %v1157 = vunpack.c.l.b16 %v880
        %v1158 = vunpack.c.h.b16 %v880
        %v1159 = vunpack.c.l.b16 %v881
        %v1160 = vunpack.c.h.b16 %v881
        %v1161 = vunpack.c.l.b16 %v882
        %v1162 = vunpack.c.h.b16 %v882
        %v1163 = vunpack.c.l.b16 %v883
        %v1164 = vunpack.c.h.b16 %v883
        %v1165 = vunpack.c.l.b16 %v884
        %v1166 = vunpack.c.h.b16 %v884
        %v1167 = vunpack.c.l.b16 %v885
        %v1168 = vunpack.c.h.b16 %v885
        %v1169 = vunpack.c.l.b16 %v886
        %v1170 = vunpack.c.h.b16 %v886
        %v1171 = vpack.c.b16 %v1025, %v1023
        %v1172 = vpack.c.b16 %v1026, %v1024
        %v1173 = vpack.c.b16 %v1029, %v1027
        %v1174 = vpack.c.b16 %v1030, %v1028
        %v1175 = vpack.c.b16 %v1033, %v1031
        %v1176 = vpack.c.b16 %v1034, %v1032
        %v1177 = vpack.c.b16 %v1037, %v1035
        %v1178 = vpack.c.b16 %v1038, %v1036
        %v1179 = vpack.c.b16 %v1041, %v1039
        %v1180 = vpack.c.b16 %v1042, %v1040
        %v1181 = vpack.c.b16 %v1045, %v1043
        %v1182 = vpack.c.b16 %v1046, %v1044
        %v1183 = vpack.c.b16 %v1049, %v1047
        %v1184 = vpack.c.b16 %v1050, %v1048
        %v1185 = vpack.c.b16 %v1053, %v1051
        %v1186 = vpack.c.b16 %v1054, %v1052
        %v1187 = vpack.c.b16 %v1057, %v1055
        %v1188 = vpack.c.b16 %v1058, %v1056
        %v1189 = vpack.c.b16 %v1061, %v1059
        %v1190 = vpack.c.b16 %v1062, %v1060
        %v1191 = vpack.c.b16 %v1065, %v1063
        %v1192 = vpack.c.b16 %v1066, %v1064
        %v1193 = vpack.c.b16 %v1069, %v1067
        %v1194 = vpack.c.b16 %v1070, %v1068
        %v1195 = vpack.c.b16 %v1073, %v1071
        %v1196 = vpack.c.b16 %v1074, %v1072
        %v1197 = vpack.c.b16 %v1077, %v1075
        %v1198 = vpack.c.b16 %v1078, %v1076
        %v1199 = vpack.c.b16 %v1081, %v1079
        %v1200 = vpack.c.b16 %v1082, %v1080
        %v1201 = vpack.c.b16 %v1085, %v1083
        %v1202 = vpack.c.b16 %v1086, %v1084
        %v1203 = vpack.c.b16 %v1089, %v1087
        %v1204 = vpack.c.b16 %v1090, %v1088
        %v1205 = vpack.c.b16 %v1093, %v1091
        %v1206 = vpack.c.b16 %v1094, %v1092
        %v1207 = vpack.c.b16 %v1097, %v1095
        %v1208 = vpack.c.b16 %v1098, %v1096
        %v1209 = vpack.c.b16 %v1101, %v1099
        %v1210 = vpack.c.b16 %v1102, %v1100
        %v1211 = vpack.c.b16 %v1105, %v1103
        %v1212 = vpack.c.b16 %v1106, %v1104
        %v1213 = vpack.c.b16 %v1109, %v1107
        %v1214 = vpack.c.b16 %v1110, %v1108
        %v1215 = vpack.c.b16 %v1113, %v1111
        %v1216 = vpack.c.b16 %v1114, %v1112
        %v1217 = vpack.c.b16 %v1117, %v1115
        %v1218 = vpack.c.b16 %v1118, %v1116
        %v1219 = vpack.c.b16 %v1121, %v1119
        %v1220 = vpack.c.b16 %v1122, %v1120
        %v1221 = vpack.c.b16 %v1125, %v1123
        %v1222 = vpack.c.b16 %v1126, %v1124
        %v1223 = vpack.c.b16 %v1129, %v1127
        %v1224 = vpack.c.b16 %v1130, %v1128
        %v1225 = vpack.c.b16 %v1133, %v1131
        %v1226 = vpack.c.b16 %v1134, %v1132
        %v1227 = vpack.c.b16 %v1137, %v1135
        %v1228 = vpack.c.b16 %v1138, %v1136
        %v1229 = vpack.c.b16 %v1141, %v1139
        %v1230 = vpack.c.b16 %v1142, %v1140
        %v1231 = vpack.c.b16 %v1145, %v1143
        %v1232 = vpack.c.b16 %v1146, %v1144
        %v1233 = vpack.c.b16 %v1149, %v1147
        %v1234 = vpack.c.b16 %v1150, %v1148
        %v1235 = vpack.c.b16 %v1153, %v1151
        %v1236 = vpack.c.b16 %v1154, %v1152
        %v1237 = vpack.c.b16 %v1157, %v1155
        %v1238 = vpack.c.b16 %v1158, %v1156
        %v1239 = vpack.c.b16 %v1161, %v1159
        %v1240 = vpack.c.b16 %v1162, %v1160
        %v1241 = vpack.c.b16 %v1165, %v1163
        %v1242 = vpack.c.b16 %v1166, %v1164
        %v1243 = vpack.c.b16 %v1169, %v1167
        %v1244 = vpack.c.b16 %v1170, %v1168
        %vm1319 = vcmask 654336
        %v1321 = vsel %vm1319, %v935, 0
        %v1324 = vsel %vm1319, %v940, 0
        %1326 = vmatprep.subr.bf16.mxu0 %v1186
        %1327 = vmatpush1.bf16.msra.mxu0 %v1185
        %1328 = vmatprep.subr.bf16.mxu0 %v1184
        %1329 = vmatpush1.bf16.msra.mxu0 %v1183
        %1330 = vmatprep.subr.bf16.mxu0 %v1182
        %1331 = vmatpush1.bf16.msra.mxu0 %v1181
        %1332 = vmatprep.subr.bf16.mxu0 %v1180
        %1333 = vmatpush1.bf16.msra.mxu0 %v1179
        %1334 = vmatprep.subr.bf16.mxu0 %v1178
        %1335 = vmatpush1.bf16.msra.mxu0 %v1177
        %1336 = vmatprep.subr.bf16.mxu0 %v1176
        %1337 = vmatpush1.bf16.msra.mxu0 %v1175
        %1338 = vmatprep.subr.bf16.mxu0 %v1174
        %1339 = vmatpush1.bf16.msra.mxu0 %v1173
        %1340 = vmatprep.subr.bf16.mxu0 %v1172
        %1341 = vmatpush1.bf16.msra.mxu0 %v1171
        %1342 = vmatprep.subr.bf16.mxu0 %v1202
        %1343 = vmatpush2.bf16.msra.mxu0 %v1201
        %1344 = vmatprep.subr.bf16.mxu0 %v1200
        %1345 = vmatpush2.bf16.msra.mxu0 %v1199
        %1346 = vmatprep.subr.bf16.mxu0 %v1198
        %1347 = vmatpush2.bf16.msra.mxu0 %v1197
        %1348 = vmatprep.subr.bf16.mxu0 %v1196
        %1349 = vmatpush2.bf16.msra.mxu0 %v1195
        %1350 = vmatprep.subr.bf16.mxu0 %v1194
        %1351 = vmatpush2.bf16.msra.mxu0 %v1193
        %1352 = vmatprep.subr.bf16.mxu0 %v1192
        %1353 = vmatpush2.bf16.msra.mxu0 %v1191
        %1354 = vmatprep.subr.bf16.mxu0 %v1190
        %1355 = vmatpush2.bf16.msra.mxu0 %v1189
        %1356 = vmatprep.subr.bf16.mxu0 %v1188
        %1357 = vmatpush2.bf16.msra.mxu0 %v1187
        %1358 = vmatprep.mubr.bf16.mxu0 %v932
        %1359 = vmatmul.mubr.bf16.gmra.mxu0 %v931
        %v1360 = vpop.f32.mrf.mxu0
        %v1361 = vadd.f32 %v892, %v1360
        %v1362 = vpop.f32.mrf.mxu0
        %v1363 = vadd.f32 %v896, %v1362
        %v1364 = vpop.f32.mrf.mxu0
        %v1365 = vadd.f32 %v892, %v1364
        %v1366 = vpop.f32.mrf.mxu0
        %v1367 = vadd.f32 %v896, %v1366
        %1368 = vmatprep.mubr.bf16.mxu0 %v937
        %1369 = vmatmul.mubr.bf16.gmra.mxu0 %v936
        %v1370 = vpop.f32.mrf.mxu0
        %v1371 = vadd.f32 %v892, %v1370
        %v1372 = vpop.f32.mrf.mxu0
        %v1373 = vadd.f32 %v896, %v1372
        %v1374 = vpop.f32.mrf.mxu0
        %v1375 = vadd.f32 %v892, %v1374
        %v1376 = vpop.f32.mrf.mxu0
        %v1377 = vadd.f32 %v896, %v1376
        %1378 = vdwg.mxu0
        %1379 = vmatprep.subr.bf16.mxu0 %v1218
        %1380 = vmatpush1.bf16.msra.mxu0 %v1217
        %1381 = vmatprep.subr.bf16.mxu0 %v1216
        %1382 = vmatpush1.bf16.msra.mxu0 %v1215
        %1383 = vmatprep.subr.bf16.mxu0 %v1214
        %1384 = vmatpush1.bf16.msra.mxu0 %v1213
        %1385 = vmatprep.subr.bf16.mxu0 %v1212
        %1386 = vmatpush1.bf16.msra.mxu0 %v1211
        %1387 = vmatprep.subr.bf16.mxu0 %v1210
        %1388 = vmatpush1.bf16.msra.mxu0 %v1209
        %1389 = vmatprep.subr.bf16.mxu0 %v1208
        %1390 = vmatpush1.bf16.msra.mxu0 %v1207
        %1391 = vmatprep.subr.bf16.mxu0 %v1206
        %1392 = vmatpush1.bf16.msra.mxu0 %v1205
        %1393 = vmatprep.subr.bf16.mxu0 %v1204
        %1394 = vmatpush1.bf16.msra.mxu0 %v1203
        %1395 = vmatprep.subr.bf16.mxu0 %v1234
        %1396 = vmatpush2.bf16.msra.mxu0 %v1233
        %1397 = vmatprep.subr.bf16.mxu0 %v1232
        %1398 = vmatpush2.bf16.msra.mxu0 %v1231
        %1399 = vmatprep.subr.bf16.mxu0 %v1230
        %1400 = vmatpush2.bf16.msra.mxu0 %v1229
        %1401 = vmatprep.subr.bf16.mxu0 %v1228
        %1402 = vmatpush2.bf16.msra.mxu0 %v1227
        %1403 = vmatprep.subr.bf16.mxu0 %v1226
        %1404 = vmatpush2.bf16.msra.mxu0 %v1225
        %1405 = vmatprep.subr.bf16.mxu0 %v1224
        %1406 = vmatpush2.bf16.msra.mxu0 %v1223
        %1407 = vmatprep.subr.bf16.mxu0 %v1222
        %1408 = vmatpush2.bf16.msra.mxu0 %v1221
        %1409 = vmatprep.subr.bf16.mxu0 %v1220
        %1410 = vmatpush2.bf16.msra.mxu0 %v1219
        %1411 = vmatprep.mubr.bf16.mxu0 %v934
        %1412 = vmatmul.mubr.bf16.gmra.mxu0 %v933
        %v1413 = vpop.f32.mrf.mxu0
        %v1414 = vadd.f32 %v1361, %v1413
        %v1415 = vpop.f32.mrf.mxu0
        %v1416 = vadd.f32 %v1363, %v1415
        %v1417 = vpop.f32.mrf.mxu0
        %v1418 = vadd.f32 %v1365, %v1417
        %v1419 = vpop.f32.mrf.mxu0
        %v1420 = vadd.f32 %v1367, %v1419
        %1421 = vmatprep.mubr.bf16.mxu0 %v939
        %1422 = vmatmul.mubr.bf16.gmra.mxu0 %v938
        %v1423 = vpop.f32.mrf.mxu0
        %v1424 = vadd.f32 %v1371, %v1423
        %v1425 = vpop.f32.mrf.mxu0
        %v1426 = vadd.f32 %v1373, %v1425
        %v1427 = vpop.f32.mrf.mxu0
        %v1428 = vadd.f32 %v1375, %v1427
        %v1429 = vpop.f32.mrf.mxu0
        %v1430 = vadd.f32 %v1377, %v1429
        %1431 = vdwg.mxu0
        %1432 = vmatprep.subr.bf16.mxu0 0
        %1433 = vmatpush1.bf16.msra.mxu0 0
        %1434 = vmatprep.subr.bf16.mxu0 0
        %1435 = vmatpush1.bf16.msra.mxu0 0
        %1436 = vmatprep.subr.bf16.mxu0 0
        %1437 = vmatpush1.bf16.msra.mxu0 0
        %1438 = vmatprep.subr.bf16.mxu0 %v1244
        %1439 = vmatpush1.bf16.msra.mxu0 %v1243
        %1440 = vmatprep.subr.bf16.mxu0 %v1242
        %1441 = vmatpush1.bf16.msra.mxu0 %v1241
        %1442 = vmatprep.subr.bf16.mxu0 %v1240
        %1443 = vmatpush1.bf16.msra.mxu0 %v1239
        %1444 = vmatprep.subr.bf16.mxu0 %v1238
        %1445 = vmatpush1.bf16.msra.mxu0 %v1237
        %1446 = vmatprep.subr.bf16.mxu0 %v1236
        %1447 = vmatpush1.bf16.msra.mxu0 %v1235
        %1448 = vmatprep.subr.bf16.mxu0 0
        %1449 = vmatpush2.bf16.msra.mxu0 0
        %1450 = vmatprep.subr.bf16.mxu0 0
        %1451 = vmatpush2.bf16.msra.mxu0 0
        %1452 = vmatprep.subr.bf16.mxu0 0
        %1453 = vmatpush2.bf16.msra.mxu0 0
        %1454 = vmatprep.subr.bf16.mxu0 0
        %1455 = vmatpush2.bf16.msra.mxu0 0
        %1456 = vmatprep.subr.bf16.mxu0 0
        %1457 = vmatpush2.bf16.msra.mxu0 0
        %1458 = vmatprep.subr.bf16.mxu0 0
        %1459 = vmatpush2.bf16.msra.mxu0 0
        %1460 = vmatprep.subr.bf16.mxu0 0
        %1461 = vmatpush2.bf16.msra.mxu0 0
        %1462 = vmatprep.subr.bf16.mxu0 0
        %1463 = vmatpush2.bf16.msra.mxu0 0
        %1464 = vmatprep.mubr.bf16.mxu0 0
        %1465 = vmatmul.mubr.bf16.gmra.mxu0 %v1321
        %v1466 = vpop.f32.mrf.mxu0
        %v1467 = vadd.f32 %v1414, %v1466
        %v1468 = vpop.f32.mrf.mxu0
        %v1469 = vadd.f32 %v1416, %v1468
        %v1470 = vpop.f32.mrf.mxu0
        %v1471 = vadd.f32 %v1418, %v1470
        %v1472 = vpop.f32.mrf.mxu0
        %v1473 = vadd.f32 %v1420, %v1472
        %1474 = vmatprep.mubr.bf16.mxu0 0
        %1475 = vmatmul.mubr.bf16.gmra.mxu0 %v1324
        %v1476 = vpop.f32.mrf.mxu0
        %v1477 = vadd.f32 %v1424, %v1476
        %v1478 = vpop.f32.mrf.mxu0
        %v1479 = vadd.f32 %v1426, %v1478
        %v1480 = vpop.f32.mrf.mxu0
        %v1481 = vadd.f32 %v1428, %v1480
        %v1482 = vpop.f32.mrf.mxu0
        %v1483 = vadd.f32 %v1430, %v1482
        %1484 = vdwg.mxu0
        %v1485 = vld [vmem:[%s782] sm:$0xff]
        %v1486 = vld [vmem:[%s782 + $0x8] sm:$0xff]
        %v1487 = vld [vmem:[%s782 + $0x10] sm:$0xff]
        %v1488 = vld [vmem:[%s782 + $0x18] sm:$0xff]
        %v1489 = vld [vmem:[%s782 + $0x20] sm:$0xff]
        %v1490 = vld [vmem:[%s782 + $0x28] sm:$0xff]
        %v1491 = vld [vmem:[%s782 + $0x30] sm:$0xff]
        %v1492 = vld [vmem:[%s782 + $0x38] sm:$0xff]
        %v1493 = vld [vmem:[%s722] sm:$0xff]
        %v1494 = vld [vmem:[%s722 + $0x8] sm:$0xff]
        %v1495 = vld [vmem:[%s722 + $0x10] sm:$0xff]
        %v1496 = vld [vmem:[%s722 + $0x18] sm:$0xff]
        %v1497 = vld [vmem:[%s722 + $0x20] sm:$0xff]
        %v1498 = vld [vmem:[%s722 + $0x28] sm:$0xff]
        %v1499 = vld [vmem:[%s722 + $0x30] sm:$0xff]
        %v1500 = vld [vmem:[%s722 + $0x38] sm:$0xff]
        %v1501 = vld [vmem:[%s722 + $0x40] sm:$0xff]
        %v1502 = vld [vmem:[%s722 + $0x48] sm:$0xff]
        %v1503 = vld [vmem:[%s722 + $0x50] sm:$0xff]
        %v1504 = vld [vmem:[%s722 + $0x58] sm:$0xff]
        %v1505 = vld [vmem:[%s722 + $0x60] sm:$0xff]
        %v1506 = vld [vmem:[%s722 + $0x68] sm:$0xff]
        %v1507 = vld [vmem:[%s722 + $0x70] sm:$0xff]
        %v1508 = vld [vmem:[%s722 + $0x78] sm:$0xff]
        %v1509 = vld [vmem:[%s722 + $0x80] sm:$0xff]
        %v1510 = vld [vmem:[%s722 + $0x88] sm:$0xff]
        %v1511 = vld [vmem:[%s722 + $0x90] sm:$0xff]
        %v1512 = vld [vmem:[%s722 + $0x98] sm:$0xff]
        %v1513 = vld [vmem:[%s722 + $0xa0] sm:$0xff]
        %v1514 = vld [vmem:[%s722 + $0xa8] sm:$0xff]
        %v1515 = vld [vmem:[%s722 + $0xb0] sm:$0xff]
        %v1516 = vld [vmem:[%s722 + $0xb8] sm:$0xff]
        %v1517 = vld [vmem:[%s722 + $0xc0] sm:$0xff]
        %v1518 = vld [vmem:[%s722 + $0xc8] sm:$0xff]
        %v1519 = vld [vmem:[%s722 + $0xd0] sm:$0xff]
        %v1520 = vld [vmem:[%s722 + $0xd8] sm:$0xff]
        %v1521 = vld [vmem:[%s722 + $0xe0] sm:$0xff]
        %v1522 = vld [vmem:[%s722 + $0xe8] sm:$0xff]
        %v1523 = vld [vmem:[%s722 + $0xf0] sm:$0xff]
        %v1524 = vld [vmem:[%s722 + $0xf8] sm:$0xff]
        %v1525 = vld [vmem:[%s722 + $0x100] sm:$0xff]
        %v1526 = vld [vmem:[%s722 + $0x108] sm:$0xff]
        %v1527 = vld [vmem:[%s722 + $0x110] sm:$0xff]
        %v1528 = vld [vmem:[%s722 + $0x118] sm:$0xff]
        %v1529 = vld [vmem:[%s722 + $0x120] sm:$0xff]
        %v1530 = vld [vmem:[%s722 + $0x128] sm:$0xff]
        %v1531 = vld [vmem:[%s722 + $0x130] sm:$0xff]
        %v1532 = vld [vmem:[%s722 + $0x138] sm:$0xff]
        %v1533 = vld [vmem:[%s722 + $0x140] sm:$0xff]
        %v1534 = vld [vmem:[%s722 + $0x148] sm:$0xff]
        %v1535 = vld [vmem:[%s722 + $0x150] sm:$0xff]
        %v1536 = vld [vmem:[%s722 + $0x158] sm:$0xff]
        %v1537 = vld [vmem:[%s722 + $0x160] sm:$0xff]
        %v1538 = vld [vmem:[%s722 + $0x168] sm:$0xff]
        %v1539 = vld [vmem:[%s722 + $0x170] sm:$0xff]
        %v1540 = vld [vmem:[%s722 + $0x178] sm:$0xff]
        %v1541 = vld [vmem:[%s722 + $0x180] sm:$0xff]
        %v1542 = vld [vmem:[%s722 + $0x188] sm:$0xff]
        %v1543 = vld [vmem:[%s722 + $0x190] sm:$0xff]
        %v1544 = vld [vmem:[%s722 + $0x198] sm:$0xff]
        %v1545 = vld [vmem:[%s722 + $0x1a0] sm:$0xff]
        %v1546 = vld [vmem:[%s722 + $0x1a8] sm:$0xff]
        %v1547 = vld [vmem:[%s722 + $0x1b0] sm:$0xff]
        %v1548 = vld [vmem:[%s722 + $0x1b8] sm:$0xff]
        %v1549 = vld [vmem:[%s722 + $0x1c0] sm:$0xff]
        %v1550 = vld [vmem:[%s722 + $0x1c8] sm:$0xff]
        %v1551 = vld [vmem:[%s722 + $0x1d0] sm:$0xff]
        %v1552 = vld [vmem:[%s722 + $0x1d8] sm:$0xff]
        %v1553 = vld [vmem:[%s722 + $0x1e0] sm:$0xff]
        %v1554 = vld [vmem:[%s722 + $0x1e8] sm:$0xff]
        %v1555 = vld [vmem:[%s722 + $0x1f0] sm:$0xff]
        %v1556 = vld [vmem:[%s722 + $0x1f8] sm:$0xff]
        %v1557 = vld [vmem:[%s722 + $0x200] sm:$0xff]
        %v1558 = vld [vmem:[%s722 + $0x208] sm:$0xff]
        %v1559 = vld [vmem:[%s722 + $0x210] sm:$0xff]
        %v1560 = vld [vmem:[%s722 + $0x218] sm:$0xff]
        %v1561 = vld [vmem:[%s722 + $0x220] sm:$0xff]
        %v1562 = vld [vmem:[%s722 + $0x228] sm:$0xff]
        %v1563 = vld [vmem:[%s722 + $0x230] sm:$0xff]
        %v1564 = vld [vmem:[%s722 + $0x238] sm:$0xff]
        %v1565 = vld [vmem:[%s722 + $0x240] sm:$0xff]
        %v1566 = vld [vmem:[%s722 + $0x248] sm:$0xff]
        %v1567 = vld [vmem:[%s722 + $0x250] sm:$0xff]
        %v1568 = vld [vmem:[%s722 + $0x258] sm:$0xff]
        %v1569 = vld [vmem:[%s722 + $0x260] sm:$0xff]
        %v1570 = vld [vmem:[%s722 + $0x268] sm:$0xff]
        %v1571 = vld [vmem:[%s722 + $0x270] sm:$0xff]
        %v1572 = vld [vmem:[%s722 + $0x278] sm:$0xff]
        %v1573 = vld [vmem:[%s722 + $0x280] sm:$0xff]
        %v1574 = vld [vmem:[%s722 + $0x288] sm:$0xff]
        %v1575 = vld [vmem:[%s722 + $0x290] sm:$0xff]
        %v1576 = vld [vmem:[%s722 + $0x298] sm:$0xff]
        %v1577 = vld [vmem:[%s722 + $0x2a0] sm:$0xff]
        %v1578 = vld [vmem:[%s722 + $0x2a8] sm:$0xff]
        %v1579 = vld [vmem:[%s722 + $0x2b0] sm:$0xff]
        %v1580 = vld [vmem:[%s722 + $0x2b8] sm:$0xff]
        %v1581 = vld [vmem:[%s722 + $0x2c0] sm:$0xff]
        %v1582 = vld [vmem:[%s722 + $0x2c8] sm:$0xff]
        %v1583 = vld [vmem:[%s722 + $0x2d0] sm:$0xff]
        %v1584 = vld [vmem:[%s722 + $0x2d8] sm:$0xff]
        %v1585 = vld [vmem:[%s722 + $0x2e0] sm:$0xff]
        %v1586 = vld [vmem:[%s722 + $0x2e8] sm:$0xff]
        %v1587 = vld [vmem:[%s722 + $0x2f0] sm:$0xff]
        %v1588 = vld [vmem:[%s722 + $0x2f8] sm:$0xff]
        %v1589 = vld [vmem:[%s722 + $0x300] sm:$0xff]
        %v1590 = vld [vmem:[%s722 + $0x308] sm:$0xff]
        %v1591 = vld [vmem:[%s722 + $0x310] sm:$0xff]
        %v1592 = vld [vmem:[%s722 + $0x318] sm:$0xff]
        %v1593 = vld [vmem:[%s722 + $0x320] sm:$0xff]
        %v1594 = vld [vmem:[%s722 + $0x328] sm:$0xff]
        %v1595 = vld [vmem:[%s722 + $0x330] sm:$0xff]
        %v1596 = vld [vmem:[%s722 + $0x338] sm:$0xff]
        %v1597 = vld [vmem:[%s722 + $0x340] sm:$0xff]
        %v1598 = vld [vmem:[%s722 + $0x348] sm:$0xff]
        %v1599 = vld [vmem:[%s722 + $0x350] sm:$0xff]
        %v1600 = vld [vmem:[%s722 + $0x358] sm:$0xff]
        %v1601 = vld [vmem:[%s722 + $0x360] sm:$0xff]
        %v1602 = vld [vmem:[%s722 + $0x368] sm:$0xff]
        %v1603 = vld [vmem:[%s722 + $0x370] sm:$0xff]
        %v1604 = vld [vmem:[%s722 + $0x378] sm:$0xff]
        %v1605 = vld [vmem:[%s722 + $0x380] sm:$0xff]
        %v1606 = vld [vmem:[%s722 + $0x388] sm:$0xff]
        %v1607 = vld [vmem:[%s722 + $0x390] sm:$0xff]
        %v1608 = vld [vmem:[%s722 + $0x398] sm:$0xff]
        %v1609 = vld [vmem:[%s722 + $0x3a0] sm:$0xff]
        %v1610 = vld [vmem:[%s722 + $0x3a8] sm:$0xff]
        %v1611 = vld [vmem:[%s722 + $0x3b0] sm:$0xff]
        %v1612 = vld [vmem:[%s722 + $0x3b8] sm:$0xff]
        %v1613 = vld [vmem:[%s722 + $0x3c0] sm:$0xff]
        %v1614 = vld [vmem:[%s722 + $0x3c8] sm:$0xff]
        %v1615 = vld [vmem:[%s722 + $0x3d0] sm:$0xff]
        %v1616 = vld [vmem:[%s722 + $0x3d8] sm:$0xff]
        %v1617 = vld [vmem:[%s722 + $0x3e0] sm:$0xff]
        %v1618 = vld [vmem:[%s722 + $0x3e8] sm:$0xff]
        %v1619 = vld [vmem:[%s722 + $0x3f0] sm:$0xff]
        %v1620 = vld [vmem:[%s722 + $0x3f8] sm:$0xff]
        %v1621 = vpack.c.bf16 %v1471, %v1467
        %v1622 = vpack.c.bf16 %v1473, %v1469
        %v1623 = vpack.c.bf16 %v1481, %v1477
        %v1624 = vpack.c.bf16 %v1483, %v1479
        %v1625 = vld [vmem:[%s729] sm:$0xff]
        %v1626 = vld [vmem:[%s729 + $0x8] sm:$0xff]
        %v1627 = vld [vmem:[%s729 + $0x10] sm:$0xff]
        %v1628 = vld [vmem:[%s729 + $0x18] sm:$0xff]
        %v1629 = vld [vmem:[%s729 + $0x20] sm:$0xff]
        %v1630 = vld [vmem:[%s729 + $0x28] sm:$0xff]
        %v1631 = vld [vmem:[%s729 + $0x30] sm:$0xff]
        %v1632 = vld [vmem:[%s729 + $0x38] sm:$0xff]
        %v1633 = vld [vmem:[%s729 + $0x40] sm:$0xff]
        %v1634 = vld [vmem:[%s729 + $0x48] sm:$0xff]
        %v1635 = vld [vmem:[%s729 + $0x50] sm:$0xff]
        %v1636 = vld [vmem:[%s729 + $0x58] sm:$0xff]
        %v1637 = vld [vmem:[%s729 + $0x60] sm:$0xff]
        %v1638 = vld [vmem:[%s729 + $0x68] sm:$0xff]
        %v1639 = vld [vmem:[%s729 + $0x70] sm:$0xff]
        %v1640 = vld [vmem:[%s729 + $0x78] sm:$0xff]
        %v1641 = vld [vmem:[%s729 + $0x80] sm:$0xff]
        %v1642 = vld [vmem:[%s729 + $0x88] sm:$0xff]
        %v1643 = vld [vmem:[%s729 + $0x90] sm:$0xff]
        %v1644 = vld [vmem:[%s729 + $0x98] sm:$0xff]
        %v1645 = vld [vmem:[%s729 + $0xa0] sm:$0xff]
        %v1646 = vld [vmem:[%s729 + $0xa8] sm:$0xff]
        %v1647 = vld [vmem:[%s729 + $0xb0] sm:$0xff]
        %v1648 = vld [vmem:[%s729 + $0xb8] sm:$0xff]
        %v1649 = vld [vmem:[%s729 + $0xc0] sm:$0xff]
        %v1650 = vld [vmem:[%s729 + $0xc8] sm:$0xff]
        %v1651 = vld [vmem:[%s729 + $0xd0] sm:$0xff]
        %v1652 = vld [vmem:[%s729 + $0xd8] sm:$0xff]
        %v1653 = vld [vmem:[%s729 + $0xe0] sm:$0xff]
        %v1654 = vld [vmem:[%s729 + $0xe8] sm:$0xff]
        %v1655 = vld [vmem:[%s729 + $0xf0] sm:$0xff]
        %v1656 = vld [vmem:[%s729 + $0xf8] sm:$0xff]
        %v1657 = vld [vmem:[%s729 + $0x100] sm:$0xff]
        %v1658 = vld [vmem:[%s729 + $0x108] sm:$0xff]
        %v1659 = vld [vmem:[%s729 + $0x110] sm:$0xff]
        %v1660 = vld [vmem:[%s729 + $0x118] sm:$0xff]
        %v1661 = vld [vmem:[%s729 + $0x120] sm:$0xff]
        %v1662 = vld [vmem:[%s729 + $0x128] sm:$0xff]
        %v1663 = vld [vmem:[%s729 + $0x130] sm:$0xff]
        %v1664 = vld [vmem:[%s729 + $0x138] sm:$0xff]
        %v1665 = vld [vmem:[%s729 + $0x140] sm:$0xff]
        %v1666 = vld [vmem:[%s729 + $0x148] sm:$0xff]
        %v1667 = vld [vmem:[%s729 + $0x150] sm:$0xff]
        %v1668 = vld [vmem:[%s729 + $0x158] sm:$0xff]
        %v1669 = vld [vmem:[%s729 + $0x160] sm:$0xff]
        %v1670 = vld [vmem:[%s729 + $0x168] sm:$0xff]
        %v1671 = vld [vmem:[%s729 + $0x170] sm:$0xff]
        %v1672 = vld [vmem:[%s729 + $0x178] sm:$0xff]
        %v1673 = vld [vmem:[%s729 + $0x180] sm:$0xff]
        %v1674 = vld [vmem:[%s729 + $0x188] sm:$0xff]
        %v1675 = vld [vmem:[%s729 + $0x190] sm:$0xff]
        %v1676 = vld [vmem:[%s729 + $0x198] sm:$0xff]
        %v1677 = vld [vmem:[%s729 + $0x1a0] sm:$0xff]
        %v1678 = vld [vmem:[%s729 + $0x1a8] sm:$0xff]
        %v1679 = vld [vmem:[%s729 + $0x1b0] sm:$0xff]
        %v1680 = vld [vmem:[%s729 + $0x1b8] sm:$0xff]
        %v1681 = vld [vmem:[%s729 + $0x1c0] sm:$0xff]
        %v1682 = vld [vmem:[%s729 + $0x1c8] sm:$0xff]
        %v1683 = vld [vmem:[%s729 + $0x1d0] sm:$0xff]
        %v1684 = vld [vmem:[%s729 + $0x1d8] sm:$0xff]
        %v1685 = vld [vmem:[%s729 + $0x1e0] sm:$0xff]
        %v1686 = vld [vmem:[%s729 + $0x1e8] sm:$0xff]
        %v1687 = vld [vmem:[%s729 + $0x1f0] sm:$0xff]
        %v1688 = vld [vmem:[%s729 + $0x1f8] sm:$0xff]
        %v1753 = vunpack.c.l.b16 %v1625
        %v1754 = vunpack.c.h.b16 %v1625
        %v1755 = vunpack.c.l.b16 %v1626
        %v1756 = vunpack.c.h.b16 %v1626
        %v1757 = vunpack.c.l.b16 %v1627
        %v1758 = vunpack.c.h.b16 %v1627
        %v1759 = vunpack.c.l.b16 %v1628
        %v1760 = vunpack.c.h.b16 %v1628
        %v1761 = vunpack.c.l.b16 %v1629
        %v1762 = vunpack.c.h.b16 %v1629
        %v1763 = vunpack.c.l.b16 %v1630
        %v1764 = vunpack.c.h.b16 %v1630
        %v1765 = vunpack.c.l.b16 %v1631
        %v1766 = vunpack.c.h.b16 %v1631
        %v1767 = vunpack.c.l.b16 %v1632
        %v1768 = vunpack.c.h.b16 %v1632
        %v1769 = vunpack.c.l.b16 %v1633
        %v1770 = vunpack.c.h.b16 %v1633
        %v1771 = vunpack.c.l.b16 %v1634
        %v1772 = vunpack.c.h.b16 %v1634
        %v1773 = vunpack.c.l.b16 %v1635
        %v1774 = vunpack.c.h.b16 %v1635
        %v1775 = vunpack.c.l.b16 %v1636
        %v1776 = vunpack.c.h.b16 %v1636
        %v1777 = vunpack.c.l.b16 %v1637
        %v1778 = vunpack.c.h.b16 %v1637
        %v1779 = vunpack.c.l.b16 %v1638
        %v1780 = vunpack.c.h.b16 %v1638
        %v1781 = vunpack.c.l.b16 %v1639
        %v1782 = vunpack.c.h.b16 %v1639
        %v1783 = vunpack.c.l.b16 %v1640
        %v1784 = vunpack.c.h.b16 %v1640
        %v1785 = vunpack.c.l.b16 %v1641
        %v1786 = vunpack.c.h.b16 %v1641
        %v1787 = vunpack.c.l.b16 %v1642
        %v1788 = vunpack.c.h.b16 %v1642
        %v1789 = vunpack.c.l.b16 %v1643
        %v1790 = vunpack.c.h.b16 %v1643
        %v1791 = vunpack.c.l.b16 %v1644
        %v1792 = vunpack.c.h.b16 %v1644
        %v1793 = vunpack.c.l.b16 %v1645
        %v1794 = vunpack.c.h.b16 %v1645
        %v1795 = vunpack.c.l.b16 %v1646
        %v1796 = vunpack.c.h.b16 %v1646
        %v1797 = vunpack.c.l.b16 %v1647
        %v1798 = vunpack.c.h.b16 %v1647
        %v1799 = vunpack.c.l.b16 %v1648
        %v1800 = vunpack.c.h.b16 %v1648
        %v1801 = vunpack.c.l.b16 %v1649
        %v1802 = vunpack.c.h.b16 %v1649
        %v1803 = vunpack.c.l.b16 %v1650
        %v1804 = vunpack.c.h.b16 %v1650
        %v1805 = vunpack.c.l.b16 %v1651
        %v1806 = vunpack.c.h.b16 %v1651
        %v1807 = vunpack.c.l.b16 %v1652
        %v1808 = vunpack.c.h.b16 %v1652
        %v1809 = vunpack.c.l.b16 %v1653
        %v1810 = vunpack.c.h.b16 %v1653
        %v1811 = vunpack.c.l.b16 %v1654
        %v1812 = vunpack.c.h.b16 %v1654
        %v1813 = vunpack.c.l.b16 %v1655
        %v1814 = vunpack.c.h.b16 %v1655
        %v1815 = vunpack.c.l.b16 %v1656
        %v1816 = vunpack.c.h.b16 %v1656
        %v1817 = vunpack.c.l.b16 %v1657
        %v1818 = vunpack.c.h.b16 %v1657
        %v1819 = vunpack.c.l.b16 %v1658
        %v1820 = vunpack.c.h.b16 %v1658
        %v1821 = vunpack.c.l.b16 %v1659
        %v1822 = vunpack.c.h.b16 %v1659
        %v1823 = vunpack.c.l.b16 %v1660
        %v1824 = vunpack.c.h.b16 %v1660
        %v1825 = vunpack.c.l.b16 %v1661
        %v1826 = vunpack.c.h.b16 %v1661
        %v1827 = vunpack.c.l.b16 %v1662
        %v1828 = vunpack.c.h.b16 %v1662
        %v1829 = vunpack.c.l.b16 %v1663
        %v1830 = vunpack.c.h.b16 %v1663
        %v1831 = vunpack.c.l.b16 %v1664
        %v1832 = vunpack.c.h.b16 %v1664
        %v1833 = vunpack.c.l.b16 %v1665
        %v1834 = vunpack.c.h.b16 %v1665
        %v1835 = vunpack.c.l.b16 %v1666
        %v1836 = vunpack.c.h.b16 %v1666
        %v1837 = vunpack.c.l.b16 %v1667
        %v1838 = vunpack.c.h.b16 %v1667
        %v1839 = vunpack.c.l.b16 %v1668
        %v1840 = vunpack.c.h.b16 %v1668
        %v1841 = vunpack.c.l.b16 %v1669
        %v1842 = vunpack.c.h.b16 %v1669
        %v1843 = vunpack.c.l.b16 %v1670
        %v1844 = vunpack.c.h.b16 %v1670
        %v1845 = vunpack.c.l.b16 %v1671
        %v1846 = vunpack.c.h.b16 %v1671
        %v1847 = vunpack.c.l.b16 %v1672
        %v1848 = vunpack.c.h.b16 %v1672
        %v1849 = vunpack.c.l.b16 %v1673
        %v1850 = vunpack.c.h.b16 %v1673
        %v1851 = vunpack.c.l.b16 %v1674
        %v1852 = vunpack.c.h.b16 %v1674
        %v1853 = vunpack.c.l.b16 %v1675
        %v1854 = vunpack.c.h.b16 %v1675
        %v1855 = vunpack.c.l.b16 %v1676
        %v1856 = vunpack.c.h.b16 %v1676
        %v1857 = vunpack.c.l.b16 %v1677
        %v1858 = vunpack.c.h.b16 %v1677
        %v1859 = vunpack.c.l.b16 %v1678
        %v1860 = vunpack.c.h.b16 %v1678
        %v1861 = vunpack.c.l.b16 %v1679
        %v1862 = vunpack.c.h.b16 %v1679
        %v1863 = vunpack.c.l.b16 %v1680
        %v1864 = vunpack.c.h.b16 %v1680
        %v1865 = vunpack.c.l.b16 %v1681
        %v1866 = vunpack.c.h.b16 %v1681
        %v1867 = vunpack.c.l.b16 %v1682
        %v1868 = vunpack.c.h.b16 %v1682
        %v1869 = vunpack.c.l.b16 %v1683
        %v1870 = vunpack.c.h.b16 %v1683
        %v1871 = vunpack.c.l.b16 %v1684
        %v1872 = vunpack.c.h.b16 %v1684
        %v1873 = vunpack.c.l.b16 %v1685
        %v1874 = vunpack.c.h.b16 %v1685
        %v1875 = vunpack.c.l.b16 %v1686
        %v1876 = vunpack.c.h.b16 %v1686
        %v1877 = vunpack.c.l.b16 %v1687
        %v1878 = vunpack.c.h.b16 %v1687
        %v1879 = vunpack.c.l.b16 %v1688
        %v1880 = vunpack.c.h.b16 %v1688
        %v1881 = vpack.c.b16 %v1757, %v1753
        %v1882 = vpack.c.b16 %v1758, %v1754
        %v1883 = vpack.c.b16 %v1759, %v1755
        %v1884 = vpack.c.b16 %v1760, %v1756
        %v1885 = vpack.c.b16 %v1765, %v1761
        %v1886 = vpack.c.b16 %v1766, %v1762
        %v1887 = vpack.c.b16 %v1767, %v1763
        %v1888 = vpack.c.b16 %v1768, %v1764
        %v1889 = vpack.c.b16 %v1773, %v1769
        %v1890 = vpack.c.b16 %v1774, %v1770
        %v1891 = vpack.c.b16 %v1775, %v1771
        %v1892 = vpack.c.b16 %v1776, %v1772
        %v1893 = vpack.c.b16 %v1781, %v1777
        %v1894 = vpack.c.b16 %v1782, %v1778
        %v1895 = vpack.c.b16 %v1783, %v1779
        %v1896 = vpack.c.b16 %v1784, %v1780
        %v1897 = vpack.c.b16 %v1789, %v1785
        %v1898 = vpack.c.b16 %v1790, %v1786
        %v1899 = vpack.c.b16 %v1791, %v1787
        %v1900 = vpack.c.b16 %v1792, %v1788
        %v1901 = vpack.c.b16 %v1797, %v1793
        %v1902 = vpack.c.b16 %v1798, %v1794
        %v1903 = vpack.c.b16 %v1799, %v1795
        %v1904 = vpack.c.b16 %v1800, %v1796
        %v1905 = vpack.c.b16 %v1805, %v1801
        %v1906 = vpack.c.b16 %v1806, %v1802
        %v1907 = vpack.c.b16 %v1807, %v1803
        %v1908 = vpack.c.b16 %v1808, %v1804
        %v1909 = vpack.c.b16 %v1813, %v1809
        %v1910 = vpack.c.b16 %v1814, %v1810
        %v1911 = vpack.c.b16 %v1815, %v1811
        %v1912 = vpack.c.b16 %v1816, %v1812
        %v1913 = vpack.c.b16 %v1821, %v1817
        %v1914 = vpack.c.b16 %v1822, %v1818
        %v1915 = vpack.c.b16 %v1823, %v1819
        %v1916 = vpack.c.b16 %v1824, %v1820
        %v1917 = vpack.c.b16 %v1829, %v1825
        %v1918 = vpack.c.b16 %v1830, %v1826
        %v1919 = vpack.c.b16 %v1831, %v1827
        %v1920 = vpack.c.b16 %v1832, %v1828
        %v1921 = vpack.c.b16 %v1837, %v1833
        %v1922 = vpack.c.b16 %v1838, %v1834
        %v1923 = vpack.c.b16 %v1839, %v1835
        %v1924 = vpack.c.b16 %v1840, %v1836
        %v1925 = vpack.c.b16 %v1845, %v1841
        %v1926 = vpack.c.b16 %v1846, %v1842
        %v1927 = vpack.c.b16 %v1847, %v1843
        %v1928 = vpack.c.b16 %v1848, %v1844
        %v1929 = vpack.c.b16 %v1853, %v1849
        %v1930 = vpack.c.b16 %v1854, %v1850
        %v1931 = vpack.c.b16 %v1855, %v1851
        %v1932 = vpack.c.b16 %v1856, %v1852
        %v1933 = vpack.c.b16 %v1861, %v1857
        %v1934 = vpack.c.b16 %v1862, %v1858
        %v1935 = vpack.c.b16 %v1863, %v1859
        %v1936 = vpack.c.b16 %v1864, %v1860
        %v1937 = vpack.c.b16 %v1869, %v1865
        %v1938 = vpack.c.b16 %v1870, %v1866
        %v1939 = vpack.c.b16 %v1871, %v1867
        %v1940 = vpack.c.b16 %v1872, %v1868
        %v1941 = vpack.c.b16 %v1877, %v1873
        %v1942 = vpack.c.b16 %v1878, %v1874
        %v1943 = vpack.c.b16 %v1879, %v1875
        %v1944 = vpack.c.b16 %v1880, %v1876
        %2009 = vmatprep.subr.bf16.mxu0 %v1910
        %2010 = vmatpush1.bf16.msra.mxu0 %v1909
        %2011 = vmatprep.subr.bf16.mxu0 %v1906
        %2012 = vmatpush1.bf16.msra.mxu0 %v1905
        %2013 = vmatprep.subr.bf16.mxu0 %v1902
        %2014 = vmatpush1.bf16.msra.mxu0 %v1901
        %2015 = vmatprep.subr.bf16.mxu0 %v1898
        %2016 = vmatpush1.bf16.msra.mxu0 %v1897
        %2017 = vmatprep.subr.bf16.mxu0 %v1894
        %2018 = vmatpush1.bf16.msra.mxu0 %v1893
        %2019 = vmatprep.subr.bf16.mxu0 %v1890
        %2020 = vmatpush1.bf16.msra.mxu0 %v1889
        %2021 = vmatprep.subr.bf16.mxu0 %v1886
        %2022 = vmatpush1.bf16.msra.mxu0 %v1885
        %2023 = vmatprep.subr.bf16.mxu0 %v1882
        %2024 = vmatpush1.bf16.msra.mxu0 %v1881
        %2025 = vmatprep.subr.bf16.mxu0 %v1942
        %2026 = vmatpush2.bf16.msra.mxu0 %v1941
        %2027 = vmatprep.subr.bf16.mxu0 %v1938
        %2028 = vmatpush2.bf16.msra.mxu0 %v1937
        %2029 = vmatprep.subr.bf16.mxu0 %v1934
        %2030 = vmatpush2.bf16.msra.mxu0 %v1933
        %2031 = vmatprep.subr.bf16.mxu0 %v1930
        %2032 = vmatpush2.bf16.msra.mxu0 %v1929
        %2033 = vmatprep.subr.bf16.mxu0 %v1926
        %2034 = vmatpush2.bf16.msra.mxu0 %v1925
        %2035 = vmatprep.subr.bf16.mxu0 %v1922
        %2036 = vmatpush2.bf16.msra.mxu0 %v1921
        %2037 = vmatprep.subr.bf16.mxu0 %v1918
        %2038 = vmatpush2.bf16.msra.mxu0 %v1917
        %2039 = vmatprep.subr.bf16.mxu0 %v1914
        %2040 = vmatpush2.bf16.msra.mxu0 %v1913
        %2041 = vmatprep.mubr.bf16.mxu0 %v1622
        %2042 = vmatmul.mubr.bf16.gmra.mxu0 %v1621
        %v2043 = vpop.f32.mrf.mxu0
        %v2044 = vadd.f32 0.0, %v2043
        %v2045 = vpop.f32.mrf.mxu0
        %v2046 = vadd.f32 0.0, %v2045
        %v2047 = vpop.f32.mrf.mxu0
        %v2048 = vadd.f32 0.0, %v2047
        %v2049 = vpop.f32.mrf.mxu0
        %v2050 = vadd.f32 0.0, %v2049
        %2051 = vmatprep.mubr.bf16.mxu0 %v1624
        %2052 = vmatmul.mubr.bf16.gmra.mxu0 %v1623
        %v2053 = vpop.f32.mrf.mxu0
        %v2054 = vadd.f32 0.0, %v2053
        %v2055 = vpop.f32.mrf.mxu0
        %v2056 = vadd.f32 0.0, %v2055
        %v2057 = vpop.f32.mrf.mxu0
        %v2058 = vadd.f32 0.0, %v2057
        %v2059 = vpop.f32.mrf.mxu0
        %v2060 = vadd.f32 0.0, %v2059
        %2061 = vdwg.mxu0
        %2062 = vmatprep.subr.bf16.mxu0 %v1912
        %2063 = vmatpush1.bf16.msra.mxu0 %v1911
        %2064 = vmatprep.subr.bf16.mxu0 %v1908
        %2065 = vmatpush1.bf16.msra.mxu0 %v1907
        %2066 = vmatprep.subr.bf16.mxu0 %v1904
        %2067 = vmatpush1.bf16.msra.mxu0 %v1903
        %2068 = vmatprep.subr.bf16.mxu0 %v1900
        %2069 = vmatpush1.bf16.msra.mxu0 %v1899
        %2070 = vmatprep.subr.bf16.mxu0 %v1896
        %2071 = vmatpush1.bf16.msra.mxu0 %v1895
        %2072 = vmatprep.subr.bf16.mxu0 %v1892
        %2073 = vmatpush1.bf16.msra.mxu0 %v1891
        %2074 = vmatprep.subr.bf16.mxu0 %v1888
        %2075 = vmatpush1.bf16.msra.mxu0 %v1887
        %2076 = vmatprep.subr.bf16.mxu0 %v1884
        %2077 = vmatpush1.bf16.msra.mxu0 %v1883
        %2078 = vmatprep.subr.bf16.mxu0 %v1944
        %2079 = vmatpush2.bf16.msra.mxu0 %v1943
        %2080 = vmatprep.subr.bf16.mxu0 %v1940
        %2081 = vmatpush2.bf16.msra.mxu0 %v1939
        %2082 = vmatprep.subr.bf16.mxu0 %v1936
        %2083 = vmatpush2.bf16.msra.mxu0 %v1935
        %2084 = vmatprep.subr.bf16.mxu0 %v1932
        %2085 = vmatpush2.bf16.msra.mxu0 %v1931
        %2086 = vmatprep.subr.bf16.mxu0 %v1928
        %2087 = vmatpush2.bf16.msra.mxu0 %v1927
        %2088 = vmatprep.subr.bf16.mxu0 %v1924
        %2089 = vmatpush2.bf16.msra.mxu0 %v1923
        %2090 = vmatprep.subr.bf16.mxu0 %v1920
        %2091 = vmatpush2.bf16.msra.mxu0 %v1919
        %2092 = vmatprep.subr.bf16.mxu0 %v1916
        %2093 = vmatpush2.bf16.msra.mxu0 %v1915
        %2094 = vmatprep.mubr.bf16.mxu0 %v1622
        %2095 = vmatmul.mubr.bf16.gmra.mxu0 %v1621
        %v2096 = vpop.f32.mrf.mxu0
        %v2097 = vadd.f32 0.0, %v2096
        %v2098 = vpop.f32.mrf.mxu0
        %v2099 = vadd.f32 0.0, %v2098
        %v2100 = vpop.f32.mrf.mxu0
        %v2101 = vadd.f32 0.0, %v2100
        %v2102 = vpop.f32.mrf.mxu0
        %v2103 = vadd.f32 0.0, %v2102
        %2104 = vmatprep.mubr.bf16.mxu0 %v1624
        %2105 = vmatmul.mubr.bf16.gmra.mxu0 %v1623
        %v2106 = vpop.f32.mrf.mxu0
        %v2107 = vadd.f32 0.0, %v2106
        %v2108 = vpop.f32.mrf.mxu0
        %v2109 = vadd.f32 0.0, %v2108
        %v2110 = vpop.f32.mrf.mxu0
        %v2111 = vadd.f32 0.0, %v2110
        %v2112 = vpop.f32.mrf.mxu0
        %v2113 = vadd.f32 0.0, %v2112
        %2114 = vdwg.mxu0
        %v2123 = vunpack.c.l.b16 %v1485
        %v2124 = vunpack.c.h.b16 %v1485
        %v2125 = vunpack.c.l.b16 %v1486
        %v2126 = vunpack.c.h.b16 %v1486
        %v2127 = vunpack.c.l.b16 %v1487
        %v2128 = vunpack.c.h.b16 %v1487
        %v2129 = vunpack.c.l.b16 %v1488
        %v2130 = vunpack.c.h.b16 %v1488
        %v2131 = vunpack.c.l.b16 %v1489
        %v2132 = vunpack.c.h.b16 %v1489
        %v2133 = vunpack.c.l.b16 %v1490
        %v2134 = vunpack.c.h.b16 %v1490
        %v2135 = vunpack.c.l.b16 %v1491
        %v2136 = vunpack.c.h.b16 %v1491
        %v2137 = vunpack.c.l.b16 %v1492
        %v2138 = vunpack.c.h.b16 %v1492
        %v2139 = vpack.c.b16 %v2127, %v2123
        %v2140 = vpack.c.b16 %v2128, %v2124
        %v2141 = vpack.c.b16 %v2129, %v2125
        %v2142 = vpack.c.b16 %v2130, %v2126
        %v2143 = vpack.c.b16 %v2135, %v2131
        %v2144 = vpack.c.b16 %v2136, %v2132
        %v2145 = vpack.c.b16 %v2137, %v2133
        %v2146 = vpack.c.b16 %v2138, %v2134
        %v2283 = vunpack.c.l.b16 %v1493
        %v2284 = vunpack.c.h.b16 %v1493
        %v2285 = vunpack.c.l.b16 %v1494
        %v2286 = vunpack.c.h.b16 %v1494
        %v2287 = vunpack.c.l.b16 %v1495
        %v2288 = vunpack.c.h.b16 %v1495
        %v2289 = vunpack.c.l.b16 %v1496
        %v2290 = vunpack.c.h.b16 %v1496
        %v2291 = vunpack.c.l.b16 %v1497
        %v2292 = vunpack.c.h.b16 %v1497
        %v2293 = vunpack.c.l.b16 %v1498
        %v2294 = vunpack.c.h.b16 %v1498
        %v2295 = vunpack.c.l.b16 %v1499
        %v2296 = vunpack.c.h.b16 %v1499
        %v2297 = vunpack.c.l.b16 %v1500
        %v2298 = vunpack.c.h.b16 %v1500
        %v2299 = vunpack.c.l.b16 %v1501
        %v2300 = vunpack.c.h.b16 %v1501
        %v2301 = vunpack.c.l.b16 %v1502
        %v2302 = vunpack.c.h.b16 %v1502
        %v2303 = vunpack.c.l.b16 %v1503
        %v2304 = vunpack.c.h.b16 %v1503
        %v2305 = vunpack.c.l.b16 %v1504
        %v2306 = vunpack.c.h.b16 %v1504
        %v2307 = vunpack.c.l.b16 %v1505
        %v2308 = vunpack.c.h.b16 %v1505
        %v2309 = vunpack.c.l.b16 %v1506
        %v2310 = vunpack.c.h.b16 %v1506
        %v2311 = vunpack.c.l.b16 %v1507
        %v2312 = vunpack.c.h.b16 %v1507
        %v2313 = vunpack.c.l.b16 %v1508
        %v2314 = vunpack.c.h.b16 %v1508
        %v2315 = vunpack.c.l.b16 %v1509
        %v2316 = vunpack.c.h.b16 %v1509
        %v2317 = vunpack.c.l.b16 %v1510
        %v2318 = vunpack.c.h.b16 %v1510
        %v2319 = vunpack.c.l.b16 %v1511
        %v2320 = vunpack.c.h.b16 %v1511
        %v2321 = vunpack.c.l.b16 %v1512
        %v2322 = vunpack.c.h.b16 %v1512
        %v2323 = vunpack.c.l.b16 %v1513
        %v2324 = vunpack.c.h.b16 %v1513
        %v2325 = vunpack.c.l.b16 %v1514
        %v2326 = vunpack.c.h.b16 %v1514
        %v2327 = vunpack.c.l.b16 %v1515
        %v2328 = vunpack.c.h.b16 %v1515
        %v2329 = vunpack.c.l.b16 %v1516
        %v2330 = vunpack.c.h.b16 %v1516
        %v2331 = vunpack.c.l.b16 %v1517
        %v2332 = vunpack.c.h.b16 %v1517
        %v2333 = vunpack.c.l.b16 %v1518
        %v2334 = vunpack.c.h.b16 %v1518
        %v2335 = vunpack.c.l.b16 %v1519
        %v2336 = vunpack.c.h.b16 %v1519
        %v2337 = vunpack.c.l.b16 %v1520
        %v2338 = vunpack.c.h.b16 %v1520
        %v2339 = vunpack.c.l.b16 %v1521
        %v2340 = vunpack.c.h.b16 %v1521
        %v2341 = vunpack.c.l.b16 %v1522
        %v2342 = vunpack.c.h.b16 %v1522
        %v2343 = vunpack.c.l.b16 %v1523
        %v2344 = vunpack.c.h.b16 %v1523
        %v2345 = vunpack.c.l.b16 %v1524
        %v2346 = vunpack.c.h.b16 %v1524
        %v2347 = vunpack.c.l.b16 %v1525
        %v2348 = vunpack.c.h.b16 %v1525
        %v2349 = vunpack.c.l.b16 %v1526
        %v2350 = vunpack.c.h.b16 %v1526
        %v2351 = vunpack.c.l.b16 %v1527
        %v2352 = vunpack.c.h.b16 %v1527
        %v2353 = vunpack.c.l.b16 %v1528
        %v2354 = vunpack.c.h.b16 %v1528
        %v2355 = vunpack.c.l.b16 %v1529
        %v2356 = vunpack.c.h.b16 %v1529
        %v2357 = vunpack.c.l.b16 %v1530
        %v2358 = vunpack.c.h.b16 %v1530
        %v2359 = vunpack.c.l.b16 %v1531
        %v2360 = vunpack.c.h.b16 %v1531
        %v2361 = vunpack.c.l.b16 %v1532
        %v2362 = vunpack.c.h.b16 %v1532
        %v2363 = vunpack.c.l.b16 %v1533
        %v2364 = vunpack.c.h.b16 %v1533
        %v2365 = vunpack.c.l.b16 %v1534
        %v2366 = vunpack.c.h.b16 %v1534
        %v2367 = vunpack.c.l.b16 %v1535
        %v2368 = vunpack.c.h.b16 %v1535
        %v2369 = vunpack.c.l.b16 %v1536
        %v2370 = vunpack.c.h.b16 %v1536
        %v2371 = vunpack.c.l.b16 %v1537
        %v2372 = vunpack.c.h.b16 %v1537
        %v2373 = vunpack.c.l.b16 %v1538
        %v2374 = vunpack.c.h.b16 %v1538
        %v2375 = vunpack.c.l.b16 %v1539
        %v2376 = vunpack.c.h.b16 %v1539
        %v2377 = vunpack.c.l.b16 %v1540
        %v2378 = vunpack.c.h.b16 %v1540
        %v2379 = vunpack.c.l.b16 %v1541
        %v2380 = vunpack.c.h.b16 %v1541
        %v2381 = vunpack.c.l.b16 %v1542
        %v2382 = vunpack.c.h.b16 %v1542
        %v2383 = vunpack.c.l.b16 %v1543
        %v2384 = vunpack.c.h.b16 %v1543
        %v2385 = vunpack.c.l.b16 %v1544
        %v2386 = vunpack.c.h.b16 %v1544
        %v2387 = vunpack.c.l.b16 %v1545
        %v2388 = vunpack.c.h.b16 %v1545
        %v2389 = vunpack.c.l.b16 %v1546
        %v2390 = vunpack.c.h.b16 %v1546
        %v2391 = vunpack.c.l.b16 %v1547
        %v2392 = vunpack.c.h.b16 %v1547
        %v2393 = vunpack.c.l.b16 %v1548
        %v2394 = vunpack.c.h.b16 %v1548
        %v2395 = vunpack.c.l.b16 %v1549
        %v2396 = vunpack.c.h.b16 %v1549
        %v2397 = vunpack.c.l.b16 %v1550
        %v2398 = vunpack.c.h.b16 %v1550
        %v2399 = vunpack.c.l.b16 %v1551
        %v2400 = vunpack.c.h.b16 %v1551
        %v2401 = vunpack.c.l.b16 %v1552
        %v2402 = vunpack.c.h.b16 %v1552
        %v2403 = vunpack.c.l.b16 %v1553
        %v2404 = vunpack.c.h.b16 %v1553
        %v2405 = vunpack.c.l.b16 %v1554
        %v2406 = vunpack.c.h.b16 %v1554
        %v2407 = vunpack.c.l.b16 %v1555
        %v2408 = vunpack.c.h.b16 %v1555
        %v2409 = vunpack.c.l.b16 %v1556
        %v2410 = vunpack.c.h.b16 %v1556
        %v2411 = vunpack.c.l.b16 %v1557
        %v2412 = vunpack.c.h.b16 %v1557
        %v2413 = vunpack.c.l.b16 %v1558
        %v2414 = vunpack.c.h.b16 %v1558
        %v2415 = vunpack.c.l.b16 %v1559
        %v2416 = vunpack.c.h.b16 %v1559
        %v2417 = vunpack.c.l.b16 %v1560
        %v2418 = vunpack.c.h.b16 %v1560
        %v2419 = vunpack.c.l.b16 %v1561
        %v2420 = vunpack.c.h.b16 %v1561
        %v2421 = vunpack.c.l.b16 %v1562
        %v2422 = vunpack.c.h.b16 %v1562
        %v2423 = vunpack.c.l.b16 %v1563
        %v2424 = vunpack.c.h.b16 %v1563
        %v2425 = vunpack.c.l.b16 %v1564
        %v2426 = vunpack.c.h.b16 %v1564
        %v2427 = vunpack.c.l.b16 %v1565
        %v2428 = vunpack.c.h.b16 %v1565
        %v2429 = vunpack.c.l.b16 %v1566
        %v2430 = vunpack.c.h.b16 %v1566
        %v2431 = vunpack.c.l.b16 %v1567
        %v2432 = vunpack.c.h.b16 %v1567
        %v2433 = vunpack.c.l.b16 %v1568
        %v2434 = vunpack.c.h.b16 %v1568
        %v2435 = vunpack.c.l.b16 %v1569
        %v2436 = vunpack.c.h.b16 %v1569
        %v2437 = vunpack.c.l.b16 %v1570
        %v2438 = vunpack.c.h.b16 %v1570
        %v2439 = vunpack.c.l.b16 %v1571
        %v2440 = vunpack.c.h.b16 %v1571
        %v2441 = vunpack.c.l.b16 %v1572
        %v2442 = vunpack.c.h.b16 %v1572
        %v2443 = vunpack.c.l.b16 %v1573
        %v2444 = vunpack.c.h.b16 %v1573
        %v2445 = vunpack.c.l.b16 %v1574
        %v2446 = vunpack.c.h.b16 %v1574
        %v2447 = vunpack.c.l.b16 %v1575
        %v2448 = vunpack.c.h.b16 %v1575
        %v2449 = vunpack.c.l.b16 %v1576
        %v2450 = vunpack.c.h.b16 %v1576
        %v2451 = vunpack.c.l.b16 %v1577
        %v2452 = vunpack.c.h.b16 %v1577
        %v2453 = vunpack.c.l.b16 %v1578
        %v2454 = vunpack.c.h.b16 %v1578
        %v2455 = vunpack.c.l.b16 %v1579
        %v2456 = vunpack.c.h.b16 %v1579
        %v2457 = vunpack.c.l.b16 %v1580
        %v2458 = vunpack.c.h.b16 %v1580
        %v2459 = vunpack.c.l.b16 %v1581
        %v2460 = vunpack.c.h.b16 %v1581
        %v2461 = vunpack.c.l.b16 %v1582
        %v2462 = vunpack.c.h.b16 %v1582
        %v2463 = vunpack.c.l.b16 %v1583
        %v2464 = vunpack.c.h.b16 %v1583
        %v2465 = vunpack.c.l.b16 %v1584
        %v2466 = vunpack.c.h.b16 %v1584
        %v2467 = vunpack.c.l.b16 %v1585
        %v2468 = vunpack.c.h.b16 %v1585
        %v2469 = vunpack.c.l.b16 %v1586
        %v2470 = vunpack.c.h.b16 %v1586
        %v2471 = vunpack.c.l.b16 %v1587
        %v2472 = vunpack.c.h.b16 %v1587
        %v2473 = vunpack.c.l.b16 %v1588
        %v2474 = vunpack.c.h.b16 %v1588
        %v2475 = vunpack.c.l.b16 %v1589
        %v2476 = vunpack.c.h.b16 %v1589
        %v2477 = vunpack.c.l.b16 %v1590
        %v2478 = vunpack.c.h.b16 %v1590
        %v2479 = vunpack.c.l.b16 %v1591
        %v2480 = vunpack.c.h.b16 %v1591
        %v2481 = vunpack.c.l.b16 %v1592
        %v2482 = vunpack.c.h.b16 %v1592
        %v2483 = vunpack.c.l.b16 %v1593
        %v2484 = vunpack.c.h.b16 %v1593
        %v2485 = vunpack.c.l.b16 %v1594
        %v2486 = vunpack.c.h.b16 %v1594
        %v2487 = vunpack.c.l.b16 %v1595
        %v2488 = vunpack.c.h.b16 %v1595
        %v2489 = vunpack.c.l.b16 %v1596
        %v2490 = vunpack.c.h.b16 %v1596
        %v2491 = vunpack.c.l.b16 %v1597
        %v2492 = vunpack.c.h.b16 %v1597
        %v2493 = vunpack.c.l.b16 %v1598
        %v2494 = vunpack.c.h.b16 %v1598
        %v2495 = vunpack.c.l.b16 %v1599
        %v2496 = vunpack.c.h.b16 %v1599
        %v2497 = vunpack.c.l.b16 %v1600
        %v2498 = vunpack.c.h.b16 %v1600
        %v2499 = vunpack.c.l.b16 %v1601
        %v2500 = vunpack.c.h.b16 %v1601
        %v2501 = vunpack.c.l.b16 %v1602
        %v2502 = vunpack.c.h.b16 %v1602
        %v2503 = vunpack.c.l.b16 %v1603
        %v2504 = vunpack.c.h.b16 %v1603
        %v2505 = vunpack.c.l.b16 %v1604
        %v2506 = vunpack.c.h.b16 %v1604
        %v2507 = vunpack.c.l.b16 %v1605
        %v2508 = vunpack.c.h.b16 %v1605
        %v2509 = vunpack.c.l.b16 %v1606
        %v2510 = vunpack.c.h.b16 %v1606
        %v2511 = vunpack.c.l.b16 %v1607
        %v2512 = vunpack.c.h.b16 %v1607
        %v2513 = vunpack.c.l.b16 %v1608
        %v2514 = vunpack.c.h.b16 %v1608
        %v2515 = vunpack.c.l.b16 %v1609
        %v2516 = vunpack.c.h.b16 %v1609
        %v2517 = vunpack.c.l.b16 %v1610
        %v2518 = vunpack.c.h.b16 %v1610
        %v2519 = vunpack.c.l.b16 %v1611
        %v2520 = vunpack.c.h.b16 %v1611
        %v2521 = vunpack.c.l.b16 %v1612
        %v2522 = vunpack.c.h.b16 %v1612
        %v2523 = vunpack.c.l.b16 %v1613
        %v2524 = vunpack.c.h.b16 %v1613
        %v2525 = vunpack.c.l.b16 %v1614
        %v2526 = vunpack.c.h.b16 %v1614
        %v2527 = vunpack.c.l.b16 %v1615
        %v2528 = vunpack.c.h.b16 %v1615
        %v2529 = vunpack.c.l.b16 %v1616
        %v2530 = vunpack.c.h.b16 %v1616
        %v2531 = vunpack.c.l.b16 %v1617
        %v2532 = vunpack.c.h.b16 %v1617
        %v2533 = vunpack.c.l.b16 %v1618
        %v2534 = vunpack.c.h.b16 %v1618
        %v2535 = vunpack.c.l.b16 %v1619
        %v2536 = vunpack.c.h.b16 %v1619
        %v2537 = vunpack.c.l.b16 %v1620
        %v2538 = vunpack.c.h.b16 %v1620
        %v2539 = vpack.c.b16 %v2287, %v2283
        %v2540 = vpack.c.b16 %v2288, %v2284
        %v2541 = vpack.c.b16 %v2289, %v2285
        %v2542 = vpack.c.b16 %v2290, %v2286
        %v2543 = vpack.c.b16 %v2295, %v2291
        %v2544 = vpack.c.b16 %v2296, %v2292
        %v2545 = vpack.c.b16 %v2297, %v2293
        %v2546 = vpack.c.b16 %v2298, %v2294
        %v2547 = vpack.c.b16 %v2303, %v2299
        %v2548 = vpack.c.b16 %v2304, %v2300
        %v2549 = vpack.c.b16 %v2305, %v2301
        %v2550 = vpack.c.b16 %v2306, %v2302
        %v2551 = vpack.c.b16 %v2311, %v2307
        %v2552 = vpack.c.b16 %v2312, %v2308
        %v2553 = vpack.c.b16 %v2313, %v2309
        %v2554 = vpack.c.b16 %v2314, %v2310
        %v2555 = vpack.c.b16 %v2319, %v2315
        %v2556 = vpack.c.b16 %v2320, %v2316
        %v2557 = vpack.c.b16 %v2321, %v2317
        %v2558 = vpack.c.b16 %v2322, %v2318
        %v2559 = vpack.c.b16 %v2327, %v2323
        %v2560 = vpack.c.b16 %v2328, %v2324
        %v2561 = vpack.c.b16 %v2329, %v2325
        %v2562 = vpack.c.b16 %v2330, %v2326
        %v2563 = vpack.c.b16 %v2335, %v2331
        %v2564 = vpack.c.b16 %v2336, %v2332
        %v2565 = vpack.c.b16 %v2337, %v2333
        %v2566 = vpack.c.b16 %v2338, %v2334
        %v2567 = vpack.c.b16 %v2343, %v2339
        %v2568 = vpack.c.b16 %v2344, %v2340
        %v2569 = vpack.c.b16 %v2345, %v2341
        %v2570 = vpack.c.b16 %v2346, %v2342
        %v2571 = vpack.c.b16 %v2351, %v2347
        %v2572 = vpack.c.b16 %v2352, %v2348
        %v2573 = vpack.c.b16 %v2353, %v2349
        %v2574 = vpack.c.b16 %v2354, %v2350
        %v2575 = vpack.c.b16 %v2359, %v2355
        %v2576 = vpack.c.b16 %v2360, %v2356
        %v2577 = vpack.c.b16 %v2361, %v2357
        %v2578 = vpack.c.b16 %v2362, %v2358
        %v2579 = vpack.c.b16 %v2367, %v2363
        %v2580 = vpack.c.b16 %v2368, %v2364
        %v2581 = vpack.c.b16 %v2369, %v2365
        %v2582 = vpack.c.b16 %v2370, %v2366
        %v2583 = vpack.c.b16 %v2375, %v2371
        %v2584 = vpack.c.b16 %v2376, %v2372
        %v2585 = vpack.c.b16 %v2377, %v2373
        %v2586 = vpack.c.b16 %v2378, %v2374
        %v2587 = vpack.c.b16 %v2383, %v2379
        %v2588 = vpack.c.b16 %v2384, %v2380
        %v2589 = vpack.c.b16 %v2385, %v2381
        %v2590 = vpack.c.b16 %v2386, %v2382
        %v2591 = vpack.c.b16 %v2391, %v2387
        %v2592 = vpack.c.b16 %v2392, %v2388
        %v2593 = vpack.c.b16 %v2393, %v2389
        %v2594 = vpack.c.b16 %v2394, %v2390
        %v2595 = vpack.c.b16 %v2399, %v2395
        %v2596 = vpack.c.b16 %v2400, %v2396
        %v2597 = vpack.c.b16 %v2401, %v2397
        %v2598 = vpack.c.b16 %v2402, %v2398
        %v2599 = vpack.c.b16 %v2407, %v2403
        %v2600 = vpack.c.b16 %v2408, %v2404
        %v2601 = vpack.c.b16 %v2409, %v2405
        %v2602 = vpack.c.b16 %v2410, %v2406
        %v2603 = vpack.c.b16 %v2415, %v2411
        %v2604 = vpack.c.b16 %v2416, %v2412
        %v2605 = vpack.c.b16 %v2417, %v2413
        %v2606 = vpack.c.b16 %v2418, %v2414
        %v2607 = vpack.c.b16 %v2423, %v2419
        %v2608 = vpack.c.b16 %v2424, %v2420
        %v2609 = vpack.c.b16 %v2425, %v2421
        %v2610 = vpack.c.b16 %v2426, %v2422
        %v2611 = vpack.c.b16 %v2431, %v2427
        %v2612 = vpack.c.b16 %v2432, %v2428
        %v2613 = vpack.c.b16 %v2433, %v2429
        %v2614 = vpack.c.b16 %v2434, %v2430
        %v2615 = vpack.c.b16 %v2439, %v2435
        %v2616 = vpack.c.b16 %v2440, %v2436
        %v2617 = vpack.c.b16 %v2441, %v2437
        %v2618 = vpack.c.b16 %v2442, %v2438
        %v2619 = vpack.c.b16 %v2447, %v2443
        %v2620 = vpack.c.b16 %v2448, %v2444
        %v2621 = vpack.c.b16 %v2449, %v2445
        %v2622 = vpack.c.b16 %v2450, %v2446
        %v2623 = vpack.c.b16 %v2455, %v2451
        %v2624 = vpack.c.b16 %v2456, %v2452
        %v2625 = vpack.c.b16 %v2457, %v2453
        %v2626 = vpack.c.b16 %v2458, %v2454
        %v2627 = vpack.c.b16 %v2463, %v2459
        %v2628 = vpack.c.b16 %v2464, %v2460
        %v2629 = vpack.c.b16 %v2465, %v2461
        %v2630 = vpack.c.b16 %v2466, %v2462
        %v2631 = vpack.c.b16 %v2471, %v2467
        %v2632 = vpack.c.b16 %v2472, %v2468
        %v2633 = vpack.c.b16 %v2473, %v2469
        %v2634 = vpack.c.b16 %v2474, %v2470
        %v2635 = vpack.c.b16 %v2479, %v2475
        %v2636 = vpack.c.b16 %v2480, %v2476
        %v2637 = vpack.c.b16 %v2481, %v2477
        %v2638 = vpack.c.b16 %v2482, %v2478
        %v2639 = vpack.c.b16 %v2487, %v2483
        %v2640 = vpack.c.b16 %v2488, %v2484
        %v2641 = vpack.c.b16 %v2489, %v2485
        %v2642 = vpack.c.b16 %v2490, %v2486
        %v2643 = vpack.c.b16 %v2495, %v2491
        %v2644 = vpack.c.b16 %v2496, %v2492
        %v2645 = vpack.c.b16 %v2497, %v2493
        %v2646 = vpack.c.b16 %v2498, %v2494
        %v2647 = vpack.c.b16 %v2503, %v2499
        %v2648 = vpack.c.b16 %v2504, %v2500
        %v2649 = vpack.c.b16 %v2505, %v2501
        %v2650 = vpack.c.b16 %v2506, %v2502
        %v2651 = vpack.c.b16 %v2511, %v2507
        %v2652 = vpack.c.b16 %v2512, %v2508
        %v2653 = vpack.c.b16 %v2513, %v2509
        %v2654 = vpack.c.b16 %v2514, %v2510
        %v2655 = vpack.c.b16 %v2519, %v2515
        %v2656 = vpack.c.b16 %v2520, %v2516
        %v2657 = vpack.c.b16 %v2521, %v2517
        %v2658 = vpack.c.b16 %v2522, %v2518
        %v2659 = vpack.c.b16 %v2527, %v2523
        %v2660 = vpack.c.b16 %v2528, %v2524
        %v2661 = vpack.c.b16 %v2529, %v2525
        %v2662 = vpack.c.b16 %v2530, %v2526
        %v2663 = vpack.c.b16 %v2535, %v2531
        %v2664 = vpack.c.b16 %v2536, %v2532
        %v2665 = vpack.c.b16 %v2537, %v2533
        %v2666 = vpack.c.b16 %v2538, %v2534
        %2795 = vmatprep.subr.bf16.mxu0 %v2568
        %2796 = vmatpush1.bf16.msra.mxu0 %v2567
        %2797 = vmatprep.subr.bf16.mxu0 %v2564
        %2798 = vmatpush1.bf16.msra.mxu0 %v2563
        %2799 = vmatprep.subr.bf16.mxu0 %v2560
        %2800 = vmatpush1.bf16.msra.mxu0 %v2559
        %2801 = vmatprep.subr.bf16.mxu0 %v2556
        %2802 = vmatpush1.bf16.msra.mxu0 %v2555
        %2803 = vmatprep.subr.bf16.mxu0 %v2552
        %2804 = vmatpush1.bf16.msra.mxu0 %v2551
        %2805 = vmatprep.subr.bf16.mxu0 %v2548
        %2806 = vmatpush1.bf16.msra.mxu0 %v2547
        %2807 = vmatprep.subr.bf16.mxu0 %v2544
        %2808 = vmatpush1.bf16.msra.mxu0 %v2543
        %2809 = vmatprep.subr.bf16.mxu0 %v2540
        %2810 = vmatpush1.bf16.msra.mxu0 %v2539
        %2811 = vmatprep.subr.bf16.mxu0 %v2600
        %2812 = vmatpush2.bf16.msra.mxu0 %v2599
        %2813 = vmatprep.subr.bf16.mxu0 %v2596
        %2814 = vmatpush2.bf16.msra.mxu0 %v2595
        %2815 = vmatprep.subr.bf16.mxu0 %v2592
        %2816 = vmatpush2.bf16.msra.mxu0 %v2591
        %2817 = vmatprep.subr.bf16.mxu0 %v2588
        %2818 = vmatpush2.bf16.msra.mxu0 %v2587
        %2819 = vmatprep.subr.bf16.mxu0 %v2584
        %2820 = vmatpush2.bf16.msra.mxu0 %v2583
        %2821 = vmatprep.subr.bf16.mxu0 %v2580
        %2822 = vmatpush2.bf16.msra.mxu0 %v2579
        %2823 = vmatprep.subr.bf16.mxu0 %v2576
        %2824 = vmatpush2.bf16.msra.mxu0 %v2575
        %2825 = vmatprep.subr.bf16.mxu0 %v2572
        %2826 = vmatpush2.bf16.msra.mxu0 %v2571
        %2827 = vmatprep.mubr.bf16.mxu0 %v2140
        %2828 = vmatmul.mubr.bf16.gmra.mxu0 %v2139
        %v2829 = vpop.f32.mrf.mxu0
        %v2830 = vadd.f32 %v2044, %v2829
        %v2831 = vpop.f32.mrf.mxu0
        %v2832 = vadd.f32 %v2046, %v2831
        %v2833 = vpop.f32.mrf.mxu0
        %v2834 = vadd.f32 %v2048, %v2833
        %v2835 = vpop.f32.mrf.mxu0
        %v2836 = vadd.f32 %v2050, %v2835
        %2837 = vmatprep.mubr.bf16.mxu0 %v2144
        %2838 = vmatmul.mubr.bf16.gmra.mxu0 %v2143
        %v2839 = vpop.f32.mrf.mxu0
        %v2840 = vadd.f32 %v2054, %v2839
        %v2841 = vpop.f32.mrf.mxu0
        %v2842 = vadd.f32 %v2056, %v2841
        %v2843 = vpop.f32.mrf.mxu0
        %v2844 = vadd.f32 %v2058, %v2843
        %v2845 = vpop.f32.mrf.mxu0
        %v2846 = vadd.f32 %v2060, %v2845
        %2847 = vdwg.mxu0
        %2848 = vmatprep.subr.bf16.mxu0 %v2632
        %2849 = vmatpush1.bf16.msra.mxu0 %v2631
        %2850 = vmatprep.subr.bf16.mxu0 %v2628
        %2851 = vmatpush1.bf16.msra.mxu0 %v2627
        %2852 = vmatprep.subr.bf16.mxu0 %v2624
        %2853 = vmatpush1.bf16.msra.mxu0 %v2623
        %2854 = vmatprep.subr.bf16.mxu0 %v2620
        %2855 = vmatpush1.bf16.msra.mxu0 %v2619
        %2856 = vmatprep.subr.bf16.mxu0 %v2616
        %2857 = vmatpush1.bf16.msra.mxu0 %v2615
        %2858 = vmatprep.subr.bf16.mxu0 %v2612
        %2859 = vmatpush1.bf16.msra.mxu0 %v2611
        %2860 = vmatprep.subr.bf16.mxu0 %v2608
        %2861 = vmatpush1.bf16.msra.mxu0 %v2607
        %2862 = vmatprep.subr.bf16.mxu0 %v2604
        %2863 = vmatpush1.bf16.msra.mxu0 %v2603
        %2864 = vmatprep.subr.bf16.mxu0 %v2664
        %2865 = vmatpush2.bf16.msra.mxu0 %v2663
        %2866 = vmatprep.subr.bf16.mxu0 %v2660
        %2867 = vmatpush2.bf16.msra.mxu0 %v2659
        %2868 = vmatprep.subr.bf16.mxu0 %v2656
        %2869 = vmatpush2.bf16.msra.mxu0 %v2655
        %2870 = vmatprep.subr.bf16.mxu0 %v2652
        %2871 = vmatpush2.bf16.msra.mxu0 %v2651
        %2872 = vmatprep.subr.bf16.mxu0 %v2648
        %2873 = vmatpush2.bf16.msra.mxu0 %v2647
        %2874 = vmatprep.subr.bf16.mxu0 %v2644
        %2875 = vmatpush2.bf16.msra.mxu0 %v2643
        %2876 = vmatprep.subr.bf16.mxu0 %v2640
        %2877 = vmatpush2.bf16.msra.mxu0 %v2639
        %2878 = vmatprep.subr.bf16.mxu0 %v2636
        %2879 = vmatpush2.bf16.msra.mxu0 %v2635
        %2880 = vmatprep.mubr.bf16.mxu0 %v2142
        %2881 = vmatmul.mubr.bf16.gmra.mxu0 %v2141
        %v2882 = vpop.f32.mrf.mxu0
        %v2883 = vadd.f32 %v2830, %v2882
        %v2884 = vpop.f32.mrf.mxu0
        %v2885 = vadd.f32 %v2832, %v2884
        %v2886 = vpop.f32.mrf.mxu0
        %v2887 = vadd.f32 %v2834, %v2886
        %v2888 = vpop.f32.mrf.mxu0
        %v2889 = vadd.f32 %v2836, %v2888
        %2890 = vmatprep.mubr.bf16.mxu0 %v2146
        %2891 = vmatmul.mubr.bf16.gmra.mxu0 %v2145
        %v2892 = vpop.f32.mrf.mxu0
        %v2893 = vadd.f32 %v2840, %v2892
        %v2894 = vpop.f32.mrf.mxu0
        %v2895 = vadd.f32 %v2842, %v2894
        %v2896 = vpop.f32.mrf.mxu0
        %v2897 = vadd.f32 %v2844, %v2896
        %v2898 = vpop.f32.mrf.mxu0
        %v2899 = vadd.f32 %v2846, %v2898
        %2900 = vdwg.mxu0
        %2901 = vmatprep.subr.bf16.mxu0 %v2570
        %2902 = vmatpush1.bf16.msra.mxu0 %v2569
        %2903 = vmatprep.subr.bf16.mxu0 %v2566
        %2904 = vmatpush1.bf16.msra.mxu0 %v2565
        %2905 = vmatprep.subr.bf16.mxu0 %v2562
        %2906 = vmatpush1.bf16.msra.mxu0 %v2561
        %2907 = vmatprep.subr.bf16.mxu0 %v2558
        %2908 = vmatpush1.bf16.msra.mxu0 %v2557
        %2909 = vmatprep.subr.bf16.mxu0 %v2554
        %2910 = vmatpush1.bf16.msra.mxu0 %v2553
        %2911 = vmatprep.subr.bf16.mxu0 %v2550
        %2912 = vmatpush1.bf16.msra.mxu0 %v2549
        %2913 = vmatprep.subr.bf16.mxu0 %v2546
        %2914 = vmatpush1.bf16.msra.mxu0 %v2545
        %2915 = vmatprep.subr.bf16.mxu0 %v2542
        %2916 = vmatpush1.bf16.msra.mxu0 %v2541
        %2917 = vmatprep.subr.bf16.mxu0 %v2602
        %2918 = vmatpush2.bf16.msra.mxu0 %v2601
        %2919 = vmatprep.subr.bf16.mxu0 %v2598
        %2920 = vmatpush2.bf16.msra.mxu0 %v2597
        %2921 = vmatprep.subr.bf16.mxu0 %v2594
        %2922 = vmatpush2.bf16.msra.mxu0 %v2593
        %2923 = vmatprep.subr.bf16.mxu0 %v2590
        %2924 = vmatpush2.bf16.msra.mxu0 %v2589
        %2925 = vmatprep.subr.bf16.mxu0 %v2586
        %2926 = vmatpush2.bf16.msra.mxu0 %v2585
        %2927 = vmatprep.subr.bf16.mxu0 %v2582
        %2928 = vmatpush2.bf16.msra.mxu0 %v2581
        %2929 = vmatprep.subr.bf16.mxu0 %v2578
        %2930 = vmatpush2.bf16.msra.mxu0 %v2577
        %2931 = vmatprep.subr.bf16.mxu0 %v2574
        %2932 = vmatpush2.bf16.msra.mxu0 %v2573
        %2933 = vmatprep.mubr.bf16.mxu0 %v2140
        %2934 = vmatmul.mubr.bf16.gmra.mxu0 %v2139
        %v2935 = vpop.f32.mrf.mxu0
        %v2936 = vadd.f32 %v2097, %v2935
        %v2937 = vpop.f32.mrf.mxu0
        %v2938 = vadd.f32 %v2099, %v2937
        %v2939 = vpop.f32.mrf.mxu0
        %v2940 = vadd.f32 %v2101, %v2939
        %v2941 = vpop.f32.mrf.mxu0
        %v2942 = vadd.f32 %v2103, %v2941
        %2943 = vmatprep.mubr.bf16.mxu0 %v2144
        %2944 = vmatmul.mubr.bf16.gmra.mxu0 %v2143
        %v2945 = vpop.f32.mrf.mxu0
        %v2946 = vadd.f32 %v2107, %v2945
        %v2947 = vpop.f32.mrf.mxu0
        %v2948 = vadd.f32 %v2109, %v2947
        %v2949 = vpop.f32.mrf.mxu0
        %v2950 = vadd.f32 %v2111, %v2949
        %v2951 = vpop.f32.mrf.mxu0
        %v2952 = vadd.f32 %v2113, %v2951
        %2953 = vdwg.mxu0
        %2954 = vmatprep.subr.bf16.mxu0 %v2634
        %2955 = vmatpush1.bf16.msra.mxu0 %v2633
        %2956 = vmatprep.subr.bf16.mxu0 %v2630
        %2957 = vmatpush1.bf16.msra.mxu0 %v2629
        %2958 = vmatprep.subr.bf16.mxu0 %v2626
        %2959 = vmatpush1.bf16.msra.mxu0 %v2625
        %2960 = vmatprep.subr.bf16.mxu0 %v2622
        %2961 = vmatpush1.bf16.msra.mxu0 %v2621
        %2962 = vmatprep.subr.bf16.mxu0 %v2618
        %2963 = vmatpush1.bf16.msra.mxu0 %v2617
        %2964 = vmatprep.subr.bf16.mxu0 %v2614
        %2965 = vmatpush1.bf16.msra.mxu0 %v2613
        %2966 = vmatprep.subr.bf16.mxu0 %v2610
        %2967 = vmatpush1.bf16.msra.mxu0 %v2609
        %2968 = vmatprep.subr.bf16.mxu0 %v2606
        %2969 = vmatpush1.bf16.msra.mxu0 %v2605
        %2970 = vmatprep.subr.bf16.mxu0 %v2666
        %2971 = vmatpush2.bf16.msra.mxu0 %v2665
        %2972 = vmatprep.subr.bf16.mxu0 %v2662
        %2973 = vmatpush2.bf16.msra.mxu0 %v2661
        %2974 = vmatprep.subr.bf16.mxu0 %v2658
        %2975 = vmatpush2.bf16.msra.mxu0 %v2657
        %2976 = vmatprep.subr.bf16.mxu0 %v2654
        %2977 = vmatpush2.bf16.msra.mxu0 %v2653
        %2978 = vmatprep.subr.bf16.mxu0 %v2650
        %2979 = vmatpush2.bf16.msra.mxu0 %v2649
        %2980 = vmatprep.subr.bf16.mxu0 %v2646
        %2981 = vmatpush2.bf16.msra.mxu0 %v2645
        %2982 = vmatprep.subr.bf16.mxu0 %v2642
        %2983 = vmatpush2.bf16.msra.mxu0 %v2641
        %2984 = vmatprep.subr.bf16.mxu0 %v2638
        %2985 = vmatpush2.bf16.msra.mxu0 %v2637
        %2986 = vmatprep.mubr.bf16.mxu0 %v2142
        %2987 = vmatmul.mubr.bf16.gmra.mxu0 %v2141
        %v2988 = vpop.f32.mrf.mxu0
        %v2989 = vadd.f32 %v2936, %v2988
        %v2990 = vpop.f32.mrf.mxu0
        %v2991 = vadd.f32 %v2938, %v2990
        %v2992 = vpop.f32.mrf.mxu0
        %v2993 = vadd.f32 %v2940, %v2992
        %v2994 = vpop.f32.mrf.mxu0
        %v2995 = vadd.f32 %v2942, %v2994
        %2996 = vmatprep.mubr.bf16.mxu0 %v2146
        %2997 = vmatmul.mubr.bf16.gmra.mxu0 %v2145
        %v2998 = vpop.f32.mrf.mxu0
        %v2999 = vadd.f32 %v2946, %v2998
        %v3000 = vpop.f32.mrf.mxu0
        %v3001 = vadd.f32 %v2948, %v3000
        %v3002 = vpop.f32.mrf.mxu0
        %v3003 = vadd.f32 %v2950, %v3002
        %v3004 = vpop.f32.mrf.mxu0
        %v3005 = vadd.f32 %v2952, %v3004
        %3006 = vdwg.mxu0
        %v3007 = vld [vmem:[%s796] sm:$0xf]
        %v3009 = vlaneseq
        %v3010 = vshrl.u32 %v3009, 7
        %v3011 = vsub.s32 0, %v3010
        %v3012 = vrot.slane %v3007, %v3011
        %v3013 = vlaneseq
        %v3014 = vshrl.u32 %v3013, 7
        %v3015 = vsub.s32 1, %v3014
        %v3016 = vrot.slane %v3007, %v3015
        %v3017 = vlaneseq
        %v3018 = vshrl.u32 %v3017, 7
        %v3019 = vsub.s32 2, %v3018
        %v3020 = vrot.slane %v3007, %v3019
        %v3021 = vlaneseq
        %v3022 = vshrl.u32 %v3021, 7
        %v3023 = vsub.s32 3, %v3022
        %v3024 = vrot.slane %v3007, %v3023
        %v3029 = vadd.f32 %v2883, %v3012
        %v3030 = vadd.f32 %v2885, %v3016
        %v3031 = vadd.f32 %v2989, %v3020
        %v3032 = vadd.f32 %v2991, %v3024
        %v3033 = vadd.f32 %v2887, %v3012
        %v3034 = vadd.f32 %v2889, %v3016
        %v3035 = vadd.f32 %v2993, %v3020
        %v3036 = vadd.f32 %v2995, %v3024
        %v3037 = vadd.f32 %v2893, %v3012
        %v3038 = vadd.f32 %v2895, %v3016
        %v3039 = vadd.f32 %v2999, %v3020
        %v3040 = vadd.f32 %v3001, %v3024
        %v3041 = vadd.f32 %v2897, %v3012
        %v3042 = vadd.f32 %v2899, %v3016
        %v3043 = vadd.f32 %v3003, %v3020
        %v3044 = vadd.f32 %v3005, %v3024
        %v3045 = vpack.c.bf16 %v3033, %v3029
        %v3046 = vpack.c.bf16 %v3034, %v3030
        %v3047 = vpack.c.bf16 %v3035, %v3031
        %v3048 = vpack.c.bf16 %v3036, %v3032
        %v3049 = vpack.c.bf16 %v3041, %v3037
        %v3050 = vpack.c.bf16 %v3042, %v3038
        %v3051 = vpack.c.bf16 %v3043, %v3039
        %v3052 = vpack.c.bf16 %v3044, %v3040
        %v3061 = vunpack.c.l.b16 %v3045
        %v3062 = vunpack.c.l.b16 %v3046
        %v3063 = vunpack.c.l.b16 %v3047
        %v3064 = vunpack.c.l.b16 %v3048
        %v3065 = vunpack.c.h.b16 %v3045
        %v3066 = vunpack.c.h.b16 %v3046
        %v3067 = vunpack.c.h.b16 %v3047
        %v3068 = vunpack.c.h.b16 %v3048
        %v3069 = vunpack.c.l.b16 %v3049
        %v3070 = vunpack.c.l.b16 %v3050
        %v3071 = vunpack.c.l.b16 %v3051
        %v3072 = vunpack.c.l.b16 %v3052
        %v3073 = vunpack.c.h.b16 %v3049
        %v3074 = vunpack.c.h.b16 %v3050
        %v3075 = vunpack.c.h.b16 %v3051
        %v3076 = vunpack.c.h.b16 %v3052
        %v3077 = vpack.c.b16 %v3062, %v3061
        %v3078 = vpack.c.b16 %v3064, %v3063
        %v3079 = vpack.c.b16 %v3066, %v3065
        %v3080 = vpack.c.b16 %v3068, %v3067
        %v3081 = vpack.c.b16 %v3070, %v3069
        %v3082 = vpack.c.b16 %v3072, %v3071
        %v3083 = vpack.c.b16 %v3074, %v3073
        %v3084 = vpack.c.b16 %v3076, %v3075
        %3093 = vst [vmem:[%s776] sm:$0xff] %v3077
        %3094 = vst [vmem:[%s776 + $0x8] sm:$0xff] %v3078
        %3095 = vst [vmem:[%s776 + $0x10] sm:$0xff] %v3079
        %3096 = vst [vmem:[%s776 + $0x18] sm:$0xff] %v3080
        %3097 = vst [vmem:[%s776 + $0x20] sm:$0xff] %v3081
        %3098 = vst [vmem:[%s776 + $0x28] sm:$0xff] %v3082
        %3099 = vst [vmem:[%s776 + $0x30] sm:$0xff] %v3083
        %3100 = vst [vmem:[%s776 + $0x38] sm:$0xff] %v3084
        %s3101 = sand.u32 %s212, 1
        %s3102 = sand.u32 %s212, 1
        %s3103 = smul.addr %s3102, 64
        %s3104 = scalar_lea.vmem [#allocation4], %s3103
        // Predicated region
        $region95: #{dep_forward.5} parent=85 // pred_check
          %p3105 = pneg %p222
        $region96: #{dep_forward.5} parent=85 // pred_check_branch
          %3107 = sbr.rel (%p3105) target = $region98
        $region97: #{dep_forward.5} parent=85 // pred_region
          %s3108 = smul.u32 4, %s22
          %s3109 = smul.u32 4, %s23
          %s3110 = smul.addr %s3108, 8
          %s3111 = sadd.s32 %s3109, %s3110
          %s3112 = smul.addr %s3111, 4
          %s3113 = scalar_lea.vmem %s7, %s3112
          // Predicated region
          $region99: #{dep_forward.5} parent=97 // pred_check
            _
          $region100: #{dep_forward.5} parent=97 // pred_check_branch
            %3115 = sbr.rel (0) target = $region102
          $region101: #{dep_forward.5} parent=97 // pred_region
            // Predicated region
            $region103: #{dep_forward.5} parent=101 // pred_check
              _
            $region104: #{dep_forward.5} parent=101 // pred_check_branch
              %3117 = sbr.rel (0) target = $region106
            $region105: #{dep_forward.5} parent=101 // pred_region
              loop: start=0, step=1, limit=1
              $region107: #{dep_forward.5} parent=105 // loop_pre_header
                _
              $region108: #{dep_forward.5} parent=105 // loop_header
                %s3119 = sphi 0, %s3123
                %p3120 = scmp.ge.s32.totalorder %s3119, 1
                %s3124 = sphi %s3104, %s3104
                %s3125 = sphi %s3113, %s3113
              $region109: #{dep_forward.5} parent=105 // loop_header_branch
                %3122 = sbr.rel (%p3120) target = $region113
              $region110: #{dep_forward.5} parent=105 // loop_body
                %v3126 = vld [vmem:[%s3124] sm:$0xff]
                %3127 = vst [vmem:[%s3125] sm:$0xff] %v3126
                %v3128 = vld [vmem:[%s3124 + $0x8] sm:$0xff]
                %3129 = vst [vmem:[%s3125 + $0x8] sm:$0xff] %v3128
                %v3130 = vld [vmem:[%s3124 + $0x10] sm:$0xff]
                %3131 = vst [vmem:[%s3125 + $0x20] sm:$0xff] %v3130
                %v3132 = vld [vmem:[%s3124 + $0x18] sm:$0xff]
                %3133 = vst [vmem:[%s3125 + $0x28] sm:$0xff] %v3132
                %v3134 = vld [vmem:[%s3124 + $0x20] sm:$0xff]
                %3135 = vst [vmem:[%s3125 + $0x40] sm:$0xff] %v3134
                %v3136 = vld [vmem:[%s3124 + $0x28] sm:$0xff]
                %3137 = vst [vmem:[%s3125 + $0x48] sm:$0xff] %v3136
                %v3138 = vld [vmem:[%s3124 + $0x30] sm:$0xff]
                %3139 = vst [vmem:[%s3125 + $0x60] sm:$0xff] %v3138
                %v3140 = vld [vmem:[%s3124 + $0x38] sm:$0xff]
                %3141 = vst [vmem:[%s3125 + $0x68] sm:$0xff] %v3140
              $region111: #{dep_forward.5} parent=105 // loop_footer
                %s3123 = sadd.s32 1, %s3119
              $region112: #{dep_forward.5} parent=105 // loop_footer_branch
                %3118 = sbr.rel target = $region108
              $region113: #{dep_forward.5} parent=105 // loop_exit
                _
            $region106: #{dep_forward.5} parent=101 // pred_fallthru
              _
            // Predicated region
            $region114: #{dep_forward.5} parent=101 // pred_check
              _
            $region115: #{dep_forward.5} parent=101 // pred_check_branch
              %3143 = sbr.rel target = $region117
            $region116: #{dep_forward.5} parent=101 // pred_region
              _
            $region117: #{dep_forward.5} parent=101 // pred_fallthru
              _
          $region102: #{dep_forward.5} parent=97 // pred_fallthru
            _
          %3144 = vnop
        $region98: #{dep_forward.5} parent=85 // pred_fallthru
          _
      $region86: #{dep_forward.5} parent=5 // pred_fallthru
        _
      %p3145 = scmp.le.s32.totalorder 2, %s13
      // Predicated region
      $region118: #{dep_forward.5} parent=5 // pred_check
        %p3146 = pneg %p3145
      $region119: #{dep_forward.5} parent=5 // pred_check_branch
        %3148 = sbr.rel (%p3146) target = $region121
      $region120: #{dep_forward.5} parent=5 // pred_region
        %s3149 = ssub.s32 %s13, 2
        // Predicated region
        $region122: #{dep_forward.5} parent=120 // pred_check
          %p3150 = pneg %p228
        $region123: #{dep_forward.5} parent=120 // pred_check_branch
          %3152 = sbr.rel (%p3150) target = $region125
        $region124: #{dep_forward.5} parent=120 // pred_region
          %s3153 = sand.u32 %s213, 1
          %s3154 = sand.u32 %s213, 1
          %s3155 = smul.addr %s3154, 64
          %s3156 = scalar_lea.vmem [#allocation4], %s3155
        $region125: #{dep_forward.5} parent=120 // pred_fallthru
          _
      $region121: #{dep_forward.5} parent=5 // pred_fallthru
        _
    $region6: #{dep_forward.5} parent=1 // loop_footer
      %s17 = sadd.s32 1, %s13
    $region7: #{dep_forward.5} parent=1 // loop_footer_branch
      %12 = sbr.rel target = $region3
    $region8: #{dep_forward.5} parent=1 // loop_exit
      _

// kernel: dep_forward.4
$region0: #{dep_forward.4}
  #allocation0 [shape = 'u32[]', space=smem, size = 0x4, offset = 0x4, fixed_abs, tag = 'smem constant byte address 0x4 - core index']
  #allocation1 [shape = 'u32[144,128]{1,0:T(1,128)}', space=vmem, size = 0x12000, scoped, tag = 'internal scratch']
  %s0 = inlined_call_operand.vmem [shape: bf16[8,1024], index: 0, kind: input, shape index: {}]
  %s1 = inlined_call_operand.vmem [shape: bf16[8,680], index: 1, kind: input, shape index: {}]
  %s2 = inlined_call_operand.hbm [shape: bf16[680,256], index: 2, kind: input, shape index: {}]
  %s3 = inlined_call_operand.hbm [shape: f32[1,256], index: 3, kind: input, shape index: {}]
  %s4 = inlined_call_operand.hbm [shape: bf16[1024,2048], index: 4, kind: input, shape index: {}]
  %s5 = inlined_call_operand.hbm [shape: bf16[256,2048], index: 5, kind: input, shape index: {}]
  %s6 = inlined_call_operand.hbm [shape: f32[1,2048], index: 6, kind: input, shape index: {}]
  %s7 = inlined_call_operand.vmem [shape: bf16[8,2048], index: 7, kind: output, shape index: {}]
  %s8 = sld [smem:[#allocation0]]
  $region81: #{dep_forward.4} parent=0
    _
  %s10 = ssub.s32 1, %s8
  %s11 = scalar_select 0, %s10, %s8
  $region1: #{dep_forward.4} parent=0
    #allocation2 [shape = 'u8[348160]{0}', space=vmem, size = 0x55000, scoped, tag = 'input window, operand 2, single buffered']
    #allocation3 [shape = 's32[2]{0}', space=sflag, size = 0x8, scoped, tag = 'scoped memory for dep_forward.4']
    #allocation4 [shape = 'u8[1024]{0}', space=vmem, size = 0x400, scoped, tag = 'input window, operand 3, single buffered']
    #allocation5 [shape = 's32[1]{0}', space=sflag, size = 0x4, scoped, tag = 'scoped memory for dep_forward.4']
    #allocation6 [shape = 'u8[2097152]{0}', space=vmem, size = 0x200000, scoped, tag = 'input window, operand 4']
    #allocation7 [shape = 'u8[524288]{0}', space=vmem, size = 0x80000, scoped, tag = 'input window, operand 5']
    #allocation8 [shape = 'u8[4096]{0}', space=vmem, size = 0x1000, scoped, tag = 'input window, operand 6']
    %12 = vsyncpa [#allocation3], 0
    %13 = vsyncpa [#allocation5], 0
    loop: start=0, step=1, limit=6
    $region2: #{dep_forward.4} parent=1 // loop_pre_header
      _
    $region3: #{dep_forward.4} parent=1 // loop_header
      %s15 = sphi 0, %s19
      %p16 = scmp.ge.s32.totalorder %s15, 6
      %s22 = sphi 0, %s34
      %s23 = sphi 0, %s30
      %s24 = sphi 0, %s22
      %s25 = sphi 0, %s23
      %s26 = sphi 0, %s24
      %s27 = sphi 0, %s25
      %s37 = sphi 0, %s39
      %s40 = sphi 0, %s37
      %s41 = sphi 0, %s40
      %s57 = sphi 0, %s41
      %s63 = sphi 0, %s65
      %s66 = sphi 0, %s63
      %s67 = sphi 0, %s66
      %s83 = sphi 0, %s67
      %s87 = sphi 0, %s87
      %s89 = sphi 0, %s87
      %s90 = sphi 0, %s89
      %s104 = sphi 0, %s90
      %s108 = sphi 0, %s108
      %s110 = sphi 0, %s108
      %s111 = sphi 0, %s110
      %s125 = sphi 0, %s111
      %s131 = sphi 0, %s133
      %s134 = sphi 0, %s131
      %s135 = sphi 0, %s134
      %s151 = sphi 0, %s135
      %s157 = sphi 0, %s159
      %s160 = sphi 0, %s157
      %s161 = sphi 0, %s160
      %s177 = sphi 0, %s161
      %s183 = sphi 0, %s185
      %s186 = sphi 0, %s183
      %s187 = sphi 0, %s186
      %s203 = sphi 0, %s187
      %s211 = sphi 0, %s213
      %s214 = sphi 0, %s211
      %s215 = sphi 0, %s214
      %s231 = sphi 0, %s215
    $region4: #{dep_forward.4} parent=1 // loop_header_branch
      %18 = sbr.rel (%p16) target = $region8
    $region5: #{dep_forward.4} parent=1 // loop_body
      %s20 = ssub.s32 %s15, 1
      %s21 = ssub.s32 %s15, 2
      %s28 = sadd.s32 1, %s23
      %p29 = scmp.ge.s32.totalorder %s28, 4
      %s30 = scalar_select %p29, 0, %s28
      %s31 = sadd.s32 1, %s22
      %s32 = scalar_select %p29, %s31, %s22
      %p33 = scmp.ge.s32.totalorder %s32, 1
      %s34 = scalar_select %p33, 0, %s32
      %s35 = ssub.s32 %s22, %s34
      %p36 = scmp.eq.s32.totalorder %s35, 0
      %s38 = sadd.s32 %s37, 1
      %s39 = scalar_select %p36, %s37, %s38
      %p42 = pneg %p36
      %p43 = scmp.eq.s32.totalorder %s15, 3
      %p44 = por %p42, %p43
      %p45 = scmp.ne.s32.totalorder %s37, %s40
      %p46 = scmp.eq.s32.totalorder %s15, 0
      %p47 = por %p45, %p46
      %p48 = scmp.ne.s32.totalorder %s37, %s40
      %p49 = scmp.eq.s32.totalorder %s20, 3
      %p50 = por %p48, %p49
      %p51 = scmp.ne.s32.totalorder %s40, %s41
      %p52 = scmp.eq.s32.totalorder %s20, 0
      %p53 = por %p51, %p52
      %p54 = scmp.ne.s32.totalorder %s40, %s41
      %p55 = scmp.eq.s32.totalorder %s21, 3
      %p56 = por %p54, %p55
      %p58 = scmp.ne.s32.totalorder %s41, %s57
      %p59 = scmp.eq.s32.totalorder %s21, 0
      %p60 = por %p58, %p59
      %s61 = ssub.s32 %s22, %s34
      %p62 = scmp.eq.s32.totalorder %s61, 0
      %s64 = sadd.s32 %s63, 1
      %s65 = scalar_select %p62, %s63, %s64
      %p68 = pneg %p62
      %p69 = scmp.eq.s32.totalorder %s15, 3
      %p70 = por %p68, %p69
      %p71 = scmp.ne.s32.totalorder %s63, %s66
      %p72 = scmp.eq.s32.totalorder %s15, 0
      %p73 = por %p71, %p72
      %p74 = scmp.ne.s32.totalorder %s63, %s66
      %p75 = scmp.eq.s32.totalorder %s20, 3
      %p76 = por %p74, %p75
      %p77 = scmp.ne.s32.totalorder %s66, %s67
      %p78 = scmp.eq.s32.totalorder %s20, 0
      %p79 = por %p77, %p78
      %p80 = scmp.ne.s32.totalorder %s66, %s67
      %p81 = scmp.eq.s32.totalorder %s21, 3
      %p82 = por %p80, %p81
      %p84 = scmp.ne.s32.totalorder %s67, %s83
      %p85 = scmp.eq.s32.totalorder %s21, 0
      %p86 = por %p84, %p85
      %s88 = sadd.s32 %s87, 1
      %p91 = scmp.eq.s32.totalorder %s15, 3
      %p92 = scmp.ne.s32.totalorder %s87, %s89
      %p93 = scmp.eq.s32.totalorder %s15, 0
      %p94 = por %p92, %p93
      %p95 = scmp.ne.s32.totalorder %s87, %s89
      %p96 = scmp.eq.s32.totalorder %s20, 3
      %p97 = por %p95, %p96
      %p98 = scmp.ne.s32.totalorder %s89, %s90
      %p99 = scmp.eq.s32.totalorder %s20, 0
      %p100 = por %p98, %p99
      %p101 = scmp.ne.s32.totalorder %s89, %s90
      %p102 = scmp.eq.s32.totalorder %s21, 3
      %p103 = por %p101, %p102
      %p105 = scmp.ne.s32.totalorder %s90, %s104
      %p106 = scmp.eq.s32.totalorder %s21, 0
      %p107 = por %p105, %p106
      %s109 = sadd.s32 %s108, 1
      %p112 = scmp.eq.s32.totalorder %s15, 3
      %p113 = scmp.ne.s32.totalorder %s108, %s110
      %p114 = scmp.eq.s32.totalorder %s15, 0
      %p115 = por %p113, %p114
      %p116 = scmp.ne.s32.totalorder %s108, %s110
      %p117 = scmp.eq.s32.totalorder %s20, 3
      %p118 = por %p116, %p117
      %p119 = scmp.ne.s32.totalorder %s110, %s111
      %p120 = scmp.eq.s32.totalorder %s20, 0
      %p121 = por %p119, %p120
      %p122 = scmp.ne.s32.totalorder %s110, %s111
      %p123 = scmp.eq.s32.totalorder %s21, 3
      %p124 = por %p122, %p123
      %p126 = scmp.ne.s32.totalorder %s111, %s125
      %p127 = scmp.eq.s32.totalorder %s21, 0
      %p128 = por %p126, %p127
      %s129 = ssub.s32 %s23, %s30
      %p130 = scmp.eq.s32.totalorder %s129, 0
      %s132 = sadd.s32 %s131, 1
      %s133 = scalar_select %p130, %s131, %s132
      %p136 = pneg %p130
      %p137 = scmp.eq.s32.totalorder %s15, 3
      %p138 = por %p136, %p137
      %p139 = scmp.ne.s32.totalorder %s131, %s134
      %p140 = scmp.eq.s32.totalorder %s15, 0
      %p141 = por %p139, %p140
      %p142 = scmp.ne.s32.totalorder %s131, %s134
      %p143 = scmp.eq.s32.totalorder %s20, 3
      %p144 = por %p142, %p143
      %p145 = scmp.ne.s32.totalorder %s134, %s135
      %p146 = scmp.eq.s32.totalorder %s20, 0
      %p147 = por %p145, %p146
      %p148 = scmp.ne.s32.totalorder %s134, %s135
      %p149 = scmp.eq.s32.totalorder %s21, 3
      %p150 = por %p148, %p149
      %p152 = scmp.ne.s32.totalorder %s135, %s151
      %p153 = scmp.eq.s32.totalorder %s21, 0
      %p154 = por %p152, %p153
      %s155 = ssub.s32 %s23, %s30
      %p156 = scmp.eq.s32.totalorder %s155, 0
      %s158 = sadd.s32 %s157, 1
      %s159 = scalar_select %p156, %s157, %s158
      %p162 = pneg %p156
      %p163 = scmp.eq.s32.totalorder %s15, 3
      %p164 = por %p162, %p163
      %p165 = scmp.ne.s32.totalorder %s157, %s160
      %p166 = scmp.eq.s32.totalorder %s15, 0
      %p167 = por %p165, %p166
      %p168 = scmp.ne.s32.totalorder %s157, %s160
      %p169 = scmp.eq.s32.totalorder %s20, 3
      %p170 = por %p168, %p169
      %p171 = scmp.ne.s32.totalorder %s160, %s161
      %p172 = scmp.eq.s32.totalorder %s20, 0
      %p173 = por %p171, %p172
      %p174 = scmp.ne.s32.totalorder %s160, %s161
      %p175 = scmp.eq.s32.totalorder %s21, 3
      %p176 = por %p174, %p175
      %p178 = scmp.ne.s32.totalorder %s161, %s177
      %p179 = scmp.eq.s32.totalorder %s21, 0
      %p180 = por %p178, %p179
      %s181 = ssub.s32 %s23, %s30
      %p182 = scmp.eq.s32.totalorder %s181, 0
      %s184 = sadd.s32 %s183, 1
      %s185 = scalar_select %p182, %s183, %s184
      %p188 = pneg %p182
      %p189 = scmp.eq.s32.totalorder %s15, 3
      %p190 = por %p188, %p189
      %p191 = scmp.ne.s32.totalorder %s183, %s186
      %p192 = scmp.eq.s32.totalorder %s15, 0
      %p193 = por %p191, %p192
      %p194 = scmp.ne.s32.totalorder %s183, %s186
      %p195 = scmp.eq.s32.totalorder %s20, 3
      %p196 = por %p194, %p195
      %p197 = scmp.ne.s32.totalorder %s186, %s187
      %p198 = scmp.eq.s32.totalorder %s20, 0
      %p199 = por %p197, %p198
      %p200 = scmp.ne.s32.totalorder %s186, %s187
      %p201 = scmp.eq.s32.totalorder %s21, 3
      %p202 = por %p200, %p201
      %p204 = scmp.ne.s32.totalorder %s187, %s203
      %p205 = scmp.eq.s32.totalorder %s21, 0
      %p206 = por %p204, %p205
      %s207 = ssub.s32 %s22, %s34
      %s208 = ssub.s32 %s23, %s30
      %s209 = sor.u32 %s207, %s208
      %p210 = scmp.eq.s32.totalorder %s209, 0
      %s212 = sadd.s32 %s211, 1
      %s213 = scalar_select %p210, %s211, %s212
      %p216 = pneg %p210
      %p217 = scmp.eq.s32.totalorder %s15, 3
      %p218 = por %p216, %p217
      %p219 = scmp.ne.s32.totalorder %s211, %s214
      %p220 = scmp.eq.s32.totalorder %s15, 0
      %p221 = por %p219, %p220
      %p222 = scmp.ne.s32.totalorder %s211, %s214
      %p223 = scmp.eq.s32.totalorder %s20, 3
      %p224 = por %p222, %p223
      %p225 = scmp.ne.s32.totalorder %s214, %s215
      %p226 = scmp.eq.s32.totalorder %s20, 0
      %p227 = por %p225, %p226
      %p228 = scmp.ne.s32.totalorder %s214, %s215
      %p229 = scmp.eq.s32.totalorder %s21, 3
      %p230 = por %p228, %p229
      %p232 = scmp.ne.s32.totalorder %s215, %s231
      %p233 = scmp.eq.s32.totalorder %s21, 0
      %p234 = por %p232, %p233
      %p235 = scmp.le.s32.totalorder 1, %s15
      %p236 = scmp.lt.s32.totalorder %s15, 5
      %p237 = pnand %p235, %p236
      %p238 = pneg %p237
      // Predicated region
      $region9: #{dep_forward.4} parent=5 // pred_check
        _
      $region10: #{dep_forward.4} parent=5 // pred_check_branch
        %240 = sbr.rel (%p237) target = $region12
      $region11: #{dep_forward.4} parent=5 // pred_region
        %s241 = ssub.s32 %s15, 1
        // Predicated region
        $region13: #{dep_forward.4} parent=11 // pred_check
          %p242 = pneg %p53
        $region14: #{dep_forward.4} parent=11 // pred_check_branch
          %244 = sbr.rel (%p242) target = $region16
        $region15: #{dep_forward.4} parent=11 // pred_region
          %p245 = scmp.lt.s32.totalorder %s24, 0
          %s246 = scalar_select %p245, %s24, 0
          %s247 = smul.addr %s246, 8
          %s248 = smul.addr %s247, 4
          %s249 = scalar_lea.vmem %s0, %s248
        $region16: #{dep_forward.4} parent=11 // pred_fallthru
          _
        // Predicated region
        $region17: #{dep_forward.4} parent=11 // pred_check
          %p250 = pneg %p79
        $region18: #{dep_forward.4} parent=11 // pred_check_branch
          %252 = sbr.rel (%p250) target = $region20
        $region19: #{dep_forward.4} parent=11 // pred_region
          %p253 = scmp.lt.s32.totalorder %s24, 0
          %s254 = scalar_select %p253, %s24, 0
          %s255 = smul.addr %s254, 6
          %s256 = smul.addr %s255, 4
          %s257 = scalar_lea.vmem %s1, %s256
        $region20: #{dep_forward.4} parent=11 // pred_fallthru
          _
        // Predicated region
        $region21: #{dep_forward.4} parent=11 // pred_check
          %p258 = pneg %p100
        $region22: #{dep_forward.4} parent=11 // pred_check_branch
          %260 = sbr.rel (%p258) target = $region24
        $region23: #{dep_forward.4} parent=11 // pred_region
          %s262 = ssub.s32 10880, 10880
          %263 = vsyncadd [#allocation3], %s262
          %s264 = sshll.u32 [#allocation2], 4
          %s265 = int_to_ptr.vmem [resolvable:$true] %s264
          %270 = dma.hbm_to_vmem [thread:$0]  %s2, 10880, %s265, [#allocation3], 128, 128, 8
        $region24: #{dep_forward.4} parent=11 // pred_fallthru
          _
        // Predicated region
        $region25: #{dep_forward.4} parent=11 // pred_check
          %p271 = pneg %p121
        $region26: #{dep_forward.4} parent=11 // pred_check_branch
          %273 = sbr.rel (%p271) target = $region28
        $region27: #{dep_forward.4} parent=11 // pred_region
          %s275 = ssub.s32 32, 32
          %276 = vsyncadd [#allocation5], %s275
          %s278 = sshll.u32 [#allocation4], 4
          %s279 = int_to_ptr.vmem [resolvable:$true] %s278
          %281 = dma.hbm_to_vmem [thread:$0]  %s3, 32, %s279, [#allocation5]
        $region28: #{dep_forward.4} parent=11 // pred_fallthru
          _
      $region12: #{dep_forward.4} parent=5 // pred_fallthru
        _
      %p282 = scmp.lt.s32.totalorder %s15, 4
      // Predicated region
      $region29: #{dep_forward.4} parent=5 // pred_check
        %p283 = pneg %p282
      $region30: #{dep_forward.4} parent=5 // pred_check_branch
        %285 = sbr.rel (%p283) target = $region32
      $region31: #{dep_forward.4} parent=5 // pred_region
        // Predicated region
        $region33: #{dep_forward.4} parent=31 // pred_check
          %p286 = pneg %p141
        $region34: #{dep_forward.4} parent=31 // pred_check_branch
          %288 = sbr.rel (%p286) target = $region36
        $region35: #{dep_forward.4} parent=31 // pred_region
          %s289 = sand.u32 %s15, 1
          %s290 = scalar_lea.sflag [#allocation3], %s289
          %s291 = sand.u32 %s131, 1
          %s292 = smul.addr %s291, 2048
          %s293 = scalar_lea.vmem [#allocation6], %s292
          %s294 = smul.u32 4, %s23
          %s296 = ssub.s32 32768, 32768
          %297 = vsyncadd %s290, %s296
          %s298 = smul.addr %s294, 64
          %s299 = scalar_lea.hbm %s4, %s298
          %s300 = sshll.u32 %s293, 4
          %s301 = int_to_ptr.vmem [resolvable:$true] %s300
          %306 = dma.hbm_to_vmem [thread:$0]  %s299, 32768, %s301, %s290, 1024, 256, 16
        $region36: #{dep_forward.4} parent=31 // pred_fallthru
          _
        // Predicated region
        $region37: #{dep_forward.4} parent=31 // pred_check
          %p307 = pneg %p167
        $region38: #{dep_forward.4} parent=31 // pred_check_branch
          %309 = sbr.rel (%p307) target = $region40
        $region39: #{dep_forward.4} parent=31 // pred_region
          %s310 = sand.u32 %s15, 1
          %s311 = scalar_lea.sflag [#allocation3], %s310
          %s312 = sand.u32 %s157, 1
          %s313 = smul.addr %s312, 512
          %s314 = scalar_lea.vmem [#allocation7], %s313
          %s315 = smul.u32 4, %s23
          %s317 = ssub.s32 8192, 8192
          %318 = vsyncadd %s311, %s317
          %s319 = smul.addr %s315, 64
          %s320 = scalar_lea.hbm %s5, %s319
          %s321 = sshll.u32 %s314, 4
          %s322 = int_to_ptr.vmem [resolvable:$true] %s321
          %327 = dma.hbm_to_vmem [thread:$0]  %s320, 8192, %s322, %s311, 1024, 256, 16
        $region40: #{dep_forward.4} parent=31 // pred_fallthru
          _
        // Predicated region
        $region41: #{dep_forward.4} parent=31 // pred_check
          %p328 = pneg %p193
        $region42: #{dep_forward.4} parent=31 // pred_check_branch
          %330 = sbr.rel (%p328) target = $region44
        $region43: #{dep_forward.4} parent=31 // pred_region
          %s331 = sand.u32 %s15, 1
          %s332 = scalar_lea.sflag [#allocation3], %s331
          %s333 = sand.u32 %s183, 1
          %s334 = smul.addr %s333, 4
          %s335 = scalar_lea.vmem [#allocation8], %s334
          %s336 = smul.u32 4, %s23
          %s338 = ssub.s32 64, 64
          %339 = vsyncadd %s332, %s338
          %s340 = smul.addr %s336, 16
          %s341 = scalar_lea.hbm %s6, %s340
          %s343 = sshll.u32 %s335, 4
          %s344 = int_to_ptr.vmem [resolvable:$true] %s343
          %346 = dma.hbm_to_vmem [thread:$0]  %s341, 64, %s344, %s332
        $region44: #{dep_forward.4} parent=31 // pred_fallthru
          _
      $region32: #{dep_forward.4} parent=5 // pred_fallthru
        _
      %p347 = scmp.le.s32.totalorder 1, %s15
      %p348 = scmp.lt.s32.totalorder %s15, 5
      %p349 = pnand %p347, %p348
      %p350 = pneg %p349
      // Predicated region
      $region45: #{dep_forward.4} parent=5 // pred_check
        _
      $region46: #{dep_forward.4} parent=5 // pred_check_branch
        %352 = sbr.rel (%p349) target = $region48
      $region47: #{dep_forward.4} parent=5 // pred_region
        %s353 = ssub.s32 %s15, 1
        // Predicated region
        $region49: #{dep_forward.4} parent=47 // pred_check
          %p354 = pneg %p100
        $region50: #{dep_forward.4} parent=47 // pred_check_branch
          %356 = sbr.rel (%p354) target = $region52
        $region51: #{dep_forward.4} parent=47 // pred_region
          %357 = dma.done [#allocation3], 10880
        $region52: #{dep_forward.4} parent=47 // pred_fallthru
          _
        // Predicated region
        $region53: #{dep_forward.4} parent=47 // pred_check
          %p358 = pneg %p121
        $region54: #{dep_forward.4} parent=47 // pred_check_branch
          %360 = sbr.rel (%p358) target = $region56
        $region55: #{dep_forward.4} parent=47 // pred_region
          %361 = dma.done [#allocation5], 32
        $region56: #{dep_forward.4} parent=47 // pred_fallthru
          _
        %s362 = sand.u32 %s20, 1
        %s363 = scalar_lea.sflag [#allocation3], %s362
        %s364 = sand.u32 %s134, 1
        %s365 = smul.addr %s364, 2048
        %s366 = scalar_lea.vmem [#allocation6], %s365
        // Predicated region
        $region57: #{dep_forward.4} parent=47 // pred_check
          %p367 = pneg %p147
        $region58: #{dep_forward.4} parent=47 // pred_check_branch
          %369 = sbr.rel (%p367) target = $region60
        $region59: #{dep_forward.4} parent=47 // pred_region
          %370 = dma.done %s363, 32768
        $region60: #{dep_forward.4} parent=47 // pred_fallthru
          _
        %s371 = sand.u32 %s20, 1
        %s372 = scalar_lea.sflag [#allocation3], %s371
        %s373 = sand.u32 %s160, 1
        %s374 = smul.addr %s373, 512
        %s375 = scalar_lea.vmem [#allocation7], %s374
        // Predicated region
        $region61: #{dep_forward.4} parent=47 // pred_check
          %p376 = pneg %p173
        $region62: #{dep_forward.4} parent=47 // pred_check_branch
          %378 = sbr.rel (%p376) target = $region64
        $region63: #{dep_forward.4} parent=47 // pred_region
          %379 = dma.done %s372, 8192
        $region64: #{dep_forward.4} parent=47 // pred_fallthru
          _
        %s380 = sand.u32 %s20, 1
        %s381 = scalar_lea.sflag [#allocation3], %s380
        %s382 = sand.u32 %s186, 1
        %s383 = smul.addr %s382, 4
        %s384 = scalar_lea.vmem [#allocation8], %s383
        // Predicated region
        $region65: #{dep_forward.4} parent=47 // pred_check
          %p385 = pneg %p199
        $region66: #{dep_forward.4} parent=47 // pred_check_branch
          %387 = sbr.rel (%p385) target = $region68
        $region67: #{dep_forward.4} parent=47 // pred_region
          %388 = dma.done %s381, 64
        $region68: #{dep_forward.4} parent=47 // pred_fallthru
          _
        %p389 = scmp.lt.s32.totalorder %s24, 0
        %s390 = scalar_select %p389, %s24, 0
        %s391 = smul.addr %s390, 8
        %s392 = smul.addr %s391, 4
        %s393 = scalar_lea.vmem %s0, %s392
        %p394 = pneg %p53
        %p395 = pneg %p50
        %p396 = scmp.lt.s32.totalorder %s24, 0
        %s397 = scalar_select %p396, %s24, 0
        %s398 = smul.addr %s397, 6
        %s399 = smul.addr %s398, 4
        %s400 = scalar_lea.vmem %s1, %s399
        %p401 = pneg %p79
        %p402 = pneg %p76
        %p403 = pneg %p100
        %p404 = pneg %p97
        %p405 = pneg %p121
        %p406 = pneg %p118
        %s407 = sand.u32 %s20, 1
        %s408 = scalar_lea.sflag [#allocation3], %s407
        %s409 = sand.u32 %s134, 1
        %s410 = smul.addr %s409, 2048
        %s411 = scalar_lea.vmem [#allocation6], %s410
        %p412 = pneg %p147
        %p413 = pneg %p144
        %s414 = sand.u32 %s20, 1
        %s415 = scalar_lea.sflag [#allocation3], %s414
        %s416 = sand.u32 %s160, 1
        %s417 = smul.addr %s416, 512
        %s418 = scalar_lea.vmem [#allocation7], %s417
        %p419 = pneg %p173
        %p420 = pneg %p170
        %s421 = sand.u32 %s20, 1
        %s422 = scalar_lea.sflag [#allocation3], %s421
        %s423 = sand.u32 %s186, 1
        %s424 = smul.addr %s423, 4
        %s425 = scalar_lea.vmem [#allocation8], %s424
        %p426 = pneg %p199
        %p427 = pneg %p196
        %p428 = pneg %p227
        %p429 = pneg %p224
        %s430 = smul.u32 4, %s25
        %p431 = scmp.lt.s32.totalorder %s24, 0
        %s432 = scalar_select %p431, %s24, 0
        %p433 = scmp.lt.s32.totalorder %s430, 15
        %s434 = scalar_select %p433, %s430, 15
        %s435 = smul.addr %s432, 16
        %s436 = sadd.s32 %s434, %s435
        %s437 = smul.addr %s436, 4
        %s438 = scalar_lea.vmem %s7, %s437
        %p439 = scmp.lt.s32.totalorder %s24, 0
        %s440 = scalar_select %p439, %s24, 0
        %s441 = smul.addr %s440, 8
        %s442 = smul.addr %s441, 4
        %s443 = scalar_lea.vmem %s0, %s442
        %p444 = scmp.lt.s32.totalorder %s24, 0
        %s445 = scalar_select %p444, %s24, 0
        %s446 = smul.addr %s445, 6
        %s447 = smul.addr %s446, 4
        %s448 = scalar_lea.vmem %s1, %s447
        %s449 = smul.u32 4, %s25
        %s450 = smul.u32 4, %s25
        %s451 = smul.u32 4, %s25
        %s452 = smul.u32 4, %s25
        %p453 = scmp.lt.s32.totalorder %s24, 0
        %s454 = scalar_select %p453, %s24, 0
        %p455 = scmp.lt.s32.totalorder %s452, 15
        %s456 = scalar_select %p455, %s452, 15
        %s457 = smul.addr %s454, 16
        %s458 = sadd.s32 %s456, %s457
        %s459 = smul.addr %s458, 4
        %s460 = scalar_lea.vmem %s7, %s459
        %s461 = smul.u32 4, %s25
        %v463 = vld [vmem:[%s448] sm:$0xff]
        %v464 = vld [vmem:[%s448 + $0x8] sm:$0xff]
        %v465 = vld [vmem:[%s448 + $0x10] sm:$0xff]
        %v466 = vld [vmem:[#allocation2] sm:$0xff]
        %v467 = vld [vmem:[#allocation2 + $0x8] sm:$0xff]
        %v468 = vld [vmem:[#allocation2 + $0x10] sm:$0xff]
        %v469 = vld [vmem:[#allocation2 + $0x18] sm:$0xff]
        %v470 = vld [vmem:[#allocation2 + $0x20] sm:$0xff]
        %v471 = vld [vmem:[#allocation2 + $0x28] sm:$0xff]
        %v472 = vld [vmem:[#allocation2 + $0x30] sm:$0xff]
        %v473 = vld [vmem:[#allocation2 + $0x38] sm:$0xff]
        %v474 = vld [vmem:[#allocation2 + $0x40] sm:$0xff]
        %v475 = vld [vmem:[#allocation2 + $0x48] sm:$0xff]
        %v476 = vld [vmem:[#allocation2 + $0x50] sm:$0xff]
        %v477 = vld [vmem:[#allocation2 + $0x58] sm:$0xff]
        %v478 = vld [vmem:[#allocation2 + $0x60] sm:$0xff]
        %v479 = vld [vmem:[#allocation2 + $0x68] sm:$0xff]
        %v480 = vld [vmem:[#allocation2 + $0x70] sm:$0xff]
        %v481 = vld [vmem:[#allocation2 + $0x78] sm:$0xff]
        %v482 = vld [vmem:[#allocation2 + $0x80] sm:$0xff]
        %v483 = vld [vmem:[#allocation2 + $0x88] sm:$0xff]
        %v484 = vld [vmem:[#allocation2 + $0x90] sm:$0xff]
        %v485 = vld [vmem:[#allocation2 + $0x98] sm:$0xff]
        %v486 = vld [vmem:[#allocation2 + $0xa0] sm:$0xff]
        %v487 = vld [vmem:[#allocation2 + $0xa8] sm:$0xff]
        %v488 = vld [vmem:[#allocation2 + $0xb0] sm:$0xff]
        %v489 = vld [vmem:[#allocation2 + $0xb8] sm:$0xff]
        %v490 = vld [vmem:[#allocation2 + $0xc0] sm:$0xff]
        %v491 = vld [vmem:[#allocation2 + $0xc8] sm:$0xff]
        %v492 = vld [vmem:[#allocation2 + $0xd0] sm:$0xff]
        %v493 = vld [vmem:[#allocation2 + $0xd8] sm:$0xff]
        %v494 = vld [vmem:[#allocation2 + $0xe0] sm:$0xff]
        %v495 = vld [vmem:[#allocation2 + $0xe8] sm:$0xff]
        %v496 = vld [vmem:[#allocation2 + $0xf0] sm:$0xff]
        %v497 = vld [vmem:[#allocation2 + $0xf8] sm:$0xff]
        %v498 = vld [vmem:[#allocation2 + $0x100] sm:$0xff]
        %v499 = vld [vmem:[#allocation2 + $0x108] sm:$0xff]
        %v500 = vld [vmem:[#allocation2 + $0x110] sm:$0xff]
        %v501 = vld [vmem:[#allocation2 + $0x118] sm:$0xff]
        %v502 = vld [vmem:[#allocation2 + $0x120] sm:$0xff]
        %v503 = vld [vmem:[#allocation2 + $0x128] sm:$0xff]
        %v504 = vld [vmem:[#allocation2 + $0x130] sm:$0xff]
        %v505 = vld [vmem:[#allocation2 + $0x138] sm:$0xff]
        %v506 = vld [vmem:[#allocation2 + $0x140] sm:$0xff]
        %v507 = vld [vmem:[#allocation2 + $0x148] sm:$0xff]
        %v508 = vld [vmem:[#allocation2 + $0x150] sm:$0xff]
        %v509 = vld [vmem:[#allocation2 + $0x158] sm:$0xff]
        %v510 = vld [vmem:[#allocation2 + $0x160] sm:$0xff]
        %v511 = vld [vmem:[#allocation2 + $0x168] sm:$0xff]
        %v512 = vld [vmem:[#allocation2 + $0x170] sm:$0xff]
        %v513 = vld [vmem:[#allocation2 + $0x178] sm:$0xff]
        %v514 = vld [vmem:[#allocation2 + $0x180] sm:$0xff]
        %v515 = vld [vmem:[#allocation2 + $0x188] sm:$0xff]
        %v516 = vld [vmem:[#allocation2 + $0x190] sm:$0xff]
        %v517 = vld [vmem:[#allocation2 + $0x198] sm:$0xff]
        %v518 = vld [vmem:[#allocation2 + $0x1a0] sm:$0xff]
        %v519 = vld [vmem:[#allocation2 + $0x1a8] sm:$0xff]
        %v520 = vld [vmem:[#allocation2 + $0x1b0] sm:$0xff]
        %v521 = vld [vmem:[#allocation2 + $0x1b8] sm:$0xff]
        %v522 = vld [vmem:[#allocation2 + $0x1c0] sm:$0xff]
        %v523 = vld [vmem:[#allocation2 + $0x1c8] sm:$0xff]
        %v524 = vld [vmem:[#allocation2 + $0x1d0] sm:$0xff]
        %v525 = vld [vmem:[#allocation2 + $0x1d8] sm:$0xff]
        %v526 = vld [vmem:[#allocation2 + $0x1e0] sm:$0xff]
        %v527 = vld [vmem:[#allocation2 + $0x1e8] sm:$0xff]
        %v528 = vld [vmem:[#allocation2 + $0x1f0] sm:$0xff]
        %v529 = vld [vmem:[#allocation2 + $0x1f8] sm:$0xff]
        %v530 = vld [vmem:[#allocation2 + $0x200] sm:$0xff]
        %v531 = vld [vmem:[#allocation2 + $0x208] sm:$0xff]
        %v532 = vld [vmem:[#allocation2 + $0x210] sm:$0xff]
        %v533 = vld [vmem:[#allocation2 + $0x218] sm:$0xff]
        %v534 = vld [vmem:[#allocation2 + $0x220] sm:$0xff]
        %v535 = vld [vmem:[#allocation2 + $0x228] sm:$0xff]
        %v536 = vld [vmem:[#allocation2 + $0x230] sm:$0xff]
        %v537 = vld [vmem:[#allocation2 + $0x238] sm:$0xff]
        %v538 = vld [vmem:[#allocation2 + $0x240] sm:$0xff]
        %v539 = vld [vmem:[#allocation2 + $0x248] sm:$0xff]
        %v540 = vld [vmem:[#allocation2 + $0x250] sm:$0xff]
        %v541 = vld [vmem:[#allocation2 + $0x258] sm:$0xff]
        %v542 = vld [vmem:[#allocation2 + $0x260] sm:$0xff]
        %v543 = vld [vmem:[#allocation2 + $0x268] sm:$0xff]
        %v544 = vld [vmem:[#allocation2 + $0x270] sm:$0xff]
        %v545 = vld [vmem:[#allocation2 + $0x278] sm:$0xff]
        %v546 = vld [vmem:[#allocation2 + $0x280] sm:$0xff]
        %v547 = vld [vmem:[#allocation2 + $0x288] sm:$0xff]
        %v548 = vld [vmem:[#allocation2 + $0x290] sm:$0xff]
        %v549 = vld [vmem:[#allocation2 + $0x298] sm:$0xff]
        %v550 = vld [vmem:[#allocation2 + $0x2a0] sm:$0xff]
        %v551 = vld [vmem:[#allocation4] sm:$0x3]
        %v553 = vlaneseq
        %v554 = vshrl.u32 %v553, 7
        %v555 = vsub.s32 0, %v554
        %v556 = vrot.slane %v551, %v555
        %v557 = vlaneseq
        %v558 = vshrl.u32 %v557, 7
        %v559 = vsub.s32 1, %v558
        %v560 = vrot.slane %v551, %v559
        %v566 = vunpack.c.l.b16 %v463
        %v567 = vunpack.c.h.b16 %v463
        %v568 = vunpack.c.l.b16 %v464
        %v569 = vunpack.c.h.b16 %v464
        %v570 = vunpack.c.l.b16 %v465
        %v571 = vunpack.c.h.b16 %v465
        %v572 = vpack.c.b16 %v566, %v566
        %v573 = vpack.c.b16 %v567, %v567
        %v574 = vpack.c.b16 %v568, %v568
        %v575 = vpack.c.b16 %v569, %v569
        %v576 = vpack.c.b16 %v570, %v570
        %v577 = vpack.c.b16 %v571, %v571
        %v668 = vunpack.c.l.b16 %v466
        %v669 = vunpack.c.h.b16 %v466
        %v670 = vunpack.c.l.b16 %v467
        %v671 = vunpack.c.h.b16 %v467
        %v672 = vunpack.c.l.b16 %v468
        %v673 = vunpack.c.h.b16 %v468
        %v674 = vunpack.c.l.b16 %v469
        %v675 = vunpack.c.h.b16 %v469
        %v676 = vunpack.c.l.b16 %v470
        %v677 = vunpack.c.h.b16 %v470
        %v678 = vunpack.c.l.b16 %v471
        %v679 = vunpack.c.h.b16 %v471
        %v680 = vunpack.c.l.b16 %v472
        %v681 = vunpack.c.h.b16 %v472
        %v682 = vunpack.c.l.b16 %v473
        %v683 = vunpack.c.h.b16 %v473
        %v684 = vunpack.c.l.b16 %v474
        %v685 = vunpack.c.h.b16 %v474
        %v686 = vunpack.c.l.b16 %v475
        %v687 = vunpack.c.h.b16 %v475
        %v688 = vunpack.c.l.b16 %v476
        %v689 = vunpack.c.h.b16 %v476
        %v690 = vunpack.c.l.b16 %v477
        %v691 = vunpack.c.h.b16 %v477
        %v692 = vunpack.c.l.b16 %v478
        %v693 = vunpack.c.h.b16 %v478
        %v694 = vunpack.c.l.b16 %v479
        %v695 = vunpack.c.h.b16 %v479
        %v696 = vunpack.c.l.b16 %v480
        %v697 = vunpack.c.h.b16 %v480
        %v698 = vunpack.c.l.b16 %v481
        %v699 = vunpack.c.h.b16 %v481
        %v700 = vunpack.c.l.b16 %v482
        %v701 = vunpack.c.h.b16 %v482
        %v702 = vunpack.c.l.b16 %v483
        %v703 = vunpack.c.h.b16 %v483
        %v704 = vunpack.c.l.b16 %v484
        %v705 = vunpack.c.h.b16 %v484
        %v706 = vunpack.c.l.b16 %v485
        %v707 = vunpack.c.h.b16 %v485
        %v708 = vunpack.c.l.b16 %v486
        %v709 = vunpack.c.h.b16 %v486
        %v710 = vunpack.c.l.b16 %v487
        %v711 = vunpack.c.h.b16 %v487
        %v712 = vunpack.c.l.b16 %v488
        %v713 = vunpack.c.h.b16 %v488
        %v714 = vunpack.c.l.b16 %v489
        %v715 = vunpack.c.h.b16 %v489
        %v716 = vunpack.c.l.b16 %v490
        %v717 = vunpack.c.h.b16 %v490
        %v718 = vunpack.c.l.b16 %v491
        %v719 = vunpack.c.h.b16 %v491
        %v720 = vunpack.c.l.b16 %v492
        %v721 = vunpack.c.h.b16 %v492
        %v722 = vunpack.c.l.b16 %v493
        %v723 = vunpack.c.h.b16 %v493
        %v724 = vunpack.c.l.b16 %v494
        %v725 = vunpack.c.h.b16 %v494
        %v726 = vunpack.c.l.b16 %v495
        %v727 = vunpack.c.h.b16 %v495
        %v728 = vunpack.c.l.b16 %v496
        %v729 = vunpack.c.h.b16 %v496
        %v730 = vunpack.c.l.b16 %v497
        %v731 = vunpack.c.h.b16 %v497
        %v732 = vunpack.c.l.b16 %v498
        %v733 = vunpack.c.h.b16 %v498
        %v734 = vunpack.c.l.b16 %v499
        %v735 = vunpack.c.h.b16 %v499
        %v736 = vunpack.c.l.b16 %v500
        %v737 = vunpack.c.h.b16 %v500
        %v738 = vunpack.c.l.b16 %v501
        %v739 = vunpack.c.h.b16 %v501
        %v740 = vunpack.c.l.b16 %v502
        %v741 = vunpack.c.h.b16 %v502
        %v742 = vunpack.c.l.b16 %v503
        %v743 = vunpack.c.h.b16 %v503
        %v744 = vunpack.c.l.b16 %v504
        %v745 = vunpack.c.h.b16 %v504
        %v746 = vunpack.c.l.b16 %v505
        %v747 = vunpack.c.h.b16 %v505
        %v748 = vunpack.c.l.b16 %v506
        %v749 = vunpack.c.h.b16 %v506
        %v750 = vunpack.c.l.b16 %v507
        %v751 = vunpack.c.h.b16 %v507
        %v752 = vunpack.c.l.b16 %v508
        %v753 = vunpack.c.h.b16 %v508
        %v754 = vunpack.c.l.b16 %v509
        %v755 = vunpack.c.h.b16 %v509
        %v756 = vunpack.c.l.b16 %v510
        %v757 = vunpack.c.h.b16 %v510
        %v758 = vunpack.c.l.b16 %v511
        %v759 = vunpack.c.h.b16 %v511
        %v760 = vunpack.c.l.b16 %v512
        %v761 = vunpack.c.h.b16 %v512
        %v762 = vunpack.c.l.b16 %v513
        %v763 = vunpack.c.h.b16 %v513
        %v764 = vunpack.c.l.b16 %v514
        %v765 = vunpack.c.h.b16 %v514
        %v766 = vunpack.c.l.b16 %v515
        %v767 = vunpack.c.h.b16 %v515
        %v768 = vunpack.c.l.b16 %v516
        %v769 = vunpack.c.h.b16 %v516
        %v770 = vunpack.c.l.b16 %v517
        %v771 = vunpack.c.h.b16 %v517
        %v772 = vunpack.c.l.b16 %v518
        %v773 = vunpack.c.h.b16 %v518
        %v774 = vunpack.c.l.b16 %v519
        %v775 = vunpack.c.h.b16 %v519
        %v776 = vunpack.c.l.b16 %v520
        %v777 = vunpack.c.h.b16 %v520
        %v778 = vunpack.c.l.b16 %v521
        %v779 = vunpack.c.h.b16 %v521
        %v780 = vunpack.c.l.b16 %v522
        %v781 = vunpack.c.h.b16 %v522
        %v782 = vunpack.c.l.b16 %v523
        %v783 = vunpack.c.h.b16 %v523
        %v784 = vunpack.c.l.b16 %v524
        %v785 = vunpack.c.h.b16 %v524
        %v786 = vunpack.c.l.b16 %v525
        %v787 = vunpack.c.h.b16 %v525
        %v788 = vunpack.c.l.b16 %v526
        %v789 = vunpack.c.h.b16 %v526
        %v790 = vunpack.c.l.b16 %v527
        %v791 = vunpack.c.h.b16 %v527
        %v792 = vunpack.c.l.b16 %v528
        %v793 = vunpack.c.h.b16 %v528
        %v794 = vunpack.c.l.b16 %v529
        %v795 = vunpack.c.h.b16 %v529
        %v796 = vunpack.c.l.b16 %v530
        %v797 = vunpack.c.h.b16 %v530
        %v798 = vunpack.c.l.b16 %v531
        %v799 = vunpack.c.h.b16 %v531
        %v800 = vunpack.c.l.b16 %v532
        %v801 = vunpack.c.h.b16 %v532
        %v802 = vunpack.c.l.b16 %v533
        %v803 = vunpack.c.h.b16 %v533
        %v804 = vunpack.c.l.b16 %v534
        %v805 = vunpack.c.h.b16 %v534
        %v806 = vunpack.c.l.b16 %v535
        %v807 = vunpack.c.h.b16 %v535
        %v808 = vunpack.c.l.b16 %v536
        %v809 = vunpack.c.h.b16 %v536
        %v810 = vunpack.c.l.b16 %v537
        %v811 = vunpack.c.h.b16 %v537
        %v812 = vunpack.c.l.b16 %v538
        %v813 = vunpack.c.h.b16 %v538
        %v814 = vunpack.c.l.b16 %v539
        %v815 = vunpack.c.h.b16 %v539
        %v816 = vunpack.c.l.b16 %v540
        %v817 = vunpack.c.h.b16 %v540
        %v818 = vunpack.c.l.b16 %v541
        %v819 = vunpack.c.h.b16 %v541
        %v820 = vunpack.c.l.b16 %v542
        %v821 = vunpack.c.h.b16 %v542
        %v822 = vunpack.c.l.b16 %v543
        %v823 = vunpack.c.h.b16 %v543
        %v824 = vunpack.c.l.b16 %v544
        %v825 = vunpack.c.h.b16 %v544
        %v826 = vunpack.c.l.b16 %v545
        %v827 = vunpack.c.h.b16 %v545
        %v828 = vunpack.c.l.b16 %v546
        %v829 = vunpack.c.h.b16 %v546
        %v830 = vunpack.c.l.b16 %v547
        %v831 = vunpack.c.h.b16 %v547
        %v832 = vunpack.c.l.b16 %v548
        %v833 = vunpack.c.h.b16 %v548
        %v834 = vunpack.c.l.b16 %v549
        %v835 = vunpack.c.h.b16 %v549
        %v836 = vunpack.c.l.b16 %v550
        %v837 = vunpack.c.h.b16 %v550
        %v838 = vpack.c.b16 %v670, %v668
        %v839 = vpack.c.b16 %v671, %v669
        %v840 = vpack.c.b16 %v674, %v672
        %v841 = vpack.c.b16 %v675, %v673
        %v842 = vpack.c.b16 %v678, %v676
        %v843 = vpack.c.b16 %v679, %v677
        %v844 = vpack.c.b16 %v682, %v680
        %v845 = vpack.c.b16 %v683, %v681
        %v846 = vpack.c.b16 %v686, %v684
        %v847 = vpack.c.b16 %v687, %v685
        %v848 = vpack.c.b16 %v690, %v688
        %v849 = vpack.c.b16 %v691, %v689
        %v850 = vpack.c.b16 %v694, %v692
        %v851 = vpack.c.b16 %v695, %v693
        %v852 = vpack.c.b16 %v698, %v696
        %v853 = vpack.c.b16 %v699, %v697
        %v854 = vpack.c.b16 %v702, %v700
        %v855 = vpack.c.b16 %v703, %v701
        %v856 = vpack.c.b16 %v706, %v704
        %v857 = vpack.c.b16 %v707, %v705
        %v858 = vpack.c.b16 %v710, %v708
        %v859 = vpack.c.b16 %v711, %v709
        %v860 = vpack.c.b16 %v714, %v712
        %v861 = vpack.c.b16 %v715, %v713
        %v862 = vpack.c.b16 %v718, %v716
        %v863 = vpack.c.b16 %v719, %v717
        %v864 = vpack.c.b16 %v722, %v720
        %v865 = vpack.c.b16 %v723, %v721
        %v866 = vpack.c.b16 %v726, %v724
        %v867 = vpack.c.b16 %v727, %v725
        %v868 = vpack.c.b16 %v730, %v728
        %v869 = vpack.c.b16 %v731, %v729
        %v870 = vpack.c.b16 %v734, %v732
        %v871 = vpack.c.b16 %v735, %v733
        %v872 = vpack.c.b16 %v738, %v736
        %v873 = vpack.c.b16 %v739, %v737
        %v874 = vpack.c.b16 %v742, %v740
        %v875 = vpack.c.b16 %v743, %v741
        %v876 = vpack.c.b16 %v746, %v744
        %v877 = vpack.c.b16 %v747, %v745
        %v878 = vpack.c.b16 %v750, %v748
        %v879 = vpack.c.b16 %v751, %v749
        %v880 = vpack.c.b16 %v754, %v752
        %v881 = vpack.c.b16 %v755, %v753
        %v882 = vpack.c.b16 %v758, %v756
        %v883 = vpack.c.b16 %v759, %v757
        %v884 = vpack.c.b16 %v762, %v760
        %v885 = vpack.c.b16 %v763, %v761
        %v886 = vpack.c.b16 %v766, %v764
        %v887 = vpack.c.b16 %v767, %v765
        %v888 = vpack.c.b16 %v770, %v768
        %v889 = vpack.c.b16 %v771, %v769
        %v890 = vpack.c.b16 %v774, %v772
        %v891 = vpack.c.b16 %v775, %v773
        %v892 = vpack.c.b16 %v778, %v776
        %v893 = vpack.c.b16 %v779, %v777
        %v894 = vpack.c.b16 %v782, %v780
        %v895 = vpack.c.b16 %v783, %v781
        %v896 = vpack.c.b16 %v786, %v784
        %v897 = vpack.c.b16 %v787, %v785
        %v898 = vpack.c.b16 %v790, %v788
        %v899 = vpack.c.b16 %v791, %v789
        %v900 = vpack.c.b16 %v794, %v792
        %v901 = vpack.c.b16 %v795, %v793
        %v902 = vpack.c.b16 %v798, %v796
        %v903 = vpack.c.b16 %v799, %v797
        %v904 = vpack.c.b16 %v802, %v800
        %v905 = vpack.c.b16 %v803, %v801
        %v906 = vpack.c.b16 %v806, %v804
        %v907 = vpack.c.b16 %v807, %v805
        %v908 = vpack.c.b16 %v810, %v808
        %v909 = vpack.c.b16 %v811, %v809
        %v910 = vpack.c.b16 %v814, %v812
        %v911 = vpack.c.b16 %v815, %v813
        %v912 = vpack.c.b16 %v818, %v816
        %v913 = vpack.c.b16 %v819, %v817
        %v914 = vpack.c.b16 %v822, %v820
        %v915 = vpack.c.b16 %v823, %v821
        %v916 = vpack.c.b16 %v826, %v824
        %v917 = vpack.c.b16 %v827, %v825
        %v918 = vpack.c.b16 %v830, %v828
        %v919 = vpack.c.b16 %v831, %v829
        %v920 = vpack.c.b16 %v834, %v832
        %v921 = vpack.c.b16 %v835, %v833
        %v922 = vpack.c.b16 %v836, %v836
        %v923 = vpack.c.b16 %v837, %v837
        %vm1008 = vcmask 326656
        %v1010 = vsel %vm1008, %v577, 0
        %vm1012 = vcmask 1043456
        %v1014 = vsel %vm1012, %v922, 0
        %v1017 = vsel %vm1012, %v923, 0
        %1019 = vmatprep.subr.bf16.mxu0 %v853
        %1020 = vmatpush1.bf16.msra.mxu0 %v852
        %1021 = vmatprep.subr.bf16.mxu0 %v851
        %1022 = vmatpush1.bf16.msra.mxu0 %v850
        %1023 = vmatprep.subr.bf16.mxu0 %v849
        %1024 = vmatpush1.bf16.msra.mxu0 %v848
        %1025 = vmatprep.subr.bf16.mxu0 %v847
        %1026 = vmatpush1.bf16.msra.mxu0 %v846
        %1027 = vmatprep.subr.bf16.mxu0 %v845
        %1028 = vmatpush1.bf16.msra.mxu0 %v844
        %1029 = vmatprep.subr.bf16.mxu0 %v843
        %1030 = vmatpush1.bf16.msra.mxu0 %v842
        %1031 = vmatprep.subr.bf16.mxu0 %v841
        %1032 = vmatpush1.bf16.msra.mxu0 %v840
        %1033 = vmatprep.subr.bf16.mxu0 %v839
        %1034 = vmatpush1.bf16.msra.mxu0 %v838
        %1035 = vmatprep.subr.bf16.mxu0 %v869
        %1036 = vmatpush2.bf16.msra.mxu0 %v868
        %1037 = vmatprep.subr.bf16.mxu0 %v867
        %1038 = vmatpush2.bf16.msra.mxu0 %v866
        %1039 = vmatprep.subr.bf16.mxu0 %v865
        %1040 = vmatpush2.bf16.msra.mxu0 %v864
        %1041 = vmatprep.subr.bf16.mxu0 %v863
        %1042 = vmatpush2.bf16.msra.mxu0 %v862
        %1043 = vmatprep.subr.bf16.mxu0 %v861
        %1044 = vmatpush2.bf16.msra.mxu0 %v860
        %1045 = vmatprep.subr.bf16.mxu0 %v859
        %1046 = vmatpush2.bf16.msra.mxu0 %v858
        %1047 = vmatprep.subr.bf16.mxu0 %v857
        %1048 = vmatpush2.bf16.msra.mxu0 %v856
        %1049 = vmatprep.subr.bf16.mxu0 %v855
        %1050 = vmatpush2.bf16.msra.mxu0 %v854
        %1051 = vmatprep.mubr.bf16.mxu0 %v573
        %1052 = vmatmul.mubr.bf16.gmra.mxu0 %v572
        %v1053 = vpop.f32.mrf.mxu0
        %v1054 = vadd.f32 %v556, %v1053
        %v1055 = vpop.f32.mrf.mxu0
        %v1056 = vadd.f32 %v560, %v1055
        %v1057 = vpop.f32.mrf.mxu0
        %v1058 = vpop.f32.mrf.mxu0
        %1059 = vdwg.mxu0
        %1060 = vmatprep.subr.bf16.mxu0 %v885
        %1061 = vmatpush1.bf16.msra.mxu0 %v884
        %1062 = vmatprep.subr.bf16.mxu0 %v883
        %1063 = vmatpush1.bf16.msra.mxu0 %v882
        %1064 = vmatprep.subr.bf16.mxu0 %v881
        %1065 = vmatpush1.bf16.msra.mxu0 %v880
        %1066 = vmatprep.subr.bf16.mxu0 %v879
        %1067 = vmatpush1.bf16.msra.mxu0 %v878
        %1068 = vmatprep.subr.bf16.mxu0 %v877
        %1069 = vmatpush1.bf16.msra.mxu0 %v876
        %1070 = vmatprep.subr.bf16.mxu0 %v875
        %1071 = vmatpush1.bf16.msra.mxu0 %v874
        %1072 = vmatprep.subr.bf16.mxu0 %v873
        %1073 = vmatpush1.bf16.msra.mxu0 %v872
        %1074 = vmatprep.subr.bf16.mxu0 %v871
        %1075 = vmatpush1.bf16.msra.mxu0 %v870
        %1076 = vmatprep.subr.bf16.mxu0 %v901
        %1077 = vmatpush2.bf16.msra.mxu0 %v900
        %1078 = vmatprep.subr.bf16.mxu0 %v899
        %1079 = vmatpush2.bf16.msra.mxu0 %v898
        %1080 = vmatprep.subr.bf16.mxu0 %v897
        %1081 = vmatpush2.bf16.msra.mxu0 %v896
        %1082 = vmatprep.subr.bf16.mxu0 %v895
        %1083 = vmatpush2.bf16.msra.mxu0 %v894
        %1084 = vmatprep.subr.bf16.mxu0 %v893
        %1085 = vmatpush2.bf16.msra.mxu0 %v892
        %1086 = vmatprep.subr.bf16.mxu0 %v891
        %1087 = vmatpush2.bf16.msra.mxu0 %v890
        %1088 = vmatprep.subr.bf16.mxu0 %v889
        %1089 = vmatpush2.bf16.msra.mxu0 %v888
        %1090 = vmatprep.subr.bf16.mxu0 %v887
        %1091 = vmatpush2.bf16.msra.mxu0 %v886
        %1092 = vmatprep.mubr.bf16.mxu0 %v575
        %1093 = vmatmul.mubr.bf16.gmra.mxu0 %v574
        %v1094 = vpop.f32.mrf.mxu0
        %v1095 = vadd.f32 %v1054, %v1094
        %v1096 = vpop.f32.mrf.mxu0
        %v1097 = vadd.f32 %v1056, %v1096
        %v1098 = vpop.f32.mrf.mxu0
        %v1099 = vpop.f32.mrf.mxu0
        %1100 = vdwg.mxu0
        %1101 = vmatprep.subr.bf16.mxu0 %v917
        %1102 = vmatpush1.bf16.msra.mxu0 %v916
        %1103 = vmatprep.subr.bf16.mxu0 %v915
        %1104 = vmatpush1.bf16.msra.mxu0 %v914
        %1105 = vmatprep.subr.bf16.mxu0 %v913
        %1106 = vmatpush1.bf16.msra.mxu0 %v912
        %1107 = vmatprep.subr.bf16.mxu0 %v911
        %1108 = vmatpush1.bf16.msra.mxu0 %v910
        %1109 = vmatprep.subr.bf16.mxu0 %v909
        %1110 = vmatpush1.bf16.msra.mxu0 %v908
        %1111 = vmatprep.subr.bf16.mxu0 %v907
        %1112 = vmatpush1.bf16.msra.mxu0 %v906
        %1113 = vmatprep.subr.bf16.mxu0 %v905
        %1114 = vmatpush1.bf16.msra.mxu0 %v904
        %1115 = vmatprep.subr.bf16.mxu0 %v903
        %1116 = vmatpush1.bf16.msra.mxu0 %v902
        %1117 = vmatprep.subr.bf16.mxu0 0
        %1118 = vmatpush2.bf16.msra.mxu0 0
        %1119 = vmatprep.subr.bf16.mxu0 0
        %1120 = vmatpush2.bf16.msra.mxu0 0
        %1121 = vmatprep.subr.bf16.mxu0 0
        %1122 = vmatpush2.bf16.msra.mxu0 0
        %1123 = vmatprep.subr.bf16.mxu0 0
        %1124 = vmatpush2.bf16.msra.mxu0 0
        %1125 = vmatprep.subr.bf16.mxu0 0
        %1126 = vmatpush2.bf16.msra.mxu0 0
        %1127 = vmatprep.subr.bf16.mxu0 %v1017
        %1128 = vmatpush2.bf16.msra.mxu0 %v1014
        %1129 = vmatprep.subr.bf16.mxu0 %v921
        %1130 = vmatpush2.bf16.msra.mxu0 %v920
        %1131 = vmatprep.subr.bf16.mxu0 %v919
        %1132 = vmatpush2.bf16.msra.mxu0 %v918
        %1133 = vmatprep.mubr.bf16.mxu0 %v1010
        %1134 = vmatmul.mubr.bf16.gmra.mxu0 %v576
        %v1135 = vpop.f32.mrf.mxu0
        %v1136 = vadd.f32 %v1095, %v1135
        %v1137 = vpop.f32.mrf.mxu0
        %v1138 = vadd.f32 %v1097, %v1137
        %v1139 = vpop.f32.mrf.mxu0
        %v1140 = vpop.f32.mrf.mxu0
        %1141 = vdwg.mxu0
        %v1142 = vld [vmem:[%s443] sm:$0xff]
        %v1143 = vld [vmem:[%s443 + $0x8] sm:$0xff]
        %v1144 = vld [vmem:[%s443 + $0x10] sm:$0xff]
        %v1145 = vld [vmem:[%s443 + $0x18] sm:$0xff]
        %v1146 = vld [vmem:[%s366] sm:$0xff]
        %v1147 = vld [vmem:[%s366 + $0x8] sm:$0xff]
        %v1148 = vld [vmem:[%s366 + $0x10] sm:$0xff]
        %v1149 = vld [vmem:[%s366 + $0x18] sm:$0xff]
        %v1150 = vld [vmem:[%s366 + $0x20] sm:$0xff]
        %v1151 = vld [vmem:[%s366 + $0x28] sm:$0xff]
        %v1152 = vld [vmem:[%s366 + $0x30] sm:$0xff]
        %v1153 = vld [vmem:[%s366 + $0x38] sm:$0xff]
        %v1154 = vld [vmem:[%s366 + $0x40] sm:$0xff]
        %v1155 = vld [vmem:[%s366 + $0x48] sm:$0xff]
        %v1156 = vld [vmem:[%s366 + $0x50] sm:$0xff]
        %v1157 = vld [vmem:[%s366 + $0x58] sm:$0xff]
        %v1158 = vld [vmem:[%s366 + $0x60] sm:$0xff]
        %v1159 = vld [vmem:[%s366 + $0x68] sm:$0xff]
        %v1160 = vld [vmem:[%s366 + $0x70] sm:$0xff]
        %v1161 = vld [vmem:[%s366 + $0x78] sm:$0xff]
        %v1162 = vld [vmem:[%s366 + $0x80] sm:$0xff]
        %v1163 = vld [vmem:[%s366 + $0x88] sm:$0xff]
        %v1164 = vld [vmem:[%s366 + $0x90] sm:$0xff]
        %v1165 = vld [vmem:[%s366 + $0x98] sm:$0xff]
        %v1166 = vld [vmem:[%s366 + $0xa0] sm:$0xff]
        %v1167 = vld [vmem:[%s366 + $0xa8] sm:$0xff]
        %v1168 = vld [vmem:[%s366 + $0xb0] sm:$0xff]
        %v1169 = vld [vmem:[%s366 + $0xb8] sm:$0xff]
        %v1170 = vld [vmem:[%s366 + $0xc0] sm:$0xff]
        %v1171 = vld [vmem:[%s366 + $0xc8] sm:$0xff]
        %v1172 = vld [vmem:[%s366 + $0xd0] sm:$0xff]
        %v1173 = vld [vmem:[%s366 + $0xd8] sm:$0xff]
        %v1174 = vld [vmem:[%s366 + $0xe0] sm:$0xff]
        %v1175 = vld [vmem:[%s366 + $0xe8] sm:$0xff]
        %v1176 = vld [vmem:[%s366 + $0xf0] sm:$0xff]
        %v1177 = vld [vmem:[%s366 + $0xf8] sm:$0xff]
        %v1178 = vld [vmem:[%s366 + $0x100] sm:$0xff]
        %v1179 = vld [vmem:[%s366 + $0x108] sm:$0xff]
        %v1180 = vld [vmem:[%s366 + $0x110] sm:$0xff]
        %v1181 = vld [vmem:[%s366 + $0x118] sm:$0xff]
        %v1182 = vld [vmem:[%s366 + $0x120] sm:$0xff]
        %v1183 = vld [vmem:[%s366 + $0x128] sm:$0xff]
        %v1184 = vld [vmem:[%s366 + $0x130] sm:$0xff]
        %v1185 = vld [vmem:[%s366 + $0x138] sm:$0xff]
        %v1186 = vld [vmem:[%s366 + $0x140] sm:$0xff]
        %v1187 = vld [vmem:[%s366 + $0x148] sm:$0xff]
        %v1188 = vld [vmem:[%s366 + $0x150] sm:$0xff]
        %v1189 = vld [vmem:[%s366 + $0x158] sm:$0xff]
        %v1190 = vld [vmem:[%s366 + $0x160] sm:$0xff]
        %v1191 = vld [vmem:[%s366 + $0x168] sm:$0xff]
        %v1192 = vld [vmem:[%s366 + $0x170] sm:$0xff]
        %v1193 = vld [vmem:[%s366 + $0x178] sm:$0xff]
        %v1194 = vld [vmem:[%s366 + $0x180] sm:$0xff]
        %v1195 = vld [vmem:[%s366 + $0x188] sm:$0xff]
        %v1196 = vld [vmem:[%s366 + $0x190] sm:$0xff]
        %v1197 = vld [vmem:[%s366 + $0x198] sm:$0xff]
        %v1198 = vld [vmem:[%s366 + $0x1a0] sm:$0xff]
        %v1199 = vld [vmem:[%s366 + $0x1a8] sm:$0xff]
        %v1200 = vld [vmem:[%s366 + $0x1b0] sm:$0xff]
        %v1201 = vld [vmem:[%s366 + $0x1b8] sm:$0xff]
        %v1202 = vld [vmem:[%s366 + $0x1c0] sm:$0xff]
        %v1203 = vld [vmem:[%s366 + $0x1c8] sm:$0xff]
        %v1204 = vld [vmem:[%s366 + $0x1d0] sm:$0xff]
        %v1205 = vld [vmem:[%s366 + $0x1d8] sm:$0xff]
        %v1206 = vld [vmem:[%s366 + $0x1e0] sm:$0xff]
        %v1207 = vld [vmem:[%s366 + $0x1e8] sm:$0xff]
        %v1208 = vld [vmem:[%s366 + $0x1f0] sm:$0xff]
        %v1209 = vld [vmem:[%s366 + $0x1f8] sm:$0xff]
        %v1210 = vld [vmem:[%s366 + $0x200] sm:$0xff]
        %v1211 = vld [vmem:[%s366 + $0x208] sm:$0xff]
        %v1212 = vld [vmem:[%s366 + $0x210] sm:$0xff]
        %v1213 = vld [vmem:[%s366 + $0x218] sm:$0xff]
        %v1214 = vld [vmem:[%s366 + $0x220] sm:$0xff]
        %v1215 = vld [vmem:[%s366 + $0x228] sm:$0xff]
        %v1216 = vld [vmem:[%s366 + $0x230] sm:$0xff]
        %v1217 = vld [vmem:[%s366 + $0x238] sm:$0xff]
        %v1218 = vld [vmem:[%s366 + $0x240] sm:$0xff]
        %v1219 = vld [vmem:[%s366 + $0x248] sm:$0xff]
        %v1220 = vld [vmem:[%s366 + $0x250] sm:$0xff]
        %v1221 = vld [vmem:[%s366 + $0x258] sm:$0xff]
        %v1222 = vld [vmem:[%s366 + $0x260] sm:$0xff]
        %v1223 = vld [vmem:[%s366 + $0x268] sm:$0xff]
        %v1224 = vld [vmem:[%s366 + $0x270] sm:$0xff]
        %v1225 = vld [vmem:[%s366 + $0x278] sm:$0xff]
        %v1226 = vld [vmem:[%s366 + $0x280] sm:$0xff]
        %v1227 = vld [vmem:[%s366 + $0x288] sm:$0xff]
        %v1228 = vld [vmem:[%s366 + $0x290] sm:$0xff]
        %v1229 = vld [vmem:[%s366 + $0x298] sm:$0xff]
        %v1230 = vld [vmem:[%s366 + $0x2a0] sm:$0xff]
        %v1231 = vld [vmem:[%s366 + $0x2a8] sm:$0xff]
        %v1232 = vld [vmem:[%s366 + $0x2b0] sm:$0xff]
        %v1233 = vld [vmem:[%s366 + $0x2b8] sm:$0xff]
        %v1234 = vld [vmem:[%s366 + $0x2c0] sm:$0xff]
        %v1235 = vld [vmem:[%s366 + $0x2c8] sm:$0xff]
        %v1236 = vld [vmem:[%s366 + $0x2d0] sm:$0xff]
        %v1237 = vld [vmem:[%s366 + $0x2d8] sm:$0xff]
        %v1238 = vld [vmem:[%s366 + $0x2e0] sm:$0xff]
        %v1239 = vld [vmem:[%s366 + $0x2e8] sm:$0xff]
        %v1240 = vld [vmem:[%s366 + $0x2f0] sm:$0xff]
        %v1241 = vld [vmem:[%s366 + $0x2f8] sm:$0xff]
        %v1242 = vld [vmem:[%s366 + $0x300] sm:$0xff]
        %v1243 = vld [vmem:[%s366 + $0x308] sm:$0xff]
        %v1244 = vld [vmem:[%s366 + $0x310] sm:$0xff]
        %v1245 = vld [vmem:[%s366 + $0x318] sm:$0xff]
        %v1246 = vld [vmem:[%s366 + $0x320] sm:$0xff]
        %v1247 = vld [vmem:[%s366 + $0x328] sm:$0xff]
        %v1248 = vld [vmem:[%s366 + $0x330] sm:$0xff]
        %v1249 = vld [vmem:[%s366 + $0x338] sm:$0xff]
        %v1250 = vld [vmem:[%s366 + $0x340] sm:$0xff]
        %v1251 = vld [vmem:[%s366 + $0x348] sm:$0xff]
        %v1252 = vld [vmem:[%s366 + $0x350] sm:$0xff]
        %v1253 = vld [vmem:[%s366 + $0x358] sm:$0xff]
        %v1254 = vld [vmem:[%s366 + $0x360] sm:$0xff]
        %v1255 = vld [vmem:[%s366 + $0x368] sm:$0xff]
        %v1256 = vld [vmem:[%s366 + $0x370] sm:$0xff]
        %v1257 = vld [vmem:[%s366 + $0x378] sm:$0xff]
        %v1258 = vld [vmem:[%s366 + $0x380] sm:$0xff]
        %v1259 = vld [vmem:[%s366 + $0x388] sm:$0xff]
        %v1260 = vld [vmem:[%s366 + $0x390] sm:$0xff]
        %v1261 = vld [vmem:[%s366 + $0x398] sm:$0xff]
        %v1262 = vld [vmem:[%s366 + $0x3a0] sm:$0xff]
        %v1263 = vld [vmem:[%s366 + $0x3a8] sm:$0xff]
        %v1264 = vld [vmem:[%s366 + $0x3b0] sm:$0xff]
        %v1265 = vld [vmem:[%s366 + $0x3b8] sm:$0xff]
        %v1266 = vld [vmem:[%s366 + $0x3c0] sm:$0xff]
        %v1267 = vld [vmem:[%s366 + $0x3c8] sm:$0xff]
        %v1268 = vld [vmem:[%s366 + $0x3d0] sm:$0xff]
        %v1269 = vld [vmem:[%s366 + $0x3d8] sm:$0xff]
        %v1270 = vld [vmem:[%s366 + $0x3e0] sm:$0xff]
        %v1271 = vld [vmem:[%s366 + $0x3e8] sm:$0xff]
        %v1272 = vld [vmem:[%s366 + $0x3f0] sm:$0xff]
        %v1273 = vld [vmem:[%s366 + $0x3f8] sm:$0xff]
        %v1274 = vld [vmem:[%s366 + $0x400] sm:$0xff]
        %v1275 = vld [vmem:[%s366 + $0x408] sm:$0xff]
        %v1276 = vld [vmem:[%s366 + $0x410] sm:$0xff]
        %v1277 = vld [vmem:[%s366 + $0x418] sm:$0xff]
        %v1278 = vld [vmem:[%s366 + $0x420] sm:$0xff]
        %v1279 = vld [vmem:[%s366 + $0x428] sm:$0xff]
        %v1280 = vld [vmem:[%s366 + $0x430] sm:$0xff]
        %v1281 = vld [vmem:[%s366 + $0x438] sm:$0xff]
        %v1282 = vld [vmem:[%s366 + $0x440] sm:$0xff]
        %v1283 = vld [vmem:[%s366 + $0x448] sm:$0xff]
        %v1284 = vld [vmem:[%s366 + $0x450] sm:$0xff]
        %v1285 = vld [vmem:[%s366 + $0x458] sm:$0xff]
        %v1286 = vld [vmem:[%s366 + $0x460] sm:$0xff]
        %v1287 = vld [vmem:[%s366 + $0x468] sm:$0xff]
        %v1288 = vld [vmem:[%s366 + $0x470] sm:$0xff]
        %v1289 = vld [vmem:[%s366 + $0x478] sm:$0xff]
        %v1290 = vld [vmem:[%s366 + $0x480] sm:$0xff]
        %v1291 = vld [vmem:[%s366 + $0x488] sm:$0xff]
        %v1292 = vld [vmem:[%s366 + $0x490] sm:$0xff]
        %v1293 = vld [vmem:[%s366 + $0x498] sm:$0xff]
        %v1294 = vld [vmem:[%s366 + $0x4a0] sm:$0xff]
        %v1295 = vld [vmem:[%s366 + $0x4a8] sm:$0xff]
        %v1296 = vld [vmem:[%s366 + $0x4b0] sm:$0xff]
        %v1297 = vld [vmem:[%s366 + $0x4b8] sm:$0xff]
        %v1298 = vld [vmem:[%s366 + $0x4c0] sm:$0xff]
        %v1299 = vld [vmem:[%s366 + $0x4c8] sm:$0xff]
        %v1300 = vld [vmem:[%s366 + $0x4d0] sm:$0xff]
        %v1301 = vld [vmem:[%s366 + $0x4d8] sm:$0xff]
        %v1302 = vld [vmem:[%s366 + $0x4e0] sm:$0xff]
        %v1303 = vld [vmem:[%s366 + $0x4e8] sm:$0xff]
        %v1304 = vld [vmem:[%s366 + $0x4f0] sm:$0xff]
        %v1305 = vld [vmem:[%s366 + $0x4f8] sm:$0xff]
        %v1306 = vld [vmem:[%s366 + $0x500] sm:$0xff]
        %v1307 = vld [vmem:[%s366 + $0x508] sm:$0xff]
        %v1308 = vld [vmem:[%s366 + $0x510] sm:$0xff]
        %v1309 = vld [vmem:[%s366 + $0x518] sm:$0xff]
        %v1310 = vld [vmem:[%s366 + $0x520] sm:$0xff]
        %v1311 = vld [vmem:[%s366 + $0x528] sm:$0xff]
        %v1312 = vld [vmem:[%s366 + $0x530] sm:$0xff]
        %v1313 = vld [vmem:[%s366 + $0x538] sm:$0xff]
        %v1314 = vld [vmem:[%s366 + $0x540] sm:$0xff]
        %v1315 = vld [vmem:[%s366 + $0x548] sm:$0xff]
        %v1316 = vld [vmem:[%s366 + $0x550] sm:$0xff]
        %v1317 = vld [vmem:[%s366 + $0x558] sm:$0xff]
        %v1318 = vld [vmem:[%s366 + $0x560] sm:$0xff]
        %v1319 = vld [vmem:[%s366 + $0x568] sm:$0xff]
        %v1320 = vld [vmem:[%s366 + $0x570] sm:$0xff]
        %v1321 = vld [vmem:[%s366 + $0x578] sm:$0xff]
        %v1322 = vld [vmem:[%s366 + $0x580] sm:$0xff]
        %v1323 = vld [vmem:[%s366 + $0x588] sm:$0xff]
        %v1324 = vld [vmem:[%s366 + $0x590] sm:$0xff]
        %v1325 = vld [vmem:[%s366 + $0x598] sm:$0xff]
        %v1326 = vld [vmem:[%s366 + $0x5a0] sm:$0xff]
        %v1327 = vld [vmem:[%s366 + $0x5a8] sm:$0xff]
        %v1328 = vld [vmem:[%s366 + $0x5b0] sm:$0xff]
        %v1329 = vld [vmem:[%s366 + $0x5b8] sm:$0xff]
        %v1330 = vld [vmem:[%s366 + $0x5c0] sm:$0xff]
        %v1331 = vld [vmem:[%s366 + $0x5c8] sm:$0xff]
        %v1332 = vld [vmem:[%s366 + $0x5d0] sm:$0xff]
        %v1333 = vld [vmem:[%s366 + $0x5d8] sm:$0xff]
        %v1334 = vld [vmem:[%s366 + $0x5e0] sm:$0xff]
        %v1335 = vld [vmem:[%s366 + $0x5e8] sm:$0xff]
        %v1336 = vld [vmem:[%s366 + $0x5f0] sm:$0xff]
        %v1337 = vld [vmem:[%s366 + $0x5f8] sm:$0xff]
        %v1338 = vld [vmem:[%s366 + $0x600] sm:$0xff]
        %v1339 = vld [vmem:[%s366 + $0x608] sm:$0xff]
        %v1340 = vld [vmem:[%s366 + $0x610] sm:$0xff]
        %v1341 = vld [vmem:[%s366 + $0x618] sm:$0xff]
        %v1342 = vld [vmem:[%s366 + $0x620] sm:$0xff]
        %v1343 = vld [vmem:[%s366 + $0x628] sm:$0xff]
        %v1344 = vld [vmem:[%s366 + $0x630] sm:$0xff]
        %v1345 = vld [vmem:[%s366 + $0x638] sm:$0xff]
        %v1346 = vld [vmem:[%s366 + $0x640] sm:$0xff]
        %v1347 = vld [vmem:[%s366 + $0x648] sm:$0xff]
        %v1348 = vld [vmem:[%s366 + $0x650] sm:$0xff]
        %v1349 = vld [vmem:[%s366 + $0x658] sm:$0xff]
        %v1350 = vld [vmem:[%s366 + $0x660] sm:$0xff]
        %v1351 = vld [vmem:[%s366 + $0x668] sm:$0xff]
        %v1352 = vld [vmem:[%s366 + $0x670] sm:$0xff]
        %v1353 = vld [vmem:[%s366 + $0x678] sm:$0xff]
        %v1354 = vld [vmem:[%s366 + $0x680] sm:$0xff]
        %v1355 = vld [vmem:[%s366 + $0x688] sm:$0xff]
        %v1356 = vld [vmem:[%s366 + $0x690] sm:$0xff]
        %v1357 = vld [vmem:[%s366 + $0x698] sm:$0xff]
        %v1358 = vld [vmem:[%s366 + $0x6a0] sm:$0xff]
        %v1359 = vld [vmem:[%s366 + $0x6a8] sm:$0xff]
        %v1360 = vld [vmem:[%s366 + $0x6b0] sm:$0xff]
        %v1361 = vld [vmem:[%s366 + $0x6b8] sm:$0xff]
        %v1362 = vld [vmem:[%s366 + $0x6c0] sm:$0xff]
        %v1363 = vld [vmem:[%s366 + $0x6c8] sm:$0xff]
        %v1364 = vld [vmem:[%s366 + $0x6d0] sm:$0xff]
        %v1365 = vld [vmem:[%s366 + $0x6d8] sm:$0xff]
        %v1366 = vld [vmem:[%s366 + $0x6e0] sm:$0xff]
        %v1367 = vld [vmem:[%s366 + $0x6e8] sm:$0xff]
        %v1368 = vld [vmem:[%s366 + $0x6f0] sm:$0xff]
        %v1369 = vld [vmem:[%s366 + $0x6f8] sm:$0xff]
        %v1370 = vld [vmem:[%s366 + $0x700] sm:$0xff]
        %v1371 = vld [vmem:[%s366 + $0x708] sm:$0xff]
        %v1372 = vld [vmem:[%s366 + $0x710] sm:$0xff]
        %v1373 = vld [vmem:[%s366 + $0x718] sm:$0xff]
        %v1374 = vld [vmem:[%s366 + $0x720] sm:$0xff]
        %v1375 = vld [vmem:[%s366 + $0x728] sm:$0xff]
        %v1376 = vld [vmem:[%s366 + $0x730] sm:$0xff]
        %v1377 = vld [vmem:[%s366 + $0x738] sm:$0xff]
        %v1378 = vld [vmem:[%s366 + $0x740] sm:$0xff]
        %v1379 = vld [vmem:[%s366 + $0x748] sm:$0xff]
        %v1380 = vld [vmem:[%s366 + $0x750] sm:$0xff]
        %v1381 = vld [vmem:[%s366 + $0x758] sm:$0xff]
        %v1382 = vld [vmem:[%s366 + $0x760] sm:$0xff]
        %v1383 = vld [vmem:[%s366 + $0x768] sm:$0xff]
        %v1384 = vld [vmem:[%s366 + $0x770] sm:$0xff]
        %v1385 = vld [vmem:[%s366 + $0x778] sm:$0xff]
        %v1386 = vld [vmem:[%s366 + $0x780] sm:$0xff]
        %v1387 = vld [vmem:[%s366 + $0x788] sm:$0xff]
        %v1388 = vld [vmem:[%s366 + $0x790] sm:$0xff]
        %v1389 = vld [vmem:[%s366 + $0x798] sm:$0xff]
        %v1390 = vld [vmem:[%s366 + $0x7a0] sm:$0xff]
        %v1391 = vld [vmem:[%s366 + $0x7a8] sm:$0xff]
        %v1392 = vld [vmem:[%s366 + $0x7b0] sm:$0xff]
        %v1393 = vld [vmem:[%s366 + $0x7b8] sm:$0xff]
        %v1394 = vld [vmem:[%s366 + $0x7c0] sm:$0xff]
        %v1395 = vld [vmem:[%s366 + $0x7c8] sm:$0xff]
        %v1396 = vld [vmem:[%s366 + $0x7d0] sm:$0xff]
        %v1397 = vld [vmem:[%s366 + $0x7d8] sm:$0xff]
        %v1398 = vld [vmem:[%s366 + $0x7e0] sm:$0xff]
        %v1399 = vld [vmem:[%s366 + $0x7e8] sm:$0xff]
        %v1400 = vld [vmem:[%s366 + $0x7f0] sm:$0xff]
        %v1401 = vld [vmem:[%s366 + $0x7f8] sm:$0xff]
        %v1402 = vpack.c.bf16 %v1136, %v1136
        %v1403 = vpack.c.bf16 %v1138, %v1138
        %v1404 = vld [vmem:[%s375] sm:$0xff]
        %v1405 = vld [vmem:[%s375 + $0x8] sm:$0xff]
        %v1406 = vld [vmem:[%s375 + $0x10] sm:$0xff]
        %v1407 = vld [vmem:[%s375 + $0x18] sm:$0xff]
        %v1408 = vld [vmem:[%s375 + $0x20] sm:$0xff]
        %v1409 = vld [vmem:[%s375 + $0x28] sm:$0xff]
        %v1410 = vld [vmem:[%s375 + $0x30] sm:$0xff]
        %v1411 = vld [vmem:[%s375 + $0x38] sm:$0xff]
        %v1412 = vld [vmem:[%s375 + $0x40] sm:$0xff]
        %v1413 = vld [vmem:[%s375 + $0x48] sm:$0xff]
        %v1414 = vld [vmem:[%s375 + $0x50] sm:$0xff]
        %v1415 = vld [vmem:[%s375 + $0x58] sm:$0xff]
        %v1416 = vld [vmem:[%s375 + $0x60] sm:$0xff]
        %v1417 = vld [vmem:[%s375 + $0x68] sm:$0xff]
        %v1418 = vld [vmem:[%s375 + $0x70] sm:$0xff]
        %v1419 = vld [vmem:[%s375 + $0x78] sm:$0xff]
        %v1420 = vld [vmem:[%s375 + $0x80] sm:$0xff]
        %v1421 = vld [vmem:[%s375 + $0x88] sm:$0xff]
        %v1422 = vld [vmem:[%s375 + $0x90] sm:$0xff]
        %v1423 = vld [vmem:[%s375 + $0x98] sm:$0xff]
        %v1424 = vld [vmem:[%s375 + $0xa0] sm:$0xff]
        %v1425 = vld [vmem:[%s375 + $0xa8] sm:$0xff]
        %v1426 = vld [vmem:[%s375 + $0xb0] sm:$0xff]
        %v1427 = vld [vmem:[%s375 + $0xb8] sm:$0xff]
        %v1428 = vld [vmem:[%s375 + $0xc0] sm:$0xff]
        %v1429 = vld [vmem:[%s375 + $0xc8] sm:$0xff]
        %v1430 = vld [vmem:[%s375 + $0xd0] sm:$0xff]
        %v1431 = vld [vmem:[%s375 + $0xd8] sm:$0xff]
        %v1432 = vld [vmem:[%s375 + $0xe0] sm:$0xff]
        %v1433 = vld [vmem:[%s375 + $0xe8] sm:$0xff]
        %v1434 = vld [vmem:[%s375 + $0xf0] sm:$0xff]
        %v1435 = vld [vmem:[%s375 + $0xf8] sm:$0xff]
        %v1436 = vld [vmem:[%s375 + $0x100] sm:$0xff]
        %v1437 = vld [vmem:[%s375 + $0x108] sm:$0xff]
        %v1438 = vld [vmem:[%s375 + $0x110] sm:$0xff]
        %v1439 = vld [vmem:[%s375 + $0x118] sm:$0xff]
        %v1440 = vld [vmem:[%s375 + $0x120] sm:$0xff]
        %v1441 = vld [vmem:[%s375 + $0x128] sm:$0xff]
        %v1442 = vld [vmem:[%s375 + $0x130] sm:$0xff]
        %v1443 = vld [vmem:[%s375 + $0x138] sm:$0xff]
        %v1444 = vld [vmem:[%s375 + $0x140] sm:$0xff]
        %v1445 = vld [vmem:[%s375 + $0x148] sm:$0xff]
        %v1446 = vld [vmem:[%s375 + $0x150] sm:$0xff]
        %v1447 = vld [vmem:[%s375 + $0x158] sm:$0xff]
        %v1448 = vld [vmem:[%s375 + $0x160] sm:$0xff]
        %v1449 = vld [vmem:[%s375 + $0x168] sm:$0xff]
        %v1450 = vld [vmem:[%s375 + $0x170] sm:$0xff]
        %v1451 = vld [vmem:[%s375 + $0x178] sm:$0xff]
        %v1452 = vld [vmem:[%s375 + $0x180] sm:$0xff]
        %v1453 = vld [vmem:[%s375 + $0x188] sm:$0xff]
        %v1454 = vld [vmem:[%s375 + $0x190] sm:$0xff]
        %v1455 = vld [vmem:[%s375 + $0x198] sm:$0xff]
        %v1456 = vld [vmem:[%s375 + $0x1a0] sm:$0xff]
        %v1457 = vld [vmem:[%s375 + $0x1a8] sm:$0xff]
        %v1458 = vld [vmem:[%s375 + $0x1b0] sm:$0xff]
        %v1459 = vld [vmem:[%s375 + $0x1b8] sm:$0xff]
        %v1460 = vld [vmem:[%s375 + $0x1c0] sm:$0xff]
        %v1461 = vld [vmem:[%s375 + $0x1c8] sm:$0xff]
        %v1462 = vld [vmem:[%s375 + $0x1d0] sm:$0xff]
        %v1463 = vld [vmem:[%s375 + $0x1d8] sm:$0xff]
        %v1464 = vld [vmem:[%s375 + $0x1e0] sm:$0xff]
        %v1465 = vld [vmem:[%s375 + $0x1e8] sm:$0xff]
        %v1466 = vld [vmem:[%s375 + $0x1f0] sm:$0xff]
        %v1467 = vld [vmem:[%s375 + $0x1f8] sm:$0xff]
        %v1532 = vunpack.c.l.b16 %v1404
        %v1533 = vunpack.c.h.b16 %v1404
        %v1534 = vunpack.c.l.b16 %v1405
        %v1535 = vunpack.c.h.b16 %v1405
        %v1536 = vunpack.c.l.b16 %v1406
        %v1537 = vunpack.c.h.b16 %v1406
        %v1538 = vunpack.c.l.b16 %v1407
        %v1539 = vunpack.c.h.b16 %v1407
        %v1540 = vunpack.c.l.b16 %v1408
        %v1541 = vunpack.c.h.b16 %v1408
        %v1542 = vunpack.c.l.b16 %v1409
        %v1543 = vunpack.c.h.b16 %v1409
        %v1544 = vunpack.c.l.b16 %v1410
        %v1545 = vunpack.c.h.b16 %v1410
        %v1546 = vunpack.c.l.b16 %v1411
        %v1547 = vunpack.c.h.b16 %v1411
        %v1548 = vunpack.c.l.b16 %v1412
        %v1549 = vunpack.c.h.b16 %v1412
        %v1550 = vunpack.c.l.b16 %v1413
        %v1551 = vunpack.c.h.b16 %v1413
        %v1552 = vunpack.c.l.b16 %v1414
        %v1553 = vunpack.c.h.b16 %v1414
        %v1554 = vunpack.c.l.b16 %v1415
        %v1555 = vunpack.c.h.b16 %v1415
        %v1556 = vunpack.c.l.b16 %v1416
        %v1557 = vunpack.c.h.b16 %v1416
        %v1558 = vunpack.c.l.b16 %v1417
        %v1559 = vunpack.c.h.b16 %v1417
        %v1560 = vunpack.c.l.b16 %v1418
        %v1561 = vunpack.c.h.b16 %v1418
        %v1562 = vunpack.c.l.b16 %v1419
        %v1563 = vunpack.c.h.b16 %v1419
        %v1564 = vunpack.c.l.b16 %v1420
        %v1565 = vunpack.c.h.b16 %v1420
        %v1566 = vunpack.c.l.b16 %v1421
        %v1567 = vunpack.c.h.b16 %v1421
        %v1568 = vunpack.c.l.b16 %v1422
        %v1569 = vunpack.c.h.b16 %v1422
        %v1570 = vunpack.c.l.b16 %v1423
        %v1571 = vunpack.c.h.b16 %v1423
        %v1572 = vunpack.c.l.b16 %v1424
        %v1573 = vunpack.c.h.b16 %v1424
        %v1574 = vunpack.c.l.b16 %v1425
        %v1575 = vunpack.c.h.b16 %v1425
        %v1576 = vunpack.c.l.b16 %v1426
        %v1577 = vunpack.c.h.b16 %v1426
        %v1578 = vunpack.c.l.b16 %v1427
        %v1579 = vunpack.c.h.b16 %v1427
        %v1580 = vunpack.c.l.b16 %v1428
        %v1581 = vunpack.c.h.b16 %v1428
        %v1582 = vunpack.c.l.b16 %v1429
        %v1583 = vunpack.c.h.b16 %v1429
        %v1584 = vunpack.c.l.b16 %v1430
        %v1585 = vunpack.c.h.b16 %v1430
        %v1586 = vunpack.c.l.b16 %v1431
        %v1587 = vunpack.c.h.b16 %v1431
        %v1588 = vunpack.c.l.b16 %v1432
        %v1589 = vunpack.c.h.b16 %v1432
        %v1590 = vunpack.c.l.b16 %v1433
        %v1591 = vunpack.c.h.b16 %v1433
        %v1592 = vunpack.c.l.b16 %v1434
        %v1593 = vunpack.c.h.b16 %v1434
        %v1594 = vunpack.c.l.b16 %v1435
        %v1595 = vunpack.c.h.b16 %v1435
        %v1596 = vunpack.c.l.b16 %v1436
        %v1597 = vunpack.c.h.b16 %v1436
        %v1598 = vunpack.c.l.b16 %v1437
        %v1599 = vunpack.c.h.b16 %v1437
        %v1600 = vunpack.c.l.b16 %v1438
        %v1601 = vunpack.c.h.b16 %v1438
        %v1602 = vunpack.c.l.b16 %v1439
        %v1603 = vunpack.c.h.b16 %v1439
        %v1604 = vunpack.c.l.b16 %v1440
        %v1605 = vunpack.c.h.b16 %v1440
        %v1606 = vunpack.c.l.b16 %v1441
        %v1607 = vunpack.c.h.b16 %v1441
        %v1608 = vunpack.c.l.b16 %v1442
        %v1609 = vunpack.c.h.b16 %v1442
        %v1610 = vunpack.c.l.b16 %v1443
        %v1611 = vunpack.c.h.b16 %v1443
        %v1612 = vunpack.c.l.b16 %v1444
        %v1613 = vunpack.c.h.b16 %v1444
        %v1614 = vunpack.c.l.b16 %v1445
        %v1615 = vunpack.c.h.b16 %v1445
        %v1616 = vunpack.c.l.b16 %v1446
        %v1617 = vunpack.c.h.b16 %v1446
        %v1618 = vunpack.c.l.b16 %v1447
        %v1619 = vunpack.c.h.b16 %v1447
        %v1620 = vunpack.c.l.b16 %v1448
        %v1621 = vunpack.c.h.b16 %v1448
        %v1622 = vunpack.c.l.b16 %v1449
        %v1623 = vunpack.c.h.b16 %v1449
        %v1624 = vunpack.c.l.b16 %v1450
        %v1625 = vunpack.c.h.b16 %v1450
        %v1626 = vunpack.c.l.b16 %v1451
        %v1627 = vunpack.c.h.b16 %v1451
        %v1628 = vunpack.c.l.b16 %v1452
        %v1629 = vunpack.c.h.b16 %v1452
        %v1630 = vunpack.c.l.b16 %v1453
        %v1631 = vunpack.c.h.b16 %v1453
        %v1632 = vunpack.c.l.b16 %v1454
        %v1633 = vunpack.c.h.b16 %v1454
        %v1634 = vunpack.c.l.b16 %v1455
        %v1635 = vunpack.c.h.b16 %v1455
        %v1636 = vunpack.c.l.b16 %v1456
        %v1637 = vunpack.c.h.b16 %v1456
        %v1638 = vunpack.c.l.b16 %v1457
        %v1639 = vunpack.c.h.b16 %v1457
        %v1640 = vunpack.c.l.b16 %v1458
        %v1641 = vunpack.c.h.b16 %v1458
        %v1642 = vunpack.c.l.b16 %v1459
        %v1643 = vunpack.c.h.b16 %v1459
        %v1644 = vunpack.c.l.b16 %v1460
        %v1645 = vunpack.c.h.b16 %v1460
        %v1646 = vunpack.c.l.b16 %v1461
        %v1647 = vunpack.c.h.b16 %v1461
        %v1648 = vunpack.c.l.b16 %v1462
        %v1649 = vunpack.c.h.b16 %v1462
        %v1650 = vunpack.c.l.b16 %v1463
        %v1651 = vunpack.c.h.b16 %v1463
        %v1652 = vunpack.c.l.b16 %v1464
        %v1653 = vunpack.c.h.b16 %v1464
        %v1654 = vunpack.c.l.b16 %v1465
        %v1655 = vunpack.c.h.b16 %v1465
        %v1656 = vunpack.c.l.b16 %v1466
        %v1657 = vunpack.c.h.b16 %v1466
        %v1658 = vunpack.c.l.b16 %v1467
        %v1659 = vunpack.c.h.b16 %v1467
        %v1660 = vpack.c.b16 %v1536, %v1532
        %v1661 = vpack.c.b16 %v1537, %v1533
        %v1662 = vpack.c.b16 %v1538, %v1534
        %v1663 = vpack.c.b16 %v1539, %v1535
        %v1664 = vpack.c.b16 %v1544, %v1540
        %v1665 = vpack.c.b16 %v1545, %v1541
        %v1666 = vpack.c.b16 %v1546, %v1542
        %v1667 = vpack.c.b16 %v1547, %v1543
        %v1668 = vpack.c.b16 %v1552, %v1548
        %v1669 = vpack.c.b16 %v1553, %v1549
        %v1670 = vpack.c.b16 %v1554, %v1550
        %v1671 = vpack.c.b16 %v1555, %v1551
        %v1672 = vpack.c.b16 %v1560, %v1556
        %v1673 = vpack.c.b16 %v1561, %v1557
        %v1674 = vpack.c.b16 %v1562, %v1558
        %v1675 = vpack.c.b16 %v1563, %v1559
        %v1676 = vpack.c.b16 %v1568, %v1564
        %v1677 = vpack.c.b16 %v1569, %v1565
        %v1678 = vpack.c.b16 %v1570, %v1566
        %v1679 = vpack.c.b16 %v1571, %v1567
        %v1680 = vpack.c.b16 %v1576, %v1572
        %v1681 = vpack.c.b16 %v1577, %v1573
        %v1682 = vpack.c.b16 %v1578, %v1574
        %v1683 = vpack.c.b16 %v1579, %v1575
        %v1684 = vpack.c.b16 %v1584, %v1580
        %v1685 = vpack.c.b16 %v1585, %v1581
        %v1686 = vpack.c.b16 %v1586, %v1582
        %v1687 = vpack.c.b16 %v1587, %v1583
        %v1688 = vpack.c.b16 %v1592, %v1588
        %v1689 = vpack.c.b16 %v1593, %v1589
        %v1690 = vpack.c.b16 %v1594, %v1590
        %v1691 = vpack.c.b16 %v1595, %v1591
        %v1692 = vpack.c.b16 %v1600, %v1596
        %v1693 = vpack.c.b16 %v1601, %v1597
        %v1694 = vpack.c.b16 %v1602, %v1598
        %v1695 = vpack.c.b16 %v1603, %v1599
        %v1696 = vpack.c.b16 %v1608, %v1604
        %v1697 = vpack.c.b16 %v1609, %v1605
        %v1698 = vpack.c.b16 %v1610, %v1606
        %v1699 = vpack.c.b16 %v1611, %v1607
        %v1700 = vpack.c.b16 %v1616, %v1612
        %v1701 = vpack.c.b16 %v1617, %v1613
        %v1702 = vpack.c.b16 %v1618, %v1614
        %v1703 = vpack.c.b16 %v1619, %v1615
        %v1704 = vpack.c.b16 %v1624, %v1620
        %v1705 = vpack.c.b16 %v1625, %v1621
        %v1706 = vpack.c.b16 %v1626, %v1622
        %v1707 = vpack.c.b16 %v1627, %v1623
        %v1708 = vpack.c.b16 %v1632, %v1628
        %v1709 = vpack.c.b16 %v1633, %v1629
        %v1710 = vpack.c.b16 %v1634, %v1630
        %v1711 = vpack.c.b16 %v1635, %v1631
        %v1712 = vpack.c.b16 %v1640, %v1636
        %v1713 = vpack.c.b16 %v1641, %v1637
        %v1714 = vpack.c.b16 %v1642, %v1638
        %v1715 = vpack.c.b16 %v1643, %v1639
        %v1716 = vpack.c.b16 %v1648, %v1644
        %v1717 = vpack.c.b16 %v1649, %v1645
        %v1718 = vpack.c.b16 %v1650, %v1646
        %v1719 = vpack.c.b16 %v1651, %v1647
        %v1720 = vpack.c.b16 %v1656, %v1652
        %v1721 = vpack.c.b16 %v1657, %v1653
        %v1722 = vpack.c.b16 %v1658, %v1654
        %v1723 = vpack.c.b16 %v1659, %v1655
        %1788 = vmatprep.subr.bf16.mxu0 %v1689
        %1789 = vmatpush1.bf16.msra.mxu0 %v1688
        %1790 = vmatprep.subr.bf16.mxu0 %v1685
        %1791 = vmatpush1.bf16.msra.mxu0 %v1684
        %1792 = vmatprep.subr.bf16.mxu0 %v1681
        %1793 = vmatpush1.bf16.msra.mxu0 %v1680
        %1794 = vmatprep.subr.bf16.mxu0 %v1677
        %1795 = vmatpush1.bf16.msra.mxu0 %v1676
        %1796 = vmatprep.subr.bf16.mxu0 %v1673
        %1797 = vmatpush1.bf16.msra.mxu0 %v1672
        %1798 = vmatprep.subr.bf16.mxu0 %v1669
        %1799 = vmatpush1.bf16.msra.mxu0 %v1668
        %1800 = vmatprep.subr.bf16.mxu0 %v1665
        %1801 = vmatpush1.bf16.msra.mxu0 %v1664
        %1802 = vmatprep.subr.bf16.mxu0 %v1661
        %1803 = vmatpush1.bf16.msra.mxu0 %v1660
        %1804 = vmatprep.subr.bf16.mxu0 %v1721
        %1805 = vmatpush2.bf16.msra.mxu0 %v1720
        %1806 = vmatprep.subr.bf16.mxu0 %v1717
        %1807 = vmatpush2.bf16.msra.mxu0 %v1716
        %1808 = vmatprep.subr.bf16.mxu0 %v1713
        %1809 = vmatpush2.bf16.msra.mxu0 %v1712
        %1810 = vmatprep.subr.bf16.mxu0 %v1709
        %1811 = vmatpush2.bf16.msra.mxu0 %v1708
        %1812 = vmatprep.subr.bf16.mxu0 %v1705
        %1813 = vmatpush2.bf16.msra.mxu0 %v1704
        %1814 = vmatprep.subr.bf16.mxu0 %v1701
        %1815 = vmatpush2.bf16.msra.mxu0 %v1700
        %1816 = vmatprep.subr.bf16.mxu0 %v1697
        %1817 = vmatpush2.bf16.msra.mxu0 %v1696
        %1818 = vmatprep.subr.bf16.mxu0 %v1693
        %1819 = vmatpush2.bf16.msra.mxu0 %v1692
        %1820 = vmatprep.mubr.bf16.mxu0 %v1403
        %1821 = vmatmul.mubr.bf16.gmra.mxu0 %v1402
        %v1822 = vpop.f32.mrf.mxu0
        %v1823 = vadd.f32 0.0, %v1822
        %v1824 = vpop.f32.mrf.mxu0
        %v1825 = vadd.f32 0.0, %v1824
        %v1826 = vpop.f32.mrf.mxu0
        %v1827 = vpop.f32.mrf.mxu0
        %1828 = vdwg.mxu0
        %1829 = vmatprep.subr.bf16.mxu0 %v1691
        %1830 = vmatpush1.bf16.msra.mxu0 %v1690
        %1831 = vmatprep.subr.bf16.mxu0 %v1687
        %1832 = vmatpush1.bf16.msra.mxu0 %v1686
        %1833 = vmatprep.subr.bf16.mxu0 %v1683
        %1834 = vmatpush1.bf16.msra.mxu0 %v1682
        %1835 = vmatprep.subr.bf16.mxu0 %v1679
        %1836 = vmatpush1.bf16.msra.mxu0 %v1678
        %1837 = vmatprep.subr.bf16.mxu0 %v1675
        %1838 = vmatpush1.bf16.msra.mxu0 %v1674
        %1839 = vmatprep.subr.bf16.mxu0 %v1671
        %1840 = vmatpush1.bf16.msra.mxu0 %v1670
        %1841 = vmatprep.subr.bf16.mxu0 %v1667
        %1842 = vmatpush1.bf16.msra.mxu0 %v1666
        %1843 = vmatprep.subr.bf16.mxu0 %v1663
        %1844 = vmatpush1.bf16.msra.mxu0 %v1662
        %1845 = vmatprep.subr.bf16.mxu0 %v1723
        %1846 = vmatpush2.bf16.msra.mxu0 %v1722
        %1847 = vmatprep.subr.bf16.mxu0 %v1719
        %1848 = vmatpush2.bf16.msra.mxu0 %v1718
        %1849 = vmatprep.subr.bf16.mxu0 %v1715
        %1850 = vmatpush2.bf16.msra.mxu0 %v1714
        %1851 = vmatprep.subr.bf16.mxu0 %v1711
        %1852 = vmatpush2.bf16.msra.mxu0 %v1710
        %1853 = vmatprep.subr.bf16.mxu0 %v1707
        %1854 = vmatpush2.bf16.msra.mxu0 %v1706
        %1855 = vmatprep.subr.bf16.mxu0 %v1703
        %1856 = vmatpush2.bf16.msra.mxu0 %v1702
        %1857 = vmatprep.subr.bf16.mxu0 %v1699
        %1858 = vmatpush2.bf16.msra.mxu0 %v1698
        %1859 = vmatprep.subr.bf16.mxu0 %v1695
        %1860 = vmatpush2.bf16.msra.mxu0 %v1694
        %1861 = vmatprep.mubr.bf16.mxu0 %v1403
        %1862 = vmatmul.mubr.bf16.gmra.mxu0 %v1402
        %v1863 = vpop.f32.mrf.mxu0
        %v1864 = vadd.f32 0.0, %v1863
        %v1865 = vpop.f32.mrf.mxu0
        %v1866 = vadd.f32 0.0, %v1865
        %v1867 = vpop.f32.mrf.mxu0
        %v1868 = vpop.f32.mrf.mxu0
        %1869 = vdwg.mxu0
        %v1874 = vunpack.c.l.b16 %v1142
        %v1875 = vunpack.c.h.b16 %v1142
        %v1876 = vunpack.c.l.b16 %v1143
        %v1877 = vunpack.c.h.b16 %v1143
        %v1878 = vunpack.c.l.b16 %v1144
        %v1879 = vunpack.c.h.b16 %v1144
        %v1880 = vunpack.c.l.b16 %v1145
        %v1881 = vunpack.c.h.b16 %v1145
        %v1882 = vpack.c.b16 %v1874, %v1874
        %v1883 = vpack.c.b16 %v1875, %v1875
        %v1884 = vpack.c.b16 %v1876, %v1876
        %v1885 = vpack.c.b16 %v1877, %v1877
        %v1886 = vpack.c.b16 %v1878, %v1878
        %v1887 = vpack.c.b16 %v1879, %v1879
        %v1888 = vpack.c.b16 %v1880, %v1880
        %v1889 = vpack.c.b16 %v1881, %v1881
        %v2154 = vunpack.c.l.b16 %v1146
        %v2155 = vunpack.c.h.b16 %v1146
        %v2156 = vunpack.c.l.b16 %v1147
        %v2157 = vunpack.c.h.b16 %v1147
        %v2158 = vunpack.c.l.b16 %v1148
        %v2159 = vunpack.c.h.b16 %v1148
        %v2160 = vunpack.c.l.b16 %v1149
        %v2161 = vunpack.c.h.b16 %v1149
        %v2162 = vunpack.c.l.b16 %v1150
        %v2163 = vunpack.c.h.b16 %v1150
        %v2164 = vunpack.c.l.b16 %v1151
        %v2165 = vunpack.c.h.b16 %v1151
        %v2166 = vunpack.c.l.b16 %v1152
        %v2167 = vunpack.c.h.b16 %v1152
        %v2168 = vunpack.c.l.b16 %v1153
        %v2169 = vunpack.c.h.b16 %v1153
        %v2170 = vunpack.c.l.b16 %v1154
        %v2171 = vunpack.c.h.b16 %v1154
        %v2172 = vunpack.c.l.b16 %v1155
        %v2173 = vunpack.c.h.b16 %v1155
        %v2174 = vunpack.c.l.b16 %v1156
        %v2175 = vunpack.c.h.b16 %v1156
        %v2176 = vunpack.c.l.b16 %v1157
        %v2177 = vunpack.c.h.b16 %v1157
        %v2178 = vunpack.c.l.b16 %v1158
        %v2179 = vunpack.c.h.b16 %v1158
        %v2180 = vunpack.c.l.b16 %v1159
        %v2181 = vunpack.c.h.b16 %v1159
        %v2182 = vunpack.c.l.b16 %v1160
        %v2183 = vunpack.c.h.b16 %v1160
        %v2184 = vunpack.c.l.b16 %v1161
        %v2185 = vunpack.c.h.b16 %v1161
        %v2186 = vunpack.c.l.b16 %v1162
        %v2187 = vunpack.c.h.b16 %v1162
        %v2188 = vunpack.c.l.b16 %v1163
        %v2189 = vunpack.c.h.b16 %v1163
        %v2190 = vunpack.c.l.b16 %v1164
        %v2191 = vunpack.c.h.b16 %v1164
        %v2192 = vunpack.c.l.b16 %v1165
        %v2193 = vunpack.c.h.b16 %v1165
        %v2194 = vunpack.c.l.b16 %v1166
        %v2195 = vunpack.c.h.b16 %v1166
        %v2196 = vunpack.c.l.b16 %v1167
        %v2197 = vunpack.c.h.b16 %v1167
        %v2198 = vunpack.c.l.b16 %v1168
        %v2199 = vunpack.c.h.b16 %v1168
        %v2200 = vunpack.c.l.b16 %v1169
        %v2201 = vunpack.c.h.b16 %v1169
        %v2202 = vunpack.c.l.b16 %v1170
        %v2203 = vunpack.c.h.b16 %v1170
        %v2204 = vunpack.c.l.b16 %v1171
        %v2205 = vunpack.c.h.b16 %v1171
        %v2206 = vunpack.c.l.b16 %v1172
        %v2207 = vunpack.c.h.b16 %v1172
        %v2208 = vunpack.c.l.b16 %v1173
        %v2209 = vunpack.c.h.b16 %v1173
        %v2210 = vunpack.c.l.b16 %v1174
        %v2211 = vunpack.c.h.b16 %v1174
        %v2212 = vunpack.c.l.b16 %v1175
        %v2213 = vunpack.c.h.b16 %v1175
        %v2214 = vunpack.c.l.b16 %v1176
        %v2215 = vunpack.c.h.b16 %v1176
        %v2216 = vunpack.c.l.b16 %v1177
        %v2217 = vunpack.c.h.b16 %v1177
        %v2218 = vunpack.c.l.b16 %v1178
        %v2219 = vunpack.c.h.b16 %v1178
        %v2220 = vunpack.c.l.b16 %v1179
        %v2221 = vunpack.c.h.b16 %v1179
        %v2222 = vunpack.c.l.b16 %v1180
        %v2223 = vunpack.c.h.b16 %v1180
        %v2224 = vunpack.c.l.b16 %v1181
        %v2225 = vunpack.c.h.b16 %v1181
        %v2226 = vunpack.c.l.b16 %v1182
        %v2227 = vunpack.c.h.b16 %v1182
        %v2228 = vunpack.c.l.b16 %v1183
        %v2229 = vunpack.c.h.b16 %v1183
        %v2230 = vunpack.c.l.b16 %v1184
        %v2231 = vunpack.c.h.b16 %v1184
        %v2232 = vunpack.c.l.b16 %v1185
        %v2233 = vunpack.c.h.b16 %v1185
        %v2234 = vunpack.c.l.b16 %v1186
        %v2235 = vunpack.c.h.b16 %v1186
        %v2236 = vunpack.c.l.b16 %v1187
        %v2237 = vunpack.c.h.b16 %v1187
        %v2238 = vunpack.c.l.b16 %v1188
        %v2239 = vunpack.c.h.b16 %v1188
        %v2240 = vunpack.c.l.b16 %v1189
        %v2241 = vunpack.c.h.b16 %v1189
        %v2242 = vunpack.c.l.b16 %v1190
        %v2243 = vunpack.c.h.b16 %v1190
        %v2244 = vunpack.c.l.b16 %v1191
        %v2245 = vunpack.c.h.b16 %v1191
        %v2246 = vunpack.c.l.b16 %v1192
        %v2247 = vunpack.c.h.b16 %v1192
        %v2248 = vunpack.c.l.b16 %v1193
        %v2249 = vunpack.c.h.b16 %v1193
        %v2250 = vunpack.c.l.b16 %v1194
        %v2251 = vunpack.c.h.b16 %v1194
        %v2252 = vunpack.c.l.b16 %v1195
        %v2253 = vunpack.c.h.b16 %v1195
        %v2254 = vunpack.c.l.b16 %v1196
        %v2255 = vunpack.c.h.b16 %v1196
        %v2256 = vunpack.c.l.b16 %v1197
        %v2257 = vunpack.c.h.b16 %v1197
        %v2258 = vunpack.c.l.b16 %v1198
        %v2259 = vunpack.c.h.b16 %v1198
        %v2260 = vunpack.c.l.b16 %v1199
        %v2261 = vunpack.c.h.b16 %v1199
        %v2262 = vunpack.c.l.b16 %v1200
        %v2263 = vunpack.c.h.b16 %v1200
        %v2264 = vunpack.c.l.b16 %v1201
        %v2265 = vunpack.c.h.b16 %v1201
        %v2266 = vunpack.c.l.b16 %v1202
        %v2267 = vunpack.c.h.b16 %v1202
        %v2268 = vunpack.c.l.b16 %v1203
        %v2269 = vunpack.c.h.b16 %v1203
        %v2270 = vunpack.c.l.b16 %v1204
        %v2271 = vunpack.c.h.b16 %v1204
        %v2272 = vunpack.c.l.b16 %v1205
        %v2273 = vunpack.c.h.b16 %v1205
        %v2274 = vunpack.c.l.b16 %v1206
        %v2275 = vunpack.c.h.b16 %v1206
        %v2276 = vunpack.c.l.b16 %v1207
        %v2277 = vunpack.c.h.b16 %v1207
        %v2278 = vunpack.c.l.b16 %v1208
        %v2279 = vunpack.c.h.b16 %v1208
        %v2280 = vunpack.c.l.b16 %v1209
        %v2281 = vunpack.c.h.b16 %v1209
        %v2282 = vunpack.c.l.b16 %v1210
        %v2283 = vunpack.c.h.b16 %v1210
        %v2284 = vunpack.c.l.b16 %v1211
        %v2285 = vunpack.c.h.b16 %v1211
        %v2286 = vunpack.c.l.b16 %v1212
        %v2287 = vunpack.c.h.b16 %v1212
        %v2288 = vunpack.c.l.b16 %v1213
        %v2289 = vunpack.c.h.b16 %v1213
        %v2290 = vunpack.c.l.b16 %v1214
        %v2291 = vunpack.c.h.b16 %v1214
        %v2292 = vunpack.c.l.b16 %v1215
        %v2293 = vunpack.c.h.b16 %v1215
        %v2294 = vunpack.c.l.b16 %v1216
        %v2295 = vunpack.c.h.b16 %v1216
        %v2296 = vunpack.c.l.b16 %v1217
        %v2297 = vunpack.c.h.b16 %v1217
        %v2298 = vunpack.c.l.b16 %v1218
        %v2299 = vunpack.c.h.b16 %v1218
        %v2300 = vunpack.c.l.b16 %v1219
        %v2301 = vunpack.c.h.b16 %v1219
        %v2302 = vunpack.c.l.b16 %v1220
        %v2303 = vunpack.c.h.b16 %v1220
        %v2304 = vunpack.c.l.b16 %v1221
        %v2305 = vunpack.c.h.b16 %v1221
        %v2306 = vunpack.c.l.b16 %v1222
        %v2307 = vunpack.c.h.b16 %v1222
        %v2308 = vunpack.c.l.b16 %v1223
        %v2309 = vunpack.c.h.b16 %v1223
        %v2310 = vunpack.c.l.b16 %v1224
        %v2311 = vunpack.c.h.b16 %v1224
        %v2312 = vunpack.c.l.b16 %v1225
        %v2313 = vunpack.c.h.b16 %v1225
        %v2314 = vunpack.c.l.b16 %v1226
        %v2315 = vunpack.c.h.b16 %v1226
        %v2316 = vunpack.c.l.b16 %v1227
        %v2317 = vunpack.c.h.b16 %v1227
        %v2318 = vunpack.c.l.b16 %v1228
        %v2319 = vunpack.c.h.b16 %v1228
        %v2320 = vunpack.c.l.b16 %v1229
        %v2321 = vunpack.c.h.b16 %v1229
        %v2322 = vunpack.c.l.b16 %v1230
        %v2323 = vunpack.c.h.b16 %v1230
        %v2324 = vunpack.c.l.b16 %v1231
        %v2325 = vunpack.c.h.b16 %v1231
        %v2326 = vunpack.c.l.b16 %v1232
        %v2327 = vunpack.c.h.b16 %v1232
        %v2328 = vunpack.c.l.b16 %v1233
        %v2329 = vunpack.c.h.b16 %v1233
        %v2330 = vunpack.c.l.b16 %v1234
        %v2331 = vunpack.c.h.b16 %v1234
        %v2332 = vunpack.c.l.b16 %v1235
        %v2333 = vunpack.c.h.b16 %v1235
        %v2334 = vunpack.c.l.b16 %v1236
        %v2335 = vunpack.c.h.b16 %v1236
        %v2336 = vunpack.c.l.b16 %v1237
        %v2337 = vunpack.c.h.b16 %v1237
        %v2338 = vunpack.c.l.b16 %v1238
        %v2339 = vunpack.c.h.b16 %v1238
        %v2340 = vunpack.c.l.b16 %v1239
        %v2341 = vunpack.c.h.b16 %v1239
        %v2342 = vunpack.c.l.b16 %v1240
        %v2343 = vunpack.c.h.b16 %v1240
        %v2344 = vunpack.c.l.b16 %v1241
        %v2345 = vunpack.c.h.b16 %v1241
        %v2346 = vunpack.c.l.b16 %v1242
        %v2347 = vunpack.c.h.b16 %v1242
        %v2348 = vunpack.c.l.b16 %v1243
        %v2349 = vunpack.c.h.b16 %v1243
        %v2350 = vunpack.c.l.b16 %v1244
        %v2351 = vunpack.c.h.b16 %v1244
        %v2352 = vunpack.c.l.b16 %v1245
        %v2353 = vunpack.c.h.b16 %v1245
        %v2354 = vunpack.c.l.b16 %v1246
        %v2355 = vunpack.c.h.b16 %v1246
        %v2356 = vunpack.c.l.b16 %v1247
        %v2357 = vunpack.c.h.b16 %v1247
        %v2358 = vunpack.c.l.b16 %v1248
        %v2359 = vunpack.c.h.b16 %v1248
        %v2360 = vunpack.c.l.b16 %v1249
        %v2361 = vunpack.c.h.b16 %v1249
        %v2362 = vunpack.c.l.b16 %v1250
        %v2363 = vunpack.c.h.b16 %v1250
        %v2364 = vunpack.c.l.b16 %v1251
        %v2365 = vunpack.c.h.b16 %v1251
        %v2366 = vunpack.c.l.b16 %v1252
        %v2367 = vunpack.c.h.b16 %v1252
        %v2368 = vunpack.c.l.b16 %v1253
        %v2369 = vunpack.c.h.b16 %v1253
        %v2370 = vunpack.c.l.b16 %v1254
        %v2371 = vunpack.c.h.b16 %v1254
        %v2372 = vunpack.c.l.b16 %v1255
        %v2373 = vunpack.c.h.b16 %v1255
        %v2374 = vunpack.c.l.b16 %v1256
        %v2375 = vunpack.c.h.b16 %v1256
        %v2376 = vunpack.c.l.b16 %v1257
        %v2377 = vunpack.c.h.b16 %v1257
        %v2378 = vunpack.c.l.b16 %v1258
        %v2379 = vunpack.c.h.b16 %v1258
        %v2380 = vunpack.c.l.b16 %v1259
        %v2381 = vunpack.c.h.b16 %v1259
        %v2382 = vunpack.c.l.b16 %v1260
        %v2383 = vunpack.c.h.b16 %v1260
        %v2384 = vunpack.c.l.b16 %v1261
        %v2385 = vunpack.c.h.b16 %v1261
        %v2386 = vunpack.c.l.b16 %v1262
        %v2387 = vunpack.c.h.b16 %v1262
        %v2388 = vunpack.c.l.b16 %v1263
        %v2389 = vunpack.c.h.b16 %v1263
        %v2390 = vunpack.c.l.b16 %v1264
        %v2391 = vunpack.c.h.b16 %v1264
        %v2392 = vunpack.c.l.b16 %v1265
        %v2393 = vunpack.c.h.b16 %v1265
        %v2394 = vunpack.c.l.b16 %v1266
        %v2395 = vunpack.c.h.b16 %v1266
        %v2396 = vunpack.c.l.b16 %v1267
        %v2397 = vunpack.c.h.b16 %v1267
        %v2398 = vunpack.c.l.b16 %v1268
        %v2399 = vunpack.c.h.b16 %v1268
        %v2400 = vunpack.c.l.b16 %v1269
        %v2401 = vunpack.c.h.b16 %v1269
        %v2402 = vunpack.c.l.b16 %v1270
        %v2403 = vunpack.c.h.b16 %v1270
        %v2404 = vunpack.c.l.b16 %v1271
        %v2405 = vunpack.c.h.b16 %v1271
        %v2406 = vunpack.c.l.b16 %v1272
        %v2407 = vunpack.c.h.b16 %v1272
        %v2408 = vunpack.c.l.b16 %v1273
        %v2409 = vunpack.c.h.b16 %v1273
        %v2410 = vunpack.c.l.b16 %v1274
        %v2411 = vunpack.c.h.b16 %v1274
        %v2412 = vunpack.c.l.b16 %v1275
        %v2413 = vunpack.c.h.b16 %v1275
        %v2414 = vunpack.c.l.b16 %v1276
        %v2415 = vunpack.c.h.b16 %v1276
        %v2416 = vunpack.c.l.b16 %v1277
        %v2417 = vunpack.c.h.b16 %v1277
        %v2418 = vunpack.c.l.b16 %v1278
        %v2419 = vunpack.c.h.b16 %v1278
        %v2420 = vunpack.c.l.b16 %v1279
        %v2421 = vunpack.c.h.b16 %v1279
        %v2422 = vunpack.c.l.b16 %v1280
        %v2423 = vunpack.c.h.b16 %v1280
        %v2424 = vunpack.c.l.b16 %v1281
        %v2425 = vunpack.c.h.b16 %v1281
        %v2426 = vunpack.c.l.b16 %v1282
        %v2427 = vunpack.c.h.b16 %v1282
        %v2428 = vunpack.c.l.b16 %v1283
        %v2429 = vunpack.c.h.b16 %v1283
        %v2430 = vunpack.c.l.b16 %v1284
        %v2431 = vunpack.c.h.b16 %v1284
        %v2432 = vunpack.c.l.b16 %v1285
        %v2433 = vunpack.c.h.b16 %v1285
        %v2434 = vunpack.c.l.b16 %v1286
        %v2435 = vunpack.c.h.b16 %v1286
        %v2436 = vunpack.c.l.b16 %v1287
        %v2437 = vunpack.c.h.b16 %v1287
        %v2438 = vunpack.c.l.b16 %v1288
        %v2439 = vunpack.c.h.b16 %v1288
        %v2440 = vunpack.c.l.b16 %v1289
        %v2441 = vunpack.c.h.b16 %v1289
        %v2442 = vunpack.c.l.b16 %v1290
        %v2443 = vunpack.c.h.b16 %v1290
        %v2444 = vunpack.c.l.b16 %v1291
        %v2445 = vunpack.c.h.b16 %v1291
        %v2446 = vunpack.c.l.b16 %v1292
        %v2447 = vunpack.c.h.b16 %v1292
        %v2448 = vunpack.c.l.b16 %v1293
        %v2449 = vunpack.c.h.b16 %v1293
        %v2450 = vunpack.c.l.b16 %v1294
        %v2451 = vunpack.c.h.b16 %v1294
        %v2452 = vunpack.c.l.b16 %v1295
        %v2453 = vunpack.c.h.b16 %v1295
        %v2454 = vunpack.c.l.b16 %v1296
        %v2455 = vunpack.c.h.b16 %v1296
        %v2456 = vunpack.c.l.b16 %v1297
        %v2457 = vunpack.c.h.b16 %v1297
        %v2458 = vunpack.c.l.b16 %v1298
        %v2459 = vunpack.c.h.b16 %v1298
        %v2460 = vunpack.c.l.b16 %v1299
        %v2461 = vunpack.c.h.b16 %v1299
        %v2462 = vunpack.c.l.b16 %v1300
        %v2463 = vunpack.c.h.b16 %v1300
        %v2464 = vunpack.c.l.b16 %v1301
        %v2465 = vunpack.c.h.b16 %v1301
        %v2466 = vunpack.c.l.b16 %v1302
        %v2467 = vunpack.c.h.b16 %v1302
        %v2468 = vunpack.c.l.b16 %v1303
        %v2469 = vunpack.c.h.b16 %v1303
        %v2470 = vunpack.c.l.b16 %v1304
        %v2471 = vunpack.c.h.b16 %v1304
        %v2472 = vunpack.c.l.b16 %v1305
        %v2473 = vunpack.c.h.b16 %v1305
        %v2474 = vunpack.c.l.b16 %v1306
        %v2475 = vunpack.c.h.b16 %v1306
        %v2476 = vunpack.c.l.b16 %v1307
        %v2477 = vunpack.c.h.b16 %v1307
        %v2478 = vunpack.c.l.b16 %v1308
        %v2479 = vunpack.c.h.b16 %v1308
        %v2480 = vunpack.c.l.b16 %v1309
        %v2481 = vunpack.c.h.b16 %v1309
        %v2482 = vunpack.c.l.b16 %v1310
        %v2483 = vunpack.c.h.b16 %v1310
        %v2484 = vunpack.c.l.b16 %v1311
        %v2485 = vunpack.c.h.b16 %v1311
        %v2486 = vunpack.c.l.b16 %v1312
        %v2487 = vunpack.c.h.b16 %v1312
        %v2488 = vunpack.c.l.b16 %v1313
        %v2489 = vunpack.c.h.b16 %v1313
        %v2490 = vunpack.c.l.b16 %v1314
        %v2491 = vunpack.c.h.b16 %v1314
        %v2492 = vunpack.c.l.b16 %v1315
        %v2493 = vunpack.c.h.b16 %v1315
        %v2494 = vunpack.c.l.b16 %v1316
        %v2495 = vunpack.c.h.b16 %v1316
        %v2496 = vunpack.c.l.b16 %v1317
        %v2497 = vunpack.c.h.b16 %v1317
        %v2498 = vunpack.c.l.b16 %v1318
        %v2499 = vunpack.c.h.b16 %v1318
        %v2500 = vunpack.c.l.b16 %v1319
        %v2501 = vunpack.c.h.b16 %v1319
        %v2502 = vunpack.c.l.b16 %v1320
        %v2503 = vunpack.c.h.b16 %v1320
        %v2504 = vunpack.c.l.b16 %v1321
        %v2505 = vunpack.c.h.b16 %v1321
        %v2506 = vunpack.c.l.b16 %v1322
        %v2507 = vunpack.c.h.b16 %v1322
        %v2508 = vunpack.c.l.b16 %v1323
        %v2509 = vunpack.c.h.b16 %v1323
        %v2510 = vunpack.c.l.b16 %v1324
        %v2511 = vunpack.c.h.b16 %v1324
        %v2512 = vunpack.c.l.b16 %v1325
        %v2513 = vunpack.c.h.b16 %v1325
        %v2514 = vunpack.c.l.b16 %v1326
        %v2515 = vunpack.c.h.b16 %v1326
        %v2516 = vunpack.c.l.b16 %v1327
        %v2517 = vunpack.c.h.b16 %v1327
        %v2518 = vunpack.c.l.b16 %v1328
        %v2519 = vunpack.c.h.b16 %v1328
        %v2520 = vunpack.c.l.b16 %v1329
        %v2521 = vunpack.c.h.b16 %v1329
        %v2522 = vunpack.c.l.b16 %v1330
        %v2523 = vunpack.c.h.b16 %v1330
        %v2524 = vunpack.c.l.b16 %v1331
        %v2525 = vunpack.c.h.b16 %v1331
        %v2526 = vunpack.c.l.b16 %v1332
        %v2527 = vunpack.c.h.b16 %v1332
        %v2528 = vunpack.c.l.b16 %v1333
        %v2529 = vunpack.c.h.b16 %v1333
        %v2530 = vunpack.c.l.b16 %v1334
        %v2531 = vunpack.c.h.b16 %v1334
        %v2532 = vunpack.c.l.b16 %v1335
        %v2533 = vunpack.c.h.b16 %v1335
        %v2534 = vunpack.c.l.b16 %v1336
        %v2535 = vunpack.c.h.b16 %v1336
        %v2536 = vunpack.c.l.b16 %v1337
        %v2537 = vunpack.c.h.b16 %v1337
        %v2538 = vunpack.c.l.b16 %v1338
        %v2539 = vunpack.c.h.b16 %v1338
        %v2540 = vunpack.c.l.b16 %v1339
        %v2541 = vunpack.c.h.b16 %v1339
        %v2542 = vunpack.c.l.b16 %v1340
        %v2543 = vunpack.c.h.b16 %v1340
        %v2544 = vunpack.c.l.b16 %v1341
        %v2545 = vunpack.c.h.b16 %v1341
        %v2546 = vunpack.c.l.b16 %v1342
        %v2547 = vunpack.c.h.b16 %v1342
        %v2548 = vunpack.c.l.b16 %v1343
        %v2549 = vunpack.c.h.b16 %v1343
        %v2550 = vunpack.c.l.b16 %v1344
        %v2551 = vunpack.c.h.b16 %v1344
        %v2552 = vunpack.c.l.b16 %v1345
        %v2553 = vunpack.c.h.b16 %v1345
        %v2554 = vunpack.c.l.b16 %v1346
        %v2555 = vunpack.c.h.b16 %v1346
        %v2556 = vunpack.c.l.b16 %v1347
        %v2557 = vunpack.c.h.b16 %v1347
        %v2558 = vunpack.c.l.b16 %v1348
        %v2559 = vunpack.c.h.b16 %v1348
        %v2560 = vunpack.c.l.b16 %v1349
        %v2561 = vunpack.c.h.b16 %v1349
        %v2562 = vunpack.c.l.b16 %v1350
        %v2563 = vunpack.c.h.b16 %v1350
        %v2564 = vunpack.c.l.b16 %v1351
        %v2565 = vunpack.c.h.b16 %v1351
        %v2566 = vunpack.c.l.b16 %v1352
        %v2567 = vunpack.c.h.b16 %v1352
        %v2568 = vunpack.c.l.b16 %v1353
        %v2569 = vunpack.c.h.b16 %v1353
        %v2570 = vunpack.c.l.b16 %v1354
        %v2571 = vunpack.c.h.b16 %v1354
        %v2572 = vunpack.c.l.b16 %v1355
        %v2573 = vunpack.c.h.b16 %v1355
        %v2574 = vunpack.c.l.b16 %v1356
        %v2575 = vunpack.c.h.b16 %v1356
        %v2576 = vunpack.c.l.b16 %v1357
        %v2577 = vunpack.c.h.b16 %v1357
        %v2578 = vunpack.c.l.b16 %v1358
        %v2579 = vunpack.c.h.b16 %v1358
        %v2580 = vunpack.c.l.b16 %v1359
        %v2581 = vunpack.c.h.b16 %v1359
        %v2582 = vunpack.c.l.b16 %v1360
        %v2583 = vunpack.c.h.b16 %v1360
        %v2584 = vunpack.c.l.b16 %v1361
        %v2585 = vunpack.c.h.b16 %v1361
        %v2586 = vunpack.c.l.b16 %v1362
        %v2587 = vunpack.c.h.b16 %v1362
        %v2588 = vunpack.c.l.b16 %v1363
        %v2589 = vunpack.c.h.b16 %v1363
        %v2590 = vunpack.c.l.b16 %v1364
        %v2591 = vunpack.c.h.b16 %v1364
        %v2592 = vunpack.c.l.b16 %v1365
        %v2593 = vunpack.c.h.b16 %v1365
        %v2594 = vunpack.c.l.b16 %v1366
        %v2595 = vunpack.c.h.b16 %v1366
        %v2596 = vunpack.c.l.b16 %v1367
        %v2597 = vunpack.c.h.b16 %v1367
        %v2598 = vunpack.c.l.b16 %v1368
        %v2599 = vunpack.c.h.b16 %v1368
        %v2600 = vunpack.c.l.b16 %v1369
        %v2601 = vunpack.c.h.b16 %v1369
        %v2602 = vunpack.c.l.b16 %v1370
        %v2603 = vunpack.c.h.b16 %v1370
        %v2604 = vunpack.c.l.b16 %v1371
        %v2605 = vunpack.c.h.b16 %v1371
        %v2606 = vunpack.c.l.b16 %v1372
        %v2607 = vunpack.c.h.b16 %v1372
        %v2608 = vunpack.c.l.b16 %v1373
        %v2609 = vunpack.c.h.b16 %v1373
        %v2610 = vunpack.c.l.b16 %v1374
        %v2611 = vunpack.c.h.b16 %v1374
        %v2612 = vunpack.c.l.b16 %v1375
        %v2613 = vunpack.c.h.b16 %v1375
        %v2614 = vunpack.c.l.b16 %v1376
        %v2615 = vunpack.c.h.b16 %v1376
        %v2616 = vunpack.c.l.b16 %v1377
        %v2617 = vunpack.c.h.b16 %v1377
        %v2618 = vunpack.c.l.b16 %v1378
        %v2619 = vunpack.c.h.b16 %v1378
        %v2620 = vunpack.c.l.b16 %v1379
        %v2621 = vunpack.c.h.b16 %v1379
        %v2622 = vunpack.c.l.b16 %v1380
        %v2623 = vunpack.c.h.b16 %v1380
        %v2624 = vunpack.c.l.b16 %v1381
        %v2625 = vunpack.c.h.b16 %v1381
        %v2626 = vunpack.c.l.b16 %v1382
        %v2627 = vunpack.c.h.b16 %v1382
        %v2628 = vunpack.c.l.b16 %v1383
        %v2629 = vunpack.c.h.b16 %v1383
        %v2630 = vunpack.c.l.b16 %v1384
        %v2631 = vunpack.c.h.b16 %v1384
        %v2632 = vunpack.c.l.b16 %v1385
        %v2633 = vunpack.c.h.b16 %v1385
        %v2634 = vunpack.c.l.b16 %v1386
        %v2635 = vunpack.c.h.b16 %v1386
        %v2636 = vunpack.c.l.b16 %v1387
        %v2637 = vunpack.c.h.b16 %v1387
        %v2638 = vunpack.c.l.b16 %v1388
        %v2639 = vunpack.c.h.b16 %v1388
        %v2640 = vunpack.c.l.b16 %v1389
        %v2641 = vunpack.c.h.b16 %v1389
        %v2642 = vunpack.c.l.b16 %v1390
        %v2643 = vunpack.c.h.b16 %v1390
        %v2644 = vunpack.c.l.b16 %v1391
        %v2645 = vunpack.c.h.b16 %v1391
        %v2646 = vunpack.c.l.b16 %v1392
        %v2647 = vunpack.c.h.b16 %v1392
        %v2648 = vunpack.c.l.b16 %v1393
        %v2649 = vunpack.c.h.b16 %v1393
        %v2650 = vunpack.c.l.b16 %v1394
        %v2651 = vunpack.c.h.b16 %v1394
        %v2652 = vunpack.c.l.b16 %v1395
        %v2653 = vunpack.c.h.b16 %v1395
        %v2654 = vunpack.c.l.b16 %v1396
        %v2655 = vunpack.c.h.b16 %v1396
        %v2656 = vunpack.c.l.b16 %v1397
        %v2657 = vunpack.c.h.b16 %v1397
        %v2658 = vunpack.c.l.b16 %v1398
        %v2659 = vunpack.c.h.b16 %v1398
        %v2660 = vunpack.c.l.b16 %v1399
        %v2661 = vunpack.c.h.b16 %v1399
        %v2662 = vunpack.c.l.b16 %v1400
        %v2663 = vunpack.c.h.b16 %v1400
        %v2664 = vunpack.c.l.b16 %v1401
        %v2665 = vunpack.c.h.b16 %v1401
        %v2666 = vpack.c.b16 %v2158, %v2154
        %v2667 = vpack.c.b16 %v2159, %v2155
        %v2668 = vpack.c.b16 %v2160, %v2156
        %v2669 = vpack.c.b16 %v2161, %v2157
        %v2670 = vpack.c.b16 %v2166, %v2162
        %v2671 = vpack.c.b16 %v2167, %v2163
        %v2672 = vpack.c.b16 %v2168, %v2164
        %v2673 = vpack.c.b16 %v2169, %v2165
        %v2674 = vpack.c.b16 %v2174, %v2170
        %v2675 = vpack.c.b16 %v2175, %v2171
        %v2676 = vpack.c.b16 %v2176, %v2172
        %v2677 = vpack.c.b16 %v2177, %v2173
        %v2678 = vpack.c.b16 %v2182, %v2178
        %v2679 = vpack.c.b16 %v2183, %v2179
        %v2680 = vpack.c.b16 %v2184, %v2180
        %v2681 = vpack.c.b16 %v2185, %v2181
        %v2682 = vpack.c.b16 %v2190, %v2186
        %v2683 = vpack.c.b16 %v2191, %v2187
        %v2684 = vpack.c.b16 %v2192, %v2188
        %v2685 = vpack.c.b16 %v2193, %v2189
        %v2686 = vpack.c.b16 %v2198, %v2194
        %v2687 = vpack.c.b16 %v2199, %v2195
        %v2688 = vpack.c.b16 %v2200, %v2196
        %v2689 = vpack.c.b16 %v2201, %v2197
        %v2690 = vpack.c.b16 %v2206, %v2202
        %v2691 = vpack.c.b16 %v2207, %v2203
        %v2692 = vpack.c.b16 %v2208, %v2204
        %v2693 = vpack.c.b16 %v2209, %v2205
        %v2694 = vpack.c.b16 %v2214, %v2210
        %v2695 = vpack.c.b16 %v2215, %v2211
        %v2696 = vpack.c.b16 %v2216, %v2212
        %v2697 = vpack.c.b16 %v2217, %v2213
        %v2698 = vpack.c.b16 %v2222, %v2218
        %v2699 = vpack.c.b16 %v2223, %v2219
        %v2700 = vpack.c.b16 %v2224, %v2220
        %v2701 = vpack.c.b16 %v2225, %v2221
        %v2702 = vpack.c.b16 %v2230, %v2226
        %v2703 = vpack.c.b16 %v2231, %v2227
        %v2704 = vpack.c.b16 %v2232, %v2228
        %v2705 = vpack.c.b16 %v2233, %v2229
        %v2706 = vpack.c.b16 %v2238, %v2234
        %v2707 = vpack.c.b16 %v2239, %v2235
        %v2708 = vpack.c.b16 %v2240, %v2236
        %v2709 = vpack.c.b16 %v2241, %v2237
        %v2710 = vpack.c.b16 %v2246, %v2242
        %v2711 = vpack.c.b16 %v2247, %v2243
        %v2712 = vpack.c.b16 %v2248, %v2244
        %v2713 = vpack.c.b16 %v2249, %v2245
        %v2714 = vpack.c.b16 %v2254, %v2250
        %v2715 = vpack.c.b16 %v2255, %v2251
        %v2716 = vpack.c.b16 %v2256, %v2252
        %v2717 = vpack.c.b16 %v2257, %v2253
        %v2718 = vpack.c.b16 %v2262, %v2258
        %v2719 = vpack.c.b16 %v2263, %v2259
        %v2720 = vpack.c.b16 %v2264, %v2260
        %v2721 = vpack.c.b16 %v2265, %v2261
        %v2722 = vpack.c.b16 %v2270, %v2266
        %v2723 = vpack.c.b16 %v2271, %v2267
        %v2724 = vpack.c.b16 %v2272, %v2268
        %v2725 = vpack.c.b16 %v2273, %v2269
        %v2726 = vpack.c.b16 %v2278, %v2274
        %v2727 = vpack.c.b16 %v2279, %v2275
        %v2728 = vpack.c.b16 %v2280, %v2276
        %v2729 = vpack.c.b16 %v2281, %v2277
        %v2730 = vpack.c.b16 %v2286, %v2282
        %v2731 = vpack.c.b16 %v2287, %v2283
        %v2732 = vpack.c.b16 %v2288, %v2284
        %v2733 = vpack.c.b16 %v2289, %v2285
        %v2734 = vpack.c.b16 %v2294, %v2290
        %v2735 = vpack.c.b16 %v2295, %v2291
        %v2736 = vpack.c.b16 %v2296, %v2292
        %v2737 = vpack.c.b16 %v2297, %v2293
        %v2738 = vpack.c.b16 %v2302, %v2298
        %v2739 = vpack.c.b16 %v2303, %v2299
        %v2740 = vpack.c.b16 %v2304, %v2300
        %v2741 = vpack.c.b16 %v2305, %v2301
        %v2742 = vpack.c.b16 %v2310, %v2306
        %v2743 = vpack.c.b16 %v2311, %v2307
        %v2744 = vpack.c.b16 %v2312, %v2308
        %v2745 = vpack.c.b16 %v2313, %v2309
        %v2746 = vpack.c.b16 %v2318, %v2314
        %v2747 = vpack.c.b16 %v2319, %v2315
        %v2748 = vpack.c.b16 %v2320, %v2316
        %v2749 = vpack.c.b16 %v2321, %v2317
        %v2750 = vpack.c.b16 %v2326, %v2322
        %v2751 = vpack.c.b16 %v2327, %v2323
        %v2752 = vpack.c.b16 %v2328, %v2324
        %v2753 = vpack.c.b16 %v2329, %v2325
        %v2754 = vpack.c.b16 %v2334, %v2330
        %v2755 = vpack.c.b16 %v2335, %v2331
        %v2756 = vpack.c.b16 %v2336, %v2332
        %v2757 = vpack.c.b16 %v2337, %v2333
        %v2758 = vpack.c.b16 %v2342, %v2338
        %v2759 = vpack.c.b16 %v2343, %v2339
        %v2760 = vpack.c.b16 %v2344, %v2340
        %v2761 = vpack.c.b16 %v2345, %v2341
        %v2762 = vpack.c.b16 %v2350, %v2346
        %v2763 = vpack.c.b16 %v2351, %v2347
        %v2764 = vpack.c.b16 %v2352, %v2348
        %v2765 = vpack.c.b16 %v2353, %v2349
        %v2766 = vpack.c.b16 %v2358, %v2354
        %v2767 = vpack.c.b16 %v2359, %v2355
        %v2768 = vpack.c.b16 %v2360, %v2356
        %v2769 = vpack.c.b16 %v2361, %v2357
        %v2770 = vpack.c.b16 %v2366, %v2362
        %v2771 = vpack.c.b16 %v2367, %v2363
        %v2772 = vpack.c.b16 %v2368, %v2364
        %v2773 = vpack.c.b16 %v2369, %v2365
        %v2774 = vpack.c.b16 %v2374, %v2370
        %v2775 = vpack.c.b16 %v2375, %v2371
        %v2776 = vpack.c.b16 %v2376, %v2372
        %v2777 = vpack.c.b16 %v2377, %v2373
        %v2778 = vpack.c.b16 %v2382, %v2378
        %v2779 = vpack.c.b16 %v2383, %v2379
        %v2780 = vpack.c.b16 %v2384, %v2380
        %v2781 = vpack.c.b16 %v2385, %v2381
        %v2782 = vpack.c.b16 %v2390, %v2386
        %v2783 = vpack.c.b16 %v2391, %v2387
        %v2784 = vpack.c.b16 %v2392, %v2388
        %v2785 = vpack.c.b16 %v2393, %v2389
        %v2786 = vpack.c.b16 %v2398, %v2394
        %v2787 = vpack.c.b16 %v2399, %v2395
        %v2788 = vpack.c.b16 %v2400, %v2396
        %v2789 = vpack.c.b16 %v2401, %v2397
        %v2790 = vpack.c.b16 %v2406, %v2402
        %v2791 = vpack.c.b16 %v2407, %v2403
        %v2792 = vpack.c.b16 %v2408, %v2404
        %v2793 = vpack.c.b16 %v2409, %v2405
        %v2794 = vpack.c.b16 %v2414, %v2410
        %v2795 = vpack.c.b16 %v2415, %v2411
        %v2796 = vpack.c.b16 %v2416, %v2412
        %v2797 = vpack.c.b16 %v2417, %v2413
        %v2798 = vpack.c.b16 %v2422, %v2418
        %v2799 = vpack.c.b16 %v2423, %v2419
        %v2800 = vpack.c.b16 %v2424, %v2420
        %v2801 = vpack.c.b16 %v2425, %v2421
        %v2802 = vpack.c.b16 %v2430, %v2426
        %v2803 = vpack.c.b16 %v2431, %v2427
        %v2804 = vpack.c.b16 %v2432, %v2428
        %v2805 = vpack.c.b16 %v2433, %v2429
        %v2806 = vpack.c.b16 %v2438, %v2434
        %v2807 = vpack.c.b16 %v2439, %v2435
        %v2808 = vpack.c.b16 %v2440, %v2436
        %v2809 = vpack.c.b16 %v2441, %v2437
        %v2810 = vpack.c.b16 %v2446, %v2442
        %v2811 = vpack.c.b16 %v2447, %v2443
        %v2812 = vpack.c.b16 %v2448, %v2444
        %v2813 = vpack.c.b16 %v2449, %v2445
        %v2814 = vpack.c.b16 %v2454, %v2450
        %v2815 = vpack.c.b16 %v2455, %v2451
        %v2816 = vpack.c.b16 %v2456, %v2452
        %v2817 = vpack.c.b16 %v2457, %v2453
        %v2818 = vpack.c.b16 %v2462, %v2458
        %v2819 = vpack.c.b16 %v2463, %v2459
        %v2820 = vpack.c.b16 %v2464, %v2460
        %v2821 = vpack.c.b16 %v2465, %v2461
        %v2822 = vpack.c.b16 %v2470, %v2466
        %v2823 = vpack.c.b16 %v2471, %v2467
        %v2824 = vpack.c.b16 %v2472, %v2468
        %v2825 = vpack.c.b16 %v2473, %v2469
        %v2826 = vpack.c.b16 %v2478, %v2474
        %v2827 = vpack.c.b16 %v2479, %v2475
        %v2828 = vpack.c.b16 %v2480, %v2476
        %v2829 = vpack.c.b16 %v2481, %v2477
        %v2830 = vpack.c.b16 %v2486, %v2482
        %v2831 = vpack.c.b16 %v2487, %v2483
        %v2832 = vpack.c.b16 %v2488, %v2484
        %v2833 = vpack.c.b16 %v2489, %v2485
        %v2834 = vpack.c.b16 %v2494, %v2490
        %v2835 = vpack.c.b16 %v2495, %v2491
        %v2836 = vpack.c.b16 %v2496, %v2492
        %v2837 = vpack.c.b16 %v2497, %v2493
        %v2838 = vpack.c.b16 %v2502, %v2498
        %v2839 = vpack.c.b16 %v2503, %v2499
        %v2840 = vpack.c.b16 %v2504, %v2500
        %v2841 = vpack.c.b16 %v2505, %v2501
        %v2842 = vpack.c.b16 %v2510, %v2506
        %v2843 = vpack.c.b16 %v2511, %v2507
        %v2844 = vpack.c.b16 %v2512, %v2508
        %v2845 = vpack.c.b16 %v2513, %v2509
        %v2846 = vpack.c.b16 %v2518, %v2514
        %v2847 = vpack.c.b16 %v2519, %v2515
        %v2848 = vpack.c.b16 %v2520, %v2516
        %v2849 = vpack.c.b16 %v2521, %v2517
        %v2850 = vpack.c.b16 %v2526, %v2522
        %v2851 = vpack.c.b16 %v2527, %v2523
        %v2852 = vpack.c.b16 %v2528, %v2524
        %v2853 = vpack.c.b16 %v2529, %v2525
        %v2854 = vpack.c.b16 %v2534, %v2530
        %v2855 = vpack.c.b16 %v2535, %v2531
        %v2856 = vpack.c.b16 %v2536, %v2532
        %v2857 = vpack.c.b16 %v2537, %v2533
        %v2858 = vpack.c.b16 %v2542, %v2538
        %v2859 = vpack.c.b16 %v2543, %v2539
        %v2860 = vpack.c.b16 %v2544, %v2540
        %v2861 = vpack.c.b16 %v2545, %v2541
        %v2862 = vpack.c.b16 %v2550, %v2546
        %v2863 = vpack.c.b16 %v2551, %v2547
        %v2864 = vpack.c.b16 %v2552, %v2548
        %v2865 = vpack.c.b16 %v2553, %v2549
        %v2866 = vpack.c.b16 %v2558, %v2554
        %v2867 = vpack.c.b16 %v2559, %v2555
        %v2868 = vpack.c.b16 %v2560, %v2556
        %v2869 = vpack.c.b16 %v2561, %v2557
        %v2870 = vpack.c.b16 %v2566, %v2562
        %v2871 = vpack.c.b16 %v2567, %v2563
        %v2872 = vpack.c.b16 %v2568, %v2564
        %v2873 = vpack.c.b16 %v2569, %v2565
        %v2874 = vpack.c.b16 %v2574, %v2570
        %v2875 = vpack.c.b16 %v2575, %v2571
        %v2876 = vpack.c.b16 %v2576, %v2572
        %v2877 = vpack.c.b16 %v2577, %v2573
        %v2878 = vpack.c.b16 %v2582, %v2578
        %v2879 = vpack.c.b16 %v2583, %v2579
        %v2880 = vpack.c.b16 %v2584, %v2580
        %v2881 = vpack.c.b16 %v2585, %v2581
        %v2882 = vpack.c.b16 %v2590, %v2586
        %v2883 = vpack.c.b16 %v2591, %v2587
        %v2884 = vpack.c.b16 %v2592, %v2588
        %v2885 = vpack.c.b16 %v2593, %v2589
        %v2886 = vpack.c.b16 %v2598, %v2594
        %v2887 = vpack.c.b16 %v2599, %v2595
        %v2888 = vpack.c.b16 %v2600, %v2596
        %v2889 = vpack.c.b16 %v2601, %v2597
        %v2890 = vpack.c.b16 %v2606, %v2602
        %v2891 = vpack.c.b16 %v2607, %v2603
        %v2892 = vpack.c.b16 %v2608, %v2604
        %v2893 = vpack.c.b16 %v2609, %v2605
        %v2894 = vpack.c.b16 %v2614, %v2610
        %v2895 = vpack.c.b16 %v2615, %v2611
        %v2896 = vpack.c.b16 %v2616, %v2612
        %v2897 = vpack.c.b16 %v2617, %v2613
        %v2898 = vpack.c.b16 %v2622, %v2618
        %v2899 = vpack.c.b16 %v2623, %v2619
        %v2900 = vpack.c.b16 %v2624, %v2620
        %v2901 = vpack.c.b16 %v2625, %v2621
        %v2902 = vpack.c.b16 %v2630, %v2626
        %v2903 = vpack.c.b16 %v2631, %v2627
        %v2904 = vpack.c.b16 %v2632, %v2628
        %v2905 = vpack.c.b16 %v2633, %v2629
        %v2906 = vpack.c.b16 %v2638, %v2634
        %v2907 = vpack.c.b16 %v2639, %v2635
        %v2908 = vpack.c.b16 %v2640, %v2636
        %v2909 = vpack.c.b16 %v2641, %v2637
        %v2910 = vpack.c.b16 %v2646, %v2642
        %v2911 = vpack.c.b16 %v2647, %v2643
        %v2912 = vpack.c.b16 %v2648, %v2644
        %v2913 = vpack.c.b16 %v2649, %v2645
        %v2914 = vpack.c.b16 %v2654, %v2650
        %v2915 = vpack.c.b16 %v2655, %v2651
        %v2916 = vpack.c.b16 %v2656, %v2652
        %v2917 = vpack.c.b16 %v2657, %v2653
        %v2918 = vpack.c.b16 %v2662, %v2658
        %v2919 = vpack.c.b16 %v2663, %v2659
        %v2920 = vpack.c.b16 %v2664, %v2660
        %v2921 = vpack.c.b16 %v2665, %v2661
        %3178 = vmatprep.subr.bf16.mxu0 %v2695
        %3179 = vmatpush1.bf16.msra.mxu0 %v2694
        %3180 = vmatprep.subr.bf16.mxu0 %v2691
        %3181 = vmatpush1.bf16.msra.mxu0 %v2690
        %3182 = vmatprep.subr.bf16.mxu0 %v2687
        %3183 = vmatpush1.bf16.msra.mxu0 %v2686
        %3184 = vmatprep.subr.bf16.mxu0 %v2683
        %3185 = vmatpush1.bf16.msra.mxu0 %v2682
        %3186 = vmatprep.subr.bf16.mxu0 %v2679
        %3187 = vmatpush1.bf16.msra.mxu0 %v2678
        %3188 = vmatprep.subr.bf16.mxu0 %v2675
        %3189 = vmatpush1.bf16.msra.mxu0 %v2674
        %3190 = vmatprep.subr.bf16.mxu0 %v2671
        %3191 = vmatpush1.bf16.msra.mxu0 %v2670
        %3192 = vmatprep.subr.bf16.mxu0 %v2667
        %3193 = vmatpush1.bf16.msra.mxu0 %v2666
        %3194 = vmatprep.subr.bf16.mxu0 %v2727
        %3195 = vmatpush2.bf16.msra.mxu0 %v2726
        %3196 = vmatprep.subr.bf16.mxu0 %v2723
        %3197 = vmatpush2.bf16.msra.mxu0 %v2722
        %3198 = vmatprep.subr.bf16.mxu0 %v2719
        %3199 = vmatpush2.bf16.msra.mxu0 %v2718
        %3200 = vmatprep.subr.bf16.mxu0 %v2715
        %3201 = vmatpush2.bf16.msra.mxu0 %v2714
        %3202 = vmatprep.subr.bf16.mxu0 %v2711
        %3203 = vmatpush2.bf16.msra.mxu0 %v2710
        %3204 = vmatprep.subr.bf16.mxu0 %v2707
        %3205 = vmatpush2.bf16.msra.mxu0 %v2706
        %3206 = vmatprep.subr.bf16.mxu0 %v2703
        %3207 = vmatpush2.bf16.msra.mxu0 %v2702
        %3208 = vmatprep.subr.bf16.mxu0 %v2699
        %3209 = vmatpush2.bf16.msra.mxu0 %v2698
        %3210 = vmatprep.mubr.bf16.mxu0 %v1883
        %3211 = vmatmul.mubr.bf16.gmra.mxu0 %v1882
        %v3212 = vpop.f32.mrf.mxu0
        %v3213 = vadd.f32 %v1823, %v3212
        %v3214 = vpop.f32.mrf.mxu0
        %v3215 = vadd.f32 %v1825, %v3214
        %v3216 = vpop.f32.mrf.mxu0
        %v3217 = vpop.f32.mrf.mxu0
        %3218 = vdwg.mxu0
        %3219 = vmatprep.subr.bf16.mxu0 %v2759
        %3220 = vmatpush1.bf16.msra.mxu0 %v2758
        %3221 = vmatprep.subr.bf16.mxu0 %v2755
        %3222 = vmatpush1.bf16.msra.mxu0 %v2754
        %3223 = vmatprep.subr.bf16.mxu0 %v2751
        %3224 = vmatpush1.bf16.msra.mxu0 %v2750
        %3225 = vmatprep.subr.bf16.mxu0 %v2747
        %3226 = vmatpush1.bf16.msra.mxu0 %v2746
        %3227 = vmatprep.subr.bf16.mxu0 %v2743
        %3228 = vmatpush1.bf16.msra.mxu0 %v2742
        %3229 = vmatprep.subr.bf16.mxu0 %v2739
        %3230 = vmatpush1.bf16.msra.mxu0 %v2738
        %3231 = vmatprep.subr.bf16.mxu0 %v2735
        %3232 = vmatpush1.bf16.msra.mxu0 %v2734
        %3233 = vmatprep.subr.bf16.mxu0 %v2731
        %3234 = vmatpush1.bf16.msra.mxu0 %v2730
        %3235 = vmatprep.subr.bf16.mxu0 %v2791
        %3236 = vmatpush2.bf16.msra.mxu0 %v2790
        %3237 = vmatprep.subr.bf16.mxu0 %v2787
        %3238 = vmatpush2.bf16.msra.mxu0 %v2786
        %3239 = vmatprep.subr.bf16.mxu0 %v2783
        %3240 = vmatpush2.bf16.msra.mxu0 %v2782
        %3241 = vmatprep.subr.bf16.mxu0 %v2779
        %3242 = vmatpush2.bf16.msra.mxu0 %v2778
        %3243 = vmatprep.subr.bf16.mxu0 %v2775
        %3244 = vmatpush2.bf16.msra.mxu0 %v2774
        %3245 = vmatprep.subr.bf16.mxu0 %v2771
        %3246 = vmatpush2.bf16.msra.mxu0 %v2770
        %3247 = vmatprep.subr.bf16.mxu0 %v2767
        %3248 = vmatpush2.bf16.msra.mxu0 %v2766
        %3249 = vmatprep.subr.bf16.mxu0 %v2763
        %3250 = vmatpush2.bf16.msra.mxu0 %v2762
        %3251 = vmatprep.mubr.bf16.mxu0 %v1885
        %3252 = vmatmul.mubr.bf16.gmra.mxu0 %v1884
        %v3253 = vpop.f32.mrf.mxu0
        %v3254 = vadd.f32 %v3213, %v3253
        %v3255 = vpop.f32.mrf.mxu0
        %v3256 = vadd.f32 %v3215, %v3255
        %v3257 = vpop.f32.mrf.mxu0
        %v3258 = vpop.f32.mrf.mxu0
        %3259 = vdwg.mxu0
        %3260 = vmatprep.subr.bf16.mxu0 %v2823
        %3261 = vmatpush1.bf16.msra.mxu0 %v2822
        %3262 = vmatprep.subr.bf16.mxu0 %v2819
        %3263 = vmatpush1.bf16.msra.mxu0 %v2818
        %3264 = vmatprep.subr.bf16.mxu0 %v2815
        %3265 = vmatpush1.bf16.msra.mxu0 %v2814
        %3266 = vmatprep.subr.bf16.mxu0 %v2811
        %3267 = vmatpush1.bf16.msra.mxu0 %v2810
        %3268 = vmatprep.subr.bf16.mxu0 %v2807
        %3269 = vmatpush1.bf16.msra.mxu0 %v2806
        %3270 = vmatprep.subr.bf16.mxu0 %v2803
        %3271 = vmatpush1.bf16.msra.mxu0 %v2802
        %3272 = vmatprep.subr.bf16.mxu0 %v2799
        %3273 = vmatpush1.bf16.msra.mxu0 %v2798
        %3274 = vmatprep.subr.bf16.mxu0 %v2795
        %3275 = vmatpush1.bf16.msra.mxu0 %v2794
        %3276 = vmatprep.subr.bf16.mxu0 %v2855
        %3277 = vmatpush2.bf16.msra.mxu0 %v2854
        %3278 = vmatprep.subr.bf16.mxu0 %v2851
        %3279 = vmatpush2.bf16.msra.mxu0 %v2850
        %3280 = vmatprep.subr.bf16.mxu0 %v2847
        %3281 = vmatpush2.bf16.msra.mxu0 %v2846
        %3282 = vmatprep.subr.bf16.mxu0 %v2843
        %3283 = vmatpush2.bf16.msra.mxu0 %v2842
        %3284 = vmatprep.subr.bf16.mxu0 %v2839
        %3285 = vmatpush2.bf16.msra.mxu0 %v2838
        %3286 = vmatprep.subr.bf16.mxu0 %v2835
        %3287 = vmatpush2.bf16.msra.mxu0 %v2834
        %3288 = vmatprep.subr.bf16.mxu0 %v2831
        %3289 = vmatpush2.bf16.msra.mxu0 %v2830
        %3290 = vmatprep.subr.bf16.mxu0 %v2827
        %3291 = vmatpush2.bf16.msra.mxu0 %v2826
        %3292 = vmatprep.mubr.bf16.mxu0 %v1887
        %3293 = vmatmul.mubr.bf16.gmra.mxu0 %v1886
        %v3294 = vpop.f32.mrf.mxu0
        %v3295 = vadd.f32 %v3254, %v3294
        %v3296 = vpop.f32.mrf.mxu0
        %v3297 = vadd.f32 %v3256, %v3296
        %v3298 = vpop.f32.mrf.mxu0
        %v3299 = vpop.f32.mrf.mxu0
        %3300 = vdwg.mxu0
        %3301 = vmatprep.subr.bf16.mxu0 %v2887
        %3302 = vmatpush1.bf16.msra.mxu0 %v2886
        %3303 = vmatprep.subr.bf16.mxu0 %v2883
        %3304 = vmatpush1.bf16.msra.mxu0 %v2882
        %3305 = vmatprep.subr.bf16.mxu0 %v2879
        %3306 = vmatpush1.bf16.msra.mxu0 %v2878
        %3307 = vmatprep.subr.bf16.mxu0 %v2875
        %3308 = vmatpush1.bf16.msra.mxu0 %v2874
        %3309 = vmatprep.subr.bf16.mxu0 %v2871
        %3310 = vmatpush1.bf16.msra.mxu0 %v2870
        %3311 = vmatprep.subr.bf16.mxu0 %v2867
        %3312 = vmatpush1.bf16.msra.mxu0 %v2866
        %3313 = vmatprep.subr.bf16.mxu0 %v2863
        %3314 = vmatpush1.bf16.msra.mxu0 %v2862
        %3315 = vmatprep.subr.bf16.mxu0 %v2859
        %3316 = vmatpush1.bf16.msra.mxu0 %v2858
        %3317 = vmatprep.subr.bf16.mxu0 %v2919
        %3318 = vmatpush2.bf16.msra.mxu0 %v2918
        %3319 = vmatprep.subr.bf16.mxu0 %v2915
        %3320 = vmatpush2.bf16.msra.mxu0 %v2914
        %3321 = vmatprep.subr.bf16.mxu0 %v2911
        %3322 = vmatpush2.bf16.msra.mxu0 %v2910
        %3323 = vmatprep.subr.bf16.mxu0 %v2907
        %3324 = vmatpush2.bf16.msra.mxu0 %v2906
        %3325 = vmatprep.subr.bf16.mxu0 %v2903
        %3326 = vmatpush2.bf16.msra.mxu0 %v2902
        %3327 = vmatprep.subr.bf16.mxu0 %v2899
        %3328 = vmatpush2.bf16.msra.mxu0 %v2898
        %3329 = vmatprep.subr.bf16.mxu0 %v2895
        %3330 = vmatpush2.bf16.msra.mxu0 %v2894
        %3331 = vmatprep.subr.bf16.mxu0 %v2891
        %3332 = vmatpush2.bf16.msra.mxu0 %v2890
        %3333 = vmatprep.mubr.bf16.mxu0 %v1889
        %3334 = vmatmul.mubr.bf16.gmra.mxu0 %v1888
        %v3335 = vpop.f32.mrf.mxu0
        %v3336 = vadd.f32 %v3295, %v3335
        %v3337 = vpop.f32.mrf.mxu0
        %v3338 = vadd.f32 %v3297, %v3337
        %v3339 = vpop.f32.mrf.mxu0
        %v3340 = vpop.f32.mrf.mxu0
        %3341 = vdwg.mxu0
        %3342 = vmatprep.subr.bf16.mxu0 %v2697
        %3343 = vmatpush1.bf16.msra.mxu0 %v2696
        %3344 = vmatprep.subr.bf16.mxu0 %v2693
        %3345 = vmatpush1.bf16.msra.mxu0 %v2692
        %3346 = vmatprep.subr.bf16.mxu0 %v2689
        %3347 = vmatpush1.bf16.msra.mxu0 %v2688
        %3348 = vmatprep.subr.bf16.mxu0 %v2685
        %3349 = vmatpush1.bf16.msra.mxu0 %v2684
        %3350 = vmatprep.subr.bf16.mxu0 %v2681
        %3351 = vmatpush1.bf16.msra.mxu0 %v2680
        %3352 = vmatprep.subr.bf16.mxu0 %v2677
        %3353 = vmatpush1.bf16.msra.mxu0 %v2676
        %3354 = vmatprep.subr.bf16.mxu0 %v2673
        %3355 = vmatpush1.bf16.msra.mxu0 %v2672
        %3356 = vmatprep.subr.bf16.mxu0 %v2669
        %3357 = vmatpush1.bf16.msra.mxu0 %v2668
        %3358 = vmatprep.subr.bf16.mxu0 %v2729
        %3359 = vmatpush2.bf16.msra.mxu0 %v2728
        %3360 = vmatprep.subr.bf16.mxu0 %v2725
        %3361 = vmatpush2.bf16.msra.mxu0 %v2724
        %3362 = vmatprep.subr.bf16.mxu0 %v2721
        %3363 = vmatpush2.bf16.msra.mxu0 %v2720
        %3364 = vmatprep.subr.bf16.mxu0 %v2717
        %3365 = vmatpush2.bf16.msra.mxu0 %v2716
        %3366 = vmatprep.subr.bf16.mxu0 %v2713
        %3367 = vmatpush2.bf16.msra.mxu0 %v2712
        %3368 = vmatprep.subr.bf16.mxu0 %v2709
        %3369 = vmatpush2.bf16.msra.mxu0 %v2708
        %3370 = vmatprep.subr.bf16.mxu0 %v2705
        %3371 = vmatpush2.bf16.msra.mxu0 %v2704
        %3372 = vmatprep.subr.bf16.mxu0 %v2701
        %3373 = vmatpush2.bf16.msra.mxu0 %v2700
        %3374 = vmatprep.mubr.bf16.mxu0 %v1883
        %3375 = vmatmul.mubr.bf16.gmra.mxu0 %v1882
        %v3376 = vpop.f32.mrf.mxu0
        %v3377 = vadd.f32 %v1864, %v3376
        %v3378 = vpop.f32.mrf.mxu0
        %v3379 = vadd.f32 %v1866, %v3378
        %v3380 = vpop.f32.mrf.mxu0
        %v3381 = vpop.f32.mrf.mxu0
        %3382 = vdwg.mxu0
        %3383 = vmatprep.subr.bf16.mxu0 %v2761
        %3384 = vmatpush1.bf16.msra.mxu0 %v2760
        %3385 = vmatprep.subr.bf16.mxu0 %v2757
        %3386 = vmatpush1.bf16.msra.mxu0 %v2756
        %3387 = vmatprep.subr.bf16.mxu0 %v2753
        %3388 = vmatpush1.bf16.msra.mxu0 %v2752
        %3389 = vmatprep.subr.bf16.mxu0 %v2749
        %3390 = vmatpush1.bf16.msra.mxu0 %v2748
        %3391 = vmatprep.subr.bf16.mxu0 %v2745
        %3392 = vmatpush1.bf16.msra.mxu0 %v2744
        %3393 = vmatprep.subr.bf16.mxu0 %v2741
        %3394 = vmatpush1.bf16.msra.mxu0 %v2740
        %3395 = vmatprep.subr.bf16.mxu0 %v2737
        %3396 = vmatpush1.bf16.msra.mxu0 %v2736
        %3397 = vmatprep.subr.bf16.mxu0 %v2733
        %3398 = vmatpush1.bf16.msra.mxu0 %v2732
        %3399 = vmatprep.subr.bf16.mxu0 %v2793
        %3400 = vmatpush2.bf16.msra.mxu0 %v2792
        %3401 = vmatprep.subr.bf16.mxu0 %v2789
        %3402 = vmatpush2.bf16.msra.mxu0 %v2788
        %3403 = vmatprep.subr.bf16.mxu0 %v2785
        %3404 = vmatpush2.bf16.msra.mxu0 %v2784
        %3405 = vmatprep.subr.bf16.mxu0 %v2781
        %3406 = vmatpush2.bf16.msra.mxu0 %v2780
        %3407 = vmatprep.subr.bf16.mxu0 %v2777
        %3408 = vmatpush2.bf16.msra.mxu0 %v2776
        %3409 = vmatprep.subr.bf16.mxu0 %v2773
        %3410 = vmatpush2.bf16.msra.mxu0 %v2772
        %3411 = vmatprep.subr.bf16.mxu0 %v2769
        %3412 = vmatpush2.bf16.msra.mxu0 %v2768
        %3413 = vmatprep.subr.bf16.mxu0 %v2765
        %3414 = vmatpush2.bf16.msra.mxu0 %v2764
        %3415 = vmatprep.mubr.bf16.mxu0 %v1885
        %3416 = vmatmul.mubr.bf16.gmra.mxu0 %v1884
        %v3417 = vpop.f32.mrf.mxu0
        %v3418 = vadd.f32 %v3377, %v3417
        %v3419 = vpop.f32.mrf.mxu0
        %v3420 = vadd.f32 %v3379, %v3419
        %v3421 = vpop.f32.mrf.mxu0
        %v3422 = vpop.f32.mrf.mxu0
        %3423 = vdwg.mxu0
        %3424 = vmatprep.subr.bf16.mxu0 %v2825
        %3425 = vmatpush1.bf16.msra.mxu0 %v2824
        %3426 = vmatprep.subr.bf16.mxu0 %v2821
        %3427 = vmatpush1.bf16.msra.mxu0 %v2820
        %3428 = vmatprep.subr.bf16.mxu0 %v2817
        %3429 = vmatpush1.bf16.msra.mxu0 %v2816
        %3430 = vmatprep.subr.bf16.mxu0 %v2813
        %3431 = vmatpush1.bf16.msra.mxu0 %v2812
        %3432 = vmatprep.subr.bf16.mxu0 %v2809
        %3433 = vmatpush1.bf16.msra.mxu0 %v2808
        %3434 = vmatprep.subr.bf16.mxu0 %v2805
        %3435 = vmatpush1.bf16.msra.mxu0 %v2804
        %3436 = vmatprep.subr.bf16.mxu0 %v2801
        %3437 = vmatpush1.bf16.msra.mxu0 %v2800
        %3438 = vmatprep.subr.bf16.mxu0 %v2797
        %3439 = vmatpush1.bf16.msra.mxu0 %v2796
        %3440 = vmatprep.subr.bf16.mxu0 %v2857
        %3441 = vmatpush2.bf16.msra.mxu0 %v2856
        %3442 = vmatprep.subr.bf16.mxu0 %v2853
        %3443 = vmatpush2.bf16.msra.mxu0 %v2852
        %3444 = vmatprep.subr.bf16.mxu0 %v2849
        %3445 = vmatpush2.bf16.msra.mxu0 %v2848
        %3446 = vmatprep.subr.bf16.mxu0 %v2845
        %3447 = vmatpush2.bf16.msra.mxu0 %v2844
        %3448 = vmatprep.subr.bf16.mxu0 %v2841
        %3449 = vmatpush2.bf16.msra.mxu0 %v2840
        %3450 = vmatprep.subr.bf16.mxu0 %v2837
        %3451 = vmatpush2.bf16.msra.mxu0 %v2836
        %3452 = vmatprep.subr.bf16.mxu0 %v2833
        %3453 = vmatpush2.bf16.msra.mxu0 %v2832
        %3454 = vmatprep.subr.bf16.mxu0 %v2829
        %3455 = vmatpush2.bf16.msra.mxu0 %v2828
        %3456 = vmatprep.mubr.bf16.mxu0 %v1887
        %3457 = vmatmul.mubr.bf16.gmra.mxu0 %v1886
        %v3458 = vpop.f32.mrf.mxu0
        %v3459 = vadd.f32 %v3418, %v3458
        %v3460 = vpop.f32.mrf.mxu0
        %v3461 = vadd.f32 %v3420, %v3460
        %v3462 = vpop.f32.mrf.mxu0
        %v3463 = vpop.f32.mrf.mxu0
        %3464 = vdwg.mxu0
        %3465 = vmatprep.subr.bf16.mxu0 %v2889
        %3466 = vmatpush1.bf16.msra.mxu0 %v2888
        %3467 = vmatprep.subr.bf16.mxu0 %v2885
        %3468 = vmatpush1.bf16.msra.mxu0 %v2884
        %3469 = vmatprep.subr.bf16.mxu0 %v2881
        %3470 = vmatpush1.bf16.msra.mxu0 %v2880
        %3471 = vmatprep.subr.bf16.mxu0 %v2877
        %3472 = vmatpush1.bf16.msra.mxu0 %v2876
        %3473 = vmatprep.subr.bf16.mxu0 %v2873
        %3474 = vmatpush1.bf16.msra.mxu0 %v2872
        %3475 = vmatprep.subr.bf16.mxu0 %v2869
        %3476 = vmatpush1.bf16.msra.mxu0 %v2868
        %3477 = vmatprep.subr.bf16.mxu0 %v2865
        %3478 = vmatpush1.bf16.msra.mxu0 %v2864
        %3479 = vmatprep.subr.bf16.mxu0 %v2861
        %3480 = vmatpush1.bf16.msra.mxu0 %v2860
        %3481 = vmatprep.subr.bf16.mxu0 %v2921
        %3482 = vmatpush2.bf16.msra.mxu0 %v2920
        %3483 = vmatprep.subr.bf16.mxu0 %v2917
        %3484 = vmatpush2.bf16.msra.mxu0 %v2916
        %3485 = vmatprep.subr.bf16.mxu0 %v2913
        %3486 = vmatpush2.bf16.msra.mxu0 %v2912
        %3487 = vmatprep.subr.bf16.mxu0 %v2909
        %3488 = vmatpush2.bf16.msra.mxu0 %v2908
        %3489 = vmatprep.subr.bf16.mxu0 %v2905
        %3490 = vmatpush2.bf16.msra.mxu0 %v2904
        %3491 = vmatprep.subr.bf16.mxu0 %v2901
        %3492 = vmatpush2.bf16.msra.mxu0 %v2900
        %3493 = vmatprep.subr.bf16.mxu0 %v2897
        %3494 = vmatpush2.bf16.msra.mxu0 %v2896
        %3495 = vmatprep.subr.bf16.mxu0 %v2893
        %3496 = vmatpush2.bf16.msra.mxu0 %v2892
        %3497 = vmatprep.mubr.bf16.mxu0 %v1889
        %3498 = vmatmul.mubr.bf16.gmra.mxu0 %v1888
        %v3499 = vpop.f32.mrf.mxu0
        %v3500 = vadd.f32 %v3459, %v3499
        %v3501 = vpop.f32.mrf.mxu0
        %v3502 = vadd.f32 %v3461, %v3501
        %v3503 = vpop.f32.mrf.mxu0
        %v3504 = vpop.f32.mrf.mxu0
        %3505 = vdwg.mxu0
        %v3506 = vld [vmem:[%s384] sm:$0xf]
        %v3508 = vlaneseq
        %v3509 = vshrl.u32 %v3508, 7
        %v3510 = vsub.s32 0, %v3509
        %v3511 = vrot.slane %v3506, %v3510
        %v3512 = vlaneseq
        %v3513 = vshrl.u32 %v3512, 7
        %v3514 = vsub.s32 1, %v3513
        %v3515 = vrot.slane %v3506, %v3514
        %v3516 = vlaneseq
        %v3517 = vshrl.u32 %v3516, 7
        %v3518 = vsub.s32 2, %v3517
        %v3519 = vrot.slane %v3506, %v3518
        %v3520 = vlaneseq
        %v3521 = vshrl.u32 %v3520, 7
        %v3522 = vsub.s32 3, %v3521
        %v3523 = vrot.slane %v3506, %v3522
        %v3528 = vadd.f32 %v3336, %v3511
        %v3529 = vadd.f32 %v3338, %v3515
        %v3530 = vadd.f32 %v3500, %v3519
        %v3531 = vadd.f32 %v3502, %v3523
        %v3532 = vpack.c.bf16 %v3528, %v3528
        %v3533 = vpack.c.bf16 %v3529, %v3529
        %v3534 = vpack.c.bf16 %v3530, %v3530
        %v3535 = vpack.c.bf16 %v3531, %v3531
        %v3540 = vunpack.c.l.b16 %v3532
        %v3541 = vunpack.c.l.b16 %v3533
        %v3542 = vunpack.c.l.b16 %v3534
        %v3543 = vunpack.c.l.b16 %v3535
        %v3544 = vpack.c.b16 %v3541, %v3540
        %v3545 = vpack.c.b16 %v3543, %v3542
        %3548 = vst [vmem:[%s460] sm:$0xff] %v3544
        %3549 = vst [vmem:[%s460 + $0x8] sm:$0xff] %v3545
        %s3550 = smul.u32 4, %s25
        %p3551 = scmp.lt.s32.totalorder %s24, 0
        %s3552 = scalar_select %p3551, %s24, 0
        %p3553 = scmp.lt.s32.totalorder %s3550, 15
        %s3554 = scalar_select %p3553, %s3550, 15
        %s3555 = smul.addr %s3552, 16
        %s3556 = sadd.s32 %s3554, %s3555
        %s3557 = smul.addr %s3556, 4
        %s3558 = scalar_lea.vmem %s7, %s3557
        // Predicated region
        $region69: #{dep_forward.4} parent=47 // pred_check
          %p3559 = pneg %p224
        $region70: #{dep_forward.4} parent=47 // pred_check_branch
          %3561 = sbr.rel (%p3559) target = $region72
        $region71: #{dep_forward.4} parent=47 // pred_region
          %s3562 = smul.u32 4, %s25
        $region72: #{dep_forward.4} parent=47 // pred_fallthru
          _
      $region48: #{dep_forward.4} parent=5 // pred_fallthru
        _
      %p3563 = scmp.le.s32.totalorder 2, %s15
      // Predicated region
      $region73: #{dep_forward.4} parent=5 // pred_check
        %p3564 = pneg %p3563
      $region74: #{dep_forward.4} parent=5 // pred_check_branch
        %3566 = sbr.rel (%p3564) target = $region76
      $region75: #{dep_forward.4} parent=5 // pred_region
        %s3567 = ssub.s32 %s15, 2
        // Predicated region
        $region77: #{dep_forward.4} parent=75 // pred_check
          %p3568 = pneg %p230
        $region78: #{dep_forward.4} parent=75 // pred_check_branch
          %3570 = sbr.rel (%p3568) target = $region80
        $region79: #{dep_forward.4} parent=75 // pred_region
          %s3571 = smul.u32 4, %s27
          %p3572 = scmp.lt.s32.totalorder %s26, 0
          %s3573 = scalar_select %p3572, %s26, 0
          %p3574 = scmp.lt.s32.totalorder %s3571, 15
          %s3575 = scalar_select %p3574, %s3571, 15
          %s3576 = smul.addr %s3573, 16
          %s3577 = sadd.s32 %s3575, %s3576
          %s3578 = smul.addr %s3577, 4
          %s3579 = scalar_lea.vmem %s7, %s3578
        $region80: #{dep_forward.4} parent=75 // pred_fallthru
          _
      $region76: #{dep_forward.4} parent=5 // pred_fallthru
        _
    $region6: #{dep_forward.4} parent=1 // loop_footer
      %s19 = sadd.s32 1, %s15
    $region7: #{dep_forward.4} parent=1 // loop_footer_branch
      %14 = sbr.rel target = $region3
    $region8: #{dep_forward.4} parent=1 // loop_exit
      _
    %3580 = vsyncpa [#allocation3], 1
    %s3581 = scalar_lea.sflag [#allocation3], 1
    %3582 = vsyncpa %s3581, 1
    %3583 = vsyncpa [#allocation5], 1

// kernel: dep_forward.7
$region0: #{dep_forward.7}
  #allocation0 [shape = 'u32[]', space=smem, size = 0x4, offset = 0x4, fixed_abs, tag = 'smem constant byte address 0x4 - core index']
  #allocation1 [shape = 'u32[144,128]{1,0:T(1,128)}', space=vmem, size = 0x12000, scoped, tag = 'internal scratch']
  %s0 = inlined_call_operand.vmem [shape: bf16[512,256], index: 0, kind: input, shape index: {}]
  %s1 = inlined_call_operand.vmem [shape: bf16[256,128], index: 1, kind: input, shape index: {}]
  %s2 = inlined_call_operand.vmem [shape: f32[1,128], index: 2, kind: input, shape index: {}]
  %s3 = inlined_call_operand.vmem [shape: f32[512,128], index: 3, kind: output, shape index: {}]
  %s4 = sld [smem:[#allocation0]]
  $region45: #{dep_forward.7} parent=0
    _
  %s6 = ssub.s32 1, %s4
  %s7 = scalar_select 0, %s6, %s4
  loop: start=0, step=1, limit=4
  $region2: #{dep_forward.7} parent=0 // loop_pre_header
    _
  $region3: #{dep_forward.7} parent=0 // loop_header
    %s9 = sphi 0, %s13
    %p10 = scmp.ge.s32.totalorder %s9, 4
    %s16 = sphi 0, %s28
    %s17 = sphi 0, %s24
    %s18 = sphi 0, %s16
    %s19 = sphi 0, %s17
    %s20 = sphi 0, %s18
    %s21 = sphi 0, %s19
    %s31 = sphi 0, %s33
    %s34 = sphi 0, %s31
    %s35 = sphi 0, %s34
    %s51 = sphi 0, %s35
    %s57 = sphi 0, %s59
    %s60 = sphi 0, %s57
    %s61 = sphi 0, %s60
    %s77 = sphi 0, %s61
    %s83 = sphi 0, %s85
    %s86 = sphi 0, %s83
    %s87 = sphi 0, %s86
    %s103 = sphi 0, %s87
    %s111 = sphi 0, %s113
    %s114 = sphi 0, %s111
    %s115 = sphi 0, %s114
    %s131 = sphi 0, %s115
  $region4: #{dep_forward.7} parent=0 // loop_header_branch
    %12 = sbr.rel (%p10) target = $region8
  $region5: #{dep_forward.7} parent=0 // loop_body
    %s14 = ssub.s32 %s9, 1
    %s15 = ssub.s32 %s9, 2
    %s22 = sadd.s32 1, %s17
    %p23 = scmp.ge.s32.totalorder %s22, 1
    %s24 = scalar_select %p23, 0, %s22
    %s25 = sadd.s32 1, %s16
    %s26 = scalar_select %p23, %s25, %s16
    %p27 = scmp.ge.s32.totalorder %s26, 2
    %s28 = scalar_select %p27, 0, %s26
    %s29 = ssub.s32 %s16, %s28
    %p30 = scmp.eq.s32.totalorder %s29, 0
    %s32 = sadd.s32 %s31, 1
    %s33 = scalar_select %p30, %s31, %s32
    %p36 = pneg %p30
    %p37 = scmp.eq.s32.totalorder %s9, 1
    %p38 = por %p36, %p37
    %p39 = scmp.ne.s32.totalorder %s31, %s34
    %p40 = scmp.eq.s32.totalorder %s9, 0
    %p41 = por %p39, %p40
    %p42 = scmp.ne.s32.totalorder %s31, %s34
    %p43 = scmp.eq.s32.totalorder %s14, 1
    %p44 = por %p42, %p43
    %p45 = scmp.ne.s32.totalorder %s34, %s35
    %p46 = scmp.eq.s32.totalorder %s14, 0
    %p47 = por %p45, %p46
    %p48 = scmp.ne.s32.totalorder %s34, %s35
    %p49 = scmp.eq.s32.totalorder %s15, 1
    %p50 = por %p48, %p49
    %p52 = scmp.ne.s32.totalorder %s35, %s51
    %p53 = scmp.eq.s32.totalorder %s15, 0
    %p54 = por %p52, %p53
    %s55 = ssub.s32 %s17, %s24
    %p56 = scmp.eq.s32.totalorder %s55, 0
    %s58 = sadd.s32 %s57, 1
    %s59 = scalar_select %p56, %s57, %s58
    %p62 = pneg %p56
    %p63 = scmp.eq.s32.totalorder %s9, 1
    %p64 = por %p62, %p63
    %p65 = scmp.ne.s32.totalorder %s57, %s60
    %p66 = scmp.eq.s32.totalorder %s9, 0
    %p67 = por %p65, %p66
    %p68 = scmp.ne.s32.totalorder %s57, %s60
    %p69 = scmp.eq.s32.totalorder %s14, 1
    %p70 = por %p68, %p69
    %p71 = scmp.ne.s32.totalorder %s60, %s61
    %p72 = scmp.eq.s32.totalorder %s14, 0
    %p73 = por %p71, %p72
    %p74 = scmp.ne.s32.totalorder %s60, %s61
    %p75 = scmp.eq.s32.totalorder %s15, 1
    %p76 = por %p74, %p75
    %p78 = scmp.ne.s32.totalorder %s61, %s77
    %p79 = scmp.eq.s32.totalorder %s15, 0
    %p80 = por %p78, %p79
    %s81 = ssub.s32 %s17, %s24
    %p82 = scmp.eq.s32.totalorder %s81, 0
    %s84 = sadd.s32 %s83, 1
    %s85 = scalar_select %p82, %s83, %s84
    %p88 = pneg %p82
    %p89 = scmp.eq.s32.totalorder %s9, 1
    %p90 = por %p88, %p89
    %p91 = scmp.ne.s32.totalorder %s83, %s86
    %p92 = scmp.eq.s32.totalorder %s9, 0
    %p93 = por %p91, %p92
    %p94 = scmp.ne.s32.totalorder %s83, %s86
    %p95 = scmp.eq.s32.totalorder %s14, 1
    %p96 = por %p94, %p95
    %p97 = scmp.ne.s32.totalorder %s86, %s87
    %p98 = scmp.eq.s32.totalorder %s14, 0
    %p99 = por %p97, %p98
    %p100 = scmp.ne.s32.totalorder %s86, %s87
    %p101 = scmp.eq.s32.totalorder %s15, 1
    %p102 = por %p100, %p101
    %p104 = scmp.ne.s32.totalorder %s87, %s103
    %p105 = scmp.eq.s32.totalorder %s15, 0
    %p106 = por %p104, %p105
    %s107 = ssub.s32 %s16, %s28
    %s108 = ssub.s32 %s17, %s24
    %s109 = sor.u32 %s107, %s108
    %p110 = scmp.eq.s32.totalorder %s109, 0
    %s112 = sadd.s32 %s111, 1
    %s113 = scalar_select %p110, %s111, %s112
    %p116 = pneg %p110
    %p117 = scmp.eq.s32.totalorder %s9, 1
    %p118 = por %p116, %p117
    %p119 = scmp.ne.s32.totalorder %s111, %s114
    %p120 = scmp.eq.s32.totalorder %s9, 0
    %p121 = por %p119, %p120
    %p122 = scmp.ne.s32.totalorder %s111, %s114
    %p123 = scmp.eq.s32.totalorder %s14, 1
    %p124 = por %p122, %p123
    %p125 = scmp.ne.s32.totalorder %s114, %s115
    %p126 = scmp.eq.s32.totalorder %s14, 0
    %p127 = por %p125, %p126
    %p128 = scmp.ne.s32.totalorder %s114, %s115
    %p129 = scmp.eq.s32.totalorder %s15, 1
    %p130 = por %p128, %p129
    %p132 = scmp.ne.s32.totalorder %s115, %s131
    %p133 = scmp.eq.s32.totalorder %s15, 0
    %p134 = por %p132, %p133
    %p135 = scmp.le.s32.totalorder 1, %s9
    %p136 = scmp.lt.s32.totalorder %s9, 3
    %p137 = pnand %p135, %p136
    %p138 = pneg %p137
    // Predicated region
    $region9: #{dep_forward.7} parent=5 // pred_check
      _
    $region10: #{dep_forward.7} parent=5 // pred_check_branch
      %140 = sbr.rel (%p137) target = $region12
    $region11: #{dep_forward.7} parent=5 // pred_region
      %s141 = ssub.s32 %s9, 1
      // Predicated region
      $region13: #{dep_forward.7} parent=11 // pred_check
        %p142 = pneg %p73
      $region14: #{dep_forward.7} parent=11 // pred_check_branch
        %144 = sbr.rel (%p142) target = $region16
      $region15: #{dep_forward.7} parent=11 // pred_region
        %p145 = scmp.lt.s32.totalorder %s19, 0
        %s146 = scalar_select %p145, %s19, 0
        %s147 = smul.addr %s146, 4
        %s148 = scalar_lea.vmem %s1, %s147
      $region16: #{dep_forward.7} parent=11 // pred_fallthru
        _
      // Predicated region
      $region17: #{dep_forward.7} parent=11 // pred_check
        %p149 = pneg %p99
      $region18: #{dep_forward.7} parent=11 // pred_check_branch
        %151 = sbr.rel (%p149) target = $region20
      $region19: #{dep_forward.7} parent=11 // pred_region
        %p152 = scmp.lt.s32.totalorder %s19, 0
        %s153 = scalar_select %p152, %s19, 0
        %s154 = scalar_lea.vmem %s2, %s153
      $region20: #{dep_forward.7} parent=11 // pred_fallthru
        _
    $region12: #{dep_forward.7} parent=5 // pred_fallthru
      _
    %p155 = scmp.lt.s32.totalorder %s9, 2
    // Predicated region
    $region21: #{dep_forward.7} parent=5 // pred_check
      %p156 = pneg %p155
    $region22: #{dep_forward.7} parent=5 // pred_check_branch
      %158 = sbr.rel (%p156) target = $region24
    $region23: #{dep_forward.7} parent=5 // pred_region
      // Predicated region
      $region25: #{dep_forward.7} parent=23 // pred_check
        %p159 = pneg %p41
      $region26: #{dep_forward.7} parent=23 // pred_check_branch
        %161 = sbr.rel (%p159) target = $region28
      $region27: #{dep_forward.7} parent=23 // pred_region
        %s162 = smul.u32 32, %s16
        %p163 = scmp.lt.s32.totalorder %s162, 63
        %s164 = scalar_select %p163, %s162, 63
        %s165 = smul.addr %s164, 2
        %s166 = smul.addr %s165, 4
        %s167 = scalar_lea.vmem %s0, %s166
        %s168 = smul.u32 32, %s16
      $region28: #{dep_forward.7} parent=23 // pred_fallthru
        _
    $region24: #{dep_forward.7} parent=5 // pred_fallthru
      _
    %p169 = scmp.le.s32.totalorder 1, %s9
    %p170 = scmp.lt.s32.totalorder %s9, 3
    %p171 = pnand %p169, %p170
    %p172 = pneg %p171
    // Predicated region
    $region29: #{dep_forward.7} parent=5 // pred_check
      _
    $region30: #{dep_forward.7} parent=5 // pred_check_branch
      %174 = sbr.rel (%p171) target = $region32
    $region31: #{dep_forward.7} parent=5 // pred_region
      %s175 = ssub.s32 %s9, 1
      %s176 = smul.u32 32, %s18
      %p177 = scmp.lt.s32.totalorder %s176, 63
      %s178 = scalar_select %p177, %s176, 63
      %s179 = smul.addr %s178, 2
      %s180 = smul.addr %s179, 4
      %s181 = scalar_lea.vmem %s0, %s180
      %p182 = pneg %p47
      %p183 = pneg %p44
      %p184 = scmp.lt.s32.totalorder %s19, 0
      %s185 = scalar_select %p184, %s19, 0
      %s186 = smul.addr %s185, 4
      %s187 = scalar_lea.vmem %s1, %s186
      %p188 = pneg %p73
      %p189 = pneg %p70
      %p190 = scmp.lt.s32.totalorder %s19, 0
      %s191 = scalar_select %p190, %s19, 0
      %s192 = scalar_lea.vmem %s2, %s191
      %p193 = pneg %p99
      %p194 = pneg %p96
      %p195 = pneg %p127
      %p196 = pneg %p124
      %s197 = smul.u32 32, %s18
      %p198 = scmp.lt.s32.totalorder %s197, 63
      %s199 = scalar_select %p198, %s197, 63
      %p200 = scmp.lt.s32.totalorder %s19, 0
      %s201 = scalar_select %p200, %s19, 0
      %s202 = sadd.s32 %s201, %s199
      %s203 = smul.addr %s202, 8
      %s204 = scalar_lea.vmem %s3, %s203
      %s205 = smul.u32 32, %s18
      %p206 = scmp.lt.s32.totalorder %s205, 63
      %s207 = scalar_select %p206, %s205, 63
      %s208 = smul.addr %s207, 2
      %s209 = smul.addr %s208, 4
      %s210 = scalar_lea.vmem %s0, %s209
      %s211 = smul.u32 32, %s18
      %p212 = scmp.lt.s32.totalorder %s19, 0
      %s213 = scalar_select %p212, %s19, 0
      %s214 = smul.addr %s213, 4
      %s215 = scalar_lea.vmem %s1, %s214
      %p216 = scmp.lt.s32.totalorder %s19, 0
      %s217 = scalar_select %p216, %s19, 0
      %s218 = scalar_lea.vmem %s2, %s217
      %s219 = smul.u32 32, %s18
      %p220 = scmp.lt.s32.totalorder %s219, 63
      %s221 = scalar_select %p220, %s219, 63
      %p222 = scmp.lt.s32.totalorder %s19, 0
      %s223 = scalar_select %p222, %s19, 0
      %s224 = sadd.s32 %s223, %s221
      %s225 = smul.addr %s224, 8
      %s226 = scalar_lea.vmem %s3, %s225
      %s227 = smul.u32 32, %s18
      %v229 = vld [vmem:[%s210] sm:$0xff]
      %v230 = vld [vmem:[%s210 + $0x8] sm:$0xff]
      %v231 = vld [vmem:[%s210 + $0x10] sm:$0xff]
      %v232 = vld [vmem:[%s210 + $0x18] sm:$0xff]
      %v233 = vld [vmem:[%s210 + $0x20] sm:$0xff]
      %v234 = vld [vmem:[%s210 + $0x28] sm:$0xff]
      %v235 = vld [vmem:[%s210 + $0x30] sm:$0xff]
      %v236 = vld [vmem:[%s210 + $0x38] sm:$0xff]
      %v237 = vld [vmem:[%s210 + $0x40] sm:$0xff]
      %v238 = vld [vmem:[%s210 + $0x48] sm:$0xff]
      %v239 = vld [vmem:[%s210 + $0x50] sm:$0xff]
      %v240 = vld [vmem:[%s210 + $0x58] sm:$0xff]
      %v241 = vld [vmem:[%s210 + $0x60] sm:$0xff]
      %v242 = vld [vmem:[%s210 + $0x68] sm:$0xff]
      %v243 = vld [vmem:[%s210 + $0x70] sm:$0xff]
      %v244 = vld [vmem:[%s210 + $0x78] sm:$0xff]
      %v245 = vld [vmem:[%s210 + $0x80] sm:$0xff]
      %v246 = vld [vmem:[%s210 + $0x88] sm:$0xff]
      %v247 = vld [vmem:[%s210 + $0x90] sm:$0xff]
      %v248 = vld [vmem:[%s210 + $0x98] sm:$0xff]
      %v249 = vld [vmem:[%s210 + $0xa0] sm:$0xff]
      %v250 = vld [vmem:[%s210 + $0xa8] sm:$0xff]
      %v251 = vld [vmem:[%s210 + $0xb0] sm:$0xff]
      %v252 = vld [vmem:[%s210 + $0xb8] sm:$0xff]
      %v253 = vld [vmem:[%s210 + $0xc0] sm:$0xff]
      %v254 = vld [vmem:[%s210 + $0xc8] sm:$0xff]
      %v255 = vld [vmem:[%s210 + $0xd0] sm:$0xff]
      %v256 = vld [vmem:[%s210 + $0xd8] sm:$0xff]
      %v257 = vld [vmem:[%s210 + $0xe0] sm:$0xff]
      %v258 = vld [vmem:[%s210 + $0xe8] sm:$0xff]
      %v259 = vld [vmem:[%s210 + $0xf0] sm:$0xff]
      %v260 = vld [vmem:[%s210 + $0xf8] sm:$0xff]
      %v261 = vld [vmem:[%s215] sm:$0xf]
      %v262 = vld [vmem:[%s215 + $0x4] sm:$0xf]
      %v263 = vld [vmem:[%s215 + $0x8] sm:$0xf]
      %v264 = vld [vmem:[%s215 + $0xc] sm:$0xf]
      %v265 = vld [vmem:[%s215 + $0x10] sm:$0xf]
      %v266 = vld [vmem:[%s215 + $0x14] sm:$0xf]
      %v267 = vld [vmem:[%s215 + $0x18] sm:$0xf]
      %v268 = vld [vmem:[%s215 + $0x1c] sm:$0xf]
      %v269 = vld [vmem:[%s215 + $0x20] sm:$0xf]
      %v270 = vld [vmem:[%s215 + $0x24] sm:$0xf]
      %v271 = vld [vmem:[%s215 + $0x28] sm:$0xf]
      %v272 = vld [vmem:[%s215 + $0x2c] sm:$0xf]
      %v273 = vld [vmem:[%s215 + $0x30] sm:$0xf]
      %v274 = vld [vmem:[%s215 + $0x34] sm:$0xf]
      %v275 = vld [vmem:[%s215 + $0x38] sm:$0xf]
      %v276 = vld [vmem:[%s215 + $0x3c] sm:$0xf]
      %v277 = vld [vmem:[%s215 + $0x40] sm:$0xf]
      %v278 = vld [vmem:[%s215 + $0x44] sm:$0xf]
      %v279 = vld [vmem:[%s215 + $0x48] sm:$0xf]
      %v280 = vld [vmem:[%s215 + $0x4c] sm:$0xf]
      %v281 = vld [vmem:[%s215 + $0x50] sm:$0xf]
      %v282 = vld [vmem:[%s215 + $0x54] sm:$0xf]
      %v283 = vld [vmem:[%s215 + $0x58] sm:$0xf]
      %v284 = vld [vmem:[%s215 + $0x5c] sm:$0xf]
      %v285 = vld [vmem:[%s215 + $0x60] sm:$0xf]
      %v286 = vld [vmem:[%s215 + $0x64] sm:$0xf]
      %v287 = vld [vmem:[%s215 + $0x68] sm:$0xf]
      %v288 = vld [vmem:[%s215 + $0x6c] sm:$0xf]
      %v289 = vld [vmem:[%s215 + $0x70] sm:$0xf]
      %v290 = vld [vmem:[%s215 + $0x74] sm:$0xf]
      %v291 = vld [vmem:[%s215 + $0x78] sm:$0xf]
      %v292 = vld [vmem:[%s215 + $0x7c] sm:$0xf]
      %v293 = vld [vmem:[%s218] sm:$0x1]
      %v295 = vlaneseq
      %v296 = vshrl.u32 %v295, 7
      %v297 = vsub.s32 0, %v296
      %v298 = vrot.slane %v293, %v297
      %v332 = vunpack.c.l.b16 %v229
      %v333 = vunpack.c.h.b16 %v229
      %v334 = vunpack.c.l.b16 %v230
      %v335 = vunpack.c.h.b16 %v230
      %v336 = vunpack.c.l.b16 %v231
      %v337 = vunpack.c.h.b16 %v231
      %v338 = vunpack.c.l.b16 %v232
      %v339 = vunpack.c.h.b16 %v232
      %v340 = vunpack.c.l.b16 %v233
      %v341 = vunpack.c.h.b16 %v233
      %v342 = vunpack.c.l.b16 %v234
      %v343 = vunpack.c.h.b16 %v234
      %v344 = vunpack.c.l.b16 %v235
      %v345 = vunpack.c.h.b16 %v235
      %v346 = vunpack.c.l.b16 %v236
      %v347 = vunpack.c.h.b16 %v236
      %v348 = vunpack.c.l.b16 %v237
      %v349 = vunpack.c.h.b16 %v237
      %v350 = vunpack.c.l.b16 %v238
      %v351 = vunpack.c.h.b16 %v238
      %v352 = vunpack.c.l.b16 %v239
      %v353 = vunpack.c.h.b16 %v239
      %v354 = vunpack.c.l.b16 %v240
      %v355 = vunpack.c.h.b16 %v240
      %v356 = vunpack.c.l.b16 %v241
      %v357 = vunpack.c.h.b16 %v241
      %v358 = vunpack.c.l.b16 %v242
      %v359 = vunpack.c.h.b16 %v242
      %v360 = vunpack.c.l.b16 %v243
      %v361 = vunpack.c.h.b16 %v243
      %v362 = vunpack.c.l.b16 %v244
      %v363 = vunpack.c.h.b16 %v244
      %v364 = vunpack.c.l.b16 %v245
      %v365 = vunpack.c.h.b16 %v245
      %v366 = vunpack.c.l.b16 %v246
      %v367 = vunpack.c.h.b16 %v246
      %v368 = vunpack.c.l.b16 %v247
      %v369 = vunpack.c.h.b16 %v247
      %v370 = vunpack.c.l.b16 %v248
      %v371 = vunpack.c.h.b16 %v248
      %v372 = vunpack.c.l.b16 %v249
      %v373 = vunpack.c.h.b16 %v249
      %v374 = vunpack.c.l.b16 %v250
      %v375 = vunpack.c.h.b16 %v250
      %v376 = vunpack.c.l.b16 %v251
      %v377 = vunpack.c.h.b16 %v251
      %v378 = vunpack.c.l.b16 %v252
      %v379 = vunpack.c.h.b16 %v252
      %v380 = vunpack.c.l.b16 %v253
      %v381 = vunpack.c.h.b16 %v253
      %v382 = vunpack.c.l.b16 %v254
      %v383 = vunpack.c.h.b16 %v254
      %v384 = vunpack.c.l.b16 %v255
      %v385 = vunpack.c.h.b16 %v255
      %v386 = vunpack.c.l.b16 %v256
      %v387 = vunpack.c.h.b16 %v256
      %v388 = vunpack.c.l.b16 %v257
      %v389 = vunpack.c.h.b16 %v257
      %v390 = vunpack.c.l.b16 %v258
      %v391 = vunpack.c.h.b16 %v258
      %v392 = vunpack.c.l.b16 %v259
      %v393 = vunpack.c.h.b16 %v259
      %v394 = vunpack.c.l.b16 %v260
      %v395 = vunpack.c.h.b16 %v260
      %v396 = vpack.c.b16 %v334, %v332
      %v397 = vpack.c.b16 %v335, %v333
      %v398 = vpack.c.b16 %v338, %v336
      %v399 = vpack.c.b16 %v339, %v337
      %v400 = vpack.c.b16 %v342, %v340
      %v401 = vpack.c.b16 %v343, %v341
      %v402 = vpack.c.b16 %v346, %v344
      %v403 = vpack.c.b16 %v347, %v345
      %v404 = vpack.c.b16 %v350, %v348
      %v405 = vpack.c.b16 %v351, %v349
      %v406 = vpack.c.b16 %v354, %v352
      %v407 = vpack.c.b16 %v355, %v353
      %v408 = vpack.c.b16 %v358, %v356
      %v409 = vpack.c.b16 %v359, %v357
      %v410 = vpack.c.b16 %v362, %v360
      %v411 = vpack.c.b16 %v363, %v361
      %v412 = vpack.c.b16 %v366, %v364
      %v413 = vpack.c.b16 %v367, %v365
      %v414 = vpack.c.b16 %v370, %v368
      %v415 = vpack.c.b16 %v371, %v369
      %v416 = vpack.c.b16 %v374, %v372
      %v417 = vpack.c.b16 %v375, %v373
      %v418 = vpack.c.b16 %v378, %v376
      %v419 = vpack.c.b16 %v379, %v377
      %v420 = vpack.c.b16 %v382, %v380
      %v421 = vpack.c.b16 %v383, %v381
      %v422 = vpack.c.b16 %v386, %v384
      %v423 = vpack.c.b16 %v387, %v385
      %v424 = vpack.c.b16 %v390, %v388
      %v425 = vpack.c.b16 %v391, %v389
      %v426 = vpack.c.b16 %v394, %v392
      %v427 = vpack.c.b16 %v395, %v393
      %v492 = vunpack.c.l.b16 %v261
      %v493 = vunpack.c.l.b16 %v262
      %v494 = vunpack.c.l.b16 %v263
      %v495 = vunpack.c.l.b16 %v264
      %v496 = vunpack.c.l.b16 %v265
      %v497 = vunpack.c.l.b16 %v266
      %v498 = vunpack.c.l.b16 %v267
      %v499 = vunpack.c.l.b16 %v268
      %v500 = vunpack.c.l.b16 %v269
      %v501 = vunpack.c.l.b16 %v270
      %v502 = vunpack.c.l.b16 %v271
      %v503 = vunpack.c.l.b16 %v272
      %v504 = vunpack.c.l.b16 %v273
      %v505 = vunpack.c.l.b16 %v274
      %v506 = vunpack.c.l.b16 %v275
      %v507 = vunpack.c.l.b16 %v276
      %v508 = vunpack.c.l.b16 %v277
      %v509 = vunpack.c.l.b16 %v278
      %v510 = vunpack.c.l.b16 %v279
      %v511 = vunpack.c.l.b16 %v280
      %v512 = vunpack.c.l.b16 %v281
      %v513 = vunpack.c.l.b16 %v282
      %v514 = vunpack.c.l.b16 %v283
      %v515 = vunpack.c.l.b16 %v284
      %v516 = vunpack.c.l.b16 %v285
      %v517 = vunpack.c.l.b16 %v286
      %v518 = vunpack.c.l.b16 %v287
      %v519 = vunpack.c.l.b16 %v288
      %v520 = vunpack.c.l.b16 %v289
      %v521 = vunpack.c.l.b16 %v290
      %v522 = vunpack.c.l.b16 %v291
      %v523 = vunpack.c.l.b16 %v292
      %v524 = vpack.c.b16 %v493, %v492
      %v525 = vpack.c.b16 %v495, %v494
      %v526 = vpack.c.b16 %v497, %v496
      %v527 = vpack.c.b16 %v499, %v498
      %v528 = vpack.c.b16 %v501, %v500
      %v529 = vpack.c.b16 %v503, %v502
      %v530 = vpack.c.b16 %v505, %v504
      %v531 = vpack.c.b16 %v507, %v506
      %v532 = vpack.c.b16 %v509, %v508
      %v533 = vpack.c.b16 %v511, %v510
      %v534 = vpack.c.b16 %v513, %v512
      %v535 = vpack.c.b16 %v515, %v514
      %v536 = vpack.c.b16 %v517, %v516
      %v537 = vpack.c.b16 %v519, %v518
      %v538 = vpack.c.b16 %v521, %v520
      %v539 = vpack.c.b16 %v523, %v522
      %556 = vmatprep.subr.bf16.mxu0 0
      %557 = vmatpush1.bf16.msra.mxu0 %v531
      %558 = vmatprep.subr.bf16.mxu0 0
      %559 = vmatpush1.bf16.msra.mxu0 %v530
      %560 = vmatprep.subr.bf16.mxu0 0
      %561 = vmatpush1.bf16.msra.mxu0 %v529
      %562 = vmatprep.subr.bf16.mxu0 0
      %563 = vmatpush1.bf16.msra.mxu0 %v528
      %564 = vmatprep.subr.bf16.mxu0 0
      %565 = vmatpush1.bf16.msra.mxu0 %v527
      %566 = vmatprep.subr.bf16.mxu0 0
      %567 = vmatpush1.bf16.msra.mxu0 %v526
      %568 = vmatprep.subr.bf16.mxu0 0
      %569 = vmatpush1.bf16.msra.mxu0 %v525
      %570 = vmatprep.subr.bf16.mxu0 0
      %571 = vmatpush1.bf16.msra.mxu0 %v524
      %572 = vmatprep.subr.bf16.mxu0 0
      %573 = vmatpush2.bf16.msra.mxu0 %v539
      %574 = vmatprep.subr.bf16.mxu0 0
      %575 = vmatpush2.bf16.msra.mxu0 %v538
      %576 = vmatprep.subr.bf16.mxu0 0
      %577 = vmatpush2.bf16.msra.mxu0 %v537
      %578 = vmatprep.subr.bf16.mxu0 0
      %579 = vmatpush2.bf16.msra.mxu0 %v536
      %580 = vmatprep.subr.bf16.mxu0 0
      %581 = vmatpush2.bf16.msra.mxu0 %v535
      %582 = vmatprep.subr.bf16.mxu0 0
      %583 = vmatpush2.bf16.msra.mxu0 %v534
      %584 = vmatprep.subr.bf16.mxu0 0
      %585 = vmatpush2.bf16.msra.mxu0 %v533
      %586 = vmatprep.subr.bf16.mxu0 0
      %587 = vmatpush2.bf16.msra.mxu0 %v532
      %588 = vmatprep.mubr.bf16.mxu0 %v397
      %589 = vmatmul.mubr.bf16.gmra.mxu0 %v396
      %v590 = vpop.f32.mrf.mxu0
      %v591 = vadd.f32 %v298, %v590
      %v592 = vpop.f32.mrf.mxu0
      %v593 = vpop.f32.mrf.mxu0
      %v594 = vadd.f32 %v298, %v593
      %v595 = vpop.f32.mrf.mxu0
      %596 = vmatprep.mubr.bf16.mxu0 %v399
      %597 = vmatmul.mubr.bf16.gmra.mxu0 %v398
      %v598 = vpop.f32.mrf.mxu0
      %v599 = vadd.f32 %v298, %v598
      %v600 = vpop.f32.mrf.mxu0
      %v601 = vpop.f32.mrf.mxu0
      %v602 = vadd.f32 %v298, %v601
      %v603 = vpop.f32.mrf.mxu0
      %604 = vmatprep.mubr.bf16.mxu0 %v401
      %605 = vmatmul.mubr.bf16.gmra.mxu0 %v400
      %v606 = vpop.f32.mrf.mxu0
      %v607 = vadd.f32 %v298, %v606
      %v608 = vpop.f32.mrf.mxu0
      %v609 = vpop.f32.mrf.mxu0
      %v610 = vadd.f32 %v298, %v609
      %v611 = vpop.f32.mrf.mxu0
      %612 = vmatprep.mubr.bf16.mxu0 %v403
      %613 = vmatmul.mubr.bf16.gmra.mxu0 %v402
      %v614 = vpop.f32.mrf.mxu0
      %v615 = vadd.f32 %v298, %v614
      %v616 = vpop.f32.mrf.mxu0
      %v617 = vpop.f32.mrf.mxu0
      %v618 = vadd.f32 %v298, %v617
      %v619 = vpop.f32.mrf.mxu0
      %620 = vmatprep.mubr.bf16.mxu0 %v405
      %621 = vmatmul.mubr.bf16.gmra.mxu0 %v404
      %v622 = vpop.f32.mrf.mxu0
      %v623 = vadd.f32 %v298, %v622
      %v624 = vpop.f32.mrf.mxu0
      %v625 = vpop.f32.mrf.mxu0
      %v626 = vadd.f32 %v298, %v625
      %v627 = vpop.f32.mrf.mxu0
      %628 = vmatprep.mubr.bf16.mxu0 %v407
      %629 = vmatmul.mubr.bf16.gmra.mxu0 %v406
      %v630 = vpop.f32.mrf.mxu0
      %v631 = vadd.f32 %v298, %v630
      %v632 = vpop.f32.mrf.mxu0
      %v633 = vpop.f32.mrf.mxu0
      %v634 = vadd.f32 %v298, %v633
      %v635 = vpop.f32.mrf.mxu0
      %636 = vmatprep.mubr.bf16.mxu0 %v409
      %637 = vmatmul.mubr.bf16.gmra.mxu0 %v408
      %v638 = vpop.f32.mrf.mxu0
      %v639 = vadd.f32 %v298, %v638
      %v640 = vpop.f32.mrf.mxu0
      %v641 = vpop.f32.mrf.mxu0
      %v642 = vadd.f32 %v298, %v641
      %v643 = vpop.f32.mrf.mxu0
      %644 = vmatprep.mubr.bf16.mxu0 %v411
      %645 = vmatmul.mubr.bf16.gmra.mxu0 %v410
      %v646 = vpop.f32.mrf.mxu0
      %v647 = vadd.f32 %v298, %v646
      %v648 = vpop.f32.mrf.mxu0
      %v649 = vpop.f32.mrf.mxu0
      %v650 = vadd.f32 %v298, %v649
      %v651 = vpop.f32.mrf.mxu0
      %652 = vmatprep.mubr.bf16.mxu0 %v413
      %653 = vmatmul.mubr.bf16.gmra.mxu0 %v412
      %v654 = vpop.f32.mrf.mxu0
      %v655 = vadd.f32 %v298, %v654
      %v656 = vpop.f32.mrf.mxu0
      %v657 = vpop.f32.mrf.mxu0
      %v658 = vadd.f32 %v298, %v657
      %v659 = vpop.f32.mrf.mxu0
      %660 = vmatprep.mubr.bf16.mxu0 %v415
      %661 = vmatmul.mubr.bf16.gmra.mxu0 %v414
      %v662 = vpop.f32.mrf.mxu0
      %v663 = vadd.f32 %v298, %v662
      %v664 = vpop.f32.mrf.mxu0
      %v665 = vpop.f32.mrf.mxu0
      %v666 = vadd.f32 %v298, %v665
      %v667 = vpop.f32.mrf.mxu0
      %668 = vmatprep.mubr.bf16.mxu0 %v417
      %669 = vmatmul.mubr.bf16.gmra.mxu0 %v416
      %v670 = vpop.f32.mrf.mxu0
      %v671 = vadd.f32 %v298, %v670
      %v672 = vpop.f32.mrf.mxu0
      %v673 = vpop.f32.mrf.mxu0
      %v674 = vadd.f32 %v298, %v673
      %v675 = vpop.f32.mrf.mxu0
      %676 = vmatprep.mubr.bf16.mxu0 %v419
      %677 = vmatmul.mubr.bf16.gmra.mxu0 %v418
      %v678 = vpop.f32.mrf.mxu0
      %v679 = vadd.f32 %v298, %v678
      %v680 = vpop.f32.mrf.mxu0
      %v681 = vpop.f32.mrf.mxu0
      %v682 = vadd.f32 %v298, %v681
      %v683 = vpop.f32.mrf.mxu0
      %684 = vmatprep.mubr.bf16.mxu0 %v421
      %685 = vmatmul.mubr.bf16.gmra.mxu0 %v420
      %v686 = vpop.f32.mrf.mxu0
      %v687 = vadd.f32 %v298, %v686
      %v688 = vpop.f32.mrf.mxu0
      %v689 = vpop.f32.mrf.mxu0
      %v690 = vadd.f32 %v298, %v689
      %v691 = vpop.f32.mrf.mxu0
      %692 = vmatprep.mubr.bf16.mxu0 %v423
      %693 = vmatmul.mubr.bf16.gmra.mxu0 %v422
      %v694 = vpop.f32.mrf.mxu0
      %v695 = vadd.f32 %v298, %v694
      %v696 = vpop.f32.mrf.mxu0
      %v697 = vpop.f32.mrf.mxu0
      %v698 = vadd.f32 %v298, %v697
      %v699 = vpop.f32.mrf.mxu0
      %700 = vmatprep.mubr.bf16.mxu0 %v425
      %701 = vmatmul.mubr.bf16.gmra.mxu0 %v424
      %v702 = vpop.f32.mrf.mxu0
      %v703 = vadd.f32 %v298, %v702
      %v704 = vpop.f32.mrf.mxu0
      %v705 = vpop.f32.mrf.mxu0
      %v706 = vadd.f32 %v298, %v705
      %v707 = vpop.f32.mrf.mxu0
      %708 = vmatprep.mubr.bf16.mxu0 %v427
      %709 = vmatmul.mubr.bf16.gmra.mxu0 %v426
      %v710 = vpop.f32.mrf.mxu0
      %v711 = vadd.f32 %v298, %v710
      %v712 = vpop.f32.mrf.mxu0
      %v713 = vpop.f32.mrf.mxu0
      %v714 = vadd.f32 %v298, %v713
      %v715 = vpop.f32.mrf.mxu0
      %716 = vdwg.mxu0
      %vm717 = vcmp.ge.f32.partialorder %v591, 0.0
      %vm718 = vcmp.ge.f32.partialorder %v594, 0.0
      %vm719 = vcmp.ge.f32.partialorder %v599, 0.0
      %vm720 = vcmp.ge.f32.partialorder %v602, 0.0
      %vm721 = vcmp.ge.f32.partialorder %v607, 0.0
      %vm722 = vcmp.ge.f32.partialorder %v610, 0.0
      %vm723 = vcmp.ge.f32.partialorder %v615, 0.0
      %vm724 = vcmp.ge.f32.partialorder %v618, 0.0
      %vm725 = vcmp.ge.f32.partialorder %v623, 0.0
      %vm726 = vcmp.ge.f32.partialorder %v626, 0.0
      %vm727 = vcmp.ge.f32.partialorder %v631, 0.0
      %vm728 = vcmp.ge.f32.partialorder %v634, 0.0
      %vm729 = vcmp.ge.f32.partialorder %v639, 0.0
      %vm730 = vcmp.ge.f32.partialorder %v642, 0.0
      %vm731 = vcmp.ge.f32.partialorder %v647, 0.0
      %vm732 = vcmp.ge.f32.partialorder %v650, 0.0
      %vm733 = vcmp.ge.f32.partialorder %v655, 0.0
      %vm734 = vcmp.ge.f32.partialorder %v658, 0.0
      %vm735 = vcmp.ge.f32.partialorder %v663, 0.0
      %vm736 = vcmp.ge.f32.partialorder %v666, 0.0
      %vm737 = vcmp.ge.f32.partialorder %v671, 0.0
      %vm738 = vcmp.ge.f32.partialorder %v674, 0.0
      %vm739 = vcmp.ge.f32.partialorder %v679, 0.0
      %vm740 = vcmp.ge.f32.partialorder %v682, 0.0
      %vm741 = vcmp.ge.f32.partialorder %v687, 0.0
      %vm742 = vcmp.ge.f32.partialorder %v690, 0.0
      %vm743 = vcmp.ge.f32.partialorder %v695, 0.0
      %vm744 = vcmp.ge.f32.partialorder %v698, 0.0
      %vm745 = vcmp.ge.f32.partialorder %v703, 0.0
      %vm746 = vcmp.ge.f32.partialorder %v706, 0.0
      %vm747 = vcmp.ge.f32.partialorder %v711, 0.0
      %vm748 = vcmp.ge.f32.partialorder %v714, 0.0
      %v749 = vmul.f32 %v591, 0.01
      %v750 = vmul.f32 %v594, 0.01
      %v751 = vmul.f32 %v599, 0.01
      %v752 = vmul.f32 %v602, 0.01
      %v753 = vmul.f32 %v607, 0.01
      %v754 = vmul.f32 %v610, 0.01
      %v755 = vmul.f32 %v615, 0.01
      %v756 = vmul.f32 %v618, 0.01
      %v757 = vmul.f32 %v623, 0.01
      %v758 = vmul.f32 %v626, 0.01
      %v759 = vmul.f32 %v631, 0.01
      %v760 = vmul.f32 %v634, 0.01
      %v761 = vmul.f32 %v639, 0.01
      %v762 = vmul.f32 %v642, 0.01
      %v763 = vmul.f32 %v647, 0.01
      %v764 = vmul.f32 %v650, 0.01
      %v765 = vmul.f32 %v655, 0.01
      %v766 = vmul.f32 %v658, 0.01
      %v767 = vmul.f32 %v663, 0.01
      %v768 = vmul.f32 %v666, 0.01
      %v769 = vmul.f32 %v671, 0.01
      %v770 = vmul.f32 %v674, 0.01
      %v771 = vmul.f32 %v679, 0.01
      %v772 = vmul.f32 %v682, 0.01
      %v773 = vmul.f32 %v687, 0.01
      %v774 = vmul.f32 %v690, 0.01
      %v775 = vmul.f32 %v695, 0.01
      %v776 = vmul.f32 %v698, 0.01
      %v777 = vmul.f32 %v703, 0.01
      %v778 = vmul.f32 %v706, 0.01
      %v779 = vmul.f32 %v711, 0.01
      %v780 = vmul.f32 %v714, 0.01
      %v781 = vsel %vm717, %v591, %v749
      %v782 = vsel %vm718, %v594, %v750
      %v783 = vsel %vm719, %v599, %v751
      %v784 = vsel %vm720, %v602, %v752
      %v785 = vsel %vm721, %v607, %v753
      %v786 = vsel %vm722, %v610, %v754
      %v787 = vsel %vm723, %v615, %v755
      %v788 = vsel %vm724, %v618, %v756
      %v789 = vsel %vm725, %v623, %v757
      %v790 = vsel %vm726, %v626, %v758
      %v791 = vsel %vm727, %v631, %v759
      %v792 = vsel %vm728, %v634, %v760
      %v793 = vsel %vm729, %v639, %v761
      %v794 = vsel %vm730, %v642, %v762
      %v795 = vsel %vm731, %v647, %v763
      %v796 = vsel %vm732, %v650, %v764
      %v797 = vsel %vm733, %v655, %v765
      %v798 = vsel %vm734, %v658, %v766
      %v799 = vsel %vm735, %v663, %v767
      %v800 = vsel %vm736, %v666, %v768
      %v801 = vsel %vm737, %v671, %v769
      %v802 = vsel %vm738, %v674, %v770
      %v803 = vsel %vm739, %v679, %v771
      %v804 = vsel %vm740, %v682, %v772
      %v805 = vsel %vm741, %v687, %v773
      %v806 = vsel %vm742, %v690, %v774
      %v807 = vsel %vm743, %v695, %v775
      %v808 = vsel %vm744, %v698, %v776
      %v809 = vsel %vm745, %v703, %v777
      %v810 = vsel %vm746, %v706, %v778
      %v811 = vsel %vm747, %v711, %v779
      %v812 = vsel %vm748, %v714, %v780
      %813 = vst [vmem:[%s226] sm:$0xff] %v781
      %814 = vst [vmem:[%s226 + $0x8] sm:$0xff] %v782
      %815 = vst [vmem:[%s226 + $0x10] sm:$0xff] %v783
      %816 = vst [vmem:[%s226 + $0x18] sm:$0xff] %v784
      %817 = vst [vmem:[%s226 + $0x20] sm:$0xff] %v785
      %818 = vst [vmem:[%s226 + $0x28] sm:$0xff] %v786
      %819 = vst [vmem:[%s226 + $0x30] sm:$0xff] %v787
      %820 = vst [vmem:[%s226 + $0x38] sm:$0xff] %v788
      %821 = vst [vmem:[%s226 + $0x40] sm:$0xff] %v789
      %822 = vst [vmem:[%s226 + $0x48] sm:$0xff] %v790
      %823 = vst [vmem:[%s226 + $0x50] sm:$0xff] %v791
      %824 = vst [vmem:[%s226 + $0x58] sm:$0xff] %v792
      %825 = vst [vmem:[%s226 + $0x60] sm:$0xff] %v793
      %826 = vst [vmem:[%s226 + $0x68] sm:$0xff] %v794
      %827 = vst [vmem:[%s226 + $0x70] sm:$0xff] %v795
      %828 = vst [vmem:[%s226 + $0x78] sm:$0xff] %v796
      %829 = vst [vmem:[%s226 + $0x80] sm:$0xff] %v797
      %830 = vst [vmem:[%s226 + $0x88] sm:$0xff] %v798
      %831 = vst [vmem:[%s226 + $0x90] sm:$0xff] %v799
      %832 = vst [vmem:[%s226 + $0x98] sm:$0xff] %v800
      %833 = vst [vmem:[%s226 + $0xa0] sm:$0xff] %v801
      %834 = vst [vmem:[%s226 + $0xa8] sm:$0xff] %v802
      %835 = vst [vmem:[%s226 + $0xb0] sm:$0xff] %v803
      %836 = vst [vmem:[%s226 + $0xb8] sm:$0xff] %v804
      %837 = vst [vmem:[%s226 + $0xc0] sm:$0xff] %v805
      %838 = vst [vmem:[%s226 + $0xc8] sm:$0xff] %v806
      %839 = vst [vmem:[%s226 + $0xd0] sm:$0xff] %v807
      %840 = vst [vmem:[%s226 + $0xd8] sm:$0xff] %v808
      %841 = vst [vmem:[%s226 + $0xe0] sm:$0xff] %v809
      %842 = vst [vmem:[%s226 + $0xe8] sm:$0xff] %v810
      %843 = vst [vmem:[%s226 + $0xf0] sm:$0xff] %v811
      %844 = vst [vmem:[%s226 + $0xf8] sm:$0xff] %v812
      %s845 = smul.u32 32, %s18
      %p846 = scmp.lt.s32.totalorder %s845, 63
      %s847 = scalar_select %p846, %s845, 63
      %p848 = scmp.lt.s32.totalorder %s19, 0
      %s849 = scalar_select %p848, %s19, 0
      %s850 = sadd.s32 %s849, %s847
      %s851 = smul.addr %s850, 8
      %s852 = scalar_lea.vmem %s3, %s851
      // Predicated region
      $region33: #{dep_forward.7} parent=31 // pred_check
        %p853 = pneg %p124
      $region34: #{dep_forward.7} parent=31 // pred_check_branch
        %855 = sbr.rel (%p853) target = $region36
      $region35: #{dep_forward.7} parent=31 // pred_region
        %s856 = smul.u32 32, %s18
      $region36: #{dep_forward.7} parent=31 // pred_fallthru
        _
    $region32: #{dep_forward.7} parent=5 // pred_fallthru
      _
    %p857 = scmp.le.s32.totalorder 2, %s9
    // Predicated region
    $region37: #{dep_forward.7} parent=5 // pred_check
      %p858 = pneg %p857
    $region38: #{dep_forward.7} parent=5 // pred_check_branch
      %860 = sbr.rel (%p858) target = $region40
    $region39: #{dep_forward.7} parent=5 // pred_region
      %s861 = ssub.s32 %s9, 2
      // Predicated region
      $region41: #{dep_forward.7} parent=39 // pred_check
        %p862 = pneg %p130
      $region42: #{dep_forward.7} parent=39 // pred_check_branch
        %864 = sbr.rel (%p862) target = $region44
      $region43: #{dep_forward.7} parent=39 // pred_region
        %s865 = smul.u32 32, %s20
        %p866 = scmp.lt.s32.totalorder %s865, 63
        %s867 = scalar_select %p866, %s865, 63
        %p868 = scmp.lt.s32.totalorder %s21, 0
        %s869 = scalar_select %p868, %s21, 0
        %s870 = sadd.s32 %s869, %s867
        %s871 = smul.addr %s870, 8
        %s872 = scalar_lea.vmem %s3, %s871
      $region44: #{dep_forward.7} parent=39 // pred_fallthru
        _
    $region40: #{dep_forward.7} parent=5 // pred_fallthru
      _
  $region6: #{dep_forward.7} parent=0 // loop_footer
    %s13 = sadd.s32 1, %s9
  $region7: #{dep_forward.7} parent=0 // loop_footer_branch
    %8 = sbr.rel target = $region3
  $region8: #{dep_forward.7} parent=0 // loop_exit
    _

</llo_original>
